<compile_context>
chip_gen: v7x
topology: tpu7x:2x2x1
jax: 0.10.0
libtpu: 0.0.40
codegen_flags: <defaults>
</compile_context>

<pallas_src>
import math
import functools

import numpy as np
import jax
import jax.numpy as jnp
from jax.experimental import pallas as pl
from jax.experimental.pallas import tpu as pltpu


LATENT_DIM = 32


# ----------------------------------------------------------------------------
# Activations
# ----------------------------------------------------------------------------
def _leaky_relu_02(x):
    return jnp.where(x > 0, x, 0.2 * x)


def _relu(x):
    return jnp.maximum(x, 0.0)


def _sigmoid_exact(x):
    # Exact divide (single tiny [B, 7] tile on a cold path); guarantees the
    # frozen gaitnet sees c strictly inside (0, 1).
    return 1.0 / (1.0 + jnp.exp(-x))


# ----------------------------------------------------------------------------
# Parameter init (mimics torch.nn.Linear default U(-1/sqrt(in), 1/sqrt(in)))
# ----------------------------------------------------------------------------
def _init_linear(key, in_dim, out_dim):
    kw, kb = jax.random.split(key)
    bound = 1.0 / math.sqrt(in_dim)
    w = jax.random.uniform(kw, (in_dim, out_dim), jnp.float32, -bound, bound)
    b = jax.random.uniform(kb, (out_dim,), jnp.float32, -bound, bound)
    return w, b


def _init_mlp(key, dims):
    keys = jax.random.split(key, len(dims) - 1)
    return [_init_linear(k, di, do) for k, di, do in zip(keys, dims[:-1], dims[1:])]


def init_advanced_vae_params(key, pose_dof, frame_num, num_known_param,
                             num_paramstate, latent_dim=LATENT_DIM):
    MD = pose_dof * frame_num
    ENC_IN = MD + num_known_param
    NK = num_known_param
    NPAR = num_paramstate

    k_enc, k_mu, k_var, k_pre, k_dec = jax.random.split(key, 5)

    encoder = _init_mlp(k_enc, [ENC_IN, 256, 256, 256])
    w_mu, b_mu = _init_linear(k_mu, 256, latent_dim)
    w_var, b_var = _init_linear(k_var, 256, latent_dim)
    # Fuse fc_mu / fc_var into one 256 -> 2*latent head (single MXU call).
    head = (jnp.concatenate([w_mu, w_var], axis=1),
            jnp.concatenate([b_mu, b_var], axis=0))
    pre_decoder = _init_mlp(k_pre, [latent_dim + NK, 256, 256, 256, NPAR - NK])
    decoder = _init_mlp(k_dec, [NPAR + 2, 512, 512, 512, pose_dof])

    layers = encoder + [head] + pre_decoder + decoder     # 12 logical layers
    out_dims = tuple(int(b.shape[0]) for _, b in layers)
    dims = [(int(w.shape[0]), int(w.shape[1])) for w, _ in layers]

    bf = lambda w: w.astype(jnp.bfloat16)
    ref_layers = [(bf(w), b) for w, b in layers]           # for the JAX reference

    # --- kernel-side weight packing (bf16), ragged-K first layers split ---
    w_e0 = bf(layers[0][0])            # [ENC_IN, 256]
    w_p0 = bf(layers[4][0])            # [latent+NK, 256]
    w_d0 = bf(layers[8][0])            # [NPAR+2, 512]
    front_weights = (
        w_e0[:MD], w_e0[MD:ENC_IN],                        # enc0 split
        bf(layers[1][0]), bf(layers[2][0]), bf(layers[3][0]),
        w_p0[:latent_dim], w_p0[latent_dim:latent_dim + NK],  # pre0 split
        bf(layers[5][0]), bf(layers[6][0]), bf(layers[7][0]),
        w_d0[:NK], w_d0[NK:NPAR], w_d0[NPAR:NPAR + 2],     # dec0 split (known|cpart|phi)
        bf(layers[11][0]),                                 # dec3 [512, pose_dof]
    )
    # Big frozen-decoder matrices -> HBM, manually prefetched inside the kernel.
    hbm_weights = (bf(layers[9][0]), bf(layers[10][0]))    # two [512, 512]

    # All biases packed in one f32 array (one DMA).
    max_out = max(out_dims)
    biases = np.zeros((len(layers), max_out), np.float32)
    for i, (_, b) in enumerate(layers):
        biases[i, : b.shape[0]] = np.asarray(b)
    biases = jnp.asarray(biases)

    # phi table: phi[i] = [sin(4*pi*i/F), cos(4*pi*i/F)]
    i = np.arange(frame_num, dtype=np.float32)
    angle = 4.0 * math.pi * (i / frame_num)
    phi = jnp.asarray(np.stack([np.sin(angle), np.cos(angle)], axis=1))

    return {
        "front_weights": front_weights,
        "hbm_weights": hbm_weights,
        "biases": biases,
        "phi": phi,
        "ref_layers": ref_layers,
        "out_dims": out_dims,
        "enc_dims": dims[:4],
        "pre_dims": dims[4:8],
        "dec_dims": dims[8:12],
        "n_front": len(front_weights),
        "latent_dim": latent_dim,
        "pose_dof": pose_dof,
        "frame_num": frame_num,
        "num_known_param": NK,
        "num_paramstate": NPAR,
        "motion_dim": MD,
    }


# ----------------------------------------------------------------------------
# Fused forward kernel
# ----------------------------------------------------------------------------
def _make_fused_kernel(cfg):
    LD = cfg["latent_dim"]
    NK = cfg["num_known_param"]
    PD = cfg["pose_dof"]
    F = cfg["frame_num"]
    MD = cfg["motion_dim"]
    out_dims = cfg["out_dims"]
    n_front = cfg["n_front"]

    def kernel(motion_ref, eps_ref, phirep_ref, rep_ref, bias_ref, *rest):
        front = rest[:n_front]
        d1_hbm, d2_hbm = rest[n_front:n_front + 2]
        recon_ref, head_ref, cpart_ref = rest[n_front + 2:n_front + 5]
        d1_buf, d2_buf, dma_sem = rest[n_front + 5:n_front + 8]

        (w_e0m, w_e0k, w_e1, w_e2, w_head,
         w_p0z, w_p0k, w_p1, w_p2, w_p3,
         w_d0k, w_d0c, w_d0p, w_d3) = front

        # Kick off HBM->VMEM prefetch of the two 512x512 decoder weights so
        # the DMA is hidden behind encoder / pre_decoder compute.
        cp1 = pltpu.make_async_copy(d1_hbm, d1_buf, dma_sem.at[0])
        cp2 = pltpu.make_async_copy(d2_hbm, d2_buf, dma_sem.at[1])
        cp1.start()
        cp2.start()

        def mm(h, w_ref):
            # bf16 MXU operands, f32 accumulation; bias/activation stay f32.
            return jnp.dot(h.astype(jnp.bfloat16), w_ref[...],
                           preferred_element_type=jnp.float32)

        def bias(li):
            return bias_ref[li:li + 1, :out_dims[li]]

        B = motion_ref.shape[0]
        motion = motion_ref[:, :MD]                       # [B, MD]   (K=128 clean)
        known = motion_ref[:, MD:MD + NK]                 # [B, NK]

        # ---- encoder + fused mu/log_var head ----
        h = _leaky_relu_02(mm(motion, w_e0m) + mm(known, w_e0k) + bias(0))
        h = _leaky_relu_02(mm(h, w_e1) + bias(1))
        h = _leaky_relu_02(mm(h, w_e2) + bias(2))
        head = mm(h, w_head) + bias(3)                    # [B, 2*LD]
        head_ref[...] = head.astype(head_ref.dtype)

        # ---- reparameterize ----
        mu = head[:, :LD]
        log_var = head[:, LD:2 * LD]
        z = eps_ref[...] * jnp.exp(0.5 * log_var) + mu    # [B, LD]

        # ---- pre_decoder (first layer split: z K=32 clean + known K=3) ----
        h = _leaky_relu_02(mm(z, w_p0z) + mm(known, w_p0k) + bias(4))
        h = _leaky_relu_02(mm(h, w_p1) + bias(5))
        h = _leaky_relu_02(mm(h, w_p2) + bias(6))
        c_part = _sigmoid_exact(mm(h, w_p3) + bias(7))    # [B, NPAR-NK]
        cpart_ref[...] = c_part.astype(cpart_ref.dtype)

        # ---- frozen gaitnet decoder ----
        # Layer 0 via algebraic split: frame-replicate the (bf16) c inputs with
        # an exact one-hot matmul (row f*B+b <- b), phi_rep is a frame-major
        # constant.  No per-frame concats, no ragged K=12 matmul.
        rep = rep_ref[...]                                # [F*B, B] bf16 one-hot
        known_rep = jnp.dot(rep, known.astype(jnp.bfloat16),
                            preferred_element_type=jnp.float32)   # [F*B, NK]
        cpart_rep = jnp.dot(rep, c_part.astype(jnp.bfloat16),
                            preferred_element_type=jnp.float32)   # [F*B, NPAR-NK]
        h = _relu(mm(known_rep, w_d0k) + mm(cpart_rep, w_d0c)
                  + mm(phirep_ref[...], w_d0p) + bias(8))          # [F*B, 512]

        cp1.wait()
        h = _relu(mm(h, d1_buf) + bias(9))
        cp2.wait()
        h = _relu(mm(h, d2_buf) + bias(10))
        out = mm(h, w_d3) + bias(11)                      # [F*B, PD]

        # Lane-dense [B, F*PD] output assembled in vregs: one store, no XLA
        # transpose/reshape afterwards.
        recon = jnp.concatenate(
            [out[f * B:(f + 1) * B, :] for f in range(F)], axis=1)
        recon_ref[...] = recon.astype(recon_ref.dtype)

    return kernel


def advanced_vae_forward(params, motion, eps):
    B = motion.shape[0]
    LD = params["latent_dim"]
    NK = params["num_known_param"]
    NPAR = params["num_paramstate"]
    PD = params["pose_dof"]
    F = params["frame_num"]
    MD = params["motion_dim"]

    # Small constants (become compile-time constants under jit).
    phi_rep = jnp.repeat(params["phi"], B, axis=0)                 # [F*B, 2] frame-major
    rep = jnp.tile(jnp.eye(B, dtype=jnp.bfloat16), (F, 1))         # [F*B, B] one-hot

    front = params["front_weights"]
    hbm_w = params["hbm_weights"]
    n_front = len(front)

    vmem = pl.BlockSpec(memory_space=pltpu.MemorySpace.VMEM)
    anyspec = pl.BlockSpec(memory_space=pl.ANY)

    flops = (2 * B * sum(k * n for k, n in params["enc_dims"] + params["pre_dims"])
             + 2 * F * B * sum(k * n for k, n in params["dec_dims"]))
    weight_bytes = sum(int(w.size) * w.dtype.itemsize for w in front + hbm_w)
    io_bytes = 4 * (motion.size + eps.size + phi_rep.size + params["biases"].size
                    + B * F * PD + B * 2 * LD + B * (NPAR - NK)) + 2 * rep.size
    cost = pl.CostEstimate(flops=int(flops),
                           transcendentals=int(B * (LD + NPAR)),
                           bytes_accessed=int(weight_bytes + io_bytes))

    kernel = _make_fused_kernel(params)
    recon, head, c_part = pl.pallas_call(
        kernel,
        out_shape=(
            jax.ShapeDtypeStruct((B, F * PD), jnp.float32),
            jax.ShapeDtypeStruct((B, 2 * LD), jnp.float32),
            jax.ShapeDtypeStruct((B, NPAR - NK), jnp.float32),
        ),
        in_specs=[vmem] * 5 + [vmem] * n_front + [anyspec] * len(hbm_w),
        out_specs=(vmem, vmem, vmem),
        scratch_shapes=[
            pltpu.VMEM(hbm_w[0].shape, hbm_w[0].dtype),
            pltpu.VMEM(hbm_w[1].shape, hbm_w[1].dtype),
            pltpu.SemaphoreType.DMA((2,)),
        ],
        compiler_params=pltpu.CompilerParams(vmem_limit_bytes=32 * 1024 * 1024),
        cost_estimate=cost,
    )(motion, eps, phi_rep, rep, params["biases"], *front, *hbm_w)

    # Free XLA ops in the wrapper (per perf review): slice head, rebuild c.
    known = motion[:, MD:MD + NK]
    mu = head[:, :LD]
    log_var = head[:, LD:]
    c = jnp.concatenate([known, c_part], axis=1)
    return motion[:, :MD], recon, mu, log_var, c


# ----------------------------------------------------------------------------
# Pure-JAX reference (same bf16 weights / same eps) for a correctness check
# ----------------------------------------------------------------------------
def _reference_forward(params, motion, eps):
    LD = params["latent_dim"]
    NK = params["num_known_param"]
    PD = params["pose_dof"]
    F = params["frame_num"]
    MD = params["motion_dim"]
    layers = params["ref_layers"]

    def lin(x, i, act=None):
        w, b = layers[i]
        y = jnp.dot(x.astype(jnp.bfloat16), w,
                    preferred_element_type=jnp.float32) + b
        return act(y) if act is not None else y

    h = motion
    for i in range(3):
        h = lin(h, i, _leaky_relu_02)
    head = lin(h, 3)
    mu, log_var = head[:, :LD], head[:, LD:]

    known = motion[:, -NK:]
    z = eps * jnp.exp(0.5 * log_var) + mu
    h = jnp.concatenate([z, known], axis=1)
    for i in range(4, 7):
        h = lin(h, i, _leaky_relu_02)
    c = jnp.concatenate([known, jax.nn.sigmoid(lin(h, 7))], axis=1)

    B = motion.shape[0]
    phi = params["phi"]
    inp = jnp.concatenate(
        [jnp.broadcast_to(c[None], (F, B, c.shape[1])),
         jnp.broadcast_to(phi[:, None, :], (F, B, 2))], axis=2
    ).reshape(F * B, -1)
    h = inp
    for i in range(8, 11):
        h = lin(h, i, _relu)
    out = lin(h, 11).reshape(F, B, PD)
    recon = jnp.transpose(out, (1, 0, 2)).reshape(B, F * PD)
    return motion[:, :MD], recon, mu, log_var, c


# ----------------------------------------------------------------------------
# Demo
# ----------------------------------------------------------------------------
if __name__ == "__main__":
    pose_dof = 16
    frame_num = 8
    num_known_param = 3
    num_paramstate = 10
    batch = 2

    key = jax.random.PRNGKey(0)
    k_params, k_motion, k_eps = jax.random.split(key, 3)

    params = init_advanced_vae_params(
        k_params, pose_dof, frame_num, num_known_param, num_paramstate)

    motion_dim = pose_dof * frame_num
    motion = jax.random.normal(
        k_motion, (batch, motion_dim + num_known_param), jnp.float32)
    eps = jax.random.normal(k_eps, (batch, params["latent_dim"]), jnp.float32)

    fwd = jax.jit(functools.partial(advanced_vae_forward, params))
    outputs = fwd(motion, eps)
    jax.block_until_ready(outputs)

    motion_trunc, recon, mu, log_var, c = outputs
    assert motion_trunc.shape == (batch, motion_dim)
    assert recon.shape == (batch, motion_dim)
    assert mu.shape == (batch, 32)
    assert log_var.shape == (batch, 32)
    assert c.shape == (batch, num_paramstate)
    for o in (recon, mu, log_var, c):
        assert bool(jnp.all(jnp.isfinite(o)))

    # Value check vs pure-JAX reference: with the exact sigmoid the only
    # expected divergence is bf16 matmul rounding / f32 summation order.
    ref = _reference_forward(params, motion, eps)
    for got, want in zip(outputs, ref):
        assert np.allclose(np.asarray(got), np.asarray(want),
                           rtol=2e-3, atol=2e-3)

    print("KERNEL_OK")
</pallas_src>

<mosaic_0001>
module attributes {stable_mosaic.version = 11 : i64} {
  func.func @kernel(%arg0: memref<2x131xf32, #tpu.memory_space<vmem>>, %arg1: memref<2x32xf32, #tpu.memory_space<vmem>>, %arg2: memref<16x2xf32, #tpu.memory_space<vmem>>, %arg3: memref<16x2xbf16, #tpu.memory_space<vmem>>, %arg4: memref<12x512xf32, #tpu.memory_space<vmem>>, %arg5: memref<128x256xbf16, #tpu.memory_space<vmem>>, %arg6: memref<3x256xbf16, #tpu.memory_space<vmem>>, %arg7: memref<256x256xbf16, #tpu.memory_space<vmem>>, %arg8: memref<256x256xbf16, #tpu.memory_space<vmem>>, %arg9: memref<256x64xbf16, #tpu.memory_space<vmem>>, %arg10: memref<32x256xbf16, #tpu.memory_space<vmem>>, %arg11: memref<3x256xbf16, #tpu.memory_space<vmem>>, %arg12: memref<256x256xbf16, #tpu.memory_space<vmem>>, %arg13: memref<256x256xbf16, #tpu.memory_space<vmem>>, %arg14: memref<256x7xbf16, #tpu.memory_space<vmem>>, %arg15: memref<3x512xbf16, #tpu.memory_space<vmem>>, %arg16: memref<7x512xbf16, #tpu.memory_space<vmem>>, %arg17: memref<2x512xbf16, #tpu.memory_space<vmem>>, %arg18: memref<512x16xbf16, #tpu.memory_space<vmem>>, %arg19: memref<512x512xbf16, #tpu.memory_space<any>>, %arg20: memref<512x512xbf16, #tpu.memory_space<any>>, %arg21: memref<2x128xf32, #tpu.memory_space<vmem>>, %arg22: memref<2x64xf32, #tpu.memory_space<vmem>>, %arg23: memref<2x7xf32, #tpu.memory_space<vmem>>, %arg24: memref<512x512xbf16, #tpu.memory_space<vmem>>, %arg25: memref<512x512xbf16, #tpu.memory_space<vmem>>, %arg26: memref<2x!tpu.dma_semaphore, #tpu.memory_space<semaphore_mem>>) attributes {dimension_semantics = [], scalar_prefetch = 0 : i64, scratch_operands = 3 : i64, tpu.core_type = #tpu.core_type<tc>} {
    %c0_i32 = arith.constant 0 : i32
    %0 = tpu.memref_slice %arg26[%c0_i32] : memref<2x!tpu.dma_semaphore, #tpu.memory_space<semaphore_mem>> -> memref<1x!tpu.dma_semaphore, #tpu.memory_space<semaphore_mem>>
    %1 = tpu.memref_squeeze %0 : memref<1x!tpu.dma_semaphore, #tpu.memory_space<semaphore_mem>> -> memref<!tpu.dma_semaphore, #tpu.memory_space<semaphore_mem>>
    tpu.enqueue_dma source(%arg19 : memref<512x512xbf16, #tpu.memory_space<any>>) target(%arg24 : memref<512x512xbf16, #tpu.memory_space<vmem>>) target_semaphore(%1 : memref<!tpu.dma_semaphore, #tpu.memory_space<semaphore_mem>>)
    %c1_i32 = arith.constant 1 : i32
    %2 = tpu.memref_slice %arg26[%c1_i32] : memref<2x!tpu.dma_semaphore, #tpu.memory_space<semaphore_mem>> -> memref<1x!tpu.dma_semaphore, #tpu.memory_space<semaphore_mem>>
    %3 = tpu.memref_squeeze %2 : memref<1x!tpu.dma_semaphore, #tpu.memory_space<semaphore_mem>> -> memref<!tpu.dma_semaphore, #tpu.memory_space<semaphore_mem>>
    tpu.enqueue_dma source(%arg20 : memref<512x512xbf16, #tpu.memory_space<any>>) target(%arg25 : memref<512x512xbf16, #tpu.memory_space<vmem>>) target_semaphore(%3 : memref<!tpu.dma_semaphore, #tpu.memory_space<semaphore_mem>>)
    %c0 = arith.constant 0 : index
    %c0_0 = arith.constant 0 : index
    %4 = vector.load %arg0[%c0, %c0_0] : memref<2x131xf32, #tpu.memory_space<vmem>>, vector<2x128xf32>
    %c0_1 = arith.constant 0 : index
    %c128 = arith.constant 128 : index
    %5 = vector.load %arg0[%c0_1, %c128] : memref<2x131xf32, #tpu.memory_space<vmem>>, vector<2x3xf32>
    %6 = arith.truncf %4 : vector<2x128xf32> to vector<2x128xbf16>
    %c0_2 = arith.constant 0 : index
    %c0_3 = arith.constant 0 : index
    %7 = vector.load %arg5[%c0_2, %c0_3] : memref<128x256xbf16, #tpu.memory_space<vmem>>, vector<128x256xbf16>
    %cst = arith.constant dense<0.000000e+00> : vector<2x256xf32>
    %8 = tpu.matmul %6, %7, %cst {dimension_numbers = #tpu.dot_dimension_numbers<[1], [0], [0], [1], [0, 0, 1, 1], [], []>} : vector<2x128xbf16>, vector<128x256xbf16>, vector<2x256xf32> -> vector<2x256xf32>
    %9 = arith.truncf %5 : vector<2x3xf32> to vector<2x3xbf16>
    %c0_4 = arith.constant 0 : index
    %c0_5 = arith.constant 0 : index
    %10 = vector.load %arg6[%c0_4, %c0_5] : memref<3x256xbf16, #tpu.memory_space<vmem>>, vector<3x256xbf16>
    %cst_6 = arith.constant dense<0.000000e+00> : vector<2x256xf32>
    %11 = tpu.matmul %9, %10, %cst_6 {dimension_numbers = #tpu.dot_dimension_numbers<[1], [0], [0], [1], [0, 0, 1, 1], [], []>} : vector<2x3xbf16>, vector<3x256xbf16>, vector<2x256xf32> -> vector<2x256xf32>
    %12 = arith.addf %8, %11 : vector<2x256xf32>
    %c0_7 = arith.constant 0 : index
    %c0_8 = arith.constant 0 : index
    %13 = vector.load %arg4[%c0_7, %c0_8] : memref<12x512xf32, #tpu.memory_space<vmem>>, vector<1x256xf32>
    %14 = vector.broadcast %13 : vector<1x256xf32> to vector<2x256xf32>
    %15 = arith.addf %12, %14 : vector<2x256xf32>
    %cst_9 = arith.constant 0.000000e+00 : f32
    %16 = vector.broadcast %cst_9 : f32 to vector<2x256xf32>
    %17 = arith.cmpf ogt, %15, %16 : vector<2x256xf32>
    %cst_10 = arith.constant 2.000000e-01 : f32
    %18 = vector.broadcast %cst_10 : f32 to vector<2x256xf32>
    %19 = arith.mulf %18, %15 : vector<2x256xf32>
    %20 = arith.select %17, %15, %19 : vector<2x256xi1>, vector<2x256xf32>
    %21 = arith.truncf %20 : vector<2x256xf32> to vector<2x256xbf16>
    %c0_11 = arith.constant 0 : index
    %c0_12 = arith.constant 0 : index
    %22 = vector.load %arg7[%c0_11, %c0_12] : memref<256x256xbf16, #tpu.memory_space<vmem>>, vector<256x256xbf16>
    %cst_13 = arith.constant dense<0.000000e+00> : vector<2x256xf32>
    %23 = tpu.matmul %21, %22, %cst_13 {dimension_numbers = #tpu.dot_dimension_numbers<[1], [0], [0], [1], [0, 0, 1, 1], [], []>} : vector<2x256xbf16>, vector<256x256xbf16>, vector<2x256xf32> -> vector<2x256xf32>
    %c1 = arith.constant 1 : index
    %c0_14 = arith.constant 0 : index
    %24 = vector.load %arg4[%c1, %c0_14] : memref<12x512xf32, #tpu.memory_space<vmem>>, vector<1x256xf32>
    %25 = vector.broadcast %24 : vector<1x256xf32> to vector<2x256xf32>
    %26 = arith.addf %23, %25 : vector<2x256xf32>
    %cst_15 = arith.constant 0.000000e+00 : f32
    %27 = vector.broadcast %cst_15 : f32 to vector<2x256xf32>
    %28 = arith.cmpf ogt, %26, %27 : vector<2x256xf32>
    %cst_16 = arith.constant 2.000000e-01 : f32
    %29 = vector.broadcast %cst_16 : f32 to vector<2x256xf32>
    %30 = arith.mulf %29, %26 : vector<2x256xf32>
    %31 = arith.select %28, %26, %30 : vector<2x256xi1>, vector<2x256xf32>
    %32 = arith.truncf %31 : vector<2x256xf32> to vector<2x256xbf16>
    %c0_17 = arith.constant 0 : index
    %c0_18 = arith.constant 0 : index
    %33 = vector.load %arg8[%c0_17, %c0_18] : memref<256x256xbf16, #tpu.memory_space<vmem>>, vector<256x256xbf16>
    %cst_19 = arith.constant dense<0.000000e+00> : vector<2x256xf32>
    %34 = tpu.matmul %32, %33, %cst_19 {dimension_numbers = #tpu.dot_dimension_numbers<[1], [0], [0], [1], [0, 0, 1, 1], [], []>} : vector<2x256xbf16>, vector<256x256xbf16>, vector<2x256xf32> -> vector<2x256xf32>
    %c2 = arith.constant 2 : index
    %c0_20 = arith.constant 0 : index
    %35 = vector.load %arg4[%c2, %c0_20] : memref<12x512xf32, #tpu.memory_space<vmem>>, vector<1x256xf32>
    %36 = vector.broadcast %35 : vector<1x256xf32> to vector<2x256xf32>
    %37 = arith.addf %34, %36 : vector<2x256xf32>
    %cst_21 = arith.constant 0.000000e+00 : f32
    %38 = vector.broadcast %cst_21 : f32 to vector<2x256xf32>
    %39 = arith.cmpf ogt, %37, %38 : vector<2x256xf32>
    %cst_22 = arith.constant 2.000000e-01 : f32
    %40 = vector.broadcast %cst_22 : f32 to vector<2x256xf32>
    %41 = arith.mulf %40, %37 : vector<2x256xf32>
    %42 = arith.select %39, %37, %41 : vector<2x256xi1>, vector<2x256xf32>
    %43 = arith.truncf %42 : vector<2x256xf32> to vector<2x256xbf16>
    %c0_23 = arith.constant 0 : index
    %c0_24 = arith.constant 0 : index
    %44 = vector.load %arg9[%c0_23, %c0_24] : memref<256x64xbf16, #tpu.memory_space<vmem>>, vector<256x64xbf16>
    %cst_25 = arith.constant dense<0.000000e+00> : vector<2x64xf32>
    %45 = tpu.matmul %43, %44, %cst_25 {dimension_numbers = #tpu.dot_dimension_numbers<[1], [0], [0], [1], [0, 0, 1, 1], [], []>} : vector<2x256xbf16>, vector<256x64xbf16>, vector<2x64xf32> -> vector<2x64xf32>
    %c3 = arith.constant 3 : index
    %c0_26 = arith.constant 0 : index
    %46 = vector.load %arg4[%c3, %c0_26] : memref<12x512xf32, #tpu.memory_space<vmem>>, vector<1x64xf32>
    %47 = vector.broadcast %46 : vector<1x64xf32> to vector<2x64xf32>
    %48 = arith.addf %45, %47 : vector<2x64xf32>
    %c0_27 = arith.constant 0 : index
    %c0_28 = arith.constant 0 : index
    %49 = vector.load %arg22[%c0_27, %c0_28] : memref<2x64xf32, #tpu.memory_space<vmem>>, vector<2x64xf32>
    tpu.vector_store %arg22[%c0_27, %c0_28], %48 {strides = array<i32>} : memref<2x64xf32, #tpu.memory_space<vmem>>, vector<2x64xf32>,
    %50 = vector.extract_strided_slice %48 {offsets = [0, 0], sizes = [2, 32], strides = [1, 1]} : vector<2x64xf32> to vector<2x32xf32>
    %51 = vector.extract_strided_slice %48 {offsets = [0, 32], sizes = [2, 32], strides = [1, 1]} : vector<2x64xf32> to vector<2x32xf32>
    %c0_29 = arith.constant 0 : index
    %c0_30 = arith.constant 0 : index
    %52 = vector.load %arg1[%c0_29, %c0_30] : memref<2x32xf32, #tpu.memory_space<vmem>>, vector<2x32xf32>
    %cst_31 = arith.constant 5.000000e-01 : f32
    %53 = vector.broadcast %cst_31 : f32 to vector<2x32xf32>
    %54 = arith.mulf %53, %51 : vector<2x32xf32>
    %55 = math.exp %54 : vector<2x32xf32>
    %56 = arith.mulf %52, %55 : vector<2x32xf32>
    %57 = arith.addf %56, %50 : vector<2x32xf32>
    %58 = arith.truncf %57 : vector<2x32xf32> to vector<2x32xbf16>
    %c0_32 = arith.constant 0 : index
    %c0_33 = arith.constant 0 : index
    %59 = vector.load %arg10[%c0_32, %c0_33] : memref<32x256xbf16, #tpu.memory_space<vmem>>, vector<32x256xbf16>
    %cst_34 = arith.constant dense<0.000000e+00> : vector<2x256xf32>
    %60 = tpu.matmul %58, %59, %cst_34 {dimension_numbers = #tpu.dot_dimension_numbers<[1], [0], [0], [1], [0, 0, 1, 1], [], []>} : vector<2x32xbf16>, vector<32x256xbf16>, vector<2x256xf32> -> vector<2x256xf32>
    %61 = arith.truncf %5 : vector<2x3xf32> to vector<2x3xbf16>
    %c0_35 = arith.constant 0 : index
    %c0_36 = arith.constant 0 : index
    %62 = vector.load %arg11[%c0_35, %c0_36] : memref<3x256xbf16, #tpu.memory_space<vmem>>, vector<3x256xbf16>
    %cst_37 = arith.constant dense<0.000000e+00> : vector<2x256xf32>
    %63 = tpu.matmul %61, %62, %cst_37 {dimension_numbers = #tpu.dot_dimension_numbers<[1], [0], [0], [1], [0, 0, 1, 1], [], []>} : vector<2x3xbf16>, vector<3x256xbf16>, vector<2x256xf32> -> vector<2x256xf32>
    %64 = arith.addf %60, %63 : vector<2x256xf32>
    %c4 = arith.constant 4 : index
    %c0_38 = arith.constant 0 : index
    %65 = vector.load %arg4[%c4, %c0_38] : memref<12x512xf32, #tpu.memory_space<vmem>>, vector<1x256xf32>
    %66 = vector.broadcast %65 : vector<1x256xf32> to vector<2x256xf32>
    %67 = arith.addf %64, %66 : vector<2x256xf32>
    %cst_39 = arith.constant 0.000000e+00 : f32
    %68 = vector.broadcast %cst_39 : f32 to vector<2x256xf32>
    %69 = arith.cmpf ogt, %67, %68 : vector<2x256xf32>
    %cst_40 = arith.constant 2.000000e-01 : f32
    %70 = vector.broadcast %cst_40 : f32 to vector<2x256xf32>
    %71 = arith.mulf %70, %67 : vector<2x256xf32>
    %72 = arith.select %69, %67, %71 : vector<2x256xi1>, vector<2x256xf32>
    %73 = arith.truncf %72 : vector<2x256xf32> to vector<2x256xbf16>
    %c0_41 = arith.constant 0 : index
    %c0_42 = arith.constant 0 : index
    %74 = vector.load %arg12[%c0_41, %c0_42] : memref<256x256xbf16, #tpu.memory_space<vmem>>, vector<256x256xbf16>
    %cst_43 = arith.constant dense<0.000000e+00> : vector<2x256xf32>
    %75 = tpu.matmul %73, %74, %cst_43 {dimension_numbers = #tpu.dot_dimension_numbers<[1], [0], [0], [1], [0, 0, 1, 1], [], []>} : vector<2x256xbf16>, vector<256x256xbf16>, vector<2x256xf32> -> vector<2x256xf32>
    %c5 = arith.constant 5 : index
    %c0_44 = arith.constant 0 : index
    %76 = vector.load %arg4[%c5, %c0_44] : memref<12x512xf32, #tpu.memory_space<vmem>>, vector<1x256xf32>
    %77 = vector.broadcast %76 : vector<1x256xf32> to vector<2x256xf32>
    %78 = arith.addf %75, %77 : vector<2x256xf32>
    %cst_45 = arith.constant 0.000000e+00 : f32
    %79 = vector.broadcast %cst_45 : f32 to vector<2x256xf32>
    %80 = arith.cmpf ogt, %78, %79 : vector<2x256xf32>
    %cst_46 = arith.constant 2.000000e-01 : f32
    %81 = vector.broadcast %cst_46 : f32 to vector<2x256xf32>
    %82 = arith.mulf %81, %78 : vector<2x256xf32>
    %83 = arith.select %80, %78, %82 : vector<2x256xi1>, vector<2x256xf32>
    %84 = arith.truncf %83 : vector<2x256xf32> to vector<2x256xbf16>
    %c0_47 = arith.constant 0 : index
    %c0_48 = arith.constant 0 : index
    %85 = vector.load %arg13[%c0_47, %c0_48] : memref<256x256xbf16, #tpu.memory_space<vmem>>, vector<256x256xbf16>
    %cst_49 = arith.constant dense<0.000000e+00> : vector<2x256xf32>
    %86 = tpu.matmul %84, %85, %cst_49 {dimension_numbers = #tpu.dot_dimension_numbers<[1], [0], [0], [1], [0, 0, 1, 1], [], []>} : vector<2x256xbf16>, vector<256x256xbf16>, vector<2x256xf32> -> vector<2x256xf32>
    %c6 = arith.constant 6 : index
    %c0_50 = arith.constant 0 : index
    %87 = vector.load %arg4[%c6, %c0_50] : memref<12x512xf32, #tpu.memory_space<vmem>>, vector<1x256xf32>
    %88 = vector.broadcast %87 : vector<1x256xf32> to vector<2x256xf32>
    %89 = arith.addf %86, %88 : vector<2x256xf32>
    %cst_51 = arith.constant 0.000000e+00 : f32
    %90 = vector.broadcast %cst_51 : f32 to vector<2x256xf32>
    %91 = arith.cmpf ogt, %89, %90 : vector<2x256xf32>
    %cst_52 = arith.constant 2.000000e-01 : f32
    %92 = vector.broadcast %cst_52 : f32 to vector<2x256xf32>
    %93 = arith.mulf %92, %89 : vector<2x256xf32>
    %94 = arith.select %91, %89, %93 : vector<2x256xi1>, vector<2x256xf32>
    %95 = arith.truncf %94 : vector<2x256xf32> to vector<2x256xbf16>
    %c0_53 = arith.constant 0 : index
    %c0_54 = arith.constant 0 : index
    %96 = vector.load %arg14[%c0_53, %c0_54] : memref<256x7xbf16, #tpu.memory_space<vmem>>, vector<256x7xbf16>
    %cst_55 = arith.constant dense<0.000000e+00> : vector<2x7xf32>
    %97 = tpu.matmul %95, %96, %cst_55 {dimension_numbers = #tpu.dot_dimension_numbers<[1], [0], [0], [1], [0, 0, 1, 1], [], []>} : vector<2x256xbf16>, vector<256x7xbf16>, vector<2x7xf32> -> vector<2x7xf32>
    %c7 = arith.constant 7 : index
    %c0_56 = arith.constant 0 : index
    %98 = vector.load %arg4[%c7, %c0_56] : memref<12x512xf32, #tpu.memory_space<vmem>>, vector<1x7xf32>
    %99 = vector.broadcast %98 : vector<1x7xf32> to vector<2x7xf32>
    %100 = arith.addf %97, %99 : vector<2x7xf32>
    %cst_57 = arith.constant 0.000000e+00 : f32
    %101 = vector.broadcast %cst_57 : f32 to vector<2x7xf32>
    %102 = arith.subf %101, %100 : vector<2x7xf32>
    %103 = math.exp %102 : vector<2x7xf32>
    %cst_58 = arith.constant 1.000000e+00 : f32
    %104 = vector.broadcast %cst_58 : f32 to vector<2x7xf32>
    %105 = arith.addf %104, %103 : vector<2x7xf32>
    %cst_59 = arith.constant 1.000000e+00 : f32
    %106 = vector.broadcast %cst_59 : f32 to vector<2x7xf32>
    %107 = arith.divf %106, %105 : vector<2x7xf32>
    %c0_60 = arith.constant 0 : index
    %c0_61 = arith.constant 0 : index
    %108 = vector.load %arg23[%c0_60, %c0_61] : memref<2x7xf32, #tpu.memory_space<vmem>>, vector<2x7xf32>
    tpu.vector_store %arg23[%c0_60, %c0_61], %107 {strides = array<i32>} : memref<2x7xf32, #tpu.memory_space<vmem>>, vector<2x7xf32>,
    %c0_62 = arith.constant 0 : index
    %c0_63 = arith.constant 0 : index
    %109 = vector.load %arg3[%c0_62, %c0_63] : memref<16x2xbf16, #tpu.memory_space<vmem>>, vector<16x2xbf16>
    %110 = arith.truncf %5 : vector<2x3xf32> to vector<2x3xbf16>
    %cst_64 = arith.constant dense<0.000000e+00> : vector<16x3xf32>
    %111 = tpu.matmul %109, %110, %cst_64 {dimension_numbers = #tpu.dot_dimension_numbers<[1], [0], [0], [1], [0, 0, 1, 1], [], []>} : vector<16x2xbf16>, vector<2x3xbf16>, vector<16x3xf32> -> vector<16x3xf32>
    %112 = arith.truncf %107 : vector<2x7xf32> to vector<2x7xbf16>
    %cst_65 = arith.constant dense<0.000000e+00> : vector<16x7xf32>
    %113 = tpu.matmul %109, %112, %cst_65 {dimension_numbers = #tpu.dot_dimension_numbers<[1], [0], [0], [1], [0, 0, 1, 1], [], []>} : vector<16x2xbf16>, vector<2x7xbf16>, vector<16x7xf32> -> vector<16x7xf32>
    %114 = arith.truncf %111 : vector<16x3xf32> to vector<16x3xbf16>
    %c0_66 = arith.constant 0 : index
    %c0_67 = arith.constant 0 : index
    %115 = vector.load %arg15[%c0_66, %c0_67] : memref<3x512xbf16, #tpu.memory_space<vmem>>, vector<3x512xbf16>
    %cst_68 = arith.constant dense<0.000000e+00> : vector<16x512xf32>
    %116 = tpu.matmul %114, %115, %cst_68 {dimension_numbers = #tpu.dot_dimension_numbers<[1], [0], [0], [1], [0, 0, 1, 1], [], []>} : vector<16x3xbf16>, vector<3x512xbf16>, vector<16x512xf32> -> vector<16x512xf32>
    %117 = arith.truncf %113 : vector<16x7xf32> to vector<16x7xbf16>
    %c0_69 = arith.constant 0 : index
    %c0_70 = arith.constant 0 : index
    %118 = vector.load %arg16[%c0_69, %c0_70] : memref<7x512xbf16, #tpu.memory_space<vmem>>, vector<7x512xbf16>
    %cst_71 = arith.constant dense<0.000000e+00> : vector<16x512xf32>
    %119 = tpu.matmul %117, %118, %cst_71 {dimension_numbers = #tpu.dot_dimension_numbers<[1], [0], [0], [1], [0, 0, 1, 1], [], []>} : vector<16x7xbf16>, vector<7x512xbf16>, vector<16x512xf32> -> vector<16x512xf32>
    %120 = arith.addf %116, %119 : vector<16x512xf32>
    %c0_72 = arith.constant 0 : index
    %c0_73 = arith.constant 0 : index
    %121 = vector.load %arg2[%c0_72, %c0_73] : memref<16x2xf32, #tpu.memory_space<vmem>>, vector<16x2xf32>
    %122 = arith.truncf %121 : vector<16x2xf32> to vector<16x2xbf16>
    %c0_74 = arith.constant 0 : index
    %c0_75 = arith.constant 0 : index
    %123 = vector.load %arg17[%c0_74, %c0_75] : memref<2x512xbf16, #tpu.memory_space<vmem>>, vector<2x512xbf16>
    %cst_76 = arith.constant dense<0.000000e+00> : vector<16x512xf32>
    %124 = tpu.matmul %122, %123, %cst_76 {dimension_numbers = #tpu.dot_dimension_numbers<[1], [0], [0], [1], [0, 0, 1, 1], [], []>} : vector<16x2xbf16>, vector<2x512xbf16>, vector<16x512xf32> -> vector<16x512xf32>
    %125 = arith.addf %120, %124 : vector<16x512xf32>
    %c8 = arith.constant 8 : index
    %c0_77 = arith.constant 0 : index
    %126 = vector.load %arg4[%c8, %c0_77] : memref<12x512xf32, #tpu.memory_space<vmem>>, vector<1x512xf32>
    %127 = vector.broadcast %126 : vector<1x512xf32> to vector<16x512xf32>
    %128 = arith.addf %125, %127 : vector<16x512xf32>
    %cst_78 = arith.constant 0.000000e+00 : f32
    %129 = vector.broadcast %cst_78 : f32 to vector<16x512xf32>
    %130 = arith.maximumf %128, %129 : vector<16x512xf32>
    %c0_i32_79 = arith.constant 0 : i32
    %131 = tpu.memref_slice %arg26[%c0_i32_79] : memref<2x!tpu.dma_semaphore, #tpu.memory_space<semaphore_mem>> -> memref<1x!tpu.dma_semaphore, #tpu.memory_space<semaphore_mem>>
    %132 = tpu.memref_squeeze %131 : memref<1x!tpu.dma_semaphore, #tpu.memory_space<semaphore_mem>> -> memref<!tpu.dma_semaphore, #tpu.memory_space<semaphore_mem>>
    tpu.wait_dma2 semaphore(%132 : memref<!tpu.dma_semaphore, #tpu.memory_space<semaphore_mem>>) src(%arg19 : memref<512x512xbf16, #tpu.memory_space<any>>) dst(%arg24 : memref<512x512xbf16, #tpu.memory_space<vmem>>)
    %133 = arith.truncf %130 : vector<16x512xf32> to vector<16x512xbf16>
    %c0_80 = arith.constant 0 : index
    %c0_81 = arith.constant 0 : index
    %134 = vector.load %arg24[%c0_80, %c0_81] : memref<512x512xbf16, #tpu.memory_space<vmem>>, vector<512x512xbf16>
    %cst_82 = arith.constant dense<0.000000e+00> : vector<16x512xf32>
    %135 = tpu.matmul %133, %134, %cst_82 {dimension_numbers = #tpu.dot_dimension_numbers<[1], [0], [0], [1], [0, 0, 1, 1], [], []>} : vector<16x512xbf16>, vector<512x512xbf16>, vector<16x512xf32> -> vector<16x512xf32>
    %c9 = arith.constant 9 : index
    %c0_83 = arith.constant 0 : index
    %136 = vector.load %arg4[%c9, %c0_83] : memref<12x512xf32, #tpu.memory_space<vmem>>, vector<1x512xf32>
    %137 = vector.broadcast %136 : vector<1x512xf32> to vector<16x512xf32>
    %138 = arith.addf %135, %137 : vector<16x512xf32>
    %cst_84 = arith.constant 0.000000e+00 : f32
    %139 = vector.broadcast %cst_84 : f32 to vector<16x512xf32>
    %140 = arith.maximumf %138, %139 : vector<16x512xf32>
    %c1_i32_85 = arith.constant 1 : i32
    %141 = tpu.memref_slice %arg26[%c1_i32_85] : memref<2x!tpu.dma_semaphore, #tpu.memory_space<semaphore_mem>> -> memref<1x!tpu.dma_semaphore, #tpu.memory_space<semaphore_mem>>
    %142 = tpu.memref_squeeze %141 : memref<1x!tpu.dma_semaphore, #tpu.memory_space<semaphore_mem>> -> memref<!tpu.dma_semaphore, #tpu.memory_space<semaphore_mem>>
    tpu.wait_dma2 semaphore(%142 : memref<!tpu.dma_semaphore, #tpu.memory_space<semaphore_mem>>) src(%arg20 : memref<512x512xbf16, #tpu.memory_space<any>>) dst(%arg25 : memref<512x512xbf16, #tpu.memory_space<vmem>>)
    %143 = arith.truncf %140 : vector<16x512xf32> to vector<16x512xbf16>
    %c0_86 = arith.constant 0 : index
    %c0_87 = arith.constant 0 : index
    %144 = vector.load %arg25[%c0_86, %c0_87] : memref<512x512xbf16, #tpu.memory_space<vmem>>, vector<512x512xbf16>
    %cst_88 = arith.constant dense<0.000000e+00> : vector<16x512xf32>
    %145 = tpu.matmul %143, %144, %cst_88 {dimension_numbers = #tpu.dot_dimension_numbers<[1], [0], [0], [1], [0, 0, 1, 1], [], []>} : vector<16x512xbf16>, vector<512x512xbf16>, vector<16x512xf32> -> vector<16x512xf32>
    %c10 = arith.constant 10 : index
    %c0_89 = arith.constant 0 : index
    %146 = vector.load %arg4[%c10, %c0_89] : memref<12x512xf32, #tpu.memory_space<vmem>>, vector<1x512xf32>
    %147 = vector.broadcast %146 : vector<1x512xf32> to vector<16x512xf32>
    %148 = arith.addf %145, %147 : vector<16x512xf32>
    %cst_90 = arith.constant 0.000000e+00 : f32
    %149 = vector.broadcast %cst_90 : f32 to vector<16x512xf32>
    %150 = arith.maximumf %148, %149 : vector<16x512xf32>
    %151 = arith.truncf %150 : vector<16x512xf32> to vector<16x512xbf16>
    %c0_91 = arith.constant 0 : index
    %c0_92 = arith.constant 0 : index
    %152 = vector.load %arg18[%c0_91, %c0_92] : memref<512x16xbf16, #tpu.memory_space<vmem>>, vector<512x16xbf16>
    %cst_93 = arith.constant dense<0.000000e+00> : vector<16x16xf32>
    %153 = tpu.matmul %151, %152, %cst_93 {dimension_numbers = #tpu.dot_dimension_numbers<[1], [0], [0], [1], [0, 0, 1, 1], [], []>} : vector<16x512xbf16>, vector<512x16xbf16>, vector<16x16xf32> -> vector<16x16xf32>
    %c11 = arith.constant 11 : index
    %c0_94 = arith.constant 0 : index
    %154 = vector.load %arg4[%c11, %c0_94] : memref<12x512xf32, #tpu.memory_space<vmem>>, vector<1x16xf32>
    %155 = vector.broadcast %154 : vector<1x16xf32> to vector<16x16xf32>
    %156 = arith.addf %153, %155 : vector<16x16xf32>
    %157 = vector.extract_strided_slice %156 {offsets = [0, 0], sizes = [2, 16], strides = [1, 1]} : vector<16x16xf32> to vector<2x16xf32>
    %158 = vector.extract_strided_slice %156 {offsets = [2, 0], sizes = [2, 16], strides = [1, 1]} : vector<16x16xf32> to vector<2x16xf32>
    %159 = vector.extract_strided_slice %156 {offsets = [4, 0], sizes = [2, 16], strides = [1, 1]} : vector<16x16xf32> to vector<2x16xf32>
    %160 = vector.extract_strided_slice %156 {offsets = [6, 0], sizes = [2, 16], strides = [1, 1]} : vector<16x16xf32> to vector<2x16xf32>
    %161 = vector.extract_strided_slice %156 {offsets = [8, 0], sizes = [2, 16], strides = [1, 1]} : vector<16x16xf32> to vector<2x16xf32>
    %162 = vector.extract_strided_slice %156 {offsets = [10, 0], sizes = [2, 16], strides = [1, 1]} : vector<16x16xf32> to vector<2x16xf32>
    %163 = vector.extract_strided_slice %156 {offsets = [12, 0], sizes = [2, 16], strides = [1, 1]} : vector<16x16xf32> to vector<2x16xf32>
    %164 = vector.extract_strided_slice %156 {offsets = [14, 0], sizes = [2, 16], strides = [1, 1]} : vector<16x16xf32> to vector<2x16xf32>
    %165 = tpu.concatenate %157, %158, %159, %160, %161, %162, %163, %164 in 1 : vector<2x16xf32>, vector<2x16xf32>, vector<2x16xf32>, vector<2x16xf32>, vector<2x16xf32>, vector<2x16xf32>, vector<2x16xf32>, vector<2x16xf32> -> vector<2x128xf32>
    %c0_95 = arith.constant 0 : index
    %c0_96 = arith.constant 0 : index
    %166 = vector.load %arg21[%c0_95, %c0_96] : memref<2x128xf32, #tpu.memory_space<vmem>>, vector<2x128xf32>
    tpu.vector_store %arg21[%c0_95, %c0_96], %165 {strides = array<i32>} : memref<2x128xf32, #tpu.memory_space<vmem>>, vector<2x128xf32>,
    return
  }
}

</mosaic_0001>

<llo_original>
// kernel: advanced_vae_forward.1
$region0: #{advanced_vae_forward.1}
  #allocation0 [shape = 'u32[]', space=smem, size = 0x4, offset = 0x4, fixed_abs, tag = 'smem constant byte address 0x4 - core index']
  #allocation1 [shape = 'u32[144,128]{1,0:T(1,128)}', space=vmem, size = 0x12000, scoped, tag = 'internal scratch']
  #allocation2 [shape = 'bf16[512,512]{1,0:T(16,128)(2,1)}', space=vmem, size = 0x80000, scoped, tag = 'scratch operand']
  #allocation3 [shape = 'bf16[512,512]{1,0:T(16,128)(2,1)}', space=vmem, size = 0x80000, scoped, tag = 'scratch operand']
  #allocation4 [shape = 's32[2]{0}', space=sflag, size = 0x8, scoped, tag = 'scratch operand']
  #allocation7 [shape = 's32[]', space=sflag, size = 0x4, offset = 0, fixed_abs, tag = 'sflag constant byte address 0x0 - dummy sync flag']
  #allocation8 [shape = 's32[]', space=sflag, size = 0x4, offset = 0, fixed_abs, tag = 'sflag constant byte address 0x0 - dummy sync flag']
  %s0 = inlined_call_operand.vmem [shape: f32[2,131], index: 0, kind: input, shape index: {}]
  %s1 = inlined_call_operand.vmem [shape: f32[2,32], index: 1, kind: input, shape index: {}]
  %s2 = inlined_call_operand.vmem [shape: f32[16,2], index: 2, kind: input, shape index: {}]
  %s3 = inlined_call_operand.vmem [shape: bf16[16,2], index: 3, kind: input, shape index: {}]
  %s4 = inlined_call_operand.vmem [shape: f32[12,512], index: 4, kind: input, shape index: {}]
  %s5 = inlined_call_operand.vmem [shape: bf16[128,256], index: 5, kind: input, shape index: {}]
  %s6 = inlined_call_operand.vmem [shape: bf16[3,256], index: 6, kind: input, shape index: {}]
  %s7 = inlined_call_operand.vmem [shape: bf16[256,256], index: 7, kind: input, shape index: {}]
  %s8 = inlined_call_operand.vmem [shape: bf16[256,256], index: 8, kind: input, shape index: {}]
  %s9 = inlined_call_operand.vmem [shape: bf16[256,64], index: 9, kind: input, shape index: {}]
  %s10 = inlined_call_operand.vmem [shape: bf16[32,256], index: 10, kind: input, shape index: {}]
  %s11 = inlined_call_operand.vmem [shape: bf16[3,256], index: 11, kind: input, shape index: {}]
  %s12 = inlined_call_operand.vmem [shape: bf16[256,256], index: 12, kind: input, shape index: {}]
  %s13 = inlined_call_operand.vmem [shape: bf16[256,256], index: 13, kind: input, shape index: {}]
  %s14 = inlined_call_operand.vmem [shape: bf16[256,7], index: 14, kind: input, shape index: {}]
  %s15 = inlined_call_operand.vmem [shape: bf16[3,512], index: 15, kind: input, shape index: {}]
  %s16 = inlined_call_operand.vmem [shape: bf16[7,512], index: 16, kind: input, shape index: {}]
  %s17 = inlined_call_operand.vmem [shape: bf16[2,512], index: 17, kind: input, shape index: {}]
  %s18 = inlined_call_operand.vmem [shape: bf16[512,16], index: 18, kind: input, shape index: {}]
  %s19 = inlined_call_operand.vmem [shape: bf16[512,512], index: 19, kind: input, shape index: {}]
  %s20 = inlined_call_operand.vmem [shape: bf16[512,512], index: 20, kind: input, shape index: {}]
  %s21 = inlined_call_operand.hbm [shape: f32[2,128], index: 21, kind: output, shape index: {0}]
  %s22 = inlined_call_operand.vmem [shape: f32[2,64], index: 22, kind: output, shape index: {1}]
  %s23 = inlined_call_operand.vmem [shape: f32[2,7], index: 23, kind: output, shape index: {2}]
  %24 = xla_tuple %s21, %s22, %s23
  %s25 = sld [smem:[#allocation0]]
  $region176: #{advanced_vae_forward.1} parent=0
    _
  %s27 = ssub.s32 1, %s25
  %s28 = scalar_select 0, %s27, %s25
  $region1: #{advanced_vae_forward.1} parent=0
    #allocation5 [shape = 'u8[1024]{0}', space=vmem, size = 0x400, scoped, tag = 'output window, operand 0, single buffered']
    #allocation6 [shape = 's32[1]{0}', space=sflag, size = 0x4, scoped, tag = 'scoped memory for advanced_vae_forward.1']
    %29 = vsyncpa [#allocation6], 0
    // Predicated region
    $region2: #{advanced_vae_forward.1} parent=1 // pred_check
      _
    $region3: #{advanced_vae_forward.1} parent=1 // pred_check_branch
      %31 = sbr.rel (0) target = $region5
    $region4: #{advanced_vae_forward.1} parent=1 // pred_region
      _
    $region5: #{advanced_vae_forward.1} parent=1 // pred_fallthru
      _
    // Predicated region
    $region6: #{advanced_vae_forward.1} parent=1 // pred_check
      _
    $region7: #{advanced_vae_forward.1} parent=1 // pred_check_branch
      %33 = sbr.rel (0) target = $region9
    $region8: #{advanced_vae_forward.1} parent=1 // pred_region
      _
    $region9: #{advanced_vae_forward.1} parent=1 // pred_fallthru
      _
    // Predicated region
    $region10: #{advanced_vae_forward.1} parent=1 // pred_check
      _
    $region11: #{advanced_vae_forward.1} parent=1 // pred_check_branch
      %35 = sbr.rel (0) target = $region13
    $region12: #{advanced_vae_forward.1} parent=1 // pred_region
      _
    $region13: #{advanced_vae_forward.1} parent=1 // pred_fallthru
      _
    // Predicated region
    $region14: #{advanced_vae_forward.1} parent=1 // pred_check
      _
    $region15: #{advanced_vae_forward.1} parent=1 // pred_check_branch
      %37 = sbr.rel (0) target = $region17
    $region16: #{advanced_vae_forward.1} parent=1 // pred_region
      _
    $region17: #{advanced_vae_forward.1} parent=1 // pred_fallthru
      _
    // Predicated region
    $region18: #{advanced_vae_forward.1} parent=1 // pred_check
      _
    $region19: #{advanced_vae_forward.1} parent=1 // pred_check_branch
      %39 = sbr.rel (0) target = $region21
    $region20: #{advanced_vae_forward.1} parent=1 // pred_region
      _
    $region21: #{advanced_vae_forward.1} parent=1 // pred_fallthru
      _
    // Predicated region
    $region22: #{advanced_vae_forward.1} parent=1 // pred_check
      _
    $region23: #{advanced_vae_forward.1} parent=1 // pred_check_branch
      %41 = sbr.rel (0) target = $region25
    $region24: #{advanced_vae_forward.1} parent=1 // pred_region
      _
    $region25: #{advanced_vae_forward.1} parent=1 // pred_fallthru
      _
    // Predicated region
    $region26: #{advanced_vae_forward.1} parent=1 // pred_check
      _
    $region27: #{advanced_vae_forward.1} parent=1 // pred_check_branch
      %43 = sbr.rel (0) target = $region29
    $region28: #{advanced_vae_forward.1} parent=1 // pred_region
      _
    $region29: #{advanced_vae_forward.1} parent=1 // pred_fallthru
      _
    // Predicated region
    $region30: #{advanced_vae_forward.1} parent=1 // pred_check
      _
    $region31: #{advanced_vae_forward.1} parent=1 // pred_check_branch
      %45 = sbr.rel (0) target = $region33
    $region32: #{advanced_vae_forward.1} parent=1 // pred_region
      _
    $region33: #{advanced_vae_forward.1} parent=1 // pred_fallthru
      _
    // Predicated region
    $region34: #{advanced_vae_forward.1} parent=1 // pred_check
      _
    $region35: #{advanced_vae_forward.1} parent=1 // pred_check_branch
      %47 = sbr.rel (0) target = $region37
    $region36: #{advanced_vae_forward.1} parent=1 // pred_region
      _
    $region37: #{advanced_vae_forward.1} parent=1 // pred_fallthru
      _
    // Predicated region
    $region38: #{advanced_vae_forward.1} parent=1 // pred_check
      _
    $region39: #{advanced_vae_forward.1} parent=1 // pred_check_branch
      %49 = sbr.rel (0) target = $region41
    $region40: #{advanced_vae_forward.1} parent=1 // pred_region
      _
    $region41: #{advanced_vae_forward.1} parent=1 // pred_fallthru
      _
    // Predicated region
    $region42: #{advanced_vae_forward.1} parent=1 // pred_check
      _
    $region43: #{advanced_vae_forward.1} parent=1 // pred_check_branch
      %51 = sbr.rel (0) target = $region45
    $region44: #{advanced_vae_forward.1} parent=1 // pred_region
      _
    $region45: #{advanced_vae_forward.1} parent=1 // pred_fallthru
      _
    // Predicated region
    $region46: #{advanced_vae_forward.1} parent=1 // pred_check
      _
    $region47: #{advanced_vae_forward.1} parent=1 // pred_check_branch
      %53 = sbr.rel (0) target = $region49
    $region48: #{advanced_vae_forward.1} parent=1 // pred_region
      _
    $region49: #{advanced_vae_forward.1} parent=1 // pred_fallthru
      _
    // Predicated region
    $region50: #{advanced_vae_forward.1} parent=1 // pred_check
      _
    $region51: #{advanced_vae_forward.1} parent=1 // pred_check_branch
      %55 = sbr.rel (0) target = $region53
    $region52: #{advanced_vae_forward.1} parent=1 // pred_region
      _
    $region53: #{advanced_vae_forward.1} parent=1 // pred_fallthru
      _
    // Predicated region
    $region54: #{advanced_vae_forward.1} parent=1 // pred_check
      _
    $region55: #{advanced_vae_forward.1} parent=1 // pred_check_branch
      %57 = sbr.rel (0) target = $region57
    $region56: #{advanced_vae_forward.1} parent=1 // pred_region
      _
    $region57: #{advanced_vae_forward.1} parent=1 // pred_fallthru
      _
    // Predicated region
    $region58: #{advanced_vae_forward.1} parent=1 // pred_check
      _
    $region59: #{advanced_vae_forward.1} parent=1 // pred_check_branch
      %59 = sbr.rel (0) target = $region61
    $region60: #{advanced_vae_forward.1} parent=1 // pred_region
      _
    $region61: #{advanced_vae_forward.1} parent=1 // pred_fallthru
      _
    // Predicated region
    $region62: #{advanced_vae_forward.1} parent=1 // pred_check
      _
    $region63: #{advanced_vae_forward.1} parent=1 // pred_check_branch
      %61 = sbr.rel (0) target = $region65
    $region64: #{advanced_vae_forward.1} parent=1 // pred_region
      _
    $region65: #{advanced_vae_forward.1} parent=1 // pred_fallthru
      _
    // Predicated region
    $region66: #{advanced_vae_forward.1} parent=1 // pred_check
      _
    $region67: #{advanced_vae_forward.1} parent=1 // pred_check_branch
      %63 = sbr.rel (0) target = $region69
    $region68: #{advanced_vae_forward.1} parent=1 // pred_region
      _
    $region69: #{advanced_vae_forward.1} parent=1 // pred_fallthru
      _
    // Predicated region
    $region70: #{advanced_vae_forward.1} parent=1 // pred_check
      _
    $region71: #{advanced_vae_forward.1} parent=1 // pred_check_branch
      %65 = sbr.rel (0) target = $region73
    $region72: #{advanced_vae_forward.1} parent=1 // pred_region
      _
    $region73: #{advanced_vae_forward.1} parent=1 // pred_fallthru
      _
    // Predicated region
    $region74: #{advanced_vae_forward.1} parent=1 // pred_check
      _
    $region75: #{advanced_vae_forward.1} parent=1 // pred_check_branch
      %67 = sbr.rel (0) target = $region77
    $region76: #{advanced_vae_forward.1} parent=1 // pred_region
      _
    $region77: #{advanced_vae_forward.1} parent=1 // pred_fallthru
      _
    %p70 = scmp.lt.u32.totalorder 4, 8
    %p71 = pneg %p70
    // Predicated region
    $region78: #{advanced_vae_forward.1} parent=1 // pred_check
      _
    $region79: #{advanced_vae_forward.1} parent=1 // pred_check_branch
      %73 = sbr.rel (%p70) target = $region81
    $region80: #{advanced_vae_forward.1} parent=1 // pred_region
      %s598 = sand.u32 4, 7
      %p599 = scmp.eq.s32.totalorder %s598, 0
      %p600 = pneg %p599
      // Predicated region
      $region93: #{advanced_vae_forward.1} parent=80 // pred_check
        _
      $region94: #{advanced_vae_forward.1} parent=80 // pred_check_branch
        %602 = sbr.rel (%p599) target = $region96
      $region95: #{advanced_vae_forward.1} parent=80 // pred_region
        %s603 = sand.u32 4, 7
        %s604 = ssub.s32 4, %s603
        %s605 = scalar_lea.vmem %s19, %s604
        %s606 = ssub.s32 4, %s603
        %s607 = scalar_lea.vmem [#allocation2], %s606
        loop: start=0, step=1, limit=1
        $region97: #{advanced_vae_forward.1} parent=95 // loop_pre_header
          _
        $region98: #{advanced_vae_forward.1} parent=95 // loop_header
          %s609 = sphi 0, %s613
          %p610 = scmp.ge.s32.totalorder %s609, 1
          %s614 = sphi %s19, %s19
          %s615 = sphi [#allocation2], [#allocation2]
        $region99: #{advanced_vae_forward.1} parent=95 // loop_header_branch
          %612 = sbr.rel (%p610) target = $region103
        $region100: #{advanced_vae_forward.1} parent=95 // loop_body
          _
        $region101: #{advanced_vae_forward.1} parent=95 // loop_footer
          %s613 = sadd.s32 1, %s609
        $region102: #{advanced_vae_forward.1} parent=95 // loop_footer_branch
          %608 = sbr.rel target = $region98
        $region103: #{advanced_vae_forward.1} parent=95 // loop_exit
          _
        %s616 = sshllo.u32 0, %s603
        loop: start=0, step=1, limit=1
        $region104: #{advanced_vae_forward.1} parent=95 // loop_pre_header
          _
        $region105: #{advanced_vae_forward.1} parent=95 // loop_header
          %s618 = sphi 0, %s622
          %p619 = scmp.ge.s32.totalorder %s618, 1
          %s623 = sphi %s605, %s605
          %s624 = sphi %s607, %s607
        $region106: #{advanced_vae_forward.1} parent=95 // loop_header_branch
          %621 = sbr.rel (%p619) target = $region110
        $region107: #{advanced_vae_forward.1} parent=95 // loop_body
          %v625 = vld [vmem:[%s623] sm:%s616]
          %626 = vst [vmem:[%s624] sm:%s616] %v625
          %v627 = vld [vmem:[%s623 + $0x10] sm:%s616]
          %628 = vst [vmem:[%s624 + $0x4] sm:%s616] %v627
          %v629 = vld [vmem:[%s623 + $0x4] sm:%s616]
          %630 = vst [vmem:[%s624 + $0x8] sm:%s616] %v629
          %v631 = vld [vmem:[%s623 + $0x14] sm:%s616]
          %632 = vst [vmem:[%s624 + $0xc] sm:%s616] %v631
          %v633 = vld [vmem:[%s623 + $0x8] sm:%s616]
          %634 = vst [vmem:[%s624 + $0x10] sm:%s616] %v633
          %v635 = vld [vmem:[%s623 + $0x18] sm:%s616]
          %636 = vst [vmem:[%s624 + $0x14] sm:%s616] %v635
          %v637 = vld [vmem:[%s623 + $0xc] sm:%s616]
          %638 = vst [vmem:[%s624 + $0x18] sm:%s616] %v637
          %v639 = vld [vmem:[%s623 + $0x1c] sm:%s616]
          %640 = vst [vmem:[%s624 + $0x1c] sm:%s616] %v639
          %v641 = vld [vmem:[%s623 + $0x20] sm:%s616]
          %642 = vst [vmem:[%s624 + $0x20] sm:%s616] %v641
          %v643 = vld [vmem:[%s623 + $0x30] sm:%s616]
          %644 = vst [vmem:[%s624 + $0x24] sm:%s616] %v643
          %v645 = vld [vmem:[%s623 + $0x24] sm:%s616]
          %646 = vst [vmem:[%s624 + $0x28] sm:%s616] %v645
          %v647 = vld [vmem:[%s623 + $0x34] sm:%s616]
          %648 = vst [vmem:[%s624 + $0x2c] sm:%s616] %v647
          %v649 = vld [vmem:[%s623 + $0x28] sm:%s616]
          %650 = vst [vmem:[%s624 + $0x30] sm:%s616] %v649
          %v651 = vld [vmem:[%s623 + $0x38] sm:%s616]
          %652 = vst [vmem:[%s624 + $0x34] sm:%s616] %v651
          %v653 = vld [vmem:[%s623 + $0x2c] sm:%s616]
          %654 = vst [vmem:[%s624 + $0x38] sm:%s616] %v653
          %v655 = vld [vmem:[%s623 + $0x3c] sm:%s616]
          %656 = vst [vmem:[%s624 + $0x3c] sm:%s616] %v655
          %v657 = vld [vmem:[%s623 + $0x40] sm:%s616]
          %658 = vst [vmem:[%s624 + $0x40] sm:%s616] %v657
          %v659 = vld [vmem:[%s623 + $0x50] sm:%s616]
          %660 = vst [vmem:[%s624 + $0x44] sm:%s616] %v659
          %v661 = vld [vmem:[%s623 + $0x44] sm:%s616]
          %662 = vst [vmem:[%s624 + $0x48] sm:%s616] %v661
          %v663 = vld [vmem:[%s623 + $0x54] sm:%s616]
          %664 = vst [vmem:[%s624 + $0x4c] sm:%s616] %v663
          %v665 = vld [vmem:[%s623 + $0x48] sm:%s616]
          %666 = vst [vmem:[%s624 + $0x50] sm:%s616] %v665
          %v667 = vld [vmem:[%s623 + $0x58] sm:%s616]
          %668 = vst [vmem:[%s624 + $0x54] sm:%s616] %v667
          %v669 = vld [vmem:[%s623 + $0x4c] sm:%s616]
          %670 = vst [vmem:[%s624 + $0x58] sm:%s616] %v669
          %v671 = vld [vmem:[%s623 + $0x5c] sm:%s616]
          %672 = vst [vmem:[%s624 + $0x5c] sm:%s616] %v671
          %v673 = vld [vmem:[%s623 + $0x60] sm:%s616]
          %674 = vst [vmem:[%s624 + $0x60] sm:%s616] %v673
          %v675 = vld [vmem:[%s623 + $0x70] sm:%s616]
          %676 = vst [vmem:[%s624 + $0x64] sm:%s616] %v675
          %v677 = vld [vmem:[%s623 + $0x64] sm:%s616]
          %678 = vst [vmem:[%s624 + $0x68] sm:%s616] %v677
          %v679 = vld [vmem:[%s623 + $0x74] sm:%s616]
          %680 = vst [vmem:[%s624 + $0x6c] sm:%s616] %v679
          %v681 = vld [vmem:[%s623 + $0x68] sm:%s616]
          %682 = vst [vmem:[%s624 + $0x70] sm:%s616] %v681
          %v683 = vld [vmem:[%s623 + $0x78] sm:%s616]
          %684 = vst [vmem:[%s624 + $0x74] sm:%s616] %v683
          %v685 = vld [vmem:[%s623 + $0x6c] sm:%s616]
          %686 = vst [vmem:[%s624 + $0x78] sm:%s616] %v685
          %v687 = vld [vmem:[%s623 + $0x7c] sm:%s616]
          %688 = vst [vmem:[%s624 + $0x7c] sm:%s616] %v687
          %v689 = vld [vmem:[%s623 + $0x80] sm:%s616]
          %690 = vst [vmem:[%s624 + $0x80] sm:%s616] %v689
          %v691 = vld [vmem:[%s623 + $0x90] sm:%s616]
          %692 = vst [vmem:[%s624 + $0x84] sm:%s616] %v691
          %v693 = vld [vmem:[%s623 + $0x84] sm:%s616]
          %694 = vst [vmem:[%s624 + $0x88] sm:%s616] %v693
          %v695 = vld [vmem:[%s623 + $0x94] sm:%s616]
          %696 = vst [vmem:[%s624 + $0x8c] sm:%s616] %v695
          %v697 = vld [vmem:[%s623 + $0x88] sm:%s616]
          %698 = vst [vmem:[%s624 + $0x90] sm:%s616] %v697
          %v699 = vld [vmem:[%s623 + $0x98] sm:%s616]
          %700 = vst [vmem:[%s624 + $0x94] sm:%s616] %v699
          %v701 = vld [vmem:[%s623 + $0x8c] sm:%s616]
          %702 = vst [vmem:[%s624 + $0x98] sm:%s616] %v701
          %v703 = vld [vmem:[%s623 + $0x9c] sm:%s616]
          %704 = vst [vmem:[%s624 + $0x9c] sm:%s616] %v703
          %v705 = vld [vmem:[%s623 + $0xa0] sm:%s616]
          %706 = vst [vmem:[%s624 + $0xa0] sm:%s616] %v705
          %v707 = vld [vmem:[%s623 + $0xb0] sm:%s616]
          %708 = vst [vmem:[%s624 + $0xa4] sm:%s616] %v707
          %v709 = vld [vmem:[%s623 + $0xa4] sm:%s616]
          %710 = vst [vmem:[%s624 + $0xa8] sm:%s616] %v709
          %v711 = vld [vmem:[%s623 + $0xb4] sm:%s616]
          %712 = vst [vmem:[%s624 + $0xac] sm:%s616] %v711
          %v713 = vld [vmem:[%s623 + $0xa8] sm:%s616]
          %714 = vst [vmem:[%s624 + $0xb0] sm:%s616] %v713
          %v715 = vld [vmem:[%s623 + $0xb8] sm:%s616]
          %716 = vst [vmem:[%s624 + $0xb4] sm:%s616] %v715
          %v717 = vld [vmem:[%s623 + $0xac] sm:%s616]
          %718 = vst [vmem:[%s624 + $0xb8] sm:%s616] %v717
          %v719 = vld [vmem:[%s623 + $0xbc] sm:%s616]
          %720 = vst [vmem:[%s624 + $0xbc] sm:%s616] %v719
          %v721 = vld [vmem:[%s623 + $0xc0] sm:%s616]
          %722 = vst [vmem:[%s624 + $0xc0] sm:%s616] %v721
          %v723 = vld [vmem:[%s623 + $0xd0] sm:%s616]
          %724 = vst [vmem:[%s624 + $0xc4] sm:%s616] %v723
          %v725 = vld [vmem:[%s623 + $0xc4] sm:%s616]
          %726 = vst [vmem:[%s624 + $0xc8] sm:%s616] %v725
          %v727 = vld [vmem:[%s623 + $0xd4] sm:%s616]
          %728 = vst [vmem:[%s624 + $0xcc] sm:%s616] %v727
          %v729 = vld [vmem:[%s623 + $0xc8] sm:%s616]
          %730 = vst [vmem:[%s624 + $0xd0] sm:%s616] %v729
          %v731 = vld [vmem:[%s623 + $0xd8] sm:%s616]
          %732 = vst [vmem:[%s624 + $0xd4] sm:%s616] %v731
          %v733 = vld [vmem:[%s623 + $0xcc] sm:%s616]
          %734 = vst [vmem:[%s624 + $0xd8] sm:%s616] %v733
          %v735 = vld [vmem:[%s623 + $0xdc] sm:%s616]
          %736 = vst [vmem:[%s624 + $0xdc] sm:%s616] %v735
          %v737 = vld [vmem:[%s623 + $0xe0] sm:%s616]
          %738 = vst [vmem:[%s624 + $0xe0] sm:%s616] %v737
          %v739 = vld [vmem:[%s623 + $0xf0] sm:%s616]
          %740 = vst [vmem:[%s624 + $0xe4] sm:%s616] %v739
          %v741 = vld [vmem:[%s623 + $0xe4] sm:%s616]
          %742 = vst [vmem:[%s624 + $0xe8] sm:%s616] %v741
          %v743 = vld [vmem:[%s623 + $0xf4] sm:%s616]
          %744 = vst [vmem:[%s624 + $0xec] sm:%s616] %v743
          %v745 = vld [vmem:[%s623 + $0xe8] sm:%s616]
          %746 = vst [vmem:[%s624 + $0xf0] sm:%s616] %v745
          %v747 = vld [vmem:[%s623 + $0xf8] sm:%s616]
          %748 = vst [vmem:[%s624 + $0xf4] sm:%s616] %v747
          %v749 = vld [vmem:[%s623 + $0xec] sm:%s616]
          %750 = vst [vmem:[%s624 + $0xf8] sm:%s616] %v749
          %v751 = vld [vmem:[%s623 + $0xfc] sm:%s616]
          %752 = vst [vmem:[%s624 + $0xfc] sm:%s616] %v751
          %v753 = vld [vmem:[%s623 + $0x100] sm:%s616]
          %754 = vst [vmem:[%s624 + $0x100] sm:%s616] %v753
          %v755 = vld [vmem:[%s623 + $0x110] sm:%s616]
          %756 = vst [vmem:[%s624 + $0x104] sm:%s616] %v755
          %v757 = vld [vmem:[%s623 + $0x104] sm:%s616]
          %758 = vst [vmem:[%s624 + $0x108] sm:%s616] %v757
          %v759 = vld [vmem:[%s623 + $0x114] sm:%s616]
          %760 = vst [vmem:[%s624 + $0x10c] sm:%s616] %v759
          %v761 = vld [vmem:[%s623 + $0x108] sm:%s616]
          %762 = vst [vmem:[%s624 + $0x110] sm:%s616] %v761
          %v763 = vld [vmem:[%s623 + $0x118] sm:%s616]
          %764 = vst [vmem:[%s624 + $0x114] sm:%s616] %v763
          %v765 = vld [vmem:[%s623 + $0x10c] sm:%s616]
          %766 = vst [vmem:[%s624 + $0x118] sm:%s616] %v765
          %v767 = vld [vmem:[%s623 + $0x11c] sm:%s616]
          %768 = vst [vmem:[%s624 + $0x11c] sm:%s616] %v767
          %v769 = vld [vmem:[%s623 + $0x120] sm:%s616]
          %770 = vst [vmem:[%s624 + $0x120] sm:%s616] %v769
          %v771 = vld [vmem:[%s623 + $0x130] sm:%s616]
          %772 = vst [vmem:[%s624 + $0x124] sm:%s616] %v771
          %v773 = vld [vmem:[%s623 + $0x124] sm:%s616]
          %774 = vst [vmem:[%s624 + $0x128] sm:%s616] %v773
          %v775 = vld [vmem:[%s623 + $0x134] sm:%s616]
          %776 = vst [vmem:[%s624 + $0x12c] sm:%s616] %v775
          %v777 = vld [vmem:[%s623 + $0x128] sm:%s616]
          %778 = vst [vmem:[%s624 + $0x130] sm:%s616] %v777
          %v779 = vld [vmem:[%s623 + $0x138] sm:%s616]
          %780 = vst [vmem:[%s624 + $0x134] sm:%s616] %v779
          %v781 = vld [vmem:[%s623 + $0x12c] sm:%s616]
          %782 = vst [vmem:[%s624 + $0x138] sm:%s616] %v781
          %v783 = vld [vmem:[%s623 + $0x13c] sm:%s616]
          %784 = vst [vmem:[%s624 + $0x13c] sm:%s616] %v783
          %v785 = vld [vmem:[%s623 + $0x140] sm:%s616]
          %786 = vst [vmem:[%s624 + $0x140] sm:%s616] %v785
          %v787 = vld [vmem:[%s623 + $0x150] sm:%s616]
          %788 = vst [vmem:[%s624 + $0x144] sm:%s616] %v787
          %v789 = vld [vmem:[%s623 + $0x144] sm:%s616]
          %790 = vst [vmem:[%s624 + $0x148] sm:%s616] %v789
          %v791 = vld [vmem:[%s623 + $0x154] sm:%s616]
          %792 = vst [vmem:[%s624 + $0x14c] sm:%s616] %v791
          %v793 = vld [vmem:[%s623 + $0x148] sm:%s616]
          %794 = vst [vmem:[%s624 + $0x150] sm:%s616] %v793
          %v795 = vld [vmem:[%s623 + $0x158] sm:%s616]
          %796 = vst [vmem:[%s624 + $0x154] sm:%s616] %v795
          %v797 = vld [vmem:[%s623 + $0x14c] sm:%s616]
          %798 = vst [vmem:[%s624 + $0x158] sm:%s616] %v797
          %v799 = vld [vmem:[%s623 + $0x15c] sm:%s616]
          %800 = vst [vmem:[%s624 + $0x15c] sm:%s616] %v799
          %v801 = vld [vmem:[%s623 + $0x160] sm:%s616]
          %802 = vst [vmem:[%s624 + $0x160] sm:%s616] %v801
          %v803 = vld [vmem:[%s623 + $0x170] sm:%s616]
          %804 = vst [vmem:[%s624 + $0x164] sm:%s616] %v803
          %v805 = vld [vmem:[%s623 + $0x164] sm:%s616]
          %806 = vst [vmem:[%s624 + $0x168] sm:%s616] %v805
          %v807 = vld [vmem:[%s623 + $0x174] sm:%s616]
          %808 = vst [vmem:[%s624 + $0x16c] sm:%s616] %v807
          %v809 = vld [vmem:[%s623 + $0x168] sm:%s616]
          %810 = vst [vmem:[%s624 + $0x170] sm:%s616] %v809
          %v811 = vld [vmem:[%s623 + $0x178] sm:%s616]
          %812 = vst [vmem:[%s624 + $0x174] sm:%s616] %v811
          %v813 = vld [vmem:[%s623 + $0x16c] sm:%s616]
          %814 = vst [vmem:[%s624 + $0x178] sm:%s616] %v813
          %v815 = vld [vmem:[%s623 + $0x17c] sm:%s616]
          %816 = vst [vmem:[%s624 + $0x17c] sm:%s616] %v815
          %v817 = vld [vmem:[%s623 + $0x180] sm:%s616]
          %818 = vst [vmem:[%s624 + $0x180] sm:%s616] %v817
          %v819 = vld [vmem:[%s623 + $0x190] sm:%s616]
          %820 = vst [vmem:[%s624 + $0x184] sm:%s616] %v819
          %v821 = vld [vmem:[%s623 + $0x184] sm:%s616]
          %822 = vst [vmem:[%s624 + $0x188] sm:%s616] %v821
          %v823 = vld [vmem:[%s623 + $0x194] sm:%s616]
          %824 = vst [vmem:[%s624 + $0x18c] sm:%s616] %v823
          %v825 = vld [vmem:[%s623 + $0x188] sm:%s616]
          %826 = vst [vmem:[%s624 + $0x190] sm:%s616] %v825
          %v827 = vld [vmem:[%s623 + $0x198] sm:%s616]
          %828 = vst [vmem:[%s624 + $0x194] sm:%s616] %v827
          %v829 = vld [vmem:[%s623 + $0x18c] sm:%s616]
          %830 = vst [vmem:[%s624 + $0x198] sm:%s616] %v829
          %v831 = vld [vmem:[%s623 + $0x19c] sm:%s616]
          %832 = vst [vmem:[%s624 + $0x19c] sm:%s616] %v831
          %v833 = vld [vmem:[%s623 + $0x1a0] sm:%s616]
          %834 = vst [vmem:[%s624 + $0x1a0] sm:%s616] %v833
          %v835 = vld [vmem:[%s623 + $0x1b0] sm:%s616]
          %836 = vst [vmem:[%s624 + $0x1a4] sm:%s616] %v835
          %v837 = vld [vmem:[%s623 + $0x1a4] sm:%s616]
          %838 = vst [vmem:[%s624 + $0x1a8] sm:%s616] %v837
          %v839 = vld [vmem:[%s623 + $0x1b4] sm:%s616]
          %840 = vst [vmem:[%s624 + $0x1ac] sm:%s616] %v839
          %v841 = vld [vmem:[%s623 + $0x1a8] sm:%s616]
          %842 = vst [vmem:[%s624 + $0x1b0] sm:%s616] %v841
          %v843 = vld [vmem:[%s623 + $0x1b8] sm:%s616]
          %844 = vst [vmem:[%s624 + $0x1b4] sm:%s616] %v843
          %v845 = vld [vmem:[%s623 + $0x1ac] sm:%s616]
          %846 = vst [vmem:[%s624 + $0x1b8] sm:%s616] %v845
          %v847 = vld [vmem:[%s623 + $0x1bc] sm:%s616]
          %848 = vst [vmem:[%s624 + $0x1bc] sm:%s616] %v847
          %v849 = vld [vmem:[%s623 + $0x1c0] sm:%s616]
          %850 = vst [vmem:[%s624 + $0x1c0] sm:%s616] %v849
          %v851 = vld [vmem:[%s623 + $0x1d0] sm:%s616]
          %852 = vst [vmem:[%s624 + $0x1c4] sm:%s616] %v851
          %v853 = vld [vmem:[%s623 + $0x1c4] sm:%s616]
          %854 = vst [vmem:[%s624 + $0x1c8] sm:%s616] %v853
          %v855 = vld [vmem:[%s623 + $0x1d4] sm:%s616]
          %856 = vst [vmem:[%s624 + $0x1cc] sm:%s616] %v855
          %v857 = vld [vmem:[%s623 + $0x1c8] sm:%s616]
          %858 = vst [vmem:[%s624 + $0x1d0] sm:%s616] %v857
          %v859 = vld [vmem:[%s623 + $0x1d8] sm:%s616]
          %860 = vst [vmem:[%s624 + $0x1d4] sm:%s616] %v859
          %v861 = vld [vmem:[%s623 + $0x1cc] sm:%s616]
          %862 = vst [vmem:[%s624 + $0x1d8] sm:%s616] %v861
          %v863 = vld [vmem:[%s623 + $0x1dc] sm:%s616]
          %864 = vst [vmem:[%s624 + $0x1dc] sm:%s616] %v863
          %v865 = vld [vmem:[%s623 + $0x1e0] sm:%s616]
          %866 = vst [vmem:[%s624 + $0x1e0] sm:%s616] %v865
          %v867 = vld [vmem:[%s623 + $0x1f0] sm:%s616]
          %868 = vst [vmem:[%s624 + $0x1e4] sm:%s616] %v867
          %v869 = vld [vmem:[%s623 + $0x1e4] sm:%s616]
          %870 = vst [vmem:[%s624 + $0x1e8] sm:%s616] %v869
          %v871 = vld [vmem:[%s623 + $0x1f4] sm:%s616]
          %872 = vst [vmem:[%s624 + $0x1ec] sm:%s616] %v871
          %v873 = vld [vmem:[%s623 + $0x1e8] sm:%s616]
          %874 = vst [vmem:[%s624 + $0x1f0] sm:%s616] %v873
          %v875 = vld [vmem:[%s623 + $0x1f8] sm:%s616]
          %876 = vst [vmem:[%s624 + $0x1f4] sm:%s616] %v875
          %v877 = vld [vmem:[%s623 + $0x1ec] sm:%s616]
          %878 = vst [vmem:[%s624 + $0x1f8] sm:%s616] %v877
          %v879 = vld [vmem:[%s623 + $0x1fc] sm:%s616]
          %880 = vst [vmem:[%s624 + $0x1fc] sm:%s616] %v879
          %v881 = vld [vmem:[%s623 + $0x200] sm:%s616]
          %882 = vst [vmem:[%s624 + $0x200] sm:%s616] %v881
          %v883 = vld [vmem:[%s623 + $0x210] sm:%s616]
          %884 = vst [vmem:[%s624 + $0x204] sm:%s616] %v883
          %v885 = vld [vmem:[%s623 + $0x204] sm:%s616]
          %886 = vst [vmem:[%s624 + $0x208] sm:%s616] %v885
          %v887 = vld [vmem:[%s623 + $0x214] sm:%s616]
          %888 = vst [vmem:[%s624 + $0x20c] sm:%s616] %v887
          %v889 = vld [vmem:[%s623 + $0x208] sm:%s616]
          %890 = vst [vmem:[%s624 + $0x210] sm:%s616] %v889
          %v891 = vld [vmem:[%s623 + $0x218] sm:%s616]
          %892 = vst [vmem:[%s624 + $0x214] sm:%s616] %v891
          %v893 = vld [vmem:[%s623 + $0x20c] sm:%s616]
          %894 = vst [vmem:[%s624 + $0x218] sm:%s616] %v893
          %v895 = vld [vmem:[%s623 + $0x21c] sm:%s616]
          %896 = vst [vmem:[%s624 + $0x21c] sm:%s616] %v895
          %v897 = vld [vmem:[%s623 + $0x220] sm:%s616]
          %898 = vst [vmem:[%s624 + $0x220] sm:%s616] %v897
          %v899 = vld [vmem:[%s623 + $0x230] sm:%s616]
          %900 = vst [vmem:[%s624 + $0x224] sm:%s616] %v899
          %v901 = vld [vmem:[%s623 + $0x224] sm:%s616]
          %902 = vst [vmem:[%s624 + $0x228] sm:%s616] %v901
          %v903 = vld [vmem:[%s623 + $0x234] sm:%s616]
          %904 = vst [vmem:[%s624 + $0x22c] sm:%s616] %v903
          %v905 = vld [vmem:[%s623 + $0x228] sm:%s616]
          %906 = vst [vmem:[%s624 + $0x230] sm:%s616] %v905
          %v907 = vld [vmem:[%s623 + $0x238] sm:%s616]
          %908 = vst [vmem:[%s624 + $0x234] sm:%s616] %v907
          %v909 = vld [vmem:[%s623 + $0x22c] sm:%s616]
          %910 = vst [vmem:[%s624 + $0x238] sm:%s616] %v909
          %v911 = vld [vmem:[%s623 + $0x23c] sm:%s616]
          %912 = vst [vmem:[%s624 + $0x23c] sm:%s616] %v911
          %v913 = vld [vmem:[%s623 + $0x240] sm:%s616]
          %914 = vst [vmem:[%s624 + $0x240] sm:%s616] %v913
          %v915 = vld [vmem:[%s623 + $0x250] sm:%s616]
          %916 = vst [vmem:[%s624 + $0x244] sm:%s616] %v915
          %v917 = vld [vmem:[%s623 + $0x244] sm:%s616]
          %918 = vst [vmem:[%s624 + $0x248] sm:%s616] %v917
          %v919 = vld [vmem:[%s623 + $0x254] sm:%s616]
          %920 = vst [vmem:[%s624 + $0x24c] sm:%s616] %v919
          %v921 = vld [vmem:[%s623 + $0x248] sm:%s616]
          %922 = vst [vmem:[%s624 + $0x250] sm:%s616] %v921
          %v923 = vld [vmem:[%s623 + $0x258] sm:%s616]
          %924 = vst [vmem:[%s624 + $0x254] sm:%s616] %v923
          %v925 = vld [vmem:[%s623 + $0x24c] sm:%s616]
          %926 = vst [vmem:[%s624 + $0x258] sm:%s616] %v925
          %v927 = vld [vmem:[%s623 + $0x25c] sm:%s616]
          %928 = vst [vmem:[%s624 + $0x25c] sm:%s616] %v927
          %v929 = vld [vmem:[%s623 + $0x260] sm:%s616]
          %930 = vst [vmem:[%s624 + $0x260] sm:%s616] %v929
          %v931 = vld [vmem:[%s623 + $0x270] sm:%s616]
          %932 = vst [vmem:[%s624 + $0x264] sm:%s616] %v931
          %v933 = vld [vmem:[%s623 + $0x264] sm:%s616]
          %934 = vst [vmem:[%s624 + $0x268] sm:%s616] %v933
          %v935 = vld [vmem:[%s623 + $0x274] sm:%s616]
          %936 = vst [vmem:[%s624 + $0x26c] sm:%s616] %v935
          %v937 = vld [vmem:[%s623 + $0x268] sm:%s616]
          %938 = vst [vmem:[%s624 + $0x270] sm:%s616] %v937
          %v939 = vld [vmem:[%s623 + $0x278] sm:%s616]
          %940 = vst [vmem:[%s624 + $0x274] sm:%s616] %v939
          %v941 = vld [vmem:[%s623 + $0x26c] sm:%s616]
          %942 = vst [vmem:[%s624 + $0x278] sm:%s616] %v941
          %v943 = vld [vmem:[%s623 + $0x27c] sm:%s616]
          %944 = vst [vmem:[%s624 + $0x27c] sm:%s616] %v943
          %v945 = vld [vmem:[%s623 + $0x280] sm:%s616]
          %946 = vst [vmem:[%s624 + $0x280] sm:%s616] %v945
          %v947 = vld [vmem:[%s623 + $0x290] sm:%s616]
          %948 = vst [vmem:[%s624 + $0x284] sm:%s616] %v947
          %v949 = vld [vmem:[%s623 + $0x284] sm:%s616]
          %950 = vst [vmem:[%s624 + $0x288] sm:%s616] %v949
          %v951 = vld [vmem:[%s623 + $0x294] sm:%s616]
          %952 = vst [vmem:[%s624 + $0x28c] sm:%s616] %v951
          %v953 = vld [vmem:[%s623 + $0x288] sm:%s616]
          %954 = vst [vmem:[%s624 + $0x290] sm:%s616] %v953
          %v955 = vld [vmem:[%s623 + $0x298] sm:%s616]
          %956 = vst [vmem:[%s624 + $0x294] sm:%s616] %v955
          %v957 = vld [vmem:[%s623 + $0x28c] sm:%s616]
          %958 = vst [vmem:[%s624 + $0x298] sm:%s616] %v957
          %v959 = vld [vmem:[%s623 + $0x29c] sm:%s616]
          %960 = vst [vmem:[%s624 + $0x29c] sm:%s616] %v959
          %v961 = vld [vmem:[%s623 + $0x2a0] sm:%s616]
          %962 = vst [vmem:[%s624 + $0x2a0] sm:%s616] %v961
          %v963 = vld [vmem:[%s623 + $0x2b0] sm:%s616]
          %964 = vst [vmem:[%s624 + $0x2a4] sm:%s616] %v963
          %v965 = vld [vmem:[%s623 + $0x2a4] sm:%s616]
          %966 = vst [vmem:[%s624 + $0x2a8] sm:%s616] %v965
          %v967 = vld [vmem:[%s623 + $0x2b4] sm:%s616]
          %968 = vst [vmem:[%s624 + $0x2ac] sm:%s616] %v967
          %v969 = vld [vmem:[%s623 + $0x2a8] sm:%s616]
          %970 = vst [vmem:[%s624 + $0x2b0] sm:%s616] %v969
          %v971 = vld [vmem:[%s623 + $0x2b8] sm:%s616]
          %972 = vst [vmem:[%s624 + $0x2b4] sm:%s616] %v971
          %v973 = vld [vmem:[%s623 + $0x2ac] sm:%s616]
          %974 = vst [vmem:[%s624 + $0x2b8] sm:%s616] %v973
          %v975 = vld [vmem:[%s623 + $0x2bc] sm:%s616]
          %976 = vst [vmem:[%s624 + $0x2bc] sm:%s616] %v975
          %v977 = vld [vmem:[%s623 + $0x2c0] sm:%s616]
          %978 = vst [vmem:[%s624 + $0x2c0] sm:%s616] %v977
          %v979 = vld [vmem:[%s623 + $0x2d0] sm:%s616]
          %980 = vst [vmem:[%s624 + $0x2c4] sm:%s616] %v979
          %v981 = vld [vmem:[%s623 + $0x2c4] sm:%s616]
          %982 = vst [vmem:[%s624 + $0x2c8] sm:%s616] %v981
          %v983 = vld [vmem:[%s623 + $0x2d4] sm:%s616]
          %984 = vst [vmem:[%s624 + $0x2cc] sm:%s616] %v983
          %v985 = vld [vmem:[%s623 + $0x2c8] sm:%s616]
          %986 = vst [vmem:[%s624 + $0x2d0] sm:%s616] %v985
          %v987 = vld [vmem:[%s623 + $0x2d8] sm:%s616]
          %988 = vst [vmem:[%s624 + $0x2d4] sm:%s616] %v987
          %v989 = vld [vmem:[%s623 + $0x2cc] sm:%s616]
          %990 = vst [vmem:[%s624 + $0x2d8] sm:%s616] %v989
          %v991 = vld [vmem:[%s623 + $0x2dc] sm:%s616]
          %992 = vst [vmem:[%s624 + $0x2dc] sm:%s616] %v991
          %v993 = vld [vmem:[%s623 + $0x2e0] sm:%s616]
          %994 = vst [vmem:[%s624 + $0x2e0] sm:%s616] %v993
          %v995 = vld [vmem:[%s623 + $0x2f0] sm:%s616]
          %996 = vst [vmem:[%s624 + $0x2e4] sm:%s616] %v995
          %v997 = vld [vmem:[%s623 + $0x2e4] sm:%s616]
          %998 = vst [vmem:[%s624 + $0x2e8] sm:%s616] %v997
          %v999 = vld [vmem:[%s623 + $0x2f4] sm:%s616]
          %1000 = vst [vmem:[%s624 + $0x2ec] sm:%s616] %v999
          %v1001 = vld [vmem:[%s623 + $0x2e8] sm:%s616]
          %1002 = vst [vmem:[%s624 + $0x2f0] sm:%s616] %v1001
          %v1003 = vld [vmem:[%s623 + $0x2f8] sm:%s616]
          %1004 = vst [vmem:[%s624 + $0x2f4] sm:%s616] %v1003
          %v1005 = vld [vmem:[%s623 + $0x2ec] sm:%s616]
          %1006 = vst [vmem:[%s624 + $0x2f8] sm:%s616] %v1005
          %v1007 = vld [vmem:[%s623 + $0x2fc] sm:%s616]
          %1008 = vst [vmem:[%s624 + $0x2fc] sm:%s616] %v1007
          %v1009 = vld [vmem:[%s623 + $0x300] sm:%s616]
          %1010 = vst [vmem:[%s624 + $0x300] sm:%s616] %v1009
          %v1011 = vld [vmem:[%s623 + $0x310] sm:%s616]
          %1012 = vst [vmem:[%s624 + $0x304] sm:%s616] %v1011
          %v1013 = vld [vmem:[%s623 + $0x304] sm:%s616]
          %1014 = vst [vmem:[%s624 + $0x308] sm:%s616] %v1013
          %v1015 = vld [vmem:[%s623 + $0x314] sm:%s616]
          %1016 = vst [vmem:[%s624 + $0x30c] sm:%s616] %v1015
          %v1017 = vld [vmem:[%s623 + $0x308] sm:%s616]
          %1018 = vst [vmem:[%s624 + $0x310] sm:%s616] %v1017
          %v1019 = vld [vmem:[%s623 + $0x318] sm:%s616]
          %1020 = vst [vmem:[%s624 + $0x314] sm:%s616] %v1019
          %v1021 = vld [vmem:[%s623 + $0x30c] sm:%s616]
          %1022 = vst [vmem:[%s624 + $0x318] sm:%s616] %v1021
          %v1023 = vld [vmem:[%s623 + $0x31c] sm:%s616]
          %1024 = vst [vmem:[%s624 + $0x31c] sm:%s616] %v1023
          %v1025 = vld [vmem:[%s623 + $0x320] sm:%s616]
          %1026 = vst [vmem:[%s624 + $0x320] sm:%s616] %v1025
          %v1027 = vld [vmem:[%s623 + $0x330] sm:%s616]
          %1028 = vst [vmem:[%s624 + $0x324] sm:%s616] %v1027
          %v1029 = vld [vmem:[%s623 + $0x324] sm:%s616]
          %1030 = vst [vmem:[%s624 + $0x328] sm:%s616] %v1029
          %v1031 = vld [vmem:[%s623 + $0x334] sm:%s616]
          %1032 = vst [vmem:[%s624 + $0x32c] sm:%s616] %v1031
          %v1033 = vld [vmem:[%s623 + $0x328] sm:%s616]
          %1034 = vst [vmem:[%s624 + $0x330] sm:%s616] %v1033
          %v1035 = vld [vmem:[%s623 + $0x338] sm:%s616]
          %1036 = vst [vmem:[%s624 + $0x334] sm:%s616] %v1035
          %v1037 = vld [vmem:[%s623 + $0x32c] sm:%s616]
          %1038 = vst [vmem:[%s624 + $0x338] sm:%s616] %v1037
          %v1039 = vld [vmem:[%s623 + $0x33c] sm:%s616]
          %1040 = vst [vmem:[%s624 + $0x33c] sm:%s616] %v1039
          %v1041 = vld [vmem:[%s623 + $0x340] sm:%s616]
          %1042 = vst [vmem:[%s624 + $0x340] sm:%s616] %v1041
          %v1043 = vld [vmem:[%s623 + $0x350] sm:%s616]
          %1044 = vst [vmem:[%s624 + $0x344] sm:%s616] %v1043
          %v1045 = vld [vmem:[%s623 + $0x344] sm:%s616]
          %1046 = vst [vmem:[%s624 + $0x348] sm:%s616] %v1045
          %v1047 = vld [vmem:[%s623 + $0x354] sm:%s616]
          %1048 = vst [vmem:[%s624 + $0x34c] sm:%s616] %v1047
          %v1049 = vld [vmem:[%s623 + $0x348] sm:%s616]
          %1050 = vst [vmem:[%s624 + $0x350] sm:%s616] %v1049
          %v1051 = vld [vmem:[%s623 + $0x358] sm:%s616]
          %1052 = vst [vmem:[%s624 + $0x354] sm:%s616] %v1051
          %v1053 = vld [vmem:[%s623 + $0x34c] sm:%s616]
          %1054 = vst [vmem:[%s624 + $0x358] sm:%s616] %v1053
          %v1055 = vld [vmem:[%s623 + $0x35c] sm:%s616]
          %1056 = vst [vmem:[%s624 + $0x35c] sm:%s616] %v1055
          %v1057 = vld [vmem:[%s623 + $0x360] sm:%s616]
          %1058 = vst [vmem:[%s624 + $0x360] sm:%s616] %v1057
          %v1059 = vld [vmem:[%s623 + $0x370] sm:%s616]
          %1060 = vst [vmem:[%s624 + $0x364] sm:%s616] %v1059
          %v1061 = vld [vmem:[%s623 + $0x364] sm:%s616]
          %1062 = vst [vmem:[%s624 + $0x368] sm:%s616] %v1061
          %v1063 = vld [vmem:[%s623 + $0x374] sm:%s616]
          %1064 = vst [vmem:[%s624 + $0x36c] sm:%s616] %v1063
          %v1065 = vld [vmem:[%s623 + $0x368] sm:%s616]
          %1066 = vst [vmem:[%s624 + $0x370] sm:%s616] %v1065
          %v1067 = vld [vmem:[%s623 + $0x378] sm:%s616]
          %1068 = vst [vmem:[%s624 + $0x374] sm:%s616] %v1067
          %v1069 = vld [vmem:[%s623 + $0x36c] sm:%s616]
          %1070 = vst [vmem:[%s624 + $0x378] sm:%s616] %v1069
          %v1071 = vld [vmem:[%s623 + $0x37c] sm:%s616]
          %1072 = vst [vmem:[%s624 + $0x37c] sm:%s616] %v1071
          %v1073 = vld [vmem:[%s623 + $0x380] sm:%s616]
          %1074 = vst [vmem:[%s624 + $0x380] sm:%s616] %v1073
          %v1075 = vld [vmem:[%s623 + $0x390] sm:%s616]
          %1076 = vst [vmem:[%s624 + $0x384] sm:%s616] %v1075
          %v1077 = vld [vmem:[%s623 + $0x384] sm:%s616]
          %1078 = vst [vmem:[%s624 + $0x388] sm:%s616] %v1077
          %v1079 = vld [vmem:[%s623 + $0x394] sm:%s616]
          %1080 = vst [vmem:[%s624 + $0x38c] sm:%s616] %v1079
          %v1081 = vld [vmem:[%s623 + $0x388] sm:%s616]
          %1082 = vst [vmem:[%s624 + $0x390] sm:%s616] %v1081
          %v1083 = vld [vmem:[%s623 + $0x398] sm:%s616]
          %1084 = vst [vmem:[%s624 + $0x394] sm:%s616] %v1083
          %v1085 = vld [vmem:[%s623 + $0x38c] sm:%s616]
          %1086 = vst [vmem:[%s624 + $0x398] sm:%s616] %v1085
          %v1087 = vld [vmem:[%s623 + $0x39c] sm:%s616]
          %1088 = vst [vmem:[%s624 + $0x39c] sm:%s616] %v1087
          %v1089 = vld [vmem:[%s623 + $0x3a0] sm:%s616]
          %1090 = vst [vmem:[%s624 + $0x3a0] sm:%s616] %v1089
          %v1091 = vld [vmem:[%s623 + $0x3b0] sm:%s616]
          %1092 = vst [vmem:[%s624 + $0x3a4] sm:%s616] %v1091
          %v1093 = vld [vmem:[%s623 + $0x3a4] sm:%s616]
          %1094 = vst [vmem:[%s624 + $0x3a8] sm:%s616] %v1093
          %v1095 = vld [vmem:[%s623 + $0x3b4] sm:%s616]
          %1096 = vst [vmem:[%s624 + $0x3ac] sm:%s616] %v1095
          %v1097 = vld [vmem:[%s623 + $0x3a8] sm:%s616]
          %1098 = vst [vmem:[%s624 + $0x3b0] sm:%s616] %v1097
          %v1099 = vld [vmem:[%s623 + $0x3b8] sm:%s616]
          %1100 = vst [vmem:[%s624 + $0x3b4] sm:%s616] %v1099
          %v1101 = vld [vmem:[%s623 + $0x3ac] sm:%s616]
          %1102 = vst [vmem:[%s624 + $0x3b8] sm:%s616] %v1101
          %v1103 = vld [vmem:[%s623 + $0x3bc] sm:%s616]
          %1104 = vst [vmem:[%s624 + $0x3bc] sm:%s616] %v1103
          %v1105 = vld [vmem:[%s623 + $0x3c0] sm:%s616]
          %1106 = vst [vmem:[%s624 + $0x3c0] sm:%s616] %v1105
          %v1107 = vld [vmem:[%s623 + $0x3d0] sm:%s616]
          %1108 = vst [vmem:[%s624 + $0x3c4] sm:%s616] %v1107
          %v1109 = vld [vmem:[%s623 + $0x3c4] sm:%s616]
          %1110 = vst [vmem:[%s624 + $0x3c8] sm:%s616] %v1109
          %v1111 = vld [vmem:[%s623 + $0x3d4] sm:%s616]
          %1112 = vst [vmem:[%s624 + $0x3cc] sm:%s616] %v1111
          %v1113 = vld [vmem:[%s623 + $0x3c8] sm:%s616]
          %1114 = vst [vmem:[%s624 + $0x3d0] sm:%s616] %v1113
          %v1115 = vld [vmem:[%s623 + $0x3d8] sm:%s616]
          %1116 = vst [vmem:[%s624 + $0x3d4] sm:%s616] %v1115
          %v1117 = vld [vmem:[%s623 + $0x3cc] sm:%s616]
          %1118 = vst [vmem:[%s624 + $0x3d8] sm:%s616] %v1117
          %v1119 = vld [vmem:[%s623 + $0x3dc] sm:%s616]
          %1120 = vst [vmem:[%s624 + $0x3dc] sm:%s616] %v1119
          %v1121 = vld [vmem:[%s623 + $0x3e0] sm:%s616]
          %1122 = vst [vmem:[%s624 + $0x3e0] sm:%s616] %v1121
          %v1123 = vld [vmem:[%s623 + $0x3f0] sm:%s616]
          %1124 = vst [vmem:[%s624 + $0x3e4] sm:%s616] %v1123
          %v1125 = vld [vmem:[%s623 + $0x3e4] sm:%s616]
          %1126 = vst [vmem:[%s624 + $0x3e8] sm:%s616] %v1125
          %v1127 = vld [vmem:[%s623 + $0x3f4] sm:%s616]
          %1128 = vst [vmem:[%s624 + $0x3ec] sm:%s616] %v1127
          %v1129 = vld [vmem:[%s623 + $0x3e8] sm:%s616]
          %1130 = vst [vmem:[%s624 + $0x3f0] sm:%s616] %v1129
          %v1131 = vld [vmem:[%s623 + $0x3f8] sm:%s616]
          %1132 = vst [vmem:[%s624 + $0x3f4] sm:%s616] %v1131
          %v1133 = vld [vmem:[%s623 + $0x3ec] sm:%s616]
          %1134 = vst [vmem:[%s624 + $0x3f8] sm:%s616] %v1133
          %v1135 = vld [vmem:[%s623 + $0x3fc] sm:%s616]
          %1136 = vst [vmem:[%s624 + $0x3fc] sm:%s616] %v1135
        $region108: #{advanced_vae_forward.1} parent=95 // loop_footer
          %s622 = sadd.s32 1, %s618
        $region109: #{advanced_vae_forward.1} parent=95 // loop_footer_branch
          %617 = sbr.rel target = $region105
        $region110: #{advanced_vae_forward.1} parent=95 // loop_exit
          _
      $region96: #{advanced_vae_forward.1} parent=80 // pred_fallthru
        _
    $region81: #{advanced_vae_forward.1} parent=1 // pred_fallthru
      _
    // Predicated region
    $region82: #{advanced_vae_forward.1} parent=1 // pred_check
      %p74 = pneg %p70
    $region83: #{advanced_vae_forward.1} parent=1 // pred_check_branch
      %76 = sbr.rel (%p74) target = $region85
    $region84: #{advanced_vae_forward.1} parent=1 // pred_region
      %s77 = sshllo.u32 0, 4
      loop: start=0, step=1, limit=1
      $region86: #{advanced_vae_forward.1} parent=84 // loop_pre_header
        _
      $region87: #{advanced_vae_forward.1} parent=84 // loop_header
        %s79 = sphi 0, %s83
        %p80 = scmp.ge.s32.totalorder %s79, 1
        %s84 = sphi %s19, %s19
        %s85 = sphi [#allocation2], [#allocation2]
      $region88: #{advanced_vae_forward.1} parent=84 // loop_header_branch
        %82 = sbr.rel (%p80) target = $region92
      $region89: #{advanced_vae_forward.1} parent=84 // loop_body
        %v86 = vld [vmem:[%s84] sm:%s77]
        %87 = vst [vmem:[%s85] sm:%s77] %v86
        %v88 = vld [vmem:[%s84 + $0x10] sm:%s77]
        %89 = vst [vmem:[%s85 + $0x4] sm:%s77] %v88
        %v90 = vld [vmem:[%s84 + $0x4] sm:%s77]
        %91 = vst [vmem:[%s85 + $0x8] sm:%s77] %v90
        %v92 = vld [vmem:[%s84 + $0x14] sm:%s77]
        %93 = vst [vmem:[%s85 + $0xc] sm:%s77] %v92
        %v94 = vld [vmem:[%s84 + $0x8] sm:%s77]
        %95 = vst [vmem:[%s85 + $0x10] sm:%s77] %v94
        %v96 = vld [vmem:[%s84 + $0x18] sm:%s77]
        %97 = vst [vmem:[%s85 + $0x14] sm:%s77] %v96
        %v98 = vld [vmem:[%s84 + $0xc] sm:%s77]
        %99 = vst [vmem:[%s85 + $0x18] sm:%s77] %v98
        %v100 = vld [vmem:[%s84 + $0x1c] sm:%s77]
        %101 = vst [vmem:[%s85 + $0x1c] sm:%s77] %v100
        %v102 = vld [vmem:[%s84 + $0x20] sm:%s77]
        %103 = vst [vmem:[%s85 + $0x20] sm:%s77] %v102
        %v104 = vld [vmem:[%s84 + $0x30] sm:%s77]
        %105 = vst [vmem:[%s85 + $0x24] sm:%s77] %v104
        %v106 = vld [vmem:[%s84 + $0x24] sm:%s77]
        %107 = vst [vmem:[%s85 + $0x28] sm:%s77] %v106
        %v108 = vld [vmem:[%s84 + $0x34] sm:%s77]
        %109 = vst [vmem:[%s85 + $0x2c] sm:%s77] %v108
        %v110 = vld [vmem:[%s84 + $0x28] sm:%s77]
        %111 = vst [vmem:[%s85 + $0x30] sm:%s77] %v110
        %v112 = vld [vmem:[%s84 + $0x38] sm:%s77]
        %113 = vst [vmem:[%s85 + $0x34] sm:%s77] %v112
        %v114 = vld [vmem:[%s84 + $0x2c] sm:%s77]
        %115 = vst [vmem:[%s85 + $0x38] sm:%s77] %v114
        %v116 = vld [vmem:[%s84 + $0x3c] sm:%s77]
        %117 = vst [vmem:[%s85 + $0x3c] sm:%s77] %v116
        %v118 = vld [vmem:[%s84 + $0x40] sm:%s77]
        %119 = vst [vmem:[%s85 + $0x40] sm:%s77] %v118
        %v120 = vld [vmem:[%s84 + $0x50] sm:%s77]
        %121 = vst [vmem:[%s85 + $0x44] sm:%s77] %v120
        %v122 = vld [vmem:[%s84 + $0x44] sm:%s77]
        %123 = vst [vmem:[%s85 + $0x48] sm:%s77] %v122
        %v124 = vld [vmem:[%s84 + $0x54] sm:%s77]
        %125 = vst [vmem:[%s85 + $0x4c] sm:%s77] %v124
        %v126 = vld [vmem:[%s84 + $0x48] sm:%s77]
        %127 = vst [vmem:[%s85 + $0x50] sm:%s77] %v126
        %v128 = vld [vmem:[%s84 + $0x58] sm:%s77]
        %129 = vst [vmem:[%s85 + $0x54] sm:%s77] %v128
        %v130 = vld [vmem:[%s84 + $0x4c] sm:%s77]
        %131 = vst [vmem:[%s85 + $0x58] sm:%s77] %v130
        %v132 = vld [vmem:[%s84 + $0x5c] sm:%s77]
        %133 = vst [vmem:[%s85 + $0x5c] sm:%s77] %v132
        %v134 = vld [vmem:[%s84 + $0x60] sm:%s77]
        %135 = vst [vmem:[%s85 + $0x60] sm:%s77] %v134
        %v136 = vld [vmem:[%s84 + $0x70] sm:%s77]
        %137 = vst [vmem:[%s85 + $0x64] sm:%s77] %v136
        %v138 = vld [vmem:[%s84 + $0x64] sm:%s77]
        %139 = vst [vmem:[%s85 + $0x68] sm:%s77] %v138
        %v140 = vld [vmem:[%s84 + $0x74] sm:%s77]
        %141 = vst [vmem:[%s85 + $0x6c] sm:%s77] %v140
        %v142 = vld [vmem:[%s84 + $0x68] sm:%s77]
        %143 = vst [vmem:[%s85 + $0x70] sm:%s77] %v142
        %v144 = vld [vmem:[%s84 + $0x78] sm:%s77]
        %145 = vst [vmem:[%s85 + $0x74] sm:%s77] %v144
        %v146 = vld [vmem:[%s84 + $0x6c] sm:%s77]
        %147 = vst [vmem:[%s85 + $0x78] sm:%s77] %v146
        %v148 = vld [vmem:[%s84 + $0x7c] sm:%s77]
        %149 = vst [vmem:[%s85 + $0x7c] sm:%s77] %v148
        %v150 = vld [vmem:[%s84 + $0x80] sm:%s77]
        %151 = vst [vmem:[%s85 + $0x80] sm:%s77] %v150
        %v152 = vld [vmem:[%s84 + $0x90] sm:%s77]
        %153 = vst [vmem:[%s85 + $0x84] sm:%s77] %v152
        %v154 = vld [vmem:[%s84 + $0x84] sm:%s77]
        %155 = vst [vmem:[%s85 + $0x88] sm:%s77] %v154
        %v156 = vld [vmem:[%s84 + $0x94] sm:%s77]
        %157 = vst [vmem:[%s85 + $0x8c] sm:%s77] %v156
        %v158 = vld [vmem:[%s84 + $0x88] sm:%s77]
        %159 = vst [vmem:[%s85 + $0x90] sm:%s77] %v158
        %v160 = vld [vmem:[%s84 + $0x98] sm:%s77]
        %161 = vst [vmem:[%s85 + $0x94] sm:%s77] %v160
        %v162 = vld [vmem:[%s84 + $0x8c] sm:%s77]
        %163 = vst [vmem:[%s85 + $0x98] sm:%s77] %v162
        %v164 = vld [vmem:[%s84 + $0x9c] sm:%s77]
        %165 = vst [vmem:[%s85 + $0x9c] sm:%s77] %v164
        %v166 = vld [vmem:[%s84 + $0xa0] sm:%s77]
        %167 = vst [vmem:[%s85 + $0xa0] sm:%s77] %v166
        %v168 = vld [vmem:[%s84 + $0xb0] sm:%s77]
        %169 = vst [vmem:[%s85 + $0xa4] sm:%s77] %v168
        %v170 = vld [vmem:[%s84 + $0xa4] sm:%s77]
        %171 = vst [vmem:[%s85 + $0xa8] sm:%s77] %v170
        %v172 = vld [vmem:[%s84 + $0xb4] sm:%s77]
        %173 = vst [vmem:[%s85 + $0xac] sm:%s77] %v172
        %v174 = vld [vmem:[%s84 + $0xa8] sm:%s77]
        %175 = vst [vmem:[%s85 + $0xb0] sm:%s77] %v174
        %v176 = vld [vmem:[%s84 + $0xb8] sm:%s77]
        %177 = vst [vmem:[%s85 + $0xb4] sm:%s77] %v176
        %v178 = vld [vmem:[%s84 + $0xac] sm:%s77]
        %179 = vst [vmem:[%s85 + $0xb8] sm:%s77] %v178
        %v180 = vld [vmem:[%s84 + $0xbc] sm:%s77]
        %181 = vst [vmem:[%s85 + $0xbc] sm:%s77] %v180
        %v182 = vld [vmem:[%s84 + $0xc0] sm:%s77]
        %183 = vst [vmem:[%s85 + $0xc0] sm:%s77] %v182
        %v184 = vld [vmem:[%s84 + $0xd0] sm:%s77]
        %185 = vst [vmem:[%s85 + $0xc4] sm:%s77] %v184
        %v186 = vld [vmem:[%s84 + $0xc4] sm:%s77]
        %187 = vst [vmem:[%s85 + $0xc8] sm:%s77] %v186
        %v188 = vld [vmem:[%s84 + $0xd4] sm:%s77]
        %189 = vst [vmem:[%s85 + $0xcc] sm:%s77] %v188
        %v190 = vld [vmem:[%s84 + $0xc8] sm:%s77]
        %191 = vst [vmem:[%s85 + $0xd0] sm:%s77] %v190
        %v192 = vld [vmem:[%s84 + $0xd8] sm:%s77]
        %193 = vst [vmem:[%s85 + $0xd4] sm:%s77] %v192
        %v194 = vld [vmem:[%s84 + $0xcc] sm:%s77]
        %195 = vst [vmem:[%s85 + $0xd8] sm:%s77] %v194
        %v196 = vld [vmem:[%s84 + $0xdc] sm:%s77]
        %197 = vst [vmem:[%s85 + $0xdc] sm:%s77] %v196
        %v198 = vld [vmem:[%s84 + $0xe0] sm:%s77]
        %199 = vst [vmem:[%s85 + $0xe0] sm:%s77] %v198
        %v200 = vld [vmem:[%s84 + $0xf0] sm:%s77]
        %201 = vst [vmem:[%s85 + $0xe4] sm:%s77] %v200
        %v202 = vld [vmem:[%s84 + $0xe4] sm:%s77]
        %203 = vst [vmem:[%s85 + $0xe8] sm:%s77] %v202
        %v204 = vld [vmem:[%s84 + $0xf4] sm:%s77]
        %205 = vst [vmem:[%s85 + $0xec] sm:%s77] %v204
        %v206 = vld [vmem:[%s84 + $0xe8] sm:%s77]
        %207 = vst [vmem:[%s85 + $0xf0] sm:%s77] %v206
        %v208 = vld [vmem:[%s84 + $0xf8] sm:%s77]
        %209 = vst [vmem:[%s85 + $0xf4] sm:%s77] %v208
        %v210 = vld [vmem:[%s84 + $0xec] sm:%s77]
        %211 = vst [vmem:[%s85 + $0xf8] sm:%s77] %v210
        %v212 = vld [vmem:[%s84 + $0xfc] sm:%s77]
        %213 = vst [vmem:[%s85 + $0xfc] sm:%s77] %v212
        %v214 = vld [vmem:[%s84 + $0x100] sm:%s77]
        %215 = vst [vmem:[%s85 + $0x100] sm:%s77] %v214
        %v216 = vld [vmem:[%s84 + $0x110] sm:%s77]
        %217 = vst [vmem:[%s85 + $0x104] sm:%s77] %v216
        %v218 = vld [vmem:[%s84 + $0x104] sm:%s77]
        %219 = vst [vmem:[%s85 + $0x108] sm:%s77] %v218
        %v220 = vld [vmem:[%s84 + $0x114] sm:%s77]
        %221 = vst [vmem:[%s85 + $0x10c] sm:%s77] %v220
        %v222 = vld [vmem:[%s84 + $0x108] sm:%s77]
        %223 = vst [vmem:[%s85 + $0x110] sm:%s77] %v222
        %v224 = vld [vmem:[%s84 + $0x118] sm:%s77]
        %225 = vst [vmem:[%s85 + $0x114] sm:%s77] %v224
        %v226 = vld [vmem:[%s84 + $0x10c] sm:%s77]
        %227 = vst [vmem:[%s85 + $0x118] sm:%s77] %v226
        %v228 = vld [vmem:[%s84 + $0x11c] sm:%s77]
        %229 = vst [vmem:[%s85 + $0x11c] sm:%s77] %v228
        %v230 = vld [vmem:[%s84 + $0x120] sm:%s77]
        %231 = vst [vmem:[%s85 + $0x120] sm:%s77] %v230
        %v232 = vld [vmem:[%s84 + $0x130] sm:%s77]
        %233 = vst [vmem:[%s85 + $0x124] sm:%s77] %v232
        %v234 = vld [vmem:[%s84 + $0x124] sm:%s77]
        %235 = vst [vmem:[%s85 + $0x128] sm:%s77] %v234
        %v236 = vld [vmem:[%s84 + $0x134] sm:%s77]
        %237 = vst [vmem:[%s85 + $0x12c] sm:%s77] %v236
        %v238 = vld [vmem:[%s84 + $0x128] sm:%s77]
        %239 = vst [vmem:[%s85 + $0x130] sm:%s77] %v238
        %v240 = vld [vmem:[%s84 + $0x138] sm:%s77]
        %241 = vst [vmem:[%s85 + $0x134] sm:%s77] %v240
        %v242 = vld [vmem:[%s84 + $0x12c] sm:%s77]
        %243 = vst [vmem:[%s85 + $0x138] sm:%s77] %v242
        %v244 = vld [vmem:[%s84 + $0x13c] sm:%s77]
        %245 = vst [vmem:[%s85 + $0x13c] sm:%s77] %v244
        %v246 = vld [vmem:[%s84 + $0x140] sm:%s77]
        %247 = vst [vmem:[%s85 + $0x140] sm:%s77] %v246
        %v248 = vld [vmem:[%s84 + $0x150] sm:%s77]
        %249 = vst [vmem:[%s85 + $0x144] sm:%s77] %v248
        %v250 = vld [vmem:[%s84 + $0x144] sm:%s77]
        %251 = vst [vmem:[%s85 + $0x148] sm:%s77] %v250
        %v252 = vld [vmem:[%s84 + $0x154] sm:%s77]
        %253 = vst [vmem:[%s85 + $0x14c] sm:%s77] %v252
        %v254 = vld [vmem:[%s84 + $0x148] sm:%s77]
        %255 = vst [vmem:[%s85 + $0x150] sm:%s77] %v254
        %v256 = vld [vmem:[%s84 + $0x158] sm:%s77]
        %257 = vst [vmem:[%s85 + $0x154] sm:%s77] %v256
        %v258 = vld [vmem:[%s84 + $0x14c] sm:%s77]
        %259 = vst [vmem:[%s85 + $0x158] sm:%s77] %v258
        %v260 = vld [vmem:[%s84 + $0x15c] sm:%s77]
        %261 = vst [vmem:[%s85 + $0x15c] sm:%s77] %v260
        %v262 = vld [vmem:[%s84 + $0x160] sm:%s77]
        %263 = vst [vmem:[%s85 + $0x160] sm:%s77] %v262
        %v264 = vld [vmem:[%s84 + $0x170] sm:%s77]
        %265 = vst [vmem:[%s85 + $0x164] sm:%s77] %v264
        %v266 = vld [vmem:[%s84 + $0x164] sm:%s77]
        %267 = vst [vmem:[%s85 + $0x168] sm:%s77] %v266
        %v268 = vld [vmem:[%s84 + $0x174] sm:%s77]
        %269 = vst [vmem:[%s85 + $0x16c] sm:%s77] %v268
        %v270 = vld [vmem:[%s84 + $0x168] sm:%s77]
        %271 = vst [vmem:[%s85 + $0x170] sm:%s77] %v270
        %v272 = vld [vmem:[%s84 + $0x178] sm:%s77]
        %273 = vst [vmem:[%s85 + $0x174] sm:%s77] %v272
        %v274 = vld [vmem:[%s84 + $0x16c] sm:%s77]
        %275 = vst [vmem:[%s85 + $0x178] sm:%s77] %v274
        %v276 = vld [vmem:[%s84 + $0x17c] sm:%s77]
        %277 = vst [vmem:[%s85 + $0x17c] sm:%s77] %v276
        %v278 = vld [vmem:[%s84 + $0x180] sm:%s77]
        %279 = vst [vmem:[%s85 + $0x180] sm:%s77] %v278
        %v280 = vld [vmem:[%s84 + $0x190] sm:%s77]
        %281 = vst [vmem:[%s85 + $0x184] sm:%s77] %v280
        %v282 = vld [vmem:[%s84 + $0x184] sm:%s77]
        %283 = vst [vmem:[%s85 + $0x188] sm:%s77] %v282
        %v284 = vld [vmem:[%s84 + $0x194] sm:%s77]
        %285 = vst [vmem:[%s85 + $0x18c] sm:%s77] %v284
        %v286 = vld [vmem:[%s84 + $0x188] sm:%s77]
        %287 = vst [vmem:[%s85 + $0x190] sm:%s77] %v286
        %v288 = vld [vmem:[%s84 + $0x198] sm:%s77]
        %289 = vst [vmem:[%s85 + $0x194] sm:%s77] %v288
        %v290 = vld [vmem:[%s84 + $0x18c] sm:%s77]
        %291 = vst [vmem:[%s85 + $0x198] sm:%s77] %v290
        %v292 = vld [vmem:[%s84 + $0x19c] sm:%s77]
        %293 = vst [vmem:[%s85 + $0x19c] sm:%s77] %v292
        %v294 = vld [vmem:[%s84 + $0x1a0] sm:%s77]
        %295 = vst [vmem:[%s85 + $0x1a0] sm:%s77] %v294
        %v296 = vld [vmem:[%s84 + $0x1b0] sm:%s77]
        %297 = vst [vmem:[%s85 + $0x1a4] sm:%s77] %v296
        %v298 = vld [vmem:[%s84 + $0x1a4] sm:%s77]
        %299 = vst [vmem:[%s85 + $0x1a8] sm:%s77] %v298
        %v300 = vld [vmem:[%s84 + $0x1b4] sm:%s77]
        %301 = vst [vmem:[%s85 + $0x1ac] sm:%s77] %v300
        %v302 = vld [vmem:[%s84 + $0x1a8] sm:%s77]
        %303 = vst [vmem:[%s85 + $0x1b0] sm:%s77] %v302
        %v304 = vld [vmem:[%s84 + $0x1b8] sm:%s77]
        %305 = vst [vmem:[%s85 + $0x1b4] sm:%s77] %v304
        %v306 = vld [vmem:[%s84 + $0x1ac] sm:%s77]
        %307 = vst [vmem:[%s85 + $0x1b8] sm:%s77] %v306
        %v308 = vld [vmem:[%s84 + $0x1bc] sm:%s77]
        %309 = vst [vmem:[%s85 + $0x1bc] sm:%s77] %v308
        %v310 = vld [vmem:[%s84 + $0x1c0] sm:%s77]
        %311 = vst [vmem:[%s85 + $0x1c0] sm:%s77] %v310
        %v312 = vld [vmem:[%s84 + $0x1d0] sm:%s77]
        %313 = vst [vmem:[%s85 + $0x1c4] sm:%s77] %v312
        %v314 = vld [vmem:[%s84 + $0x1c4] sm:%s77]
        %315 = vst [vmem:[%s85 + $0x1c8] sm:%s77] %v314
        %v316 = vld [vmem:[%s84 + $0x1d4] sm:%s77]
        %317 = vst [vmem:[%s85 + $0x1cc] sm:%s77] %v316
        %v318 = vld [vmem:[%s84 + $0x1c8] sm:%s77]
        %319 = vst [vmem:[%s85 + $0x1d0] sm:%s77] %v318
        %v320 = vld [vmem:[%s84 + $0x1d8] sm:%s77]
        %321 = vst [vmem:[%s85 + $0x1d4] sm:%s77] %v320
        %v322 = vld [vmem:[%s84 + $0x1cc] sm:%s77]
        %323 = vst [vmem:[%s85 + $0x1d8] sm:%s77] %v322
        %v324 = vld [vmem:[%s84 + $0x1dc] sm:%s77]
        %325 = vst [vmem:[%s85 + $0x1dc] sm:%s77] %v324
        %v326 = vld [vmem:[%s84 + $0x1e0] sm:%s77]
        %327 = vst [vmem:[%s85 + $0x1e0] sm:%s77] %v326
        %v328 = vld [vmem:[%s84 + $0x1f0] sm:%s77]
        %329 = vst [vmem:[%s85 + $0x1e4] sm:%s77] %v328
        %v330 = vld [vmem:[%s84 + $0x1e4] sm:%s77]
        %331 = vst [vmem:[%s85 + $0x1e8] sm:%s77] %v330
        %v332 = vld [vmem:[%s84 + $0x1f4] sm:%s77]
        %333 = vst [vmem:[%s85 + $0x1ec] sm:%s77] %v332
        %v334 = vld [vmem:[%s84 + $0x1e8] sm:%s77]
        %335 = vst [vmem:[%s85 + $0x1f0] sm:%s77] %v334
        %v336 = vld [vmem:[%s84 + $0x1f8] sm:%s77]
        %337 = vst [vmem:[%s85 + $0x1f4] sm:%s77] %v336
        %v338 = vld [vmem:[%s84 + $0x1ec] sm:%s77]
        %339 = vst [vmem:[%s85 + $0x1f8] sm:%s77] %v338
        %v340 = vld [vmem:[%s84 + $0x1fc] sm:%s77]
        %341 = vst [vmem:[%s85 + $0x1fc] sm:%s77] %v340
        %v342 = vld [vmem:[%s84 + $0x200] sm:%s77]
        %343 = vst [vmem:[%s85 + $0x200] sm:%s77] %v342
        %v344 = vld [vmem:[%s84 + $0x210] sm:%s77]
        %345 = vst [vmem:[%s85 + $0x204] sm:%s77] %v344
        %v346 = vld [vmem:[%s84 + $0x204] sm:%s77]
        %347 = vst [vmem:[%s85 + $0x208] sm:%s77] %v346
        %v348 = vld [vmem:[%s84 + $0x214] sm:%s77]
        %349 = vst [vmem:[%s85 + $0x20c] sm:%s77] %v348
        %v350 = vld [vmem:[%s84 + $0x208] sm:%s77]
        %351 = vst [vmem:[%s85 + $0x210] sm:%s77] %v350
        %v352 = vld [vmem:[%s84 + $0x218] sm:%s77]
        %353 = vst [vmem:[%s85 + $0x214] sm:%s77] %v352
        %v354 = vld [vmem:[%s84 + $0x20c] sm:%s77]
        %355 = vst [vmem:[%s85 + $0x218] sm:%s77] %v354
        %v356 = vld [vmem:[%s84 + $0x21c] sm:%s77]
        %357 = vst [vmem:[%s85 + $0x21c] sm:%s77] %v356
        %v358 = vld [vmem:[%s84 + $0x220] sm:%s77]
        %359 = vst [vmem:[%s85 + $0x220] sm:%s77] %v358
        %v360 = vld [vmem:[%s84 + $0x230] sm:%s77]
        %361 = vst [vmem:[%s85 + $0x224] sm:%s77] %v360
        %v362 = vld [vmem:[%s84 + $0x224] sm:%s77]
        %363 = vst [vmem:[%s85 + $0x228] sm:%s77] %v362
        %v364 = vld [vmem:[%s84 + $0x234] sm:%s77]
        %365 = vst [vmem:[%s85 + $0x22c] sm:%s77] %v364
        %v366 = vld [vmem:[%s84 + $0x228] sm:%s77]
        %367 = vst [vmem:[%s85 + $0x230] sm:%s77] %v366
        %v368 = vld [vmem:[%s84 + $0x238] sm:%s77]
        %369 = vst [vmem:[%s85 + $0x234] sm:%s77] %v368
        %v370 = vld [vmem:[%s84 + $0x22c] sm:%s77]
        %371 = vst [vmem:[%s85 + $0x238] sm:%s77] %v370
        %v372 = vld [vmem:[%s84 + $0x23c] sm:%s77]
        %373 = vst [vmem:[%s85 + $0x23c] sm:%s77] %v372
        %v374 = vld [vmem:[%s84 + $0x240] sm:%s77]
        %375 = vst [vmem:[%s85 + $0x240] sm:%s77] %v374
        %v376 = vld [vmem:[%s84 + $0x250] sm:%s77]
        %377 = vst [vmem:[%s85 + $0x244] sm:%s77] %v376
        %v378 = vld [vmem:[%s84 + $0x244] sm:%s77]
        %379 = vst [vmem:[%s85 + $0x248] sm:%s77] %v378
        %v380 = vld [vmem:[%s84 + $0x254] sm:%s77]
        %381 = vst [vmem:[%s85 + $0x24c] sm:%s77] %v380
        %v382 = vld [vmem:[%s84 + $0x248] sm:%s77]
        %383 = vst [vmem:[%s85 + $0x250] sm:%s77] %v382
        %v384 = vld [vmem:[%s84 + $0x258] sm:%s77]
        %385 = vst [vmem:[%s85 + $0x254] sm:%s77] %v384
        %v386 = vld [vmem:[%s84 + $0x24c] sm:%s77]
        %387 = vst [vmem:[%s85 + $0x258] sm:%s77] %v386
        %v388 = vld [vmem:[%s84 + $0x25c] sm:%s77]
        %389 = vst [vmem:[%s85 + $0x25c] sm:%s77] %v388
        %v390 = vld [vmem:[%s84 + $0x260] sm:%s77]
        %391 = vst [vmem:[%s85 + $0x260] sm:%s77] %v390
        %v392 = vld [vmem:[%s84 + $0x270] sm:%s77]
        %393 = vst [vmem:[%s85 + $0x264] sm:%s77] %v392
        %v394 = vld [vmem:[%s84 + $0x264] sm:%s77]
        %395 = vst [vmem:[%s85 + $0x268] sm:%s77] %v394
        %v396 = vld [vmem:[%s84 + $0x274] sm:%s77]
        %397 = vst [vmem:[%s85 + $0x26c] sm:%s77] %v396
        %v398 = vld [vmem:[%s84 + $0x268] sm:%s77]
        %399 = vst [vmem:[%s85 + $0x270] sm:%s77] %v398
        %v400 = vld [vmem:[%s84 + $0x278] sm:%s77]
        %401 = vst [vmem:[%s85 + $0x274] sm:%s77] %v400
        %v402 = vld [vmem:[%s84 + $0x26c] sm:%s77]
        %403 = vst [vmem:[%s85 + $0x278] sm:%s77] %v402
        %v404 = vld [vmem:[%s84 + $0x27c] sm:%s77]
        %405 = vst [vmem:[%s85 + $0x27c] sm:%s77] %v404
        %v406 = vld [vmem:[%s84 + $0x280] sm:%s77]
        %407 = vst [vmem:[%s85 + $0x280] sm:%s77] %v406
        %v408 = vld [vmem:[%s84 + $0x290] sm:%s77]
        %409 = vst [vmem:[%s85 + $0x284] sm:%s77] %v408
        %v410 = vld [vmem:[%s84 + $0x284] sm:%s77]
        %411 = vst [vmem:[%s85 + $0x288] sm:%s77] %v410
        %v412 = vld [vmem:[%s84 + $0x294] sm:%s77]
        %413 = vst [vmem:[%s85 + $0x28c] sm:%s77] %v412
        %v414 = vld [vmem:[%s84 + $0x288] sm:%s77]
        %415 = vst [vmem:[%s85 + $0x290] sm:%s77] %v414
        %v416 = vld [vmem:[%s84 + $0x298] sm:%s77]
        %417 = vst [vmem:[%s85 + $0x294] sm:%s77] %v416
        %v418 = vld [vmem:[%s84 + $0x28c] sm:%s77]
        %419 = vst [vmem:[%s85 + $0x298] sm:%s77] %v418
        %v420 = vld [vmem:[%s84 + $0x29c] sm:%s77]
        %421 = vst [vmem:[%s85 + $0x29c] sm:%s77] %v420
        %v422 = vld [vmem:[%s84 + $0x2a0] sm:%s77]
        %423 = vst [vmem:[%s85 + $0x2a0] sm:%s77] %v422
        %v424 = vld [vmem:[%s84 + $0x2b0] sm:%s77]
        %425 = vst [vmem:[%s85 + $0x2a4] sm:%s77] %v424
        %v426 = vld [vmem:[%s84 + $0x2a4] sm:%s77]
        %427 = vst [vmem:[%s85 + $0x2a8] sm:%s77] %v426
        %v428 = vld [vmem:[%s84 + $0x2b4] sm:%s77]
        %429 = vst [vmem:[%s85 + $0x2ac] sm:%s77] %v428
        %v430 = vld [vmem:[%s84 + $0x2a8] sm:%s77]
        %431 = vst [vmem:[%s85 + $0x2b0] sm:%s77] %v430
        %v432 = vld [vmem:[%s84 + $0x2b8] sm:%s77]
        %433 = vst [vmem:[%s85 + $0x2b4] sm:%s77] %v432
        %v434 = vld [vmem:[%s84 + $0x2ac] sm:%s77]
        %435 = vst [vmem:[%s85 + $0x2b8] sm:%s77] %v434
        %v436 = vld [vmem:[%s84 + $0x2bc] sm:%s77]
        %437 = vst [vmem:[%s85 + $0x2bc] sm:%s77] %v436
        %v438 = vld [vmem:[%s84 + $0x2c0] sm:%s77]
        %439 = vst [vmem:[%s85 + $0x2c0] sm:%s77] %v438
        %v440 = vld [vmem:[%s84 + $0x2d0] sm:%s77]
        %441 = vst [vmem:[%s85 + $0x2c4] sm:%s77] %v440
        %v442 = vld [vmem:[%s84 + $0x2c4] sm:%s77]
        %443 = vst [vmem:[%s85 + $0x2c8] sm:%s77] %v442
        %v444 = vld [vmem:[%s84 + $0x2d4] sm:%s77]
        %445 = vst [vmem:[%s85 + $0x2cc] sm:%s77] %v444
        %v446 = vld [vmem:[%s84 + $0x2c8] sm:%s77]
        %447 = vst [vmem:[%s85 + $0x2d0] sm:%s77] %v446
        %v448 = vld [vmem:[%s84 + $0x2d8] sm:%s77]
        %449 = vst [vmem:[%s85 + $0x2d4] sm:%s77] %v448
        %v450 = vld [vmem:[%s84 + $0x2cc] sm:%s77]
        %451 = vst [vmem:[%s85 + $0x2d8] sm:%s77] %v450
        %v452 = vld [vmem:[%s84 + $0x2dc] sm:%s77]
        %453 = vst [vmem:[%s85 + $0x2dc] sm:%s77] %v452
        %v454 = vld [vmem:[%s84 + $0x2e0] sm:%s77]
        %455 = vst [vmem:[%s85 + $0x2e0] sm:%s77] %v454
        %v456 = vld [vmem:[%s84 + $0x2f0] sm:%s77]
        %457 = vst [vmem:[%s85 + $0x2e4] sm:%s77] %v456
        %v458 = vld [vmem:[%s84 + $0x2e4] sm:%s77]
        %459 = vst [vmem:[%s85 + $0x2e8] sm:%s77] %v458
        %v460 = vld [vmem:[%s84 + $0x2f4] sm:%s77]
        %461 = vst [vmem:[%s85 + $0x2ec] sm:%s77] %v460
        %v462 = vld [vmem:[%s84 + $0x2e8] sm:%s77]
        %463 = vst [vmem:[%s85 + $0x2f0] sm:%s77] %v462
        %v464 = vld [vmem:[%s84 + $0x2f8] sm:%s77]
        %465 = vst [vmem:[%s85 + $0x2f4] sm:%s77] %v464
        %v466 = vld [vmem:[%s84 + $0x2ec] sm:%s77]
        %467 = vst [vmem:[%s85 + $0x2f8] sm:%s77] %v466
        %v468 = vld [vmem:[%s84 + $0x2fc] sm:%s77]
        %469 = vst [vmem:[%s85 + $0x2fc] sm:%s77] %v468
        %v470 = vld [vmem:[%s84 + $0x300] sm:%s77]
        %471 = vst [vmem:[%s85 + $0x300] sm:%s77] %v470
        %v472 = vld [vmem:[%s84 + $0x310] sm:%s77]
        %473 = vst [vmem:[%s85 + $0x304] sm:%s77] %v472
        %v474 = vld [vmem:[%s84 + $0x304] sm:%s77]
        %475 = vst [vmem:[%s85 + $0x308] sm:%s77] %v474
        %v476 = vld [vmem:[%s84 + $0x314] sm:%s77]
        %477 = vst [vmem:[%s85 + $0x30c] sm:%s77] %v476
        %v478 = vld [vmem:[%s84 + $0x308] sm:%s77]
        %479 = vst [vmem:[%s85 + $0x310] sm:%s77] %v478
        %v480 = vld [vmem:[%s84 + $0x318] sm:%s77]
        %481 = vst [vmem:[%s85 + $0x314] sm:%s77] %v480
        %v482 = vld [vmem:[%s84 + $0x30c] sm:%s77]
        %483 = vst [vmem:[%s85 + $0x318] sm:%s77] %v482
        %v484 = vld [vmem:[%s84 + $0x31c] sm:%s77]
        %485 = vst [vmem:[%s85 + $0x31c] sm:%s77] %v484
        %v486 = vld [vmem:[%s84 + $0x320] sm:%s77]
        %487 = vst [vmem:[%s85 + $0x320] sm:%s77] %v486
        %v488 = vld [vmem:[%s84 + $0x330] sm:%s77]
        %489 = vst [vmem:[%s85 + $0x324] sm:%s77] %v488
        %v490 = vld [vmem:[%s84 + $0x324] sm:%s77]
        %491 = vst [vmem:[%s85 + $0x328] sm:%s77] %v490
        %v492 = vld [vmem:[%s84 + $0x334] sm:%s77]
        %493 = vst [vmem:[%s85 + $0x32c] sm:%s77] %v492
        %v494 = vld [vmem:[%s84 + $0x328] sm:%s77]
        %495 = vst [vmem:[%s85 + $0x330] sm:%s77] %v494
        %v496 = vld [vmem:[%s84 + $0x338] sm:%s77]
        %497 = vst [vmem:[%s85 + $0x334] sm:%s77] %v496
        %v498 = vld [vmem:[%s84 + $0x32c] sm:%s77]
        %499 = vst [vmem:[%s85 + $0x338] sm:%s77] %v498
        %v500 = vld [vmem:[%s84 + $0x33c] sm:%s77]
        %501 = vst [vmem:[%s85 + $0x33c] sm:%s77] %v500
        %v502 = vld [vmem:[%s84 + $0x340] sm:%s77]
        %503 = vst [vmem:[%s85 + $0x340] sm:%s77] %v502
        %v504 = vld [vmem:[%s84 + $0x350] sm:%s77]
        %505 = vst [vmem:[%s85 + $0x344] sm:%s77] %v504
        %v506 = vld [vmem:[%s84 + $0x344] sm:%s77]
        %507 = vst [vmem:[%s85 + $0x348] sm:%s77] %v506
        %v508 = vld [vmem:[%s84 + $0x354] sm:%s77]
        %509 = vst [vmem:[%s85 + $0x34c] sm:%s77] %v508
        %v510 = vld [vmem:[%s84 + $0x348] sm:%s77]
        %511 = vst [vmem:[%s85 + $0x350] sm:%s77] %v510
        %v512 = vld [vmem:[%s84 + $0x358] sm:%s77]
        %513 = vst [vmem:[%s85 + $0x354] sm:%s77] %v512
        %v514 = vld [vmem:[%s84 + $0x34c] sm:%s77]
        %515 = vst [vmem:[%s85 + $0x358] sm:%s77] %v514
        %v516 = vld [vmem:[%s84 + $0x35c] sm:%s77]
        %517 = vst [vmem:[%s85 + $0x35c] sm:%s77] %v516
        %v518 = vld [vmem:[%s84 + $0x360] sm:%s77]
        %519 = vst [vmem:[%s85 + $0x360] sm:%s77] %v518
        %v520 = vld [vmem:[%s84 + $0x370] sm:%s77]
        %521 = vst [vmem:[%s85 + $0x364] sm:%s77] %v520
        %v522 = vld [vmem:[%s84 + $0x364] sm:%s77]
        %523 = vst [vmem:[%s85 + $0x368] sm:%s77] %v522
        %v524 = vld [vmem:[%s84 + $0x374] sm:%s77]
        %525 = vst [vmem:[%s85 + $0x36c] sm:%s77] %v524
        %v526 = vld [vmem:[%s84 + $0x368] sm:%s77]
        %527 = vst [vmem:[%s85 + $0x370] sm:%s77] %v526
        %v528 = vld [vmem:[%s84 + $0x378] sm:%s77]
        %529 = vst [vmem:[%s85 + $0x374] sm:%s77] %v528
        %v530 = vld [vmem:[%s84 + $0x36c] sm:%s77]
        %531 = vst [vmem:[%s85 + $0x378] sm:%s77] %v530
        %v532 = vld [vmem:[%s84 + $0x37c] sm:%s77]
        %533 = vst [vmem:[%s85 + $0x37c] sm:%s77] %v532
        %v534 = vld [vmem:[%s84 + $0x380] sm:%s77]
        %535 = vst [vmem:[%s85 + $0x380] sm:%s77] %v534
        %v536 = vld [vmem:[%s84 + $0x390] sm:%s77]
        %537 = vst [vmem:[%s85 + $0x384] sm:%s77] %v536
        %v538 = vld [vmem:[%s84 + $0x384] sm:%s77]
        %539 = vst [vmem:[%s85 + $0x388] sm:%s77] %v538
        %v540 = vld [vmem:[%s84 + $0x394] sm:%s77]
        %541 = vst [vmem:[%s85 + $0x38c] sm:%s77] %v540
        %v542 = vld [vmem:[%s84 + $0x388] sm:%s77]
        %543 = vst [vmem:[%s85 + $0x390] sm:%s77] %v542
        %v544 = vld [vmem:[%s84 + $0x398] sm:%s77]
        %545 = vst [vmem:[%s85 + $0x394] sm:%s77] %v544
        %v546 = vld [vmem:[%s84 + $0x38c] sm:%s77]
        %547 = vst [vmem:[%s85 + $0x398] sm:%s77] %v546
        %v548 = vld [vmem:[%s84 + $0x39c] sm:%s77]
        %549 = vst [vmem:[%s85 + $0x39c] sm:%s77] %v548
        %v550 = vld [vmem:[%s84 + $0x3a0] sm:%s77]
        %551 = vst [vmem:[%s85 + $0x3a0] sm:%s77] %v550
        %v552 = vld [vmem:[%s84 + $0x3b0] sm:%s77]
        %553 = vst [vmem:[%s85 + $0x3a4] sm:%s77] %v552
        %v554 = vld [vmem:[%s84 + $0x3a4] sm:%s77]
        %555 = vst [vmem:[%s85 + $0x3a8] sm:%s77] %v554
        %v556 = vld [vmem:[%s84 + $0x3b4] sm:%s77]
        %557 = vst [vmem:[%s85 + $0x3ac] sm:%s77] %v556
        %v558 = vld [vmem:[%s84 + $0x3a8] sm:%s77]
        %559 = vst [vmem:[%s85 + $0x3b0] sm:%s77] %v558
        %v560 = vld [vmem:[%s84 + $0x3b8] sm:%s77]
        %561 = vst [vmem:[%s85 + $0x3b4] sm:%s77] %v560
        %v562 = vld [vmem:[%s84 + $0x3ac] sm:%s77]
        %563 = vst [vmem:[%s85 + $0x3b8] sm:%s77] %v562
        %v564 = vld [vmem:[%s84 + $0x3bc] sm:%s77]
        %565 = vst [vmem:[%s85 + $0x3bc] sm:%s77] %v564
        %v566 = vld [vmem:[%s84 + $0x3c0] sm:%s77]
        %567 = vst [vmem:[%s85 + $0x3c0] sm:%s77] %v566
        %v568 = vld [vmem:[%s84 + $0x3d0] sm:%s77]
        %569 = vst [vmem:[%s85 + $0x3c4] sm:%s77] %v568
        %v570 = vld [vmem:[%s84 + $0x3c4] sm:%s77]
        %571 = vst [vmem:[%s85 + $0x3c8] sm:%s77] %v570
        %v572 = vld [vmem:[%s84 + $0x3d4] sm:%s77]
        %573 = vst [vmem:[%s85 + $0x3cc] sm:%s77] %v572
        %v574 = vld [vmem:[%s84 + $0x3c8] sm:%s77]
        %575 = vst [vmem:[%s85 + $0x3d0] sm:%s77] %v574
        %v576 = vld [vmem:[%s84 + $0x3d8] sm:%s77]
        %577 = vst [vmem:[%s85 + $0x3d4] sm:%s77] %v576
        %v578 = vld [vmem:[%s84 + $0x3cc] sm:%s77]
        %579 = vst [vmem:[%s85 + $0x3d8] sm:%s77] %v578
        %v580 = vld [vmem:[%s84 + $0x3dc] sm:%s77]
        %581 = vst [vmem:[%s85 + $0x3dc] sm:%s77] %v580
        %v582 = vld [vmem:[%s84 + $0x3e0] sm:%s77]
        %583 = vst [vmem:[%s85 + $0x3e0] sm:%s77] %v582
        %v584 = vld [vmem:[%s84 + $0x3f0] sm:%s77]
        %585 = vst [vmem:[%s85 + $0x3e4] sm:%s77] %v584
        %v586 = vld [vmem:[%s84 + $0x3e4] sm:%s77]
        %587 = vst [vmem:[%s85 + $0x3e8] sm:%s77] %v586
        %v588 = vld [vmem:[%s84 + $0x3f4] sm:%s77]
        %589 = vst [vmem:[%s85 + $0x3ec] sm:%s77] %v588
        %v590 = vld [vmem:[%s84 + $0x3e8] sm:%s77]
        %591 = vst [vmem:[%s85 + $0x3f0] sm:%s77] %v590
        %v592 = vld [vmem:[%s84 + $0x3f8] sm:%s77]
        %593 = vst [vmem:[%s85 + $0x3f4] sm:%s77] %v592
        %v594 = vld [vmem:[%s84 + $0x3ec] sm:%s77]
        %595 = vst [vmem:[%s85 + $0x3f8] sm:%s77] %v594
        %v596 = vld [vmem:[%s84 + $0x3fc] sm:%s77]
        %597 = vst [vmem:[%s85 + $0x3fc] sm:%s77] %v596
      $region90: #{advanced_vae_forward.1} parent=84 // loop_footer
        %s83 = sadd.s32 1, %s79
      $region91: #{advanced_vae_forward.1} parent=84 // loop_footer_branch
        %78 = sbr.rel target = $region87
      $region92: #{advanced_vae_forward.1} parent=84 // loop_exit
        _
    $region85: #{advanced_vae_forward.1} parent=1 // pred_fallthru
      _
    // Predicated region
    $region111: #{advanced_vae_forward.1} parent=1 // pred_check
      _
    $region112: #{advanced_vae_forward.1} parent=1 // pred_check_branch
      %1139 = sbr.rel (0) target = $region114
    $region113: #{advanced_vae_forward.1} parent=1 // pred_region
      %1140 = vsyncadd [#allocation4], 16384
    $region114: #{advanced_vae_forward.1} parent=1 // pred_fallthru
      _
    %s1141 = scalar_lea.sflag [#allocation4], 1
    %p1143 = scmp.lt.u32.totalorder 4, 8
    %p1144 = pneg %p1143
    // Predicated region
    $region115: #{advanced_vae_forward.1} parent=1 // pred_check
      _
    $region116: #{advanced_vae_forward.1} parent=1 // pred_check_branch
      %1146 = sbr.rel (%p1143) target = $region118
    $region117: #{advanced_vae_forward.1} parent=1 // pred_region
      %s1671 = sand.u32 4, 7
      %p1672 = scmp.eq.s32.totalorder %s1671, 0
      %p1673 = pneg %p1672
      // Predicated region
      $region130: #{advanced_vae_forward.1} parent=117 // pred_check
        _
      $region131: #{advanced_vae_forward.1} parent=117 // pred_check_branch
        %1675 = sbr.rel (%p1672) target = $region133
      $region132: #{advanced_vae_forward.1} parent=117 // pred_region
        %s1676 = sand.u32 4, 7
        %s1677 = ssub.s32 4, %s1676
        %s1678 = scalar_lea.vmem %s20, %s1677
        %s1679 = ssub.s32 4, %s1676
        %s1680 = scalar_lea.vmem [#allocation3], %s1679
        loop: start=0, step=1, limit=1
        $region134: #{advanced_vae_forward.1} parent=132 // loop_pre_header
          _
        $region135: #{advanced_vae_forward.1} parent=132 // loop_header
          %s1682 = sphi 0, %s1686
          %p1683 = scmp.ge.s32.totalorder %s1682, 1
          %s1687 = sphi %s20, %s20
          %s1688 = sphi [#allocation3], [#allocation3]
        $region136: #{advanced_vae_forward.1} parent=132 // loop_header_branch
          %1685 = sbr.rel (%p1683) target = $region140
        $region137: #{advanced_vae_forward.1} parent=132 // loop_body
          _
        $region138: #{advanced_vae_forward.1} parent=132 // loop_footer
          %s1686 = sadd.s32 1, %s1682
        $region139: #{advanced_vae_forward.1} parent=132 // loop_footer_branch
          %1681 = sbr.rel target = $region135
        $region140: #{advanced_vae_forward.1} parent=132 // loop_exit
          _
        %s1689 = sshllo.u32 0, %s1676
        loop: start=0, step=1, limit=1
        $region141: #{advanced_vae_forward.1} parent=132 // loop_pre_header
          _
        $region142: #{advanced_vae_forward.1} parent=132 // loop_header
          %s1691 = sphi 0, %s1695
          %p1692 = scmp.ge.s32.totalorder %s1691, 1
          %s1696 = sphi %s1678, %s1678
          %s1697 = sphi %s1680, %s1680
        $region143: #{advanced_vae_forward.1} parent=132 // loop_header_branch
          %1694 = sbr.rel (%p1692) target = $region147
        $region144: #{advanced_vae_forward.1} parent=132 // loop_body
          %v1698 = vld [vmem:[%s1696] sm:%s1689]
          %1699 = vst [vmem:[%s1697] sm:%s1689] %v1698
          %v1700 = vld [vmem:[%s1696 + $0x10] sm:%s1689]
          %1701 = vst [vmem:[%s1697 + $0x4] sm:%s1689] %v1700
          %v1702 = vld [vmem:[%s1696 + $0x4] sm:%s1689]
          %1703 = vst [vmem:[%s1697 + $0x8] sm:%s1689] %v1702
          %v1704 = vld [vmem:[%s1696 + $0x14] sm:%s1689]
          %1705 = vst [vmem:[%s1697 + $0xc] sm:%s1689] %v1704
          %v1706 = vld [vmem:[%s1696 + $0x8] sm:%s1689]
          %1707 = vst [vmem:[%s1697 + $0x10] sm:%s1689] %v1706
          %v1708 = vld [vmem:[%s1696 + $0x18] sm:%s1689]
          %1709 = vst [vmem:[%s1697 + $0x14] sm:%s1689] %v1708
          %v1710 = vld [vmem:[%s1696 + $0xc] sm:%s1689]
          %1711 = vst [vmem:[%s1697 + $0x18] sm:%s1689] %v1710
          %v1712 = vld [vmem:[%s1696 + $0x1c] sm:%s1689]
          %1713 = vst [vmem:[%s1697 + $0x1c] sm:%s1689] %v1712
          %v1714 = vld [vmem:[%s1696 + $0x20] sm:%s1689]
          %1715 = vst [vmem:[%s1697 + $0x20] sm:%s1689] %v1714
          %v1716 = vld [vmem:[%s1696 + $0x30] sm:%s1689]
          %1717 = vst [vmem:[%s1697 + $0x24] sm:%s1689] %v1716
          %v1718 = vld [vmem:[%s1696 + $0x24] sm:%s1689]
          %1719 = vst [vmem:[%s1697 + $0x28] sm:%s1689] %v1718
          %v1720 = vld [vmem:[%s1696 + $0x34] sm:%s1689]
          %1721 = vst [vmem:[%s1697 + $0x2c] sm:%s1689] %v1720
          %v1722 = vld [vmem:[%s1696 + $0x28] sm:%s1689]
          %1723 = vst [vmem:[%s1697 + $0x30] sm:%s1689] %v1722
          %v1724 = vld [vmem:[%s1696 + $0x38] sm:%s1689]
          %1725 = vst [vmem:[%s1697 + $0x34] sm:%s1689] %v1724
          %v1726 = vld [vmem:[%s1696 + $0x2c] sm:%s1689]
          %1727 = vst [vmem:[%s1697 + $0x38] sm:%s1689] %v1726
          %v1728 = vld [vmem:[%s1696 + $0x3c] sm:%s1689]
          %1729 = vst [vmem:[%s1697 + $0x3c] sm:%s1689] %v1728
          %v1730 = vld [vmem:[%s1696 + $0x40] sm:%s1689]
          %1731 = vst [vmem:[%s1697 + $0x40] sm:%s1689] %v1730
          %v1732 = vld [vmem:[%s1696 + $0x50] sm:%s1689]
          %1733 = vst [vmem:[%s1697 + $0x44] sm:%s1689] %v1732
          %v1734 = vld [vmem:[%s1696 + $0x44] sm:%s1689]
          %1735 = vst [vmem:[%s1697 + $0x48] sm:%s1689] %v1734
          %v1736 = vld [vmem:[%s1696 + $0x54] sm:%s1689]
          %1737 = vst [vmem:[%s1697 + $0x4c] sm:%s1689] %v1736
          %v1738 = vld [vmem:[%s1696 + $0x48] sm:%s1689]
          %1739 = vst [vmem:[%s1697 + $0x50] sm:%s1689] %v1738
          %v1740 = vld [vmem:[%s1696 + $0x58] sm:%s1689]
          %1741 = vst [vmem:[%s1697 + $0x54] sm:%s1689] %v1740
          %v1742 = vld [vmem:[%s1696 + $0x4c] sm:%s1689]
          %1743 = vst [vmem:[%s1697 + $0x58] sm:%s1689] %v1742
          %v1744 = vld [vmem:[%s1696 + $0x5c] sm:%s1689]
          %1745 = vst [vmem:[%s1697 + $0x5c] sm:%s1689] %v1744
          %v1746 = vld [vmem:[%s1696 + $0x60] sm:%s1689]
          %1747 = vst [vmem:[%s1697 + $0x60] sm:%s1689] %v1746
          %v1748 = vld [vmem:[%s1696 + $0x70] sm:%s1689]
          %1749 = vst [vmem:[%s1697 + $0x64] sm:%s1689] %v1748
          %v1750 = vld [vmem:[%s1696 + $0x64] sm:%s1689]
          %1751 = vst [vmem:[%s1697 + $0x68] sm:%s1689] %v1750
          %v1752 = vld [vmem:[%s1696 + $0x74] sm:%s1689]
          %1753 = vst [vmem:[%s1697 + $0x6c] sm:%s1689] %v1752
          %v1754 = vld [vmem:[%s1696 + $0x68] sm:%s1689]
          %1755 = vst [vmem:[%s1697 + $0x70] sm:%s1689] %v1754
          %v1756 = vld [vmem:[%s1696 + $0x78] sm:%s1689]
          %1757 = vst [vmem:[%s1697 + $0x74] sm:%s1689] %v1756
          %v1758 = vld [vmem:[%s1696 + $0x6c] sm:%s1689]
          %1759 = vst [vmem:[%s1697 + $0x78] sm:%s1689] %v1758
          %v1760 = vld [vmem:[%s1696 + $0x7c] sm:%s1689]
          %1761 = vst [vmem:[%s1697 + $0x7c] sm:%s1689] %v1760
          %v1762 = vld [vmem:[%s1696 + $0x80] sm:%s1689]
          %1763 = vst [vmem:[%s1697 + $0x80] sm:%s1689] %v1762
          %v1764 = vld [vmem:[%s1696 + $0x90] sm:%s1689]
          %1765 = vst [vmem:[%s1697 + $0x84] sm:%s1689] %v1764
          %v1766 = vld [vmem:[%s1696 + $0x84] sm:%s1689]
          %1767 = vst [vmem:[%s1697 + $0x88] sm:%s1689] %v1766
          %v1768 = vld [vmem:[%s1696 + $0x94] sm:%s1689]
          %1769 = vst [vmem:[%s1697 + $0x8c] sm:%s1689] %v1768
          %v1770 = vld [vmem:[%s1696 + $0x88] sm:%s1689]
          %1771 = vst [vmem:[%s1697 + $0x90] sm:%s1689] %v1770
          %v1772 = vld [vmem:[%s1696 + $0x98] sm:%s1689]
          %1773 = vst [vmem:[%s1697 + $0x94] sm:%s1689] %v1772
          %v1774 = vld [vmem:[%s1696 + $0x8c] sm:%s1689]
          %1775 = vst [vmem:[%s1697 + $0x98] sm:%s1689] %v1774
          %v1776 = vld [vmem:[%s1696 + $0x9c] sm:%s1689]
          %1777 = vst [vmem:[%s1697 + $0x9c] sm:%s1689] %v1776
          %v1778 = vld [vmem:[%s1696 + $0xa0] sm:%s1689]
          %1779 = vst [vmem:[%s1697 + $0xa0] sm:%s1689] %v1778
          %v1780 = vld [vmem:[%s1696 + $0xb0] sm:%s1689]
          %1781 = vst [vmem:[%s1697 + $0xa4] sm:%s1689] %v1780
          %v1782 = vld [vmem:[%s1696 + $0xa4] sm:%s1689]
          %1783 = vst [vmem:[%s1697 + $0xa8] sm:%s1689] %v1782
          %v1784 = vld [vmem:[%s1696 + $0xb4] sm:%s1689]
          %1785 = vst [vmem:[%s1697 + $0xac] sm:%s1689] %v1784
          %v1786 = vld [vmem:[%s1696 + $0xa8] sm:%s1689]
          %1787 = vst [vmem:[%s1697 + $0xb0] sm:%s1689] %v1786
          %v1788 = vld [vmem:[%s1696 + $0xb8] sm:%s1689]
          %1789 = vst [vmem:[%s1697 + $0xb4] sm:%s1689] %v1788
          %v1790 = vld [vmem:[%s1696 + $0xac] sm:%s1689]
          %1791 = vst [vmem:[%s1697 + $0xb8] sm:%s1689] %v1790
          %v1792 = vld [vmem:[%s1696 + $0xbc] sm:%s1689]
          %1793 = vst [vmem:[%s1697 + $0xbc] sm:%s1689] %v1792
          %v1794 = vld [vmem:[%s1696 + $0xc0] sm:%s1689]
          %1795 = vst [vmem:[%s1697 + $0xc0] sm:%s1689] %v1794
          %v1796 = vld [vmem:[%s1696 + $0xd0] sm:%s1689]
          %1797 = vst [vmem:[%s1697 + $0xc4] sm:%s1689] %v1796
          %v1798 = vld [vmem:[%s1696 + $0xc4] sm:%s1689]
          %1799 = vst [vmem:[%s1697 + $0xc8] sm:%s1689] %v1798
          %v1800 = vld [vmem:[%s1696 + $0xd4] sm:%s1689]
          %1801 = vst [vmem:[%s1697 + $0xcc] sm:%s1689] %v1800
          %v1802 = vld [vmem:[%s1696 + $0xc8] sm:%s1689]
          %1803 = vst [vmem:[%s1697 + $0xd0] sm:%s1689] %v1802
          %v1804 = vld [vmem:[%s1696 + $0xd8] sm:%s1689]
          %1805 = vst [vmem:[%s1697 + $0xd4] sm:%s1689] %v1804
          %v1806 = vld [vmem:[%s1696 + $0xcc] sm:%s1689]
          %1807 = vst [vmem:[%s1697 + $0xd8] sm:%s1689] %v1806
          %v1808 = vld [vmem:[%s1696 + $0xdc] sm:%s1689]
          %1809 = vst [vmem:[%s1697 + $0xdc] sm:%s1689] %v1808
          %v1810 = vld [vmem:[%s1696 + $0xe0] sm:%s1689]
          %1811 = vst [vmem:[%s1697 + $0xe0] sm:%s1689] %v1810
          %v1812 = vld [vmem:[%s1696 + $0xf0] sm:%s1689]
          %1813 = vst [vmem:[%s1697 + $0xe4] sm:%s1689] %v1812
          %v1814 = vld [vmem:[%s1696 + $0xe4] sm:%s1689]
          %1815 = vst [vmem:[%s1697 + $0xe8] sm:%s1689] %v1814
          %v1816 = vld [vmem:[%s1696 + $0xf4] sm:%s1689]
          %1817 = vst [vmem:[%s1697 + $0xec] sm:%s1689] %v1816
          %v1818 = vld [vmem:[%s1696 + $0xe8] sm:%s1689]
          %1819 = vst [vmem:[%s1697 + $0xf0] sm:%s1689] %v1818
          %v1820 = vld [vmem:[%s1696 + $0xf8] sm:%s1689]
          %1821 = vst [vmem:[%s1697 + $0xf4] sm:%s1689] %v1820
          %v1822 = vld [vmem:[%s1696 + $0xec] sm:%s1689]
          %1823 = vst [vmem:[%s1697 + $0xf8] sm:%s1689] %v1822
          %v1824 = vld [vmem:[%s1696 + $0xfc] sm:%s1689]
          %1825 = vst [vmem:[%s1697 + $0xfc] sm:%s1689] %v1824
          %v1826 = vld [vmem:[%s1696 + $0x100] sm:%s1689]
          %1827 = vst [vmem:[%s1697 + $0x100] sm:%s1689] %v1826
          %v1828 = vld [vmem:[%s1696 + $0x110] sm:%s1689]
          %1829 = vst [vmem:[%s1697 + $0x104] sm:%s1689] %v1828
          %v1830 = vld [vmem:[%s1696 + $0x104] sm:%s1689]
          %1831 = vst [vmem:[%s1697 + $0x108] sm:%s1689] %v1830
          %v1832 = vld [vmem:[%s1696 + $0x114] sm:%s1689]
          %1833 = vst [vmem:[%s1697 + $0x10c] sm:%s1689] %v1832
          %v1834 = vld [vmem:[%s1696 + $0x108] sm:%s1689]
          %1835 = vst [vmem:[%s1697 + $0x110] sm:%s1689] %v1834
          %v1836 = vld [vmem:[%s1696 + $0x118] sm:%s1689]
          %1837 = vst [vmem:[%s1697 + $0x114] sm:%s1689] %v1836
          %v1838 = vld [vmem:[%s1696 + $0x10c] sm:%s1689]
          %1839 = vst [vmem:[%s1697 + $0x118] sm:%s1689] %v1838
          %v1840 = vld [vmem:[%s1696 + $0x11c] sm:%s1689]
          %1841 = vst [vmem:[%s1697 + $0x11c] sm:%s1689] %v1840
          %v1842 = vld [vmem:[%s1696 + $0x120] sm:%s1689]
          %1843 = vst [vmem:[%s1697 + $0x120] sm:%s1689] %v1842
          %v1844 = vld [vmem:[%s1696 + $0x130] sm:%s1689]
          %1845 = vst [vmem:[%s1697 + $0x124] sm:%s1689] %v1844
          %v1846 = vld [vmem:[%s1696 + $0x124] sm:%s1689]
          %1847 = vst [vmem:[%s1697 + $0x128] sm:%s1689] %v1846
          %v1848 = vld [vmem:[%s1696 + $0x134] sm:%s1689]
          %1849 = vst [vmem:[%s1697 + $0x12c] sm:%s1689] %v1848
          %v1850 = vld [vmem:[%s1696 + $0x128] sm:%s1689]
          %1851 = vst [vmem:[%s1697 + $0x130] sm:%s1689] %v1850
          %v1852 = vld [vmem:[%s1696 + $0x138] sm:%s1689]
          %1853 = vst [vmem:[%s1697 + $0x134] sm:%s1689] %v1852
          %v1854 = vld [vmem:[%s1696 + $0x12c] sm:%s1689]
          %1855 = vst [vmem:[%s1697 + $0x138] sm:%s1689] %v1854
          %v1856 = vld [vmem:[%s1696 + $0x13c] sm:%s1689]
          %1857 = vst [vmem:[%s1697 + $0x13c] sm:%s1689] %v1856
          %v1858 = vld [vmem:[%s1696 + $0x140] sm:%s1689]
          %1859 = vst [vmem:[%s1697 + $0x140] sm:%s1689] %v1858
          %v1860 = vld [vmem:[%s1696 + $0x150] sm:%s1689]
          %1861 = vst [vmem:[%s1697 + $0x144] sm:%s1689] %v1860
          %v1862 = vld [vmem:[%s1696 + $0x144] sm:%s1689]
          %1863 = vst [vmem:[%s1697 + $0x148] sm:%s1689] %v1862
          %v1864 = vld [vmem:[%s1696 + $0x154] sm:%s1689]
          %1865 = vst [vmem:[%s1697 + $0x14c] sm:%s1689] %v1864
          %v1866 = vld [vmem:[%s1696 + $0x148] sm:%s1689]
          %1867 = vst [vmem:[%s1697 + $0x150] sm:%s1689] %v1866
          %v1868 = vld [vmem:[%s1696 + $0x158] sm:%s1689]
          %1869 = vst [vmem:[%s1697 + $0x154] sm:%s1689] %v1868
          %v1870 = vld [vmem:[%s1696 + $0x14c] sm:%s1689]
          %1871 = vst [vmem:[%s1697 + $0x158] sm:%s1689] %v1870
          %v1872 = vld [vmem:[%s1696 + $0x15c] sm:%s1689]
          %1873 = vst [vmem:[%s1697 + $0x15c] sm:%s1689] %v1872
          %v1874 = vld [vmem:[%s1696 + $0x160] sm:%s1689]
          %1875 = vst [vmem:[%s1697 + $0x160] sm:%s1689] %v1874
          %v1876 = vld [vmem:[%s1696 + $0x170] sm:%s1689]
          %1877 = vst [vmem:[%s1697 + $0x164] sm:%s1689] %v1876
          %v1878 = vld [vmem:[%s1696 + $0x164] sm:%s1689]
          %1879 = vst [vmem:[%s1697 + $0x168] sm:%s1689] %v1878
          %v1880 = vld [vmem:[%s1696 + $0x174] sm:%s1689]
          %1881 = vst [vmem:[%s1697 + $0x16c] sm:%s1689] %v1880
          %v1882 = vld [vmem:[%s1696 + $0x168] sm:%s1689]
          %1883 = vst [vmem:[%s1697 + $0x170] sm:%s1689] %v1882
          %v1884 = vld [vmem:[%s1696 + $0x178] sm:%s1689]
          %1885 = vst [vmem:[%s1697 + $0x174] sm:%s1689] %v1884
          %v1886 = vld [vmem:[%s1696 + $0x16c] sm:%s1689]
          %1887 = vst [vmem:[%s1697 + $0x178] sm:%s1689] %v1886
          %v1888 = vld [vmem:[%s1696 + $0x17c] sm:%s1689]
          %1889 = vst [vmem:[%s1697 + $0x17c] sm:%s1689] %v1888
          %v1890 = vld [vmem:[%s1696 + $0x180] sm:%s1689]
          %1891 = vst [vmem:[%s1697 + $0x180] sm:%s1689] %v1890
          %v1892 = vld [vmem:[%s1696 + $0x190] sm:%s1689]
          %1893 = vst [vmem:[%s1697 + $0x184] sm:%s1689] %v1892
          %v1894 = vld [vmem:[%s1696 + $0x184] sm:%s1689]
          %1895 = vst [vmem:[%s1697 + $0x188] sm:%s1689] %v1894
          %v1896 = vld [vmem:[%s1696 + $0x194] sm:%s1689]
          %1897 = vst [vmem:[%s1697 + $0x18c] sm:%s1689] %v1896
          %v1898 = vld [vmem:[%s1696 + $0x188] sm:%s1689]
          %1899 = vst [vmem:[%s1697 + $0x190] sm:%s1689] %v1898
          %v1900 = vld [vmem:[%s1696 + $0x198] sm:%s1689]
          %1901 = vst [vmem:[%s1697 + $0x194] sm:%s1689] %v1900
          %v1902 = vld [vmem:[%s1696 + $0x18c] sm:%s1689]
          %1903 = vst [vmem:[%s1697 + $0x198] sm:%s1689] %v1902
          %v1904 = vld [vmem:[%s1696 + $0x19c] sm:%s1689]
          %1905 = vst [vmem:[%s1697 + $0x19c] sm:%s1689] %v1904
          %v1906 = vld [vmem:[%s1696 + $0x1a0] sm:%s1689]
          %1907 = vst [vmem:[%s1697 + $0x1a0] sm:%s1689] %v1906
          %v1908 = vld [vmem:[%s1696 + $0x1b0] sm:%s1689]
          %1909 = vst [vmem:[%s1697 + $0x1a4] sm:%s1689] %v1908
          %v1910 = vld [vmem:[%s1696 + $0x1a4] sm:%s1689]
          %1911 = vst [vmem:[%s1697 + $0x1a8] sm:%s1689] %v1910
          %v1912 = vld [vmem:[%s1696 + $0x1b4] sm:%s1689]
          %1913 = vst [vmem:[%s1697 + $0x1ac] sm:%s1689] %v1912
          %v1914 = vld [vmem:[%s1696 + $0x1a8] sm:%s1689]
          %1915 = vst [vmem:[%s1697 + $0x1b0] sm:%s1689] %v1914
          %v1916 = vld [vmem:[%s1696 + $0x1b8] sm:%s1689]
          %1917 = vst [vmem:[%s1697 + $0x1b4] sm:%s1689] %v1916
          %v1918 = vld [vmem:[%s1696 + $0x1ac] sm:%s1689]
          %1919 = vst [vmem:[%s1697 + $0x1b8] sm:%s1689] %v1918
          %v1920 = vld [vmem:[%s1696 + $0x1bc] sm:%s1689]
          %1921 = vst [vmem:[%s1697 + $0x1bc] sm:%s1689] %v1920
          %v1922 = vld [vmem:[%s1696 + $0x1c0] sm:%s1689]
          %1923 = vst [vmem:[%s1697 + $0x1c0] sm:%s1689] %v1922
          %v1924 = vld [vmem:[%s1696 + $0x1d0] sm:%s1689]
          %1925 = vst [vmem:[%s1697 + $0x1c4] sm:%s1689] %v1924
          %v1926 = vld [vmem:[%s1696 + $0x1c4] sm:%s1689]
          %1927 = vst [vmem:[%s1697 + $0x1c8] sm:%s1689] %v1926
          %v1928 = vld [vmem:[%s1696 + $0x1d4] sm:%s1689]
          %1929 = vst [vmem:[%s1697 + $0x1cc] sm:%s1689] %v1928
          %v1930 = vld [vmem:[%s1696 + $0x1c8] sm:%s1689]
          %1931 = vst [vmem:[%s1697 + $0x1d0] sm:%s1689] %v1930
          %v1932 = vld [vmem:[%s1696 + $0x1d8] sm:%s1689]
          %1933 = vst [vmem:[%s1697 + $0x1d4] sm:%s1689] %v1932
          %v1934 = vld [vmem:[%s1696 + $0x1cc] sm:%s1689]
          %1935 = vst [vmem:[%s1697 + $0x1d8] sm:%s1689] %v1934
          %v1936 = vld [vmem:[%s1696 + $0x1dc] sm:%s1689]
          %1937 = vst [vmem:[%s1697 + $0x1dc] sm:%s1689] %v1936
          %v1938 = vld [vmem:[%s1696 + $0x1e0] sm:%s1689]
          %1939 = vst [vmem:[%s1697 + $0x1e0] sm:%s1689] %v1938
          %v1940 = vld [vmem:[%s1696 + $0x1f0] sm:%s1689]
          %1941 = vst [vmem:[%s1697 + $0x1e4] sm:%s1689] %v1940
          %v1942 = vld [vmem:[%s1696 + $0x1e4] sm:%s1689]
          %1943 = vst [vmem:[%s1697 + $0x1e8] sm:%s1689] %v1942
          %v1944 = vld [vmem:[%s1696 + $0x1f4] sm:%s1689]
          %1945 = vst [vmem:[%s1697 + $0x1ec] sm:%s1689] %v1944
          %v1946 = vld [vmem:[%s1696 + $0x1e8] sm:%s1689]
          %1947 = vst [vmem:[%s1697 + $0x1f0] sm:%s1689] %v1946
          %v1948 = vld [vmem:[%s1696 + $0x1f8] sm:%s1689]
          %1949 = vst [vmem:[%s1697 + $0x1f4] sm:%s1689] %v1948
          %v1950 = vld [vmem:[%s1696 + $0x1ec] sm:%s1689]
          %1951 = vst [vmem:[%s1697 + $0x1f8] sm:%s1689] %v1950
          %v1952 = vld [vmem:[%s1696 + $0x1fc] sm:%s1689]
          %1953 = vst [vmem:[%s1697 + $0x1fc] sm:%s1689] %v1952
          %v1954 = vld [vmem:[%s1696 + $0x200] sm:%s1689]
          %1955 = vst [vmem:[%s1697 + $0x200] sm:%s1689] %v1954
          %v1956 = vld [vmem:[%s1696 + $0x210] sm:%s1689]
          %1957 = vst [vmem:[%s1697 + $0x204] sm:%s1689] %v1956
          %v1958 = vld [vmem:[%s1696 + $0x204] sm:%s1689]
          %1959 = vst [vmem:[%s1697 + $0x208] sm:%s1689] %v1958
          %v1960 = vld [vmem:[%s1696 + $0x214] sm:%s1689]
          %1961 = vst [vmem:[%s1697 + $0x20c] sm:%s1689] %v1960
          %v1962 = vld [vmem:[%s1696 + $0x208] sm:%s1689]
          %1963 = vst [vmem:[%s1697 + $0x210] sm:%s1689] %v1962
          %v1964 = vld [vmem:[%s1696 + $0x218] sm:%s1689]
          %1965 = vst [vmem:[%s1697 + $0x214] sm:%s1689] %v1964
          %v1966 = vld [vmem:[%s1696 + $0x20c] sm:%s1689]
          %1967 = vst [vmem:[%s1697 + $0x218] sm:%s1689] %v1966
          %v1968 = vld [vmem:[%s1696 + $0x21c] sm:%s1689]
          %1969 = vst [vmem:[%s1697 + $0x21c] sm:%s1689] %v1968
          %v1970 = vld [vmem:[%s1696 + $0x220] sm:%s1689]
          %1971 = vst [vmem:[%s1697 + $0x220] sm:%s1689] %v1970
          %v1972 = vld [vmem:[%s1696 + $0x230] sm:%s1689]
          %1973 = vst [vmem:[%s1697 + $0x224] sm:%s1689] %v1972
          %v1974 = vld [vmem:[%s1696 + $0x224] sm:%s1689]
          %1975 = vst [vmem:[%s1697 + $0x228] sm:%s1689] %v1974
          %v1976 = vld [vmem:[%s1696 + $0x234] sm:%s1689]
          %1977 = vst [vmem:[%s1697 + $0x22c] sm:%s1689] %v1976
          %v1978 = vld [vmem:[%s1696 + $0x228] sm:%s1689]
          %1979 = vst [vmem:[%s1697 + $0x230] sm:%s1689] %v1978
          %v1980 = vld [vmem:[%s1696 + $0x238] sm:%s1689]
          %1981 = vst [vmem:[%s1697 + $0x234] sm:%s1689] %v1980
          %v1982 = vld [vmem:[%s1696 + $0x22c] sm:%s1689]
          %1983 = vst [vmem:[%s1697 + $0x238] sm:%s1689] %v1982
          %v1984 = vld [vmem:[%s1696 + $0x23c] sm:%s1689]
          %1985 = vst [vmem:[%s1697 + $0x23c] sm:%s1689] %v1984
          %v1986 = vld [vmem:[%s1696 + $0x240] sm:%s1689]
          %1987 = vst [vmem:[%s1697 + $0x240] sm:%s1689] %v1986
          %v1988 = vld [vmem:[%s1696 + $0x250] sm:%s1689]
          %1989 = vst [vmem:[%s1697 + $0x244] sm:%s1689] %v1988
          %v1990 = vld [vmem:[%s1696 + $0x244] sm:%s1689]
          %1991 = vst [vmem:[%s1697 + $0x248] sm:%s1689] %v1990
          %v1992 = vld [vmem:[%s1696 + $0x254] sm:%s1689]
          %1993 = vst [vmem:[%s1697 + $0x24c] sm:%s1689] %v1992
          %v1994 = vld [vmem:[%s1696 + $0x248] sm:%s1689]
          %1995 = vst [vmem:[%s1697 + $0x250] sm:%s1689] %v1994
          %v1996 = vld [vmem:[%s1696 + $0x258] sm:%s1689]
          %1997 = vst [vmem:[%s1697 + $0x254] sm:%s1689] %v1996
          %v1998 = vld [vmem:[%s1696 + $0x24c] sm:%s1689]
          %1999 = vst [vmem:[%s1697 + $0x258] sm:%s1689] %v1998
          %v2000 = vld [vmem:[%s1696 + $0x25c] sm:%s1689]
          %2001 = vst [vmem:[%s1697 + $0x25c] sm:%s1689] %v2000
          %v2002 = vld [vmem:[%s1696 + $0x260] sm:%s1689]
          %2003 = vst [vmem:[%s1697 + $0x260] sm:%s1689] %v2002
          %v2004 = vld [vmem:[%s1696 + $0x270] sm:%s1689]
          %2005 = vst [vmem:[%s1697 + $0x264] sm:%s1689] %v2004
          %v2006 = vld [vmem:[%s1696 + $0x264] sm:%s1689]
          %2007 = vst [vmem:[%s1697 + $0x268] sm:%s1689] %v2006
          %v2008 = vld [vmem:[%s1696 + $0x274] sm:%s1689]
          %2009 = vst [vmem:[%s1697 + $0x26c] sm:%s1689] %v2008
          %v2010 = vld [vmem:[%s1696 + $0x268] sm:%s1689]
          %2011 = vst [vmem:[%s1697 + $0x270] sm:%s1689] %v2010
          %v2012 = vld [vmem:[%s1696 + $0x278] sm:%s1689]
          %2013 = vst [vmem:[%s1697 + $0x274] sm:%s1689] %v2012
          %v2014 = vld [vmem:[%s1696 + $0x26c] sm:%s1689]
          %2015 = vst [vmem:[%s1697 + $0x278] sm:%s1689] %v2014
          %v2016 = vld [vmem:[%s1696 + $0x27c] sm:%s1689]
          %2017 = vst [vmem:[%s1697 + $0x27c] sm:%s1689] %v2016
          %v2018 = vld [vmem:[%s1696 + $0x280] sm:%s1689]
          %2019 = vst [vmem:[%s1697 + $0x280] sm:%s1689] %v2018
          %v2020 = vld [vmem:[%s1696 + $0x290] sm:%s1689]
          %2021 = vst [vmem:[%s1697 + $0x284] sm:%s1689] %v2020
          %v2022 = vld [vmem:[%s1696 + $0x284] sm:%s1689]
          %2023 = vst [vmem:[%s1697 + $0x288] sm:%s1689] %v2022
          %v2024 = vld [vmem:[%s1696 + $0x294] sm:%s1689]
          %2025 = vst [vmem:[%s1697 + $0x28c] sm:%s1689] %v2024
          %v2026 = vld [vmem:[%s1696 + $0x288] sm:%s1689]
          %2027 = vst [vmem:[%s1697 + $0x290] sm:%s1689] %v2026
          %v2028 = vld [vmem:[%s1696 + $0x298] sm:%s1689]
          %2029 = vst [vmem:[%s1697 + $0x294] sm:%s1689] %v2028
          %v2030 = vld [vmem:[%s1696 + $0x28c] sm:%s1689]
          %2031 = vst [vmem:[%s1697 + $0x298] sm:%s1689] %v2030
          %v2032 = vld [vmem:[%s1696 + $0x29c] sm:%s1689]
          %2033 = vst [vmem:[%s1697 + $0x29c] sm:%s1689] %v2032
          %v2034 = vld [vmem:[%s1696 + $0x2a0] sm:%s1689]
          %2035 = vst [vmem:[%s1697 + $0x2a0] sm:%s1689] %v2034
          %v2036 = vld [vmem:[%s1696 + $0x2b0] sm:%s1689]
          %2037 = vst [vmem:[%s1697 + $0x2a4] sm:%s1689] %v2036
          %v2038 = vld [vmem:[%s1696 + $0x2a4] sm:%s1689]
          %2039 = vst [vmem:[%s1697 + $0x2a8] sm:%s1689] %v2038
          %v2040 = vld [vmem:[%s1696 + $0x2b4] sm:%s1689]
          %2041 = vst [vmem:[%s1697 + $0x2ac] sm:%s1689] %v2040
          %v2042 = vld [vmem:[%s1696 + $0x2a8] sm:%s1689]
          %2043 = vst [vmem:[%s1697 + $0x2b0] sm:%s1689] %v2042
          %v2044 = vld [vmem:[%s1696 + $0x2b8] sm:%s1689]
          %2045 = vst [vmem:[%s1697 + $0x2b4] sm:%s1689] %v2044
          %v2046 = vld [vmem:[%s1696 + $0x2ac] sm:%s1689]
          %2047 = vst [vmem:[%s1697 + $0x2b8] sm:%s1689] %v2046
          %v2048 = vld [vmem:[%s1696 + $0x2bc] sm:%s1689]
          %2049 = vst [vmem:[%s1697 + $0x2bc] sm:%s1689] %v2048
          %v2050 = vld [vmem:[%s1696 + $0x2c0] sm:%s1689]
          %2051 = vst [vmem:[%s1697 + $0x2c0] sm:%s1689] %v2050
          %v2052 = vld [vmem:[%s1696 + $0x2d0] sm:%s1689]
          %2053 = vst [vmem:[%s1697 + $0x2c4] sm:%s1689] %v2052
          %v2054 = vld [vmem:[%s1696 + $0x2c4] sm:%s1689]
          %2055 = vst [vmem:[%s1697 + $0x2c8] sm:%s1689] %v2054
          %v2056 = vld [vmem:[%s1696 + $0x2d4] sm:%s1689]
          %2057 = vst [vmem:[%s1697 + $0x2cc] sm:%s1689] %v2056
          %v2058 = vld [vmem:[%s1696 + $0x2c8] sm:%s1689]
          %2059 = vst [vmem:[%s1697 + $0x2d0] sm:%s1689] %v2058
          %v2060 = vld [vmem:[%s1696 + $0x2d8] sm:%s1689]
          %2061 = vst [vmem:[%s1697 + $0x2d4] sm:%s1689] %v2060
          %v2062 = vld [vmem:[%s1696 + $0x2cc] sm:%s1689]
          %2063 = vst [vmem:[%s1697 + $0x2d8] sm:%s1689] %v2062
          %v2064 = vld [vmem:[%s1696 + $0x2dc] sm:%s1689]
          %2065 = vst [vmem:[%s1697 + $0x2dc] sm:%s1689] %v2064
          %v2066 = vld [vmem:[%s1696 + $0x2e0] sm:%s1689]
          %2067 = vst [vmem:[%s1697 + $0x2e0] sm:%s1689] %v2066
          %v2068 = vld [vmem:[%s1696 + $0x2f0] sm:%s1689]
          %2069 = vst [vmem:[%s1697 + $0x2e4] sm:%s1689] %v2068
          %v2070 = vld [vmem:[%s1696 + $0x2e4] sm:%s1689]
          %2071 = vst [vmem:[%s1697 + $0x2e8] sm:%s1689] %v2070
          %v2072 = vld [vmem:[%s1696 + $0x2f4] sm:%s1689]
          %2073 = vst [vmem:[%s1697 + $0x2ec] sm:%s1689] %v2072
          %v2074 = vld [vmem:[%s1696 + $0x2e8] sm:%s1689]
          %2075 = vst [vmem:[%s1697 + $0x2f0] sm:%s1689] %v2074
          %v2076 = vld [vmem:[%s1696 + $0x2f8] sm:%s1689]
          %2077 = vst [vmem:[%s1697 + $0x2f4] sm:%s1689] %v2076
          %v2078 = vld [vmem:[%s1696 + $0x2ec] sm:%s1689]
          %2079 = vst [vmem:[%s1697 + $0x2f8] sm:%s1689] %v2078
          %v2080 = vld [vmem:[%s1696 + $0x2fc] sm:%s1689]
          %2081 = vst [vmem:[%s1697 + $0x2fc] sm:%s1689] %v2080
          %v2082 = vld [vmem:[%s1696 + $0x300] sm:%s1689]
          %2083 = vst [vmem:[%s1697 + $0x300] sm:%s1689] %v2082
          %v2084 = vld [vmem:[%s1696 + $0x310] sm:%s1689]
          %2085 = vst [vmem:[%s1697 + $0x304] sm:%s1689] %v2084
          %v2086 = vld [vmem:[%s1696 + $0x304] sm:%s1689]
          %2087 = vst [vmem:[%s1697 + $0x308] sm:%s1689] %v2086
          %v2088 = vld [vmem:[%s1696 + $0x314] sm:%s1689]
          %2089 = vst [vmem:[%s1697 + $0x30c] sm:%s1689] %v2088
          %v2090 = vld [vmem:[%s1696 + $0x308] sm:%s1689]
          %2091 = vst [vmem:[%s1697 + $0x310] sm:%s1689] %v2090
          %v2092 = vld [vmem:[%s1696 + $0x318] sm:%s1689]
          %2093 = vst [vmem:[%s1697 + $0x314] sm:%s1689] %v2092
          %v2094 = vld [vmem:[%s1696 + $0x30c] sm:%s1689]
          %2095 = vst [vmem:[%s1697 + $0x318] sm:%s1689] %v2094
          %v2096 = vld [vmem:[%s1696 + $0x31c] sm:%s1689]
          %2097 = vst [vmem:[%s1697 + $0x31c] sm:%s1689] %v2096
          %v2098 = vld [vmem:[%s1696 + $0x320] sm:%s1689]
          %2099 = vst [vmem:[%s1697 + $0x320] sm:%s1689] %v2098
          %v2100 = vld [vmem:[%s1696 + $0x330] sm:%s1689]
          %2101 = vst [vmem:[%s1697 + $0x324] sm:%s1689] %v2100
          %v2102 = vld [vmem:[%s1696 + $0x324] sm:%s1689]
          %2103 = vst [vmem:[%s1697 + $0x328] sm:%s1689] %v2102
          %v2104 = vld [vmem:[%s1696 + $0x334] sm:%s1689]
          %2105 = vst [vmem:[%s1697 + $0x32c] sm:%s1689] %v2104
          %v2106 = vld [vmem:[%s1696 + $0x328] sm:%s1689]
          %2107 = vst [vmem:[%s1697 + $0x330] sm:%s1689] %v2106
          %v2108 = vld [vmem:[%s1696 + $0x338] sm:%s1689]
          %2109 = vst [vmem:[%s1697 + $0x334] sm:%s1689] %v2108
          %v2110 = vld [vmem:[%s1696 + $0x32c] sm:%s1689]
          %2111 = vst [vmem:[%s1697 + $0x338] sm:%s1689] %v2110
          %v2112 = vld [vmem:[%s1696 + $0x33c] sm:%s1689]
          %2113 = vst [vmem:[%s1697 + $0x33c] sm:%s1689] %v2112
          %v2114 = vld [vmem:[%s1696 + $0x340] sm:%s1689]
          %2115 = vst [vmem:[%s1697 + $0x340] sm:%s1689] %v2114
          %v2116 = vld [vmem:[%s1696 + $0x350] sm:%s1689]
          %2117 = vst [vmem:[%s1697 + $0x344] sm:%s1689] %v2116
          %v2118 = vld [vmem:[%s1696 + $0x344] sm:%s1689]
          %2119 = vst [vmem:[%s1697 + $0x348] sm:%s1689] %v2118
          %v2120 = vld [vmem:[%s1696 + $0x354] sm:%s1689]
          %2121 = vst [vmem:[%s1697 + $0x34c] sm:%s1689] %v2120
          %v2122 = vld [vmem:[%s1696 + $0x348] sm:%s1689]
          %2123 = vst [vmem:[%s1697 + $0x350] sm:%s1689] %v2122
          %v2124 = vld [vmem:[%s1696 + $0x358] sm:%s1689]
          %2125 = vst [vmem:[%s1697 + $0x354] sm:%s1689] %v2124
          %v2126 = vld [vmem:[%s1696 + $0x34c] sm:%s1689]
          %2127 = vst [vmem:[%s1697 + $0x358] sm:%s1689] %v2126
          %v2128 = vld [vmem:[%s1696 + $0x35c] sm:%s1689]
          %2129 = vst [vmem:[%s1697 + $0x35c] sm:%s1689] %v2128
          %v2130 = vld [vmem:[%s1696 + $0x360] sm:%s1689]
          %2131 = vst [vmem:[%s1697 + $0x360] sm:%s1689] %v2130
          %v2132 = vld [vmem:[%s1696 + $0x370] sm:%s1689]
          %2133 = vst [vmem:[%s1697 + $0x364] sm:%s1689] %v2132
          %v2134 = vld [vmem:[%s1696 + $0x364] sm:%s1689]
          %2135 = vst [vmem:[%s1697 + $0x368] sm:%s1689] %v2134
          %v2136 = vld [vmem:[%s1696 + $0x374] sm:%s1689]
          %2137 = vst [vmem:[%s1697 + $0x36c] sm:%s1689] %v2136
          %v2138 = vld [vmem:[%s1696 + $0x368] sm:%s1689]
          %2139 = vst [vmem:[%s1697 + $0x370] sm:%s1689] %v2138
          %v2140 = vld [vmem:[%s1696 + $0x378] sm:%s1689]
          %2141 = vst [vmem:[%s1697 + $0x374] sm:%s1689] %v2140
          %v2142 = vld [vmem:[%s1696 + $0x36c] sm:%s1689]
          %2143 = vst [vmem:[%s1697 + $0x378] sm:%s1689] %v2142
          %v2144 = vld [vmem:[%s1696 + $0x37c] sm:%s1689]
          %2145 = vst [vmem:[%s1697 + $0x37c] sm:%s1689] %v2144
          %v2146 = vld [vmem:[%s1696 + $0x380] sm:%s1689]
          %2147 = vst [vmem:[%s1697 + $0x380] sm:%s1689] %v2146
          %v2148 = vld [vmem:[%s1696 + $0x390] sm:%s1689]
          %2149 = vst [vmem:[%s1697 + $0x384] sm:%s1689] %v2148
          %v2150 = vld [vmem:[%s1696 + $0x384] sm:%s1689]
          %2151 = vst [vmem:[%s1697 + $0x388] sm:%s1689] %v2150
          %v2152 = vld [vmem:[%s1696 + $0x394] sm:%s1689]
          %2153 = vst [vmem:[%s1697 + $0x38c] sm:%s1689] %v2152
          %v2154 = vld [vmem:[%s1696 + $0x388] sm:%s1689]
          %2155 = vst [vmem:[%s1697 + $0x390] sm:%s1689] %v2154
          %v2156 = vld [vmem:[%s1696 + $0x398] sm:%s1689]
          %2157 = vst [vmem:[%s1697 + $0x394] sm:%s1689] %v2156
          %v2158 = vld [vmem:[%s1696 + $0x38c] sm:%s1689]
          %2159 = vst [vmem:[%s1697 + $0x398] sm:%s1689] %v2158
          %v2160 = vld [vmem:[%s1696 + $0x39c] sm:%s1689]
          %2161 = vst [vmem:[%s1697 + $0x39c] sm:%s1689] %v2160
          %v2162 = vld [vmem:[%s1696 + $0x3a0] sm:%s1689]
          %2163 = vst [vmem:[%s1697 + $0x3a0] sm:%s1689] %v2162
          %v2164 = vld [vmem:[%s1696 + $0x3b0] sm:%s1689]
          %2165 = vst [vmem:[%s1697 + $0x3a4] sm:%s1689] %v2164
          %v2166 = vld [vmem:[%s1696 + $0x3a4] sm:%s1689]
          %2167 = vst [vmem:[%s1697 + $0x3a8] sm:%s1689] %v2166
          %v2168 = vld [vmem:[%s1696 + $0x3b4] sm:%s1689]
          %2169 = vst [vmem:[%s1697 + $0x3ac] sm:%s1689] %v2168
          %v2170 = vld [vmem:[%s1696 + $0x3a8] sm:%s1689]
          %2171 = vst [vmem:[%s1697 + $0x3b0] sm:%s1689] %v2170
          %v2172 = vld [vmem:[%s1696 + $0x3b8] sm:%s1689]
          %2173 = vst [vmem:[%s1697 + $0x3b4] sm:%s1689] %v2172
          %v2174 = vld [vmem:[%s1696 + $0x3ac] sm:%s1689]
          %2175 = vst [vmem:[%s1697 + $0x3b8] sm:%s1689] %v2174
          %v2176 = vld [vmem:[%s1696 + $0x3bc] sm:%s1689]
          %2177 = vst [vmem:[%s1697 + $0x3bc] sm:%s1689] %v2176
          %v2178 = vld [vmem:[%s1696 + $0x3c0] sm:%s1689]
          %2179 = vst [vmem:[%s1697 + $0x3c0] sm:%s1689] %v2178
          %v2180 = vld [vmem:[%s1696 + $0x3d0] sm:%s1689]
          %2181 = vst [vmem:[%s1697 + $0x3c4] sm:%s1689] %v2180
          %v2182 = vld [vmem:[%s1696 + $0x3c4] sm:%s1689]
          %2183 = vst [vmem:[%s1697 + $0x3c8] sm:%s1689] %v2182
          %v2184 = vld [vmem:[%s1696 + $0x3d4] sm:%s1689]
          %2185 = vst [vmem:[%s1697 + $0x3cc] sm:%s1689] %v2184
          %v2186 = vld [vmem:[%s1696 + $0x3c8] sm:%s1689]
          %2187 = vst [vmem:[%s1697 + $0x3d0] sm:%s1689] %v2186
          %v2188 = vld [vmem:[%s1696 + $0x3d8] sm:%s1689]
          %2189 = vst [vmem:[%s1697 + $0x3d4] sm:%s1689] %v2188
          %v2190 = vld [vmem:[%s1696 + $0x3cc] sm:%s1689]
          %2191 = vst [vmem:[%s1697 + $0x3d8] sm:%s1689] %v2190
          %v2192 = vld [vmem:[%s1696 + $0x3dc] sm:%s1689]
          %2193 = vst [vmem:[%s1697 + $0x3dc] sm:%s1689] %v2192
          %v2194 = vld [vmem:[%s1696 + $0x3e0] sm:%s1689]
          %2195 = vst [vmem:[%s1697 + $0x3e0] sm:%s1689] %v2194
          %v2196 = vld [vmem:[%s1696 + $0x3f0] sm:%s1689]
          %2197 = vst [vmem:[%s1697 + $0x3e4] sm:%s1689] %v2196
          %v2198 = vld [vmem:[%s1696 + $0x3e4] sm:%s1689]
          %2199 = vst [vmem:[%s1697 + $0x3e8] sm:%s1689] %v2198
          %v2200 = vld [vmem:[%s1696 + $0x3f4] sm:%s1689]
          %2201 = vst [vmem:[%s1697 + $0x3ec] sm:%s1689] %v2200
          %v2202 = vld [vmem:[%s1696 + $0x3e8] sm:%s1689]
          %2203 = vst [vmem:[%s1697 + $0x3f0] sm:%s1689] %v2202
          %v2204 = vld [vmem:[%s1696 + $0x3f8] sm:%s1689]
          %2205 = vst [vmem:[%s1697 + $0x3f4] sm:%s1689] %v2204
          %v2206 = vld [vmem:[%s1696 + $0x3ec] sm:%s1689]
          %2207 = vst [vmem:[%s1697 + $0x3f8] sm:%s1689] %v2206
          %v2208 = vld [vmem:[%s1696 + $0x3fc] sm:%s1689]
          %2209 = vst [vmem:[%s1697 + $0x3fc] sm:%s1689] %v2208
        $region145: #{advanced_vae_forward.1} parent=132 // loop_footer
          %s1695 = sadd.s32 1, %s1691
        $region146: #{advanced_vae_forward.1} parent=132 // loop_footer_branch
          %1690 = sbr.rel target = $region142
        $region147: #{advanced_vae_forward.1} parent=132 // loop_exit
          _
      $region133: #{advanced_vae_forward.1} parent=117 // pred_fallthru
        _
    $region118: #{advanced_vae_forward.1} parent=1 // pred_fallthru
      _
    // Predicated region
    $region119: #{advanced_vae_forward.1} parent=1 // pred_check
      %p1147 = pneg %p1143
    $region120: #{advanced_vae_forward.1} parent=1 // pred_check_branch
      %1149 = sbr.rel (%p1147) target = $region122
    $region121: #{advanced_vae_forward.1} parent=1 // pred_region
      %s1150 = sshllo.u32 0, 4
      loop: start=0, step=1, limit=1
      $region123: #{advanced_vae_forward.1} parent=121 // loop_pre_header
        _
      $region124: #{advanced_vae_forward.1} parent=121 // loop_header
        %s1152 = sphi 0, %s1156
        %p1153 = scmp.ge.s32.totalorder %s1152, 1
        %s1157 = sphi %s20, %s20
        %s1158 = sphi [#allocation3], [#allocation3]
      $region125: #{advanced_vae_forward.1} parent=121 // loop_header_branch
        %1155 = sbr.rel (%p1153) target = $region129
      $region126: #{advanced_vae_forward.1} parent=121 // loop_body
        %v1159 = vld [vmem:[%s1157] sm:%s1150]
        %1160 = vst [vmem:[%s1158] sm:%s1150] %v1159
        %v1161 = vld [vmem:[%s1157 + $0x10] sm:%s1150]
        %1162 = vst [vmem:[%s1158 + $0x4] sm:%s1150] %v1161
        %v1163 = vld [vmem:[%s1157 + $0x4] sm:%s1150]
        %1164 = vst [vmem:[%s1158 + $0x8] sm:%s1150] %v1163
        %v1165 = vld [vmem:[%s1157 + $0x14] sm:%s1150]
        %1166 = vst [vmem:[%s1158 + $0xc] sm:%s1150] %v1165
        %v1167 = vld [vmem:[%s1157 + $0x8] sm:%s1150]
        %1168 = vst [vmem:[%s1158 + $0x10] sm:%s1150] %v1167
        %v1169 = vld [vmem:[%s1157 + $0x18] sm:%s1150]
        %1170 = vst [vmem:[%s1158 + $0x14] sm:%s1150] %v1169
        %v1171 = vld [vmem:[%s1157 + $0xc] sm:%s1150]
        %1172 = vst [vmem:[%s1158 + $0x18] sm:%s1150] %v1171
        %v1173 = vld [vmem:[%s1157 + $0x1c] sm:%s1150]
        %1174 = vst [vmem:[%s1158 + $0x1c] sm:%s1150] %v1173
        %v1175 = vld [vmem:[%s1157 + $0x20] sm:%s1150]
        %1176 = vst [vmem:[%s1158 + $0x20] sm:%s1150] %v1175
        %v1177 = vld [vmem:[%s1157 + $0x30] sm:%s1150]
        %1178 = vst [vmem:[%s1158 + $0x24] sm:%s1150] %v1177
        %v1179 = vld [vmem:[%s1157 + $0x24] sm:%s1150]
        %1180 = vst [vmem:[%s1158 + $0x28] sm:%s1150] %v1179
        %v1181 = vld [vmem:[%s1157 + $0x34] sm:%s1150]
        %1182 = vst [vmem:[%s1158 + $0x2c] sm:%s1150] %v1181
        %v1183 = vld [vmem:[%s1157 + $0x28] sm:%s1150]
        %1184 = vst [vmem:[%s1158 + $0x30] sm:%s1150] %v1183
        %v1185 = vld [vmem:[%s1157 + $0x38] sm:%s1150]
        %1186 = vst [vmem:[%s1158 + $0x34] sm:%s1150] %v1185
        %v1187 = vld [vmem:[%s1157 + $0x2c] sm:%s1150]
        %1188 = vst [vmem:[%s1158 + $0x38] sm:%s1150] %v1187
        %v1189 = vld [vmem:[%s1157 + $0x3c] sm:%s1150]
        %1190 = vst [vmem:[%s1158 + $0x3c] sm:%s1150] %v1189
        %v1191 = vld [vmem:[%s1157 + $0x40] sm:%s1150]
        %1192 = vst [vmem:[%s1158 + $0x40] sm:%s1150] %v1191
        %v1193 = vld [vmem:[%s1157 + $0x50] sm:%s1150]
        %1194 = vst [vmem:[%s1158 + $0x44] sm:%s1150] %v1193
        %v1195 = vld [vmem:[%s1157 + $0x44] sm:%s1150]
        %1196 = vst [vmem:[%s1158 + $0x48] sm:%s1150] %v1195
        %v1197 = vld [vmem:[%s1157 + $0x54] sm:%s1150]
        %1198 = vst [vmem:[%s1158 + $0x4c] sm:%s1150] %v1197
        %v1199 = vld [vmem:[%s1157 + $0x48] sm:%s1150]
        %1200 = vst [vmem:[%s1158 + $0x50] sm:%s1150] %v1199
        %v1201 = vld [vmem:[%s1157 + $0x58] sm:%s1150]
        %1202 = vst [vmem:[%s1158 + $0x54] sm:%s1150] %v1201
        %v1203 = vld [vmem:[%s1157 + $0x4c] sm:%s1150]
        %1204 = vst [vmem:[%s1158 + $0x58] sm:%s1150] %v1203
        %v1205 = vld [vmem:[%s1157 + $0x5c] sm:%s1150]
        %1206 = vst [vmem:[%s1158 + $0x5c] sm:%s1150] %v1205
        %v1207 = vld [vmem:[%s1157 + $0x60] sm:%s1150]
        %1208 = vst [vmem:[%s1158 + $0x60] sm:%s1150] %v1207
        %v1209 = vld [vmem:[%s1157 + $0x70] sm:%s1150]
        %1210 = vst [vmem:[%s1158 + $0x64] sm:%s1150] %v1209
        %v1211 = vld [vmem:[%s1157 + $0x64] sm:%s1150]
        %1212 = vst [vmem:[%s1158 + $0x68] sm:%s1150] %v1211
        %v1213 = vld [vmem:[%s1157 + $0x74] sm:%s1150]
        %1214 = vst [vmem:[%s1158 + $0x6c] sm:%s1150] %v1213
        %v1215 = vld [vmem:[%s1157 + $0x68] sm:%s1150]
        %1216 = vst [vmem:[%s1158 + $0x70] sm:%s1150] %v1215
        %v1217 = vld [vmem:[%s1157 + $0x78] sm:%s1150]
        %1218 = vst [vmem:[%s1158 + $0x74] sm:%s1150] %v1217
        %v1219 = vld [vmem:[%s1157 + $0x6c] sm:%s1150]
        %1220 = vst [vmem:[%s1158 + $0x78] sm:%s1150] %v1219
        %v1221 = vld [vmem:[%s1157 + $0x7c] sm:%s1150]
        %1222 = vst [vmem:[%s1158 + $0x7c] sm:%s1150] %v1221
        %v1223 = vld [vmem:[%s1157 + $0x80] sm:%s1150]
        %1224 = vst [vmem:[%s1158 + $0x80] sm:%s1150] %v1223
        %v1225 = vld [vmem:[%s1157 + $0x90] sm:%s1150]
        %1226 = vst [vmem:[%s1158 + $0x84] sm:%s1150] %v1225
        %v1227 = vld [vmem:[%s1157 + $0x84] sm:%s1150]
        %1228 = vst [vmem:[%s1158 + $0x88] sm:%s1150] %v1227
        %v1229 = vld [vmem:[%s1157 + $0x94] sm:%s1150]
        %1230 = vst [vmem:[%s1158 + $0x8c] sm:%s1150] %v1229
        %v1231 = vld [vmem:[%s1157 + $0x88] sm:%s1150]
        %1232 = vst [vmem:[%s1158 + $0x90] sm:%s1150] %v1231
        %v1233 = vld [vmem:[%s1157 + $0x98] sm:%s1150]
        %1234 = vst [vmem:[%s1158 + $0x94] sm:%s1150] %v1233
        %v1235 = vld [vmem:[%s1157 + $0x8c] sm:%s1150]
        %1236 = vst [vmem:[%s1158 + $0x98] sm:%s1150] %v1235
        %v1237 = vld [vmem:[%s1157 + $0x9c] sm:%s1150]
        %1238 = vst [vmem:[%s1158 + $0x9c] sm:%s1150] %v1237
        %v1239 = vld [vmem:[%s1157 + $0xa0] sm:%s1150]
        %1240 = vst [vmem:[%s1158 + $0xa0] sm:%s1150] %v1239
        %v1241 = vld [vmem:[%s1157 + $0xb0] sm:%s1150]
        %1242 = vst [vmem:[%s1158 + $0xa4] sm:%s1150] %v1241
        %v1243 = vld [vmem:[%s1157 + $0xa4] sm:%s1150]
        %1244 = vst [vmem:[%s1158 + $0xa8] sm:%s1150] %v1243
        %v1245 = vld [vmem:[%s1157 + $0xb4] sm:%s1150]
        %1246 = vst [vmem:[%s1158 + $0xac] sm:%s1150] %v1245
        %v1247 = vld [vmem:[%s1157 + $0xa8] sm:%s1150]
        %1248 = vst [vmem:[%s1158 + $0xb0] sm:%s1150] %v1247
        %v1249 = vld [vmem:[%s1157 + $0xb8] sm:%s1150]
        %1250 = vst [vmem:[%s1158 + $0xb4] sm:%s1150] %v1249
        %v1251 = vld [vmem:[%s1157 + $0xac] sm:%s1150]
        %1252 = vst [vmem:[%s1158 + $0xb8] sm:%s1150] %v1251
        %v1253 = vld [vmem:[%s1157 + $0xbc] sm:%s1150]
        %1254 = vst [vmem:[%s1158 + $0xbc] sm:%s1150] %v1253
        %v1255 = vld [vmem:[%s1157 + $0xc0] sm:%s1150]
        %1256 = vst [vmem:[%s1158 + $0xc0] sm:%s1150] %v1255
        %v1257 = vld [vmem:[%s1157 + $0xd0] sm:%s1150]
        %1258 = vst [vmem:[%s1158 + $0xc4] sm:%s1150] %v1257
        %v1259 = vld [vmem:[%s1157 + $0xc4] sm:%s1150]
        %1260 = vst [vmem:[%s1158 + $0xc8] sm:%s1150] %v1259
        %v1261 = vld [vmem:[%s1157 + $0xd4] sm:%s1150]
        %1262 = vst [vmem:[%s1158 + $0xcc] sm:%s1150] %v1261
        %v1263 = vld [vmem:[%s1157 + $0xc8] sm:%s1150]
        %1264 = vst [vmem:[%s1158 + $0xd0] sm:%s1150] %v1263
        %v1265 = vld [vmem:[%s1157 + $0xd8] sm:%s1150]
        %1266 = vst [vmem:[%s1158 + $0xd4] sm:%s1150] %v1265
        %v1267 = vld [vmem:[%s1157 + $0xcc] sm:%s1150]
        %1268 = vst [vmem:[%s1158 + $0xd8] sm:%s1150] %v1267
        %v1269 = vld [vmem:[%s1157 + $0xdc] sm:%s1150]
        %1270 = vst [vmem:[%s1158 + $0xdc] sm:%s1150] %v1269
        %v1271 = vld [vmem:[%s1157 + $0xe0] sm:%s1150]
        %1272 = vst [vmem:[%s1158 + $0xe0] sm:%s1150] %v1271
        %v1273 = vld [vmem:[%s1157 + $0xf0] sm:%s1150]
        %1274 = vst [vmem:[%s1158 + $0xe4] sm:%s1150] %v1273
        %v1275 = vld [vmem:[%s1157 + $0xe4] sm:%s1150]
        %1276 = vst [vmem:[%s1158 + $0xe8] sm:%s1150] %v1275
        %v1277 = vld [vmem:[%s1157 + $0xf4] sm:%s1150]
        %1278 = vst [vmem:[%s1158 + $0xec] sm:%s1150] %v1277
        %v1279 = vld [vmem:[%s1157 + $0xe8] sm:%s1150]
        %1280 = vst [vmem:[%s1158 + $0xf0] sm:%s1150] %v1279
        %v1281 = vld [vmem:[%s1157 + $0xf8] sm:%s1150]
        %1282 = vst [vmem:[%s1158 + $0xf4] sm:%s1150] %v1281
        %v1283 = vld [vmem:[%s1157 + $0xec] sm:%s1150]
        %1284 = vst [vmem:[%s1158 + $0xf8] sm:%s1150] %v1283
        %v1285 = vld [vmem:[%s1157 + $0xfc] sm:%s1150]
        %1286 = vst [vmem:[%s1158 + $0xfc] sm:%s1150] %v1285
        %v1287 = vld [vmem:[%s1157 + $0x100] sm:%s1150]
        %1288 = vst [vmem:[%s1158 + $0x100] sm:%s1150] %v1287
        %v1289 = vld [vmem:[%s1157 + $0x110] sm:%s1150]
        %1290 = vst [vmem:[%s1158 + $0x104] sm:%s1150] %v1289
        %v1291 = vld [vmem:[%s1157 + $0x104] sm:%s1150]
        %1292 = vst [vmem:[%s1158 + $0x108] sm:%s1150] %v1291
        %v1293 = vld [vmem:[%s1157 + $0x114] sm:%s1150]
        %1294 = vst [vmem:[%s1158 + $0x10c] sm:%s1150] %v1293
        %v1295 = vld [vmem:[%s1157 + $0x108] sm:%s1150]
        %1296 = vst [vmem:[%s1158 + $0x110] sm:%s1150] %v1295
        %v1297 = vld [vmem:[%s1157 + $0x118] sm:%s1150]
        %1298 = vst [vmem:[%s1158 + $0x114] sm:%s1150] %v1297
        %v1299 = vld [vmem:[%s1157 + $0x10c] sm:%s1150]
        %1300 = vst [vmem:[%s1158 + $0x118] sm:%s1150] %v1299
        %v1301 = vld [vmem:[%s1157 + $0x11c] sm:%s1150]
        %1302 = vst [vmem:[%s1158 + $0x11c] sm:%s1150] %v1301
        %v1303 = vld [vmem:[%s1157 + $0x120] sm:%s1150]
        %1304 = vst [vmem:[%s1158 + $0x120] sm:%s1150] %v1303
        %v1305 = vld [vmem:[%s1157 + $0x130] sm:%s1150]
        %1306 = vst [vmem:[%s1158 + $0x124] sm:%s1150] %v1305
        %v1307 = vld [vmem:[%s1157 + $0x124] sm:%s1150]
        %1308 = vst [vmem:[%s1158 + $0x128] sm:%s1150] %v1307
        %v1309 = vld [vmem:[%s1157 + $0x134] sm:%s1150]
        %1310 = vst [vmem:[%s1158 + $0x12c] sm:%s1150] %v1309
        %v1311 = vld [vmem:[%s1157 + $0x128] sm:%s1150]
        %1312 = vst [vmem:[%s1158 + $0x130] sm:%s1150] %v1311
        %v1313 = vld [vmem:[%s1157 + $0x138] sm:%s1150]
        %1314 = vst [vmem:[%s1158 + $0x134] sm:%s1150] %v1313
        %v1315 = vld [vmem:[%s1157 + $0x12c] sm:%s1150]
        %1316 = vst [vmem:[%s1158 + $0x138] sm:%s1150] %v1315
        %v1317 = vld [vmem:[%s1157 + $0x13c] sm:%s1150]
        %1318 = vst [vmem:[%s1158 + $0x13c] sm:%s1150] %v1317
        %v1319 = vld [vmem:[%s1157 + $0x140] sm:%s1150]
        %1320 = vst [vmem:[%s1158 + $0x140] sm:%s1150] %v1319
        %v1321 = vld [vmem:[%s1157 + $0x150] sm:%s1150]
        %1322 = vst [vmem:[%s1158 + $0x144] sm:%s1150] %v1321
        %v1323 = vld [vmem:[%s1157 + $0x144] sm:%s1150]
        %1324 = vst [vmem:[%s1158 + $0x148] sm:%s1150] %v1323
        %v1325 = vld [vmem:[%s1157 + $0x154] sm:%s1150]
        %1326 = vst [vmem:[%s1158 + $0x14c] sm:%s1150] %v1325
        %v1327 = vld [vmem:[%s1157 + $0x148] sm:%s1150]
        %1328 = vst [vmem:[%s1158 + $0x150] sm:%s1150] %v1327
        %v1329 = vld [vmem:[%s1157 + $0x158] sm:%s1150]
        %1330 = vst [vmem:[%s1158 + $0x154] sm:%s1150] %v1329
        %v1331 = vld [vmem:[%s1157 + $0x14c] sm:%s1150]
        %1332 = vst [vmem:[%s1158 + $0x158] sm:%s1150] %v1331
        %v1333 = vld [vmem:[%s1157 + $0x15c] sm:%s1150]
        %1334 = vst [vmem:[%s1158 + $0x15c] sm:%s1150] %v1333
        %v1335 = vld [vmem:[%s1157 + $0x160] sm:%s1150]
        %1336 = vst [vmem:[%s1158 + $0x160] sm:%s1150] %v1335
        %v1337 = vld [vmem:[%s1157 + $0x170] sm:%s1150]
        %1338 = vst [vmem:[%s1158 + $0x164] sm:%s1150] %v1337
        %v1339 = vld [vmem:[%s1157 + $0x164] sm:%s1150]
        %1340 = vst [vmem:[%s1158 + $0x168] sm:%s1150] %v1339
        %v1341 = vld [vmem:[%s1157 + $0x174] sm:%s1150]
        %1342 = vst [vmem:[%s1158 + $0x16c] sm:%s1150] %v1341
        %v1343 = vld [vmem:[%s1157 + $0x168] sm:%s1150]
        %1344 = vst [vmem:[%s1158 + $0x170] sm:%s1150] %v1343
        %v1345 = vld [vmem:[%s1157 + $0x178] sm:%s1150]
        %1346 = vst [vmem:[%s1158 + $0x174] sm:%s1150] %v1345
        %v1347 = vld [vmem:[%s1157 + $0x16c] sm:%s1150]
        %1348 = vst [vmem:[%s1158 + $0x178] sm:%s1150] %v1347
        %v1349 = vld [vmem:[%s1157 + $0x17c] sm:%s1150]
        %1350 = vst [vmem:[%s1158 + $0x17c] sm:%s1150] %v1349
        %v1351 = vld [vmem:[%s1157 + $0x180] sm:%s1150]
        %1352 = vst [vmem:[%s1158 + $0x180] sm:%s1150] %v1351
        %v1353 = vld [vmem:[%s1157 + $0x190] sm:%s1150]
        %1354 = vst [vmem:[%s1158 + $0x184] sm:%s1150] %v1353
        %v1355 = vld [vmem:[%s1157 + $0x184] sm:%s1150]
        %1356 = vst [vmem:[%s1158 + $0x188] sm:%s1150] %v1355
        %v1357 = vld [vmem:[%s1157 + $0x194] sm:%s1150]
        %1358 = vst [vmem:[%s1158 + $0x18c] sm:%s1150] %v1357
        %v1359 = vld [vmem:[%s1157 + $0x188] sm:%s1150]
        %1360 = vst [vmem:[%s1158 + $0x190] sm:%s1150] %v1359
        %v1361 = vld [vmem:[%s1157 + $0x198] sm:%s1150]
        %1362 = vst [vmem:[%s1158 + $0x194] sm:%s1150] %v1361
        %v1363 = vld [vmem:[%s1157 + $0x18c] sm:%s1150]
        %1364 = vst [vmem:[%s1158 + $0x198] sm:%s1150] %v1363
        %v1365 = vld [vmem:[%s1157 + $0x19c] sm:%s1150]
        %1366 = vst [vmem:[%s1158 + $0x19c] sm:%s1150] %v1365
        %v1367 = vld [vmem:[%s1157 + $0x1a0] sm:%s1150]
        %1368 = vst [vmem:[%s1158 + $0x1a0] sm:%s1150] %v1367
        %v1369 = vld [vmem:[%s1157 + $0x1b0] sm:%s1150]
        %1370 = vst [vmem:[%s1158 + $0x1a4] sm:%s1150] %v1369
        %v1371 = vld [vmem:[%s1157 + $0x1a4] sm:%s1150]
        %1372 = vst [vmem:[%s1158 + $0x1a8] sm:%s1150] %v1371
        %v1373 = vld [vmem:[%s1157 + $0x1b4] sm:%s1150]
        %1374 = vst [vmem:[%s1158 + $0x1ac] sm:%s1150] %v1373
        %v1375 = vld [vmem:[%s1157 + $0x1a8] sm:%s1150]
        %1376 = vst [vmem:[%s1158 + $0x1b0] sm:%s1150] %v1375
        %v1377 = vld [vmem:[%s1157 + $0x1b8] sm:%s1150]
        %1378 = vst [vmem:[%s1158 + $0x1b4] sm:%s1150] %v1377
        %v1379 = vld [vmem:[%s1157 + $0x1ac] sm:%s1150]
        %1380 = vst [vmem:[%s1158 + $0x1b8] sm:%s1150] %v1379
        %v1381 = vld [vmem:[%s1157 + $0x1bc] sm:%s1150]
        %1382 = vst [vmem:[%s1158 + $0x1bc] sm:%s1150] %v1381
        %v1383 = vld [vmem:[%s1157 + $0x1c0] sm:%s1150]
        %1384 = vst [vmem:[%s1158 + $0x1c0] sm:%s1150] %v1383
        %v1385 = vld [vmem:[%s1157 + $0x1d0] sm:%s1150]
        %1386 = vst [vmem:[%s1158 + $0x1c4] sm:%s1150] %v1385
        %v1387 = vld [vmem:[%s1157 + $0x1c4] sm:%s1150]
        %1388 = vst [vmem:[%s1158 + $0x1c8] sm:%s1150] %v1387
        %v1389 = vld [vmem:[%s1157 + $0x1d4] sm:%s1150]
        %1390 = vst [vmem:[%s1158 + $0x1cc] sm:%s1150] %v1389
        %v1391 = vld [vmem:[%s1157 + $0x1c8] sm:%s1150]
        %1392 = vst [vmem:[%s1158 + $0x1d0] sm:%s1150] %v1391
        %v1393 = vld [vmem:[%s1157 + $0x1d8] sm:%s1150]
        %1394 = vst [vmem:[%s1158 + $0x1d4] sm:%s1150] %v1393
        %v1395 = vld [vmem:[%s1157 + $0x1cc] sm:%s1150]
        %1396 = vst [vmem:[%s1158 + $0x1d8] sm:%s1150] %v1395
        %v1397 = vld [vmem:[%s1157 + $0x1dc] sm:%s1150]
        %1398 = vst [vmem:[%s1158 + $0x1dc] sm:%s1150] %v1397
        %v1399 = vld [vmem:[%s1157 + $0x1e0] sm:%s1150]
        %1400 = vst [vmem:[%s1158 + $0x1e0] sm:%s1150] %v1399
        %v1401 = vld [vmem:[%s1157 + $0x1f0] sm:%s1150]
        %1402 = vst [vmem:[%s1158 + $0x1e4] sm:%s1150] %v1401
        %v1403 = vld [vmem:[%s1157 + $0x1e4] sm:%s1150]
        %1404 = vst [vmem:[%s1158 + $0x1e8] sm:%s1150] %v1403
        %v1405 = vld [vmem:[%s1157 + $0x1f4] sm:%s1150]
        %1406 = vst [vmem:[%s1158 + $0x1ec] sm:%s1150] %v1405
        %v1407 = vld [vmem:[%s1157 + $0x1e8] sm:%s1150]
        %1408 = vst [vmem:[%s1158 + $0x1f0] sm:%s1150] %v1407
        %v1409 = vld [vmem:[%s1157 + $0x1f8] sm:%s1150]
        %1410 = vst [vmem:[%s1158 + $0x1f4] sm:%s1150] %v1409
        %v1411 = vld [vmem:[%s1157 + $0x1ec] sm:%s1150]
        %1412 = vst [vmem:[%s1158 + $0x1f8] sm:%s1150] %v1411
        %v1413 = vld [vmem:[%s1157 + $0x1fc] sm:%s1150]
        %1414 = vst [vmem:[%s1158 + $0x1fc] sm:%s1150] %v1413
        %v1415 = vld [vmem:[%s1157 + $0x200] sm:%s1150]
        %1416 = vst [vmem:[%s1158 + $0x200] sm:%s1150] %v1415
        %v1417 = vld [vmem:[%s1157 + $0x210] sm:%s1150]
        %1418 = vst [vmem:[%s1158 + $0x204] sm:%s1150] %v1417
        %v1419 = vld [vmem:[%s1157 + $0x204] sm:%s1150]
        %1420 = vst [vmem:[%s1158 + $0x208] sm:%s1150] %v1419
        %v1421 = vld [vmem:[%s1157 + $0x214] sm:%s1150]
        %1422 = vst [vmem:[%s1158 + $0x20c] sm:%s1150] %v1421
        %v1423 = vld [vmem:[%s1157 + $0x208] sm:%s1150]
        %1424 = vst [vmem:[%s1158 + $0x210] sm:%s1150] %v1423
        %v1425 = vld [vmem:[%s1157 + $0x218] sm:%s1150]
        %1426 = vst [vmem:[%s1158 + $0x214] sm:%s1150] %v1425
        %v1427 = vld [vmem:[%s1157 + $0x20c] sm:%s1150]
        %1428 = vst [vmem:[%s1158 + $0x218] sm:%s1150] %v1427
        %v1429 = vld [vmem:[%s1157 + $0x21c] sm:%s1150]
        %1430 = vst [vmem:[%s1158 + $0x21c] sm:%s1150] %v1429
        %v1431 = vld [vmem:[%s1157 + $0x220] sm:%s1150]
        %1432 = vst [vmem:[%s1158 + $0x220] sm:%s1150] %v1431
        %v1433 = vld [vmem:[%s1157 + $0x230] sm:%s1150]
        %1434 = vst [vmem:[%s1158 + $0x224] sm:%s1150] %v1433
        %v1435 = vld [vmem:[%s1157 + $0x224] sm:%s1150]
        %1436 = vst [vmem:[%s1158 + $0x228] sm:%s1150] %v1435
        %v1437 = vld [vmem:[%s1157 + $0x234] sm:%s1150]
        %1438 = vst [vmem:[%s1158 + $0x22c] sm:%s1150] %v1437
        %v1439 = vld [vmem:[%s1157 + $0x228] sm:%s1150]
        %1440 = vst [vmem:[%s1158 + $0x230] sm:%s1150] %v1439
        %v1441 = vld [vmem:[%s1157 + $0x238] sm:%s1150]
        %1442 = vst [vmem:[%s1158 + $0x234] sm:%s1150] %v1441
        %v1443 = vld [vmem:[%s1157 + $0x22c] sm:%s1150]
        %1444 = vst [vmem:[%s1158 + $0x238] sm:%s1150] %v1443
        %v1445 = vld [vmem:[%s1157 + $0x23c] sm:%s1150]
        %1446 = vst [vmem:[%s1158 + $0x23c] sm:%s1150] %v1445
        %v1447 = vld [vmem:[%s1157 + $0x240] sm:%s1150]
        %1448 = vst [vmem:[%s1158 + $0x240] sm:%s1150] %v1447
        %v1449 = vld [vmem:[%s1157 + $0x250] sm:%s1150]
        %1450 = vst [vmem:[%s1158 + $0x244] sm:%s1150] %v1449
        %v1451 = vld [vmem:[%s1157 + $0x244] sm:%s1150]
        %1452 = vst [vmem:[%s1158 + $0x248] sm:%s1150] %v1451
        %v1453 = vld [vmem:[%s1157 + $0x254] sm:%s1150]
        %1454 = vst [vmem:[%s1158 + $0x24c] sm:%s1150] %v1453
        %v1455 = vld [vmem:[%s1157 + $0x248] sm:%s1150]
        %1456 = vst [vmem:[%s1158 + $0x250] sm:%s1150] %v1455
        %v1457 = vld [vmem:[%s1157 + $0x258] sm:%s1150]
        %1458 = vst [vmem:[%s1158 + $0x254] sm:%s1150] %v1457
        %v1459 = vld [vmem:[%s1157 + $0x24c] sm:%s1150]
        %1460 = vst [vmem:[%s1158 + $0x258] sm:%s1150] %v1459
        %v1461 = vld [vmem:[%s1157 + $0x25c] sm:%s1150]
        %1462 = vst [vmem:[%s1158 + $0x25c] sm:%s1150] %v1461
        %v1463 = vld [vmem:[%s1157 + $0x260] sm:%s1150]
        %1464 = vst [vmem:[%s1158 + $0x260] sm:%s1150] %v1463
        %v1465 = vld [vmem:[%s1157 + $0x270] sm:%s1150]
        %1466 = vst [vmem:[%s1158 + $0x264] sm:%s1150] %v1465
        %v1467 = vld [vmem:[%s1157 + $0x264] sm:%s1150]
        %1468 = vst [vmem:[%s1158 + $0x268] sm:%s1150] %v1467
        %v1469 = vld [vmem:[%s1157 + $0x274] sm:%s1150]
        %1470 = vst [vmem:[%s1158 + $0x26c] sm:%s1150] %v1469
        %v1471 = vld [vmem:[%s1157 + $0x268] sm:%s1150]
        %1472 = vst [vmem:[%s1158 + $0x270] sm:%s1150] %v1471
        %v1473 = vld [vmem:[%s1157 + $0x278] sm:%s1150]
        %1474 = vst [vmem:[%s1158 + $0x274] sm:%s1150] %v1473
        %v1475 = vld [vmem:[%s1157 + $0x26c] sm:%s1150]
        %1476 = vst [vmem:[%s1158 + $0x278] sm:%s1150] %v1475
        %v1477 = vld [vmem:[%s1157 + $0x27c] sm:%s1150]
        %1478 = vst [vmem:[%s1158 + $0x27c] sm:%s1150] %v1477
        %v1479 = vld [vmem:[%s1157 + $0x280] sm:%s1150]
        %1480 = vst [vmem:[%s1158 + $0x280] sm:%s1150] %v1479
        %v1481 = vld [vmem:[%s1157 + $0x290] sm:%s1150]
        %1482 = vst [vmem:[%s1158 + $0x284] sm:%s1150] %v1481
        %v1483 = vld [vmem:[%s1157 + $0x284] sm:%s1150]
        %1484 = vst [vmem:[%s1158 + $0x288] sm:%s1150] %v1483
        %v1485 = vld [vmem:[%s1157 + $0x294] sm:%s1150]
        %1486 = vst [vmem:[%s1158 + $0x28c] sm:%s1150] %v1485
        %v1487 = vld [vmem:[%s1157 + $0x288] sm:%s1150]
        %1488 = vst [vmem:[%s1158 + $0x290] sm:%s1150] %v1487
        %v1489 = vld [vmem:[%s1157 + $0x298] sm:%s1150]
        %1490 = vst [vmem:[%s1158 + $0x294] sm:%s1150] %v1489
        %v1491 = vld [vmem:[%s1157 + $0x28c] sm:%s1150]
        %1492 = vst [vmem:[%s1158 + $0x298] sm:%s1150] %v1491
        %v1493 = vld [vmem:[%s1157 + $0x29c] sm:%s1150]
        %1494 = vst [vmem:[%s1158 + $0x29c] sm:%s1150] %v1493
        %v1495 = vld [vmem:[%s1157 + $0x2a0] sm:%s1150]
        %1496 = vst [vmem:[%s1158 + $0x2a0] sm:%s1150] %v1495
        %v1497 = vld [vmem:[%s1157 + $0x2b0] sm:%s1150]
        %1498 = vst [vmem:[%s1158 + $0x2a4] sm:%s1150] %v1497
        %v1499 = vld [vmem:[%s1157 + $0x2a4] sm:%s1150]
        %1500 = vst [vmem:[%s1158 + $0x2a8] sm:%s1150] %v1499
        %v1501 = vld [vmem:[%s1157 + $0x2b4] sm:%s1150]
        %1502 = vst [vmem:[%s1158 + $0x2ac] sm:%s1150] %v1501
        %v1503 = vld [vmem:[%s1157 + $0x2a8] sm:%s1150]
        %1504 = vst [vmem:[%s1158 + $0x2b0] sm:%s1150] %v1503
        %v1505 = vld [vmem:[%s1157 + $0x2b8] sm:%s1150]
        %1506 = vst [vmem:[%s1158 + $0x2b4] sm:%s1150] %v1505
        %v1507 = vld [vmem:[%s1157 + $0x2ac] sm:%s1150]
        %1508 = vst [vmem:[%s1158 + $0x2b8] sm:%s1150] %v1507
        %v1509 = vld [vmem:[%s1157 + $0x2bc] sm:%s1150]
        %1510 = vst [vmem:[%s1158 + $0x2bc] sm:%s1150] %v1509
        %v1511 = vld [vmem:[%s1157 + $0x2c0] sm:%s1150]
        %1512 = vst [vmem:[%s1158 + $0x2c0] sm:%s1150] %v1511
        %v1513 = vld [vmem:[%s1157 + $0x2d0] sm:%s1150]
        %1514 = vst [vmem:[%s1158 + $0x2c4] sm:%s1150] %v1513
        %v1515 = vld [vmem:[%s1157 + $0x2c4] sm:%s1150]
        %1516 = vst [vmem:[%s1158 + $0x2c8] sm:%s1150] %v1515
        %v1517 = vld [vmem:[%s1157 + $0x2d4] sm:%s1150]
        %1518 = vst [vmem:[%s1158 + $0x2cc] sm:%s1150] %v1517
        %v1519 = vld [vmem:[%s1157 + $0x2c8] sm:%s1150]
        %1520 = vst [vmem:[%s1158 + $0x2d0] sm:%s1150] %v1519
        %v1521 = vld [vmem:[%s1157 + $0x2d8] sm:%s1150]
        %1522 = vst [vmem:[%s1158 + $0x2d4] sm:%s1150] %v1521
        %v1523 = vld [vmem:[%s1157 + $0x2cc] sm:%s1150]
        %1524 = vst [vmem:[%s1158 + $0x2d8] sm:%s1150] %v1523
        %v1525 = vld [vmem:[%s1157 + $0x2dc] sm:%s1150]
        %1526 = vst [vmem:[%s1158 + $0x2dc] sm:%s1150] %v1525
        %v1527 = vld [vmem:[%s1157 + $0x2e0] sm:%s1150]
        %1528 = vst [vmem:[%s1158 + $0x2e0] sm:%s1150] %v1527
        %v1529 = vld [vmem:[%s1157 + $0x2f0] sm:%s1150]
        %1530 = vst [vmem:[%s1158 + $0x2e4] sm:%s1150] %v1529
        %v1531 = vld [vmem:[%s1157 + $0x2e4] sm:%s1150]
        %1532 = vst [vmem:[%s1158 + $0x2e8] sm:%s1150] %v1531
        %v1533 = vld [vmem:[%s1157 + $0x2f4] sm:%s1150]
        %1534 = vst [vmem:[%s1158 + $0x2ec] sm:%s1150] %v1533
        %v1535 = vld [vmem:[%s1157 + $0x2e8] sm:%s1150]
        %1536 = vst [vmem:[%s1158 + $0x2f0] sm:%s1150] %v1535
        %v1537 = vld [vmem:[%s1157 + $0x2f8] sm:%s1150]
        %1538 = vst [vmem:[%s1158 + $0x2f4] sm:%s1150] %v1537
        %v1539 = vld [vmem:[%s1157 + $0x2ec] sm:%s1150]
        %1540 = vst [vmem:[%s1158 + $0x2f8] sm:%s1150] %v1539
        %v1541 = vld [vmem:[%s1157 + $0x2fc] sm:%s1150]
        %1542 = vst [vmem:[%s1158 + $0x2fc] sm:%s1150] %v1541
        %v1543 = vld [vmem:[%s1157 + $0x300] sm:%s1150]
        %1544 = vst [vmem:[%s1158 + $0x300] sm:%s1150] %v1543
        %v1545 = vld [vmem:[%s1157 + $0x310] sm:%s1150]
        %1546 = vst [vmem:[%s1158 + $0x304] sm:%s1150] %v1545
        %v1547 = vld [vmem:[%s1157 + $0x304] sm:%s1150]
        %1548 = vst [vmem:[%s1158 + $0x308] sm:%s1150] %v1547
        %v1549 = vld [vmem:[%s1157 + $0x314] sm:%s1150]
        %1550 = vst [vmem:[%s1158 + $0x30c] sm:%s1150] %v1549
        %v1551 = vld [vmem:[%s1157 + $0x308] sm:%s1150]
        %1552 = vst [vmem:[%s1158 + $0x310] sm:%s1150] %v1551
        %v1553 = vld [vmem:[%s1157 + $0x318] sm:%s1150]
        %1554 = vst [vmem:[%s1158 + $0x314] sm:%s1150] %v1553
        %v1555 = vld [vmem:[%s1157 + $0x30c] sm:%s1150]
        %1556 = vst [vmem:[%s1158 + $0x318] sm:%s1150] %v1555
        %v1557 = vld [vmem:[%s1157 + $0x31c] sm:%s1150]
        %1558 = vst [vmem:[%s1158 + $0x31c] sm:%s1150] %v1557
        %v1559 = vld [vmem:[%s1157 + $0x320] sm:%s1150]
        %1560 = vst [vmem:[%s1158 + $0x320] sm:%s1150] %v1559
        %v1561 = vld [vmem:[%s1157 + $0x330] sm:%s1150]
        %1562 = vst [vmem:[%s1158 + $0x324] sm:%s1150] %v1561
        %v1563 = vld [vmem:[%s1157 + $0x324] sm:%s1150]
        %1564 = vst [vmem:[%s1158 + $0x328] sm:%s1150] %v1563
        %v1565 = vld [vmem:[%s1157 + $0x334] sm:%s1150]
        %1566 = vst [vmem:[%s1158 + $0x32c] sm:%s1150] %v1565
        %v1567 = vld [vmem:[%s1157 + $0x328] sm:%s1150]
        %1568 = vst [vmem:[%s1158 + $0x330] sm:%s1150] %v1567
        %v1569 = vld [vmem:[%s1157 + $0x338] sm:%s1150]
        %1570 = vst [vmem:[%s1158 + $0x334] sm:%s1150] %v1569
        %v1571 = vld [vmem:[%s1157 + $0x32c] sm:%s1150]
        %1572 = vst [vmem:[%s1158 + $0x338] sm:%s1150] %v1571
        %v1573 = vld [vmem:[%s1157 + $0x33c] sm:%s1150]
        %1574 = vst [vmem:[%s1158 + $0x33c] sm:%s1150] %v1573
        %v1575 = vld [vmem:[%s1157 + $0x340] sm:%s1150]
        %1576 = vst [vmem:[%s1158 + $0x340] sm:%s1150] %v1575
        %v1577 = vld [vmem:[%s1157 + $0x350] sm:%s1150]
        %1578 = vst [vmem:[%s1158 + $0x344] sm:%s1150] %v1577
        %v1579 = vld [vmem:[%s1157 + $0x344] sm:%s1150]
        %1580 = vst [vmem:[%s1158 + $0x348] sm:%s1150] %v1579
        %v1581 = vld [vmem:[%s1157 + $0x354] sm:%s1150]
        %1582 = vst [vmem:[%s1158 + $0x34c] sm:%s1150] %v1581
        %v1583 = vld [vmem:[%s1157 + $0x348] sm:%s1150]
        %1584 = vst [vmem:[%s1158 + $0x350] sm:%s1150] %v1583
        %v1585 = vld [vmem:[%s1157 + $0x358] sm:%s1150]
        %1586 = vst [vmem:[%s1158 + $0x354] sm:%s1150] %v1585
        %v1587 = vld [vmem:[%s1157 + $0x34c] sm:%s1150]
        %1588 = vst [vmem:[%s1158 + $0x358] sm:%s1150] %v1587
        %v1589 = vld [vmem:[%s1157 + $0x35c] sm:%s1150]
        %1590 = vst [vmem:[%s1158 + $0x35c] sm:%s1150] %v1589
        %v1591 = vld [vmem:[%s1157 + $0x360] sm:%s1150]
        %1592 = vst [vmem:[%s1158 + $0x360] sm:%s1150] %v1591
        %v1593 = vld [vmem:[%s1157 + $0x370] sm:%s1150]
        %1594 = vst [vmem:[%s1158 + $0x364] sm:%s1150] %v1593
        %v1595 = vld [vmem:[%s1157 + $0x364] sm:%s1150]
        %1596 = vst [vmem:[%s1158 + $0x368] sm:%s1150] %v1595
        %v1597 = vld [vmem:[%s1157 + $0x374] sm:%s1150]
        %1598 = vst [vmem:[%s1158 + $0x36c] sm:%s1150] %v1597
        %v1599 = vld [vmem:[%s1157 + $0x368] sm:%s1150]
        %1600 = vst [vmem:[%s1158 + $0x370] sm:%s1150] %v1599
        %v1601 = vld [vmem:[%s1157 + $0x378] sm:%s1150]
        %1602 = vst [vmem:[%s1158 + $0x374] sm:%s1150] %v1601
        %v1603 = vld [vmem:[%s1157 + $0x36c] sm:%s1150]
        %1604 = vst [vmem:[%s1158 + $0x378] sm:%s1150] %v1603
        %v1605 = vld [vmem:[%s1157 + $0x37c] sm:%s1150]
        %1606 = vst [vmem:[%s1158 + $0x37c] sm:%s1150] %v1605
        %v1607 = vld [vmem:[%s1157 + $0x380] sm:%s1150]
        %1608 = vst [vmem:[%s1158 + $0x380] sm:%s1150] %v1607
        %v1609 = vld [vmem:[%s1157 + $0x390] sm:%s1150]
        %1610 = vst [vmem:[%s1158 + $0x384] sm:%s1150] %v1609
        %v1611 = vld [vmem:[%s1157 + $0x384] sm:%s1150]
        %1612 = vst [vmem:[%s1158 + $0x388] sm:%s1150] %v1611
        %v1613 = vld [vmem:[%s1157 + $0x394] sm:%s1150]
        %1614 = vst [vmem:[%s1158 + $0x38c] sm:%s1150] %v1613
        %v1615 = vld [vmem:[%s1157 + $0x388] sm:%s1150]
        %1616 = vst [vmem:[%s1158 + $0x390] sm:%s1150] %v1615
        %v1617 = vld [vmem:[%s1157 + $0x398] sm:%s1150]
        %1618 = vst [vmem:[%s1158 + $0x394] sm:%s1150] %v1617
        %v1619 = vld [vmem:[%s1157 + $0x38c] sm:%s1150]
        %1620 = vst [vmem:[%s1158 + $0x398] sm:%s1150] %v1619
        %v1621 = vld [vmem:[%s1157 + $0x39c] sm:%s1150]
        %1622 = vst [vmem:[%s1158 + $0x39c] sm:%s1150] %v1621
        %v1623 = vld [vmem:[%s1157 + $0x3a0] sm:%s1150]
        %1624 = vst [vmem:[%s1158 + $0x3a0] sm:%s1150] %v1623
        %v1625 = vld [vmem:[%s1157 + $0x3b0] sm:%s1150]
        %1626 = vst [vmem:[%s1158 + $0x3a4] sm:%s1150] %v1625
        %v1627 = vld [vmem:[%s1157 + $0x3a4] sm:%s1150]
        %1628 = vst [vmem:[%s1158 + $0x3a8] sm:%s1150] %v1627
        %v1629 = vld [vmem:[%s1157 + $0x3b4] sm:%s1150]
        %1630 = vst [vmem:[%s1158 + $0x3ac] sm:%s1150] %v1629
        %v1631 = vld [vmem:[%s1157 + $0x3a8] sm:%s1150]
        %1632 = vst [vmem:[%s1158 + $0x3b0] sm:%s1150] %v1631
        %v1633 = vld [vmem:[%s1157 + $0x3b8] sm:%s1150]
        %1634 = vst [vmem:[%s1158 + $0x3b4] sm:%s1150] %v1633
        %v1635 = vld [vmem:[%s1157 + $0x3ac] sm:%s1150]
        %1636 = vst [vmem:[%s1158 + $0x3b8] sm:%s1150] %v1635
        %v1637 = vld [vmem:[%s1157 + $0x3bc] sm:%s1150]
        %1638 = vst [vmem:[%s1158 + $0x3bc] sm:%s1150] %v1637
        %v1639 = vld [vmem:[%s1157 + $0x3c0] sm:%s1150]
        %1640 = vst [vmem:[%s1158 + $0x3c0] sm:%s1150] %v1639
        %v1641 = vld [vmem:[%s1157 + $0x3d0] sm:%s1150]
        %1642 = vst [vmem:[%s1158 + $0x3c4] sm:%s1150] %v1641
        %v1643 = vld [vmem:[%s1157 + $0x3c4] sm:%s1150]
        %1644 = vst [vmem:[%s1158 + $0x3c8] sm:%s1150] %v1643
        %v1645 = vld [vmem:[%s1157 + $0x3d4] sm:%s1150]
        %1646 = vst [vmem:[%s1158 + $0x3cc] sm:%s1150] %v1645
        %v1647 = vld [vmem:[%s1157 + $0x3c8] sm:%s1150]
        %1648 = vst [vmem:[%s1158 + $0x3d0] sm:%s1150] %v1647
        %v1649 = vld [vmem:[%s1157 + $0x3d8] sm:%s1150]
        %1650 = vst [vmem:[%s1158 + $0x3d4] sm:%s1150] %v1649
        %v1651 = vld [vmem:[%s1157 + $0x3cc] sm:%s1150]
        %1652 = vst [vmem:[%s1158 + $0x3d8] sm:%s1150] %v1651
        %v1653 = vld [vmem:[%s1157 + $0x3dc] sm:%s1150]
        %1654 = vst [vmem:[%s1158 + $0x3dc] sm:%s1150] %v1653
        %v1655 = vld [vmem:[%s1157 + $0x3e0] sm:%s1150]
        %1656 = vst [vmem:[%s1158 + $0x3e0] sm:%s1150] %v1655
        %v1657 = vld [vmem:[%s1157 + $0x3f0] sm:%s1150]
        %1658 = vst [vmem:[%s1158 + $0x3e4] sm:%s1150] %v1657
        %v1659 = vld [vmem:[%s1157 + $0x3e4] sm:%s1150]
        %1660 = vst [vmem:[%s1158 + $0x3e8] sm:%s1150] %v1659
        %v1661 = vld [vmem:[%s1157 + $0x3f4] sm:%s1150]
        %1662 = vst [vmem:[%s1158 + $0x3ec] sm:%s1150] %v1661
        %v1663 = vld [vmem:[%s1157 + $0x3e8] sm:%s1150]
        %1664 = vst [vmem:[%s1158 + $0x3f0] sm:%s1150] %v1663
        %v1665 = vld [vmem:[%s1157 + $0x3f8] sm:%s1150]
        %1666 = vst [vmem:[%s1158 + $0x3f4] sm:%s1150] %v1665
        %v1667 = vld [vmem:[%s1157 + $0x3ec] sm:%s1150]
        %1668 = vst [vmem:[%s1158 + $0x3f8] sm:%s1150] %v1667
        %v1669 = vld [vmem:[%s1157 + $0x3fc] sm:%s1150]
        %1670 = vst [vmem:[%s1158 + $0x3fc] sm:%s1150] %v1669
      $region127: #{advanced_vae_forward.1} parent=121 // loop_footer
        %s1156 = sadd.s32 1, %s1152
      $region128: #{advanced_vae_forward.1} parent=121 // loop_footer_branch
        %1151 = sbr.rel target = $region124
      $region129: #{advanced_vae_forward.1} parent=121 // loop_exit
        _
    $region122: #{advanced_vae_forward.1} parent=1 // pred_fallthru
      _
    // Predicated region
    $region148: #{advanced_vae_forward.1} parent=1 // pred_check
      _
    $region149: #{advanced_vae_forward.1} parent=1 // pred_check_branch
      %2212 = sbr.rel (0) target = $region151
    $region150: #{advanced_vae_forward.1} parent=1 // pred_region
      %2213 = vsyncadd %s1141, 16384
    $region151: #{advanced_vae_forward.1} parent=1 // pred_fallthru
      _
    %v2214 = vld [vmem:[%s0] sm:$0x3]
    %v2215 = vld [vmem:[%s0 + $0x2] sm:$0x3]
    %v2216 = vpack.c.bf16 %v2214, %v2214
    %v2217 = vld [vmem:[%s5] sm:$0xff]
    %v2218 = vld [vmem:[%s5 + $0x8] sm:$0xff]
    %v2219 = vld [vmem:[%s5 + $0x10] sm:$0xff]
    %v2220 = vld [vmem:[%s5 + $0x18] sm:$0xff]
    %v2221 = vld [vmem:[%s5 + $0x20] sm:$0xff]
    %v2222 = vld [vmem:[%s5 + $0x28] sm:$0xff]
    %v2223 = vld [vmem:[%s5 + $0x30] sm:$0xff]
    %v2224 = vld [vmem:[%s5 + $0x38] sm:$0xff]
    %v2225 = vld [vmem:[%s5 + $0x40] sm:$0xff]
    %v2226 = vld [vmem:[%s5 + $0x48] sm:$0xff]
    %v2227 = vld [vmem:[%s5 + $0x50] sm:$0xff]
    %v2228 = vld [vmem:[%s5 + $0x58] sm:$0xff]
    %v2229 = vld [vmem:[%s5 + $0x60] sm:$0xff]
    %v2230 = vld [vmem:[%s5 + $0x68] sm:$0xff]
    %v2231 = vld [vmem:[%s5 + $0x70] sm:$0xff]
    %v2232 = vld [vmem:[%s5 + $0x78] sm:$0xff]
    %v2233 = vpack.c.bf16 %v2215, %v2215
    %v2234 = vld [vmem:[%s6] sm:$0xf]
    %v2237 = vunpack.c.l.s4 1983009808
    %v2238 = vunpack.c.0.s8 %v2237
    %v2239 = vlaneseq
    %v2240 = vshrl.u32 %v2239, 7
    %v2241 = vsub.s32 %v2238, %v2240
    %v2242 = vrot.slane %v2234, %v2241
    %v2243 = vcombine.high %v2242, %v2242
    %vm2244 = vcmask 23552
    %v2246 = vsel %vm2244, %v2233, 0
    %vm2248 = vcmask 1040384
    %vm2249 = vcmask 1041408
    %v2250 = vsel %vm2248, 4294967295, 65535
    %v2251 = vsel %vm2249, %v2250, 0
    %v2253 = vand.u32 %v2242, %v2251
    %v2256 = vand.u32 %v2243, %v2251
    %2258 = vmatprep.subr.bf16.mxu0 %v2256
    %2259 = vmatpush1.bf16.msra.mxu0 %v2253
    %2260 = vmatprep.subr.bf16.mxu0 0
    %2261 = vmatpush1.bf16.msra.mxu0 0
    %2262 = vmatprep.subr.bf16.mxu0 0
    %2263 = vmatpush1.bf16.msra.mxu0 0
    %2264 = vmatprep.subr.bf16.mxu0 0
    %2265 = vmatpush1.bf16.msra.mxu0 0
    %2266 = vmatprep.subr.bf16.mxu0 0
    %2267 = vmatpush1.bf16.msra.mxu0 0
    %2268 = vmatprep.subr.bf16.mxu0 0
    %2269 = vmatpush1.bf16.msra.mxu0 0
    %2270 = vmatprep.subr.bf16.mxu0 0
    %2271 = vmatpush1.bf16.msra.mxu0 0
    %2272 = vmatprep.subr.bf16.mxu0 0
    %2273 = vmatpush1.bf16.msra.mxu0 0
    %2274 = vmatprep.subr.bf16.mxu0 0
    %2275 = vmatpush1.bf16.msra.mxu0 0
    %2276 = vmatprep.subr.bf16.mxu0 0
    %2277 = vmatpush1.bf16.msra.mxu0 0
    %2278 = vmatprep.subr.bf16.mxu0 0
    %2279 = vmatpush1.bf16.msra.mxu0 0
    %2280 = vmatprep.subr.bf16.mxu0 0
    %2281 = vmatpush1.bf16.msra.mxu0 0
    %2282 = vmatprep.subr.bf16.mxu0 0
    %2283 = vmatpush1.bf16.msra.mxu0 0
    %2284 = vmatprep.subr.bf16.mxu0 0
    %2285 = vmatpush1.bf16.msra.mxu0 0
    %2286 = vmatprep.subr.bf16.mxu0 0
    %2287 = vmatpush1.bf16.msra.mxu0 0
    %2288 = vmatprep.subr.bf16.mxu0 0
    %2289 = vmatpush1.bf16.msra.mxu0 0
    %2290 = vmatprep.mubr.bf16.mxu0 0
    %2291 = vmatmul.mubr.bf16.gmra.mrb[0].mxu0 %v2246
    %v2292 = vpop.f32.mrb[0].mxu0
    %v2293 = vadd.f32 0.0, %v2292
    %v2294 = vpop.f32.mrb[0].mxu0
    %v2295 = vadd.f32 0.0, %v2294
    %v2296 = vpop.f32.mrb[0].mxu0
    %v2297 = vpop.f32.mrb[0].mxu0
    %2298 = vdwg.mxu0
    %v2315 = vunpack.c.l.b16 %v2217
    %v2316 = vunpack.c.h.b16 %v2217
    %v2317 = vunpack.c.l.b16 %v2218
    %v2318 = vunpack.c.h.b16 %v2218
    %v2319 = vunpack.c.l.b16 %v2219
    %v2320 = vunpack.c.h.b16 %v2219
    %v2321 = vunpack.c.l.b16 %v2220
    %v2322 = vunpack.c.h.b16 %v2220
    %v2323 = vunpack.c.l.b16 %v2221
    %v2324 = vunpack.c.h.b16 %v2221
    %v2325 = vunpack.c.l.b16 %v2222
    %v2326 = vunpack.c.h.b16 %v2222
    %v2327 = vunpack.c.l.b16 %v2223
    %v2328 = vunpack.c.h.b16 %v2223
    %v2329 = vunpack.c.l.b16 %v2224
    %v2330 = vunpack.c.h.b16 %v2224
    %v2331 = vunpack.c.l.b16 %v2225
    %v2332 = vunpack.c.h.b16 %v2225
    %v2333 = vunpack.c.l.b16 %v2226
    %v2334 = vunpack.c.h.b16 %v2226
    %v2335 = vunpack.c.l.b16 %v2227
    %v2336 = vunpack.c.h.b16 %v2227
    %v2337 = vunpack.c.l.b16 %v2228
    %v2338 = vunpack.c.h.b16 %v2228
    %v2339 = vunpack.c.l.b16 %v2229
    %v2340 = vunpack.c.h.b16 %v2229
    %v2341 = vunpack.c.l.b16 %v2230
    %v2342 = vunpack.c.h.b16 %v2230
    %v2343 = vunpack.c.l.b16 %v2231
    %v2344 = vunpack.c.h.b16 %v2231
    %v2345 = vunpack.c.l.b16 %v2232
    %v2346 = vunpack.c.h.b16 %v2232
    %v2347 = vpack.c.b16 %v2317, %v2315
    %v2348 = vpack.c.b16 %v2318, %v2316
    %v2349 = vpack.c.b16 %v2321, %v2319
    %v2350 = vpack.c.b16 %v2322, %v2320
    %v2351 = vpack.c.b16 %v2325, %v2323
    %v2352 = vpack.c.b16 %v2326, %v2324
    %v2353 = vpack.c.b16 %v2329, %v2327
    %v2354 = vpack.c.b16 %v2330, %v2328
    %v2355 = vpack.c.b16 %v2333, %v2331
    %v2356 = vpack.c.b16 %v2334, %v2332
    %v2357 = vpack.c.b16 %v2337, %v2335
    %v2358 = vpack.c.b16 %v2338, %v2336
    %v2359 = vpack.c.b16 %v2341, %v2339
    %v2360 = vpack.c.b16 %v2342, %v2340
    %v2361 = vpack.c.b16 %v2345, %v2343
    %v2362 = vpack.c.b16 %v2346, %v2344
    %2379 = vmatprep.subr.bf16.mxu0 %v2348
    %2380 = vmatpush1.bf16.msra.mxu0 %v2347
    %2381 = vmatprep.subr.bf16.mxu0 %v2350
    %2382 = vmatpush1.bf16.msra.mxu0 %v2349
    %2383 = vmatprep.subr.bf16.mxu0 %v2352
    %2384 = vmatpush1.bf16.msra.mxu0 %v2351
    %2385 = vmatprep.subr.bf16.mxu0 %v2354
    %2386 = vmatpush1.bf16.msra.mxu0 %v2353
    %2387 = vmatprep.subr.bf16.mxu0 %v2356
    %2388 = vmatpush1.bf16.msra.mxu0 %v2355
    %2389 = vmatprep.subr.bf16.mxu0 %v2358
    %2390 = vmatpush1.bf16.msra.mxu0 %v2357
    %2391 = vmatprep.subr.bf16.mxu0 %v2360
    %2392 = vmatpush1.bf16.msra.mxu0 %v2359
    %2393 = vmatprep.subr.bf16.mxu0 %v2362
    %2394 = vmatpush1.bf16.msra.mxu0 %v2361
    %2395 = vmatprep.subr.bf16.mxu0 0
    %2396 = vmatpush1.bf16.msra.mxu0 0
    %2397 = vmatprep.subr.bf16.mxu0 0
    %2398 = vmatpush1.bf16.msra.mxu0 0
    %2399 = vmatprep.subr.bf16.mxu0 0
    %2400 = vmatpush1.bf16.msra.mxu0 0
    %2401 = vmatprep.subr.bf16.mxu0 0
    %2402 = vmatpush1.bf16.msra.mxu0 0
    %2403 = vmatprep.subr.bf16.mxu0 0
    %2404 = vmatpush1.bf16.msra.mxu0 0
    %2405 = vmatprep.subr.bf16.mxu0 0
    %2406 = vmatpush1.bf16.msra.mxu0 0
    %2407 = vmatprep.subr.bf16.mxu0 0
    %2408 = vmatpush1.bf16.msra.mxu0 0
    %2409 = vmatprep.subr.bf16.mxu0 0
    %2410 = vmatpush1.bf16.msra.mxu0 0
    %2411 = vmatprep.mubr.bf16.mxu0 0
    %2412 = vmatmul.mubr.bf16.gmra.mrb[0].mxu0 %v2216
    %v2413 = vpop.f32.mrb[0].mxu0
    %v2414 = vadd.f32 %v2293, %v2413
    %v2415 = vpop.f32.mrb[0].mxu0
    %v2416 = vadd.f32 %v2295, %v2415
    %v2417 = vpop.f32.mrb[0].mxu0
    %v2418 = vpop.f32.mrb[0].mxu0
    %2419 = vdwg.mxu0
    %v2420 = vld [vmem:[%s4] ss:$8 sm:$0x3]
    %v2422 = vlaneseq
    %v2423 = vshrl.u32 %v2422, 7
    %v2424 = vsub.s32 0, %v2423
    %v2425 = vrot.slane %v2420, %v2424
    %v2426 = vlaneseq
    %v2427 = vshrl.u32 %v2426, 7
    %v2428 = vsub.s32 1, %v2427
    %v2429 = vrot.slane %v2420, %v2428
    %v2432 = vadd.f32 %v2414, %v2425
    %v2433 = vadd.f32 %v2416, %v2429
    %vm2434 = vcmp.gt.f32.partialorder %v2432, 0.0
    %vm2435 = vcmp.gt.f32.partialorder %v2433, 0.0
    %v2436 = vmul.f32 %v2432, 0.2
    %v2437 = vmul.f32 %v2433, 0.2
    %v2438 = vsel %vm2434, %v2432, %v2436
    %v2439 = vsel %vm2435, %v2433, %v2437
    %v2440 = vpack.c.bf16 %v2438, %v2438
    %v2441 = vpack.c.bf16 %v2439, %v2439
    %v2442 = vld [vmem:[%s7] sm:$0xff]
    %v2443 = vld [vmem:[%s7 + $0x8] sm:$0xff]
    %v2444 = vld [vmem:[%s7 + $0x10] sm:$0xff]
    %v2445 = vld [vmem:[%s7 + $0x18] sm:$0xff]
    %v2446 = vld [vmem:[%s7 + $0x20] sm:$0xff]
    %v2447 = vld [vmem:[%s7 + $0x28] sm:$0xff]
    %v2448 = vld [vmem:[%s7 + $0x30] sm:$0xff]
    %v2449 = vld [vmem:[%s7 + $0x38] sm:$0xff]
    %v2450 = vld [vmem:[%s7 + $0x40] sm:$0xff]
    %v2451 = vld [vmem:[%s7 + $0x48] sm:$0xff]
    %v2452 = vld [vmem:[%s7 + $0x50] sm:$0xff]
    %v2453 = vld [vmem:[%s7 + $0x58] sm:$0xff]
    %v2454 = vld [vmem:[%s7 + $0x60] sm:$0xff]
    %v2455 = vld [vmem:[%s7 + $0x68] sm:$0xff]
    %v2456 = vld [vmem:[%s7 + $0x70] sm:$0xff]
    %v2457 = vld [vmem:[%s7 + $0x78] sm:$0xff]
    %v2458 = vld [vmem:[%s7 + $0x80] sm:$0xff]
    %v2459 = vld [vmem:[%s7 + $0x88] sm:$0xff]
    %v2460 = vld [vmem:[%s7 + $0x90] sm:$0xff]
    %v2461 = vld [vmem:[%s7 + $0x98] sm:$0xff]
    %v2462 = vld [vmem:[%s7 + $0xa0] sm:$0xff]
    %v2463 = vld [vmem:[%s7 + $0xa8] sm:$0xff]
    %v2464 = vld [vmem:[%s7 + $0xb0] sm:$0xff]
    %v2465 = vld [vmem:[%s7 + $0xb8] sm:$0xff]
    %v2466 = vld [vmem:[%s7 + $0xc0] sm:$0xff]
    %v2467 = vld [vmem:[%s7 + $0xc8] sm:$0xff]
    %v2468 = vld [vmem:[%s7 + $0xd0] sm:$0xff]
    %v2469 = vld [vmem:[%s7 + $0xd8] sm:$0xff]
    %v2470 = vld [vmem:[%s7 + $0xe0] sm:$0xff]
    %v2471 = vld [vmem:[%s7 + $0xe8] sm:$0xff]
    %v2472 = vld [vmem:[%s7 + $0xf0] sm:$0xff]
    %v2473 = vld [vmem:[%s7 + $0xf8] sm:$0xff]
    %s2474 = scalar_lea.vmem %s4, 1
    %v2475 = vld [vmem:[%s2474] ss:$8 sm:$0x3]
    %v2477 = vlaneseq
    %v2478 = vshrl.u32 %v2477, 7
    %v2479 = vsub.s32 0, %v2478
    %v2480 = vrot.slane %v2475, %v2479
    %v2481 = vlaneseq
    %v2482 = vshrl.u32 %v2481, 7
    %v2483 = vsub.s32 1, %v2482
    %v2484 = vrot.slane %v2475, %v2483
    %v2519 = vunpack.c.l.b16 %v2442
    %v2520 = vunpack.c.h.b16 %v2442
    %v2521 = vunpack.c.l.b16 %v2443
    %v2522 = vunpack.c.h.b16 %v2443
    %v2523 = vunpack.c.l.b16 %v2444
    %v2524 = vunpack.c.h.b16 %v2444
    %v2525 = vunpack.c.l.b16 %v2445
    %v2526 = vunpack.c.h.b16 %v2445
    %v2527 = vunpack.c.l.b16 %v2446
    %v2528 = vunpack.c.h.b16 %v2446
    %v2529 = vunpack.c.l.b16 %v2447
    %v2530 = vunpack.c.h.b16 %v2447
    %v2531 = vunpack.c.l.b16 %v2448
    %v2532 = vunpack.c.h.b16 %v2448
    %v2533 = vunpack.c.l.b16 %v2449
    %v2534 = vunpack.c.h.b16 %v2449
    %v2535 = vunpack.c.l.b16 %v2450
    %v2536 = vunpack.c.h.b16 %v2450
    %v2537 = vunpack.c.l.b16 %v2451
    %v2538 = vunpack.c.h.b16 %v2451
    %v2539 = vunpack.c.l.b16 %v2452
    %v2540 = vunpack.c.h.b16 %v2452
    %v2541 = vunpack.c.l.b16 %v2453
    %v2542 = vunpack.c.h.b16 %v2453
    %v2543 = vunpack.c.l.b16 %v2454
    %v2544 = vunpack.c.h.b16 %v2454
    %v2545 = vunpack.c.l.b16 %v2455
    %v2546 = vunpack.c.h.b16 %v2455
    %v2547 = vunpack.c.l.b16 %v2456
    %v2548 = vunpack.c.h.b16 %v2456
    %v2549 = vunpack.c.l.b16 %v2457
    %v2550 = vunpack.c.h.b16 %v2457
    %v2551 = vunpack.c.l.b16 %v2458
    %v2552 = vunpack.c.h.b16 %v2458
    %v2553 = vunpack.c.l.b16 %v2459
    %v2554 = vunpack.c.h.b16 %v2459
    %v2555 = vunpack.c.l.b16 %v2460
    %v2556 = vunpack.c.h.b16 %v2460
    %v2557 = vunpack.c.l.b16 %v2461
    %v2558 = vunpack.c.h.b16 %v2461
    %v2559 = vunpack.c.l.b16 %v2462
    %v2560 = vunpack.c.h.b16 %v2462
    %v2561 = vunpack.c.l.b16 %v2463
    %v2562 = vunpack.c.h.b16 %v2463
    %v2563 = vunpack.c.l.b16 %v2464
    %v2564 = vunpack.c.h.b16 %v2464
    %v2565 = vunpack.c.l.b16 %v2465
    %v2566 = vunpack.c.h.b16 %v2465
    %v2567 = vunpack.c.l.b16 %v2466
    %v2568 = vunpack.c.h.b16 %v2466
    %v2569 = vunpack.c.l.b16 %v2467
    %v2570 = vunpack.c.h.b16 %v2467
    %v2571 = vunpack.c.l.b16 %v2468
    %v2572 = vunpack.c.h.b16 %v2468
    %v2573 = vunpack.c.l.b16 %v2469
    %v2574 = vunpack.c.h.b16 %v2469
    %v2575 = vunpack.c.l.b16 %v2470
    %v2576 = vunpack.c.h.b16 %v2470
    %v2577 = vunpack.c.l.b16 %v2471
    %v2578 = vunpack.c.h.b16 %v2471
    %v2579 = vunpack.c.l.b16 %v2472
    %v2580 = vunpack.c.h.b16 %v2472
    %v2581 = vunpack.c.l.b16 %v2473
    %v2582 = vunpack.c.h.b16 %v2473
    %v2583 = vpack.c.b16 %v2521, %v2519
    %v2584 = vpack.c.b16 %v2522, %v2520
    %v2585 = vpack.c.b16 %v2525, %v2523
    %v2586 = vpack.c.b16 %v2526, %v2524
    %v2587 = vpack.c.b16 %v2529, %v2527
    %v2588 = vpack.c.b16 %v2530, %v2528
    %v2589 = vpack.c.b16 %v2533, %v2531
    %v2590 = vpack.c.b16 %v2534, %v2532
    %v2591 = vpack.c.b16 %v2537, %v2535
    %v2592 = vpack.c.b16 %v2538, %v2536
    %v2593 = vpack.c.b16 %v2541, %v2539
    %v2594 = vpack.c.b16 %v2542, %v2540
    %v2595 = vpack.c.b16 %v2545, %v2543
    %v2596 = vpack.c.b16 %v2546, %v2544
    %v2597 = vpack.c.b16 %v2549, %v2547
    %v2598 = vpack.c.b16 %v2550, %v2548
    %v2599 = vpack.c.b16 %v2553, %v2551
    %v2600 = vpack.c.b16 %v2554, %v2552
    %v2601 = vpack.c.b16 %v2557, %v2555
    %v2602 = vpack.c.b16 %v2558, %v2556
    %v2603 = vpack.c.b16 %v2561, %v2559
    %v2604 = vpack.c.b16 %v2562, %v2560
    %v2605 = vpack.c.b16 %v2565, %v2563
    %v2606 = vpack.c.b16 %v2566, %v2564
    %v2607 = vpack.c.b16 %v2569, %v2567
    %v2608 = vpack.c.b16 %v2570, %v2568
    %v2609 = vpack.c.b16 %v2573, %v2571
    %v2610 = vpack.c.b16 %v2574, %v2572
    %v2611 = vpack.c.b16 %v2577, %v2575
    %v2612 = vpack.c.b16 %v2578, %v2576
    %v2613 = vpack.c.b16 %v2581, %v2579
    %v2614 = vpack.c.b16 %v2582, %v2580
    %2647 = vmatprep.subr.bf16.mxu0 %v2584
    %2648 = vmatpush1.bf16.msra.mxu0 %v2583
    %2649 = vmatprep.subr.bf16.mxu0 %v2586
    %2650 = vmatpush1.bf16.msra.mxu0 %v2585
    %2651 = vmatprep.subr.bf16.mxu0 %v2588
    %2652 = vmatpush1.bf16.msra.mxu0 %v2587
    %2653 = vmatprep.subr.bf16.mxu0 %v2590
    %2654 = vmatpush1.bf16.msra.mxu0 %v2589
    %2655 = vmatprep.subr.bf16.mxu0 %v2592
    %2656 = vmatpush1.bf16.msra.mxu0 %v2591
    %2657 = vmatprep.subr.bf16.mxu0 %v2594
    %2658 = vmatpush1.bf16.msra.mxu0 %v2593
    %2659 = vmatprep.subr.bf16.mxu0 %v2596
    %2660 = vmatpush1.bf16.msra.mxu0 %v2595
    %2661 = vmatprep.subr.bf16.mxu0 %v2598
    %2662 = vmatpush1.bf16.msra.mxu0 %v2597
    %2663 = vmatprep.subr.bf16.mxu0 %v2600
    %2664 = vmatpush1.bf16.msra.mxu0 %v2599
    %2665 = vmatprep.subr.bf16.mxu0 %v2602
    %2666 = vmatpush1.bf16.msra.mxu0 %v2601
    %2667 = vmatprep.subr.bf16.mxu0 %v2604
    %2668 = vmatpush1.bf16.msra.mxu0 %v2603
    %2669 = vmatprep.subr.bf16.mxu0 %v2606
    %2670 = vmatpush1.bf16.msra.mxu0 %v2605
    %2671 = vmatprep.subr.bf16.mxu0 %v2608
    %2672 = vmatpush1.bf16.msra.mxu0 %v2607
    %2673 = vmatprep.subr.bf16.mxu0 %v2610
    %2674 = vmatpush1.bf16.msra.mxu0 %v2609
    %2675 = vmatprep.subr.bf16.mxu0 %v2612
    %2676 = vmatpush1.bf16.msra.mxu0 %v2611
    %2677 = vmatprep.subr.bf16.mxu0 %v2614
    %2678 = vmatpush1.bf16.msra.mxu0 %v2613
    %2679 = vmatprep.mubr.bf16.mxu0 %v2441
    %2680 = vmatmul.mubr.bf16.gmra.mrb[0].mxu0 %v2440
    %v2681 = vpop.f32.mrb[0].mxu0
    %v2682 = vadd.f32 %v2480, %v2681
    %v2683 = vpop.f32.mrb[0].mxu0
    %v2684 = vadd.f32 %v2484, %v2683
    %v2685 = vpop.f32.mrb[0].mxu0
    %v2686 = vpop.f32.mrb[0].mxu0
    %2687 = vdwg.mxu0
    %vm2688 = vcmp.gt.f32.partialorder %v2682, 0.0
    %vm2689 = vcmp.gt.f32.partialorder %v2684, 0.0
    %v2690 = vmul.f32 %v2682, 0.2
    %v2691 = vmul.f32 %v2684, 0.2
    %v2692 = vsel %vm2688, %v2682, %v2690
    %v2693 = vsel %vm2689, %v2684, %v2691
    %v2694 = vpack.c.bf16 %v2692, %v2692
    %v2695 = vpack.c.bf16 %v2693, %v2693
    %v2696 = vld [vmem:[%s8] sm:$0xff]
    %v2697 = vld [vmem:[%s8 + $0x8] sm:$0xff]
    %v2698 = vld [vmem:[%s8 + $0x10] sm:$0xff]
    %v2699 = vld [vmem:[%s8 + $0x18] sm:$0xff]
    %v2700 = vld [vmem:[%s8 + $0x20] sm:$0xff]
    %v2701 = vld [vmem:[%s8 + $0x28] sm:$0xff]
    %v2702 = vld [vmem:[%s8 + $0x30] sm:$0xff]
    %v2703 = vld [vmem:[%s8 + $0x38] sm:$0xff]
    %v2704 = vld [vmem:[%s8 + $0x40] sm:$0xff]
    %v2705 = vld [vmem:[%s8 + $0x48] sm:$0xff]
    %v2706 = vld [vmem:[%s8 + $0x50] sm:$0xff]
    %v2707 = vld [vmem:[%s8 + $0x58] sm:$0xff]
    %v2708 = vld [vmem:[%s8 + $0x60] sm:$0xff]
    %v2709 = vld [vmem:[%s8 + $0x68] sm:$0xff]
    %v2710 = vld [vmem:[%s8 + $0x70] sm:$0xff]
    %v2711 = vld [vmem:[%s8 + $0x78] sm:$0xff]
    %v2712 = vld [vmem:[%s8 + $0x80] sm:$0xff]
    %v2713 = vld [vmem:[%s8 + $0x88] sm:$0xff]
    %v2714 = vld [vmem:[%s8 + $0x90] sm:$0xff]
    %v2715 = vld [vmem:[%s8 + $0x98] sm:$0xff]
    %v2716 = vld [vmem:[%s8 + $0xa0] sm:$0xff]
    %v2717 = vld [vmem:[%s8 + $0xa8] sm:$0xff]
    %v2718 = vld [vmem:[%s8 + $0xb0] sm:$0xff]
    %v2719 = vld [vmem:[%s8 + $0xb8] sm:$0xff]
    %v2720 = vld [vmem:[%s8 + $0xc0] sm:$0xff]
    %v2721 = vld [vmem:[%s8 + $0xc8] sm:$0xff]
    %v2722 = vld [vmem:[%s8 + $0xd0] sm:$0xff]
    %v2723 = vld [vmem:[%s8 + $0xd8] sm:$0xff]
    %v2724 = vld [vmem:[%s8 + $0xe0] sm:$0xff]
    %v2725 = vld [vmem:[%s8 + $0xe8] sm:$0xff]
    %v2726 = vld [vmem:[%s8 + $0xf0] sm:$0xff]
    %v2727 = vld [vmem:[%s8 + $0xf8] sm:$0xff]
    %s2728 = scalar_lea.vmem %s4, 2
    %v2729 = vld [vmem:[%s2728] ss:$8 sm:$0x3]
    %v2731 = vlaneseq
    %v2732 = vshrl.u32 %v2731, 7
    %v2733 = vsub.s32 0, %v2732
    %v2734 = vrot.slane %v2729, %v2733
    %v2735 = vlaneseq
    %v2736 = vshrl.u32 %v2735, 7
    %v2737 = vsub.s32 1, %v2736
    %v2738 = vrot.slane %v2729, %v2737
    %v2773 = vunpack.c.l.b16 %v2696
    %v2774 = vunpack.c.h.b16 %v2696
    %v2775 = vunpack.c.l.b16 %v2697
    %v2776 = vunpack.c.h.b16 %v2697
    %v2777 = vunpack.c.l.b16 %v2698
    %v2778 = vunpack.c.h.b16 %v2698
    %v2779 = vunpack.c.l.b16 %v2699
    %v2780 = vunpack.c.h.b16 %v2699
    %v2781 = vunpack.c.l.b16 %v2700
    %v2782 = vunpack.c.h.b16 %v2700
    %v2783 = vunpack.c.l.b16 %v2701
    %v2784 = vunpack.c.h.b16 %v2701
    %v2785 = vunpack.c.l.b16 %v2702
    %v2786 = vunpack.c.h.b16 %v2702
    %v2787 = vunpack.c.l.b16 %v2703
    %v2788 = vunpack.c.h.b16 %v2703
    %v2789 = vunpack.c.l.b16 %v2704
    %v2790 = vunpack.c.h.b16 %v2704
    %v2791 = vunpack.c.l.b16 %v2705
    %v2792 = vunpack.c.h.b16 %v2705
    %v2793 = vunpack.c.l.b16 %v2706
    %v2794 = vunpack.c.h.b16 %v2706
    %v2795 = vunpack.c.l.b16 %v2707
    %v2796 = vunpack.c.h.b16 %v2707
    %v2797 = vunpack.c.l.b16 %v2708
    %v2798 = vunpack.c.h.b16 %v2708
    %v2799 = vunpack.c.l.b16 %v2709
    %v2800 = vunpack.c.h.b16 %v2709
    %v2801 = vunpack.c.l.b16 %v2710
    %v2802 = vunpack.c.h.b16 %v2710
    %v2803 = vunpack.c.l.b16 %v2711
    %v2804 = vunpack.c.h.b16 %v2711
    %v2805 = vunpack.c.l.b16 %v2712
    %v2806 = vunpack.c.h.b16 %v2712
    %v2807 = vunpack.c.l.b16 %v2713
    %v2808 = vunpack.c.h.b16 %v2713
    %v2809 = vunpack.c.l.b16 %v2714
    %v2810 = vunpack.c.h.b16 %v2714
    %v2811 = vunpack.c.l.b16 %v2715
    %v2812 = vunpack.c.h.b16 %v2715
    %v2813 = vunpack.c.l.b16 %v2716
    %v2814 = vunpack.c.h.b16 %v2716
    %v2815 = vunpack.c.l.b16 %v2717
    %v2816 = vunpack.c.h.b16 %v2717
    %v2817 = vunpack.c.l.b16 %v2718
    %v2818 = vunpack.c.h.b16 %v2718
    %v2819 = vunpack.c.l.b16 %v2719
    %v2820 = vunpack.c.h.b16 %v2719
    %v2821 = vunpack.c.l.b16 %v2720
    %v2822 = vunpack.c.h.b16 %v2720
    %v2823 = vunpack.c.l.b16 %v2721
    %v2824 = vunpack.c.h.b16 %v2721
    %v2825 = vunpack.c.l.b16 %v2722
    %v2826 = vunpack.c.h.b16 %v2722
    %v2827 = vunpack.c.l.b16 %v2723
    %v2828 = vunpack.c.h.b16 %v2723
    %v2829 = vunpack.c.l.b16 %v2724
    %v2830 = vunpack.c.h.b16 %v2724
    %v2831 = vunpack.c.l.b16 %v2725
    %v2832 = vunpack.c.h.b16 %v2725
    %v2833 = vunpack.c.l.b16 %v2726
    %v2834 = vunpack.c.h.b16 %v2726
    %v2835 = vunpack.c.l.b16 %v2727
    %v2836 = vunpack.c.h.b16 %v2727
    %v2837 = vpack.c.b16 %v2775, %v2773
    %v2838 = vpack.c.b16 %v2776, %v2774
    %v2839 = vpack.c.b16 %v2779, %v2777
    %v2840 = vpack.c.b16 %v2780, %v2778
    %v2841 = vpack.c.b16 %v2783, %v2781
    %v2842 = vpack.c.b16 %v2784, %v2782
    %v2843 = vpack.c.b16 %v2787, %v2785
    %v2844 = vpack.c.b16 %v2788, %v2786
    %v2845 = vpack.c.b16 %v2791, %v2789
    %v2846 = vpack.c.b16 %v2792, %v2790
    %v2847 = vpack.c.b16 %v2795, %v2793
    %v2848 = vpack.c.b16 %v2796, %v2794
    %v2849 = vpack.c.b16 %v2799, %v2797
    %v2850 = vpack.c.b16 %v2800, %v2798
    %v2851 = vpack.c.b16 %v2803, %v2801
    %v2852 = vpack.c.b16 %v2804, %v2802
    %v2853 = vpack.c.b16 %v2807, %v2805
    %v2854 = vpack.c.b16 %v2808, %v2806
    %v2855 = vpack.c.b16 %v2811, %v2809
    %v2856 = vpack.c.b16 %v2812, %v2810
    %v2857 = vpack.c.b16 %v2815, %v2813
    %v2858 = vpack.c.b16 %v2816, %v2814
    %v2859 = vpack.c.b16 %v2819, %v2817
    %v2860 = vpack.c.b16 %v2820, %v2818
    %v2861 = vpack.c.b16 %v2823, %v2821
    %v2862 = vpack.c.b16 %v2824, %v2822
    %v2863 = vpack.c.b16 %v2827, %v2825
    %v2864 = vpack.c.b16 %v2828, %v2826
    %v2865 = vpack.c.b16 %v2831, %v2829
    %v2866 = vpack.c.b16 %v2832, %v2830
    %v2867 = vpack.c.b16 %v2835, %v2833
    %v2868 = vpack.c.b16 %v2836, %v2834
    %2901 = vmatprep.subr.bf16.mxu0 %v2838
    %2902 = vmatpush1.bf16.msra.mxu0 %v2837
    %2903 = vmatprep.subr.bf16.mxu0 %v2840
    %2904 = vmatpush1.bf16.msra.mxu0 %v2839
    %2905 = vmatprep.subr.bf16.mxu0 %v2842
    %2906 = vmatpush1.bf16.msra.mxu0 %v2841
    %2907 = vmatprep.subr.bf16.mxu0 %v2844
    %2908 = vmatpush1.bf16.msra.mxu0 %v2843
    %2909 = vmatprep.subr.bf16.mxu0 %v2846
    %2910 = vmatpush1.bf16.msra.mxu0 %v2845
    %2911 = vmatprep.subr.bf16.mxu0 %v2848
    %2912 = vmatpush1.bf16.msra.mxu0 %v2847
    %2913 = vmatprep.subr.bf16.mxu0 %v2850
    %2914 = vmatpush1.bf16.msra.mxu0 %v2849
    %2915 = vmatprep.subr.bf16.mxu0 %v2852
    %2916 = vmatpush1.bf16.msra.mxu0 %v2851
    %2917 = vmatprep.subr.bf16.mxu0 %v2854
    %2918 = vmatpush1.bf16.msra.mxu0 %v2853
    %2919 = vmatprep.subr.bf16.mxu0 %v2856
    %2920 = vmatpush1.bf16.msra.mxu0 %v2855
    %2921 = vmatprep.subr.bf16.mxu0 %v2858
    %2922 = vmatpush1.bf16.msra.mxu0 %v2857
    %2923 = vmatprep.subr.bf16.mxu0 %v2860
    %2924 = vmatpush1.bf16.msra.mxu0 %v2859
    %2925 = vmatprep.subr.bf16.mxu0 %v2862
    %2926 = vmatpush1.bf16.msra.mxu0 %v2861
    %2927 = vmatprep.subr.bf16.mxu0 %v2864
    %2928 = vmatpush1.bf16.msra.mxu0 %v2863
    %2929 = vmatprep.subr.bf16.mxu0 %v2866
    %2930 = vmatpush1.bf16.msra.mxu0 %v2865
    %2931 = vmatprep.subr.bf16.mxu0 %v2868
    %2932 = vmatpush1.bf16.msra.mxu0 %v2867
    %2933 = vmatprep.mubr.bf16.mxu0 %v2695
    %2934 = vmatmul.mubr.bf16.gmra.mrb[0].mxu0 %v2694
    %v2935 = vpop.f32.mrb[0].mxu0
    %v2936 = vadd.f32 %v2734, %v2935
    %v2937 = vpop.f32.mrb[0].mxu0
    %v2938 = vadd.f32 %v2738, %v2937
    %v2939 = vpop.f32.mrb[0].mxu0
    %v2940 = vpop.f32.mrb[0].mxu0
    %2941 = vdwg.mxu0
    %vm2942 = vcmp.gt.f32.partialorder %v2936, 0.0
    %vm2943 = vcmp.gt.f32.partialorder %v2938, 0.0
    %v2944 = vmul.f32 %v2936, 0.2
    %v2945 = vmul.f32 %v2938, 0.2
    %v2946 = vsel %vm2942, %v2936, %v2944
    %v2947 = vsel %vm2943, %v2938, %v2945
    %v2948 = vpack.c.bf16 %v2946, %v2946
    %v2949 = vpack.c.bf16 %v2947, %v2947
    %v2950 = vld [vmem:[%s9] sm:$0xf]
    %v2951 = vld [vmem:[%s9 + $0x4] sm:$0xf]
    %v2952 = vld [vmem:[%s9 + $0x8] sm:$0xf]
    %v2953 = vld [vmem:[%s9 + $0xc] sm:$0xf]
    %v2954 = vld [vmem:[%s9 + $0x10] sm:$0xf]
    %v2955 = vld [vmem:[%s9 + $0x14] sm:$0xf]
    %v2956 = vld [vmem:[%s9 + $0x18] sm:$0xf]
    %v2957 = vld [vmem:[%s9 + $0x1c] sm:$0xf]
    %v2958 = vld [vmem:[%s9 + $0x20] sm:$0xf]
    %v2959 = vld [vmem:[%s9 + $0x24] sm:$0xf]
    %v2960 = vld [vmem:[%s9 + $0x28] sm:$0xf]
    %v2961 = vld [vmem:[%s9 + $0x2c] sm:$0xf]
    %v2962 = vld [vmem:[%s9 + $0x30] sm:$0xf]
    %v2963 = vld [vmem:[%s9 + $0x34] sm:$0xf]
    %v2964 = vld [vmem:[%s9 + $0x38] sm:$0xf]
    %v2965 = vld [vmem:[%s9 + $0x3c] sm:$0xf]
    %v2966 = vld [vmem:[%s9 + $0x40] sm:$0xf]
    %v2967 = vld [vmem:[%s9 + $0x44] sm:$0xf]
    %v2968 = vld [vmem:[%s9 + $0x48] sm:$0xf]
    %v2969 = vld [vmem:[%s9 + $0x4c] sm:$0xf]
    %v2970 = vld [vmem:[%s9 + $0x50] sm:$0xf]
    %v2971 = vld [vmem:[%s9 + $0x54] sm:$0xf]
    %v2972 = vld [vmem:[%s9 + $0x58] sm:$0xf]
    %v2973 = vld [vmem:[%s9 + $0x5c] sm:$0xf]
    %v2974 = vld [vmem:[%s9 + $0x60] sm:$0xf]
    %v2975 = vld [vmem:[%s9 + $0x64] sm:$0xf]
    %v2976 = vld [vmem:[%s9 + $0x68] sm:$0xf]
    %v2977 = vld [vmem:[%s9 + $0x6c] sm:$0xf]
    %v2978 = vld [vmem:[%s9 + $0x70] sm:$0xf]
    %v2979 = vld [vmem:[%s9 + $0x74] sm:$0xf]
    %v2980 = vld [vmem:[%s9 + $0x78] sm:$0xf]
    %v2981 = vld [vmem:[%s9 + $0x7c] sm:$0xf]
    %v2982 = vld [vmem:[%s4 + $0x3] ss:$0 sm:$0xff]
    %v3015 = vunpack.c.l.b16 %v2950
    %v3016 = vunpack.c.l.b16 %v2951
    %v3017 = vunpack.c.l.b16 %v2952
    %v3018 = vunpack.c.l.b16 %v2953
    %v3019 = vunpack.c.l.b16 %v2954
    %v3020 = vunpack.c.l.b16 %v2955
    %v3021 = vunpack.c.l.b16 %v2956
    %v3022 = vunpack.c.l.b16 %v2957
    %v3023 = vunpack.c.l.b16 %v2958
    %v3024 = vunpack.c.l.b16 %v2959
    %v3025 = vunpack.c.l.b16 %v2960
    %v3026 = vunpack.c.l.b16 %v2961
    %v3027 = vunpack.c.l.b16 %v2962
    %v3028 = vunpack.c.l.b16 %v2963
    %v3029 = vunpack.c.l.b16 %v2964
    %v3030 = vunpack.c.l.b16 %v2965
    %v3031 = vunpack.c.l.b16 %v2966
    %v3032 = vunpack.c.l.b16 %v2967
    %v3033 = vunpack.c.l.b16 %v2968
    %v3034 = vunpack.c.l.b16 %v2969
    %v3035 = vunpack.c.l.b16 %v2970
    %v3036 = vunpack.c.l.b16 %v2971
    %v3037 = vunpack.c.l.b16 %v2972
    %v3038 = vunpack.c.l.b16 %v2973
    %v3039 = vunpack.c.l.b16 %v2974
    %v3040 = vunpack.c.l.b16 %v2975
    %v3041 = vunpack.c.l.b16 %v2976
    %v3042 = vunpack.c.l.b16 %v2977
    %v3043 = vunpack.c.l.b16 %v2978
    %v3044 = vunpack.c.l.b16 %v2979
    %v3045 = vunpack.c.l.b16 %v2980
    %v3046 = vunpack.c.l.b16 %v2981
    %v3047 = vpack.c.b16 %v3016, %v3015
    %v3048 = vpack.c.b16 %v3018, %v3017
    %v3049 = vpack.c.b16 %v3020, %v3019
    %v3050 = vpack.c.b16 %v3022, %v3021
    %v3051 = vpack.c.b16 %v3024, %v3023
    %v3052 = vpack.c.b16 %v3026, %v3025
    %v3053 = vpack.c.b16 %v3028, %v3027
    %v3054 = vpack.c.b16 %v3030, %v3029
    %v3055 = vpack.c.b16 %v3032, %v3031
    %v3056 = vpack.c.b16 %v3034, %v3033
    %v3057 = vpack.c.b16 %v3036, %v3035
    %v3058 = vpack.c.b16 %v3038, %v3037
    %v3059 = vpack.c.b16 %v3040, %v3039
    %v3060 = vpack.c.b16 %v3042, %v3041
    %v3061 = vpack.c.b16 %v3044, %v3043
    %v3062 = vpack.c.b16 %v3046, %v3045
    %3079 = vmatprep.subr.bf16.mxu0 0
    %3080 = vmatpush1.bf16.msra.mxu0 %v3047
    %3081 = vmatprep.subr.bf16.mxu0 0
    %3082 = vmatpush1.bf16.msra.mxu0 %v3048
    %3083 = vmatprep.subr.bf16.mxu0 0
    %3084 = vmatpush1.bf16.msra.mxu0 %v3049
    %3085 = vmatprep.subr.bf16.mxu0 0
    %3086 = vmatpush1.bf16.msra.mxu0 %v3050
    %3087 = vmatprep.subr.bf16.mxu0 0
    %3088 = vmatpush1.bf16.msra.mxu0 %v3051
    %3089 = vmatprep.subr.bf16.mxu0 0
    %3090 = vmatpush1.bf16.msra.mxu0 %v3052
    %3091 = vmatprep.subr.bf16.mxu0 0
    %3092 = vmatpush1.bf16.msra.mxu0 %v3053
    %3093 = vmatprep.subr.bf16.mxu0 0
    %3094 = vmatpush1.bf16.msra.mxu0 %v3054
    %3095 = vmatprep.subr.bf16.mxu0 0
    %3096 = vmatpush1.bf16.msra.mxu0 %v3055
    %3097 = vmatprep.subr.bf16.mxu0 0
    %3098 = vmatpush1.bf16.msra.mxu0 %v3056
    %3099 = vmatprep.subr.bf16.mxu0 0
    %3100 = vmatpush1.bf16.msra.mxu0 %v3057
    %3101 = vmatprep.subr.bf16.mxu0 0
    %3102 = vmatpush1.bf16.msra.mxu0 %v3058
    %3103 = vmatprep.subr.bf16.mxu0 0
    %3104 = vmatpush1.bf16.msra.mxu0 %v3059
    %3105 = vmatprep.subr.bf16.mxu0 0
    %3106 = vmatpush1.bf16.msra.mxu0 %v3060
    %3107 = vmatprep.subr.bf16.mxu0 0
    %3108 = vmatpush1.bf16.msra.mxu0 %v3061
    %3109 = vmatprep.subr.bf16.mxu0 0
    %3110 = vmatpush1.bf16.msra.mxu0 %v3062
    %3111 = vmatprep.mubr.bf16.mxu0 %v2949
    %3112 = vmatmul.mubr.bf16.gmra.mrb[0].mxu0 %v2948
    %v3113 = vpop.f32.mrb[0].mxu0
    %v3114 = vadd.f32 %v2982, %v3113
    %v3115 = vpop.f32.mrb[0].mxu0
    %v3116 = vpop.f32.mrb[0].mxu0
    %v3117 = vpop.f32.mrb[0].mxu0
    %3118 = vdwg.mxu0
    %vm3119 = vcmask 517120
    %3120 = vst.msk [vmem:[%s22] sm:$0x3] %vm3119, %v3114
    %v3121 = vld [vmem:[%s1] sm:$0x3]
    %v3122 = vmul.f32 %v3114, 0.5
    %v3123 = vmul.f32 %v3122, 1.442695
    %v3124 = vpow.pop %v3123
    %3126 = vrot.lane.b32.xlu0 %v3124, 96
    %v3127 = vpop.permute.xlu0 %3126
    %v3129 = vmul.f32 %v3121, %v3127
    %v3130 = vadd.f32 %v3129, %v3114
    %v3131 = vpack.c.bf16 %v3130, %v3130
    %v3132 = vld [vmem:[%s10] sm:$0xff]
    %v3133 = vld [vmem:[%s10 + $0x8] sm:$0xff]
    %v3134 = vld [vmem:[%s10 + $0x10] sm:$0xff]
    %v3135 = vld [vmem:[%s10 + $0x18] sm:$0xff]
    %v3136 = vld [vmem:[%s11] sm:$0xf]
    %v3139 = vunpack.c.l.s4 1983009808
    %v3140 = vunpack.c.0.s8 %v3139
    %v3141 = vlaneseq
    %v3142 = vshrl.u32 %v3141, 7
    %v3143 = vsub.s32 %v3140, %v3142
    %v3144 = vrot.slane %v3136, %v3143
    %v3145 = vcombine.high %v3144, %v3144
    %v3147 = vand.u32 %v3144, %v2251
    %v3150 = vand.u32 %v3145, %v2251
    %3152 = vmatprep.subr.bf16.mxu0 %v3150
    %3153 = vmatpush1.bf16.msra.mxu0 %v3147
    %3154 = vmatprep.subr.bf16.mxu0 0
    %3155 = vmatpush1.bf16.msra.mxu0 0
    %3156 = vmatprep.subr.bf16.mxu0 0
    %3157 = vmatpush1.bf16.msra.mxu0 0
    %3158 = vmatprep.subr.bf16.mxu0 0
    %3159 = vmatpush1.bf16.msra.mxu0 0
    %3160 = vmatprep.subr.bf16.mxu0 0
    %3161 = vmatpush1.bf16.msra.mxu0 0
    %3162 = vmatprep.subr.bf16.mxu0 0
    %3163 = vmatpush1.bf16.msra.mxu0 0
    %3164 = vmatprep.subr.bf16.mxu0 0
    %3165 = vmatpush1.bf16.msra.mxu0 0
    %3166 = vmatprep.subr.bf16.mxu0 0
    %3167 = vmatpush1.bf16.msra.mxu0 0
    %3168 = vmatprep.subr.bf16.mxu0 0
    %3169 = vmatpush1.bf16.msra.mxu0 0
    %3170 = vmatprep.subr.bf16.mxu0 0
    %3171 = vmatpush1.bf16.msra.mxu0 0
    %3172 = vmatprep.subr.bf16.mxu0 0
    %3173 = vmatpush1.bf16.msra.mxu0 0
    %3174 = vmatprep.subr.bf16.mxu0 0
    %3175 = vmatpush1.bf16.msra.mxu0 0
    %3176 = vmatprep.subr.bf16.mxu0 0
    %3177 = vmatpush1.bf16.msra.mxu0 0
    %3178 = vmatprep.subr.bf16.mxu0 0
    %3179 = vmatpush1.bf16.msra.mxu0 0
    %3180 = vmatprep.subr.bf16.mxu0 0
    %3181 = vmatpush1.bf16.msra.mxu0 0
    %3182 = vmatprep.subr.bf16.mxu0 0
    %3183 = vmatpush1.bf16.msra.mxu0 0
    %3184 = vmatprep.mubr.bf16.mxu0 0
    %3185 = vmatmul.mubr.bf16.gmra.mrb[0].mxu0 %v2246
    %v3186 = vpop.f32.mrb[0].mxu0
    %v3187 = vadd.f32 0.0, %v3186
    %v3188 = vpop.f32.mrb[0].mxu0
    %v3189 = vadd.f32 0.0, %v3188
    %v3190 = vpop.f32.mrb[0].mxu0
    %v3191 = vpop.f32.mrb[0].mxu0
    %3192 = vdwg.mxu0
    %v3197 = vunpack.c.l.b16 %v3132
    %v3198 = vunpack.c.h.b16 %v3132
    %v3199 = vunpack.c.l.b16 %v3133
    %v3200 = vunpack.c.h.b16 %v3133
    %v3201 = vunpack.c.l.b16 %v3134
    %v3202 = vunpack.c.h.b16 %v3134
    %v3203 = vunpack.c.l.b16 %v3135
    %v3204 = vunpack.c.h.b16 %v3135
    %v3205 = vpack.c.b16 %v3199, %v3197
    %v3206 = vpack.c.b16 %v3200, %v3198
    %v3207 = vpack.c.b16 %v3203, %v3201
    %v3208 = vpack.c.b16 %v3204, %v3202
    %vm3213 = vcmask 261120
    %v3215 = vsel %vm3213, %v3131, 0
    %3217 = vmatprep.subr.bf16.mxu0 %v3206
    %3218 = vmatpush1.bf16.msra.mxu0 %v3205
    %3219 = vmatprep.subr.bf16.mxu0 %v3208
    %3220 = vmatpush1.bf16.msra.mxu0 %v3207
    %3221 = vmatprep.subr.bf16.mxu0 0
    %3222 = vmatpush1.bf16.msra.mxu0 0
    %3223 = vmatprep.subr.bf16.mxu0 0
    %3224 = vmatpush1.bf16.msra.mxu0 0
    %3225 = vmatprep.subr.bf16.mxu0 0
    %3226 = vmatpush1.bf16.msra.mxu0 0
    %3227 = vmatprep.subr.bf16.mxu0 0
    %3228 = vmatpush1.bf16.msra.mxu0 0
    %3229 = vmatprep.subr.bf16.mxu0 0
    %3230 = vmatpush1.bf16.msra.mxu0 0
    %3231 = vmatprep.subr.bf16.mxu0 0
    %3232 = vmatpush1.bf16.msra.mxu0 0
    %3233 = vmatprep.subr.bf16.mxu0 0
    %3234 = vmatpush1.bf16.msra.mxu0 0
    %3235 = vmatprep.subr.bf16.mxu0 0
    %3236 = vmatpush1.bf16.msra.mxu0 0
    %3237 = vmatprep.subr.bf16.mxu0 0
    %3238 = vmatpush1.bf16.msra.mxu0 0
    %3239 = vmatprep.subr.bf16.mxu0 0
    %3240 = vmatpush1.bf16.msra.mxu0 0
    %3241 = vmatprep.subr.bf16.mxu0 0
    %3242 = vmatpush1.bf16.msra.mxu0 0
    %3243 = vmatprep.subr.bf16.mxu0 0
    %3244 = vmatpush1.bf16.msra.mxu0 0
    %3245 = vmatprep.subr.bf16.mxu0 0
    %3246 = vmatpush1.bf16.msra.mxu0 0
    %3247 = vmatprep.subr.bf16.mxu0 0
    %3248 = vmatpush1.bf16.msra.mxu0 0
    %3249 = vmatprep.mubr.bf16.mxu0 0
    %3250 = vmatmul.mubr.bf16.gmra.mrb[0].mxu0 %v3215
    %v3251 = vpop.f32.mrb[0].mxu0
    %v3252 = vadd.f32 %v3187, %v3251
    %v3253 = vpop.f32.mrb[0].mxu0
    %v3254 = vadd.f32 %v3189, %v3253
    %v3255 = vpop.f32.mrb[0].mxu0
    %v3256 = vpop.f32.mrb[0].mxu0
    %3257 = vdwg.mxu0
    %s3258 = scalar_lea.vmem %s4, 4
    %v3259 = vld [vmem:[%s3258] ss:$8 sm:$0x3]
    %v3261 = vlaneseq
    %v3262 = vshrl.u32 %v3261, 7
    %v3263 = vsub.s32 0, %v3262
    %v3264 = vrot.slane %v3259, %v3263
    %v3265 = vlaneseq
    %v3266 = vshrl.u32 %v3265, 7
    %v3267 = vsub.s32 1, %v3266
    %v3268 = vrot.slane %v3259, %v3267
    %v3271 = vadd.f32 %v3252, %v3264
    %v3272 = vadd.f32 %v3254, %v3268
    %vm3273 = vcmp.gt.f32.partialorder %v3271, 0.0
    %vm3274 = vcmp.gt.f32.partialorder %v3272, 0.0
    %v3275 = vmul.f32 %v3271, 0.2
    %v3276 = vmul.f32 %v3272, 0.2
    %v3277 = vsel %vm3273, %v3271, %v3275
    %v3278 = vsel %vm3274, %v3272, %v3276
    %v3279 = vpack.c.bf16 %v3277, %v3277
    %v3280 = vpack.c.bf16 %v3278, %v3278
    %v3281 = vld [vmem:[%s12] sm:$0xff]
    %v3282 = vld [vmem:[%s12 + $0x8] sm:$0xff]
    %v3283 = vld [vmem:[%s12 + $0x10] sm:$0xff]
    %v3284 = vld [vmem:[%s12 + $0x18] sm:$0xff]
    %v3285 = vld [vmem:[%s12 + $0x20] sm:$0xff]
    %v3286 = vld [vmem:[%s12 + $0x28] sm:$0xff]
    %v3287 = vld [vmem:[%s12 + $0x30] sm:$0xff]
    %v3288 = vld [vmem:[%s12 + $0x38] sm:$0xff]
    %v3289 = vld [vmem:[%s12 + $0x40] sm:$0xff]
    %v3290 = vld [vmem:[%s12 + $0x48] sm:$0xff]
    %v3291 = vld [vmem:[%s12 + $0x50] sm:$0xff]
    %v3292 = vld [vmem:[%s12 + $0x58] sm:$0xff]
    %v3293 = vld [vmem:[%s12 + $0x60] sm:$0xff]
    %v3294 = vld [vmem:[%s12 + $0x68] sm:$0xff]
    %v3295 = vld [vmem:[%s12 + $0x70] sm:$0xff]
    %v3296 = vld [vmem:[%s12 + $0x78] sm:$0xff]
    %v3297 = vld [vmem:[%s12 + $0x80] sm:$0xff]
    %v3298 = vld [vmem:[%s12 + $0x88] sm:$0xff]
    %v3299 = vld [vmem:[%s12 + $0x90] sm:$0xff]
    %v3300 = vld [vmem:[%s12 + $0x98] sm:$0xff]
    %v3301 = vld [vmem:[%s12 + $0xa0] sm:$0xff]
    %v3302 = vld [vmem:[%s12 + $0xa8] sm:$0xff]
    %v3303 = vld [vmem:[%s12 + $0xb0] sm:$0xff]
    %v3304 = vld [vmem:[%s12 + $0xb8] sm:$0xff]
    %v3305 = vld [vmem:[%s12 + $0xc0] sm:$0xff]
    %v3306 = vld [vmem:[%s12 + $0xc8] sm:$0xff]
    %v3307 = vld [vmem:[%s12 + $0xd0] sm:$0xff]
    %v3308 = vld [vmem:[%s12 + $0xd8] sm:$0xff]
    %v3309 = vld [vmem:[%s12 + $0xe0] sm:$0xff]
    %v3310 = vld [vmem:[%s12 + $0xe8] sm:$0xff]
    %v3311 = vld [vmem:[%s12 + $0xf0] sm:$0xff]
    %v3312 = vld [vmem:[%s12 + $0xf8] sm:$0xff]
    %s3313 = scalar_lea.vmem %s4, 5
    %v3314 = vld [vmem:[%s3313] ss:$8 sm:$0x3]
    %v3316 = vlaneseq
    %v3317 = vshrl.u32 %v3316, 7
    %v3318 = vsub.s32 0, %v3317
    %v3319 = vrot.slane %v3314, %v3318
    %v3320 = vlaneseq
    %v3321 = vshrl.u32 %v3320, 7
    %v3322 = vsub.s32 1, %v3321
    %v3323 = vrot.slane %v3314, %v3322
    %v3358 = vunpack.c.l.b16 %v3281
    %v3359 = vunpack.c.h.b16 %v3281
    %v3360 = vunpack.c.l.b16 %v3282
    %v3361 = vunpack.c.h.b16 %v3282
    %v3362 = vunpack.c.l.b16 %v3283
    %v3363 = vunpack.c.h.b16 %v3283
    %v3364 = vunpack.c.l.b16 %v3284
    %v3365 = vunpack.c.h.b16 %v3284
    %v3366 = vunpack.c.l.b16 %v3285
    %v3367 = vunpack.c.h.b16 %v3285
    %v3368 = vunpack.c.l.b16 %v3286
    %v3369 = vunpack.c.h.b16 %v3286
    %v3370 = vunpack.c.l.b16 %v3287
    %v3371 = vunpack.c.h.b16 %v3287
    %v3372 = vunpack.c.l.b16 %v3288
    %v3373 = vunpack.c.h.b16 %v3288
    %v3374 = vunpack.c.l.b16 %v3289
    %v3375 = vunpack.c.h.b16 %v3289
    %v3376 = vunpack.c.l.b16 %v3290
    %v3377 = vunpack.c.h.b16 %v3290
    %v3378 = vunpack.c.l.b16 %v3291
    %v3379 = vunpack.c.h.b16 %v3291
    %v3380 = vunpack.c.l.b16 %v3292
    %v3381 = vunpack.c.h.b16 %v3292
    %v3382 = vunpack.c.l.b16 %v3293
    %v3383 = vunpack.c.h.b16 %v3293
    %v3384 = vunpack.c.l.b16 %v3294
    %v3385 = vunpack.c.h.b16 %v3294
    %v3386 = vunpack.c.l.b16 %v3295
    %v3387 = vunpack.c.h.b16 %v3295
    %v3388 = vunpack.c.l.b16 %v3296
    %v3389 = vunpack.c.h.b16 %v3296
    %v3390 = vunpack.c.l.b16 %v3297
    %v3391 = vunpack.c.h.b16 %v3297
    %v3392 = vunpack.c.l.b16 %v3298
    %v3393 = vunpack.c.h.b16 %v3298
    %v3394 = vunpack.c.l.b16 %v3299
    %v3395 = vunpack.c.h.b16 %v3299
    %v3396 = vunpack.c.l.b16 %v3300
    %v3397 = vunpack.c.h.b16 %v3300
    %v3398 = vunpack.c.l.b16 %v3301
    %v3399 = vunpack.c.h.b16 %v3301
    %v3400 = vunpack.c.l.b16 %v3302
    %v3401 = vunpack.c.h.b16 %v3302
    %v3402 = vunpack.c.l.b16 %v3303
    %v3403 = vunpack.c.h.b16 %v3303
    %v3404 = vunpack.c.l.b16 %v3304
    %v3405 = vunpack.c.h.b16 %v3304
    %v3406 = vunpack.c.l.b16 %v3305
    %v3407 = vunpack.c.h.b16 %v3305
    %v3408 = vunpack.c.l.b16 %v3306
    %v3409 = vunpack.c.h.b16 %v3306
    %v3410 = vunpack.c.l.b16 %v3307
    %v3411 = vunpack.c.h.b16 %v3307
    %v3412 = vunpack.c.l.b16 %v3308
    %v3413 = vunpack.c.h.b16 %v3308
    %v3414 = vunpack.c.l.b16 %v3309
    %v3415 = vunpack.c.h.b16 %v3309
    %v3416 = vunpack.c.l.b16 %v3310
    %v3417 = vunpack.c.h.b16 %v3310
    %v3418 = vunpack.c.l.b16 %v3311
    %v3419 = vunpack.c.h.b16 %v3311
    %v3420 = vunpack.c.l.b16 %v3312
    %v3421 = vunpack.c.h.b16 %v3312
    %v3422 = vpack.c.b16 %v3360, %v3358
    %v3423 = vpack.c.b16 %v3361, %v3359
    %v3424 = vpack.c.b16 %v3364, %v3362
    %v3425 = vpack.c.b16 %v3365, %v3363
    %v3426 = vpack.c.b16 %v3368, %v3366
    %v3427 = vpack.c.b16 %v3369, %v3367
    %v3428 = vpack.c.b16 %v3372, %v3370
    %v3429 = vpack.c.b16 %v3373, %v3371
    %v3430 = vpack.c.b16 %v3376, %v3374
    %v3431 = vpack.c.b16 %v3377, %v3375
    %v3432 = vpack.c.b16 %v3380, %v3378
    %v3433 = vpack.c.b16 %v3381, %v3379
    %v3434 = vpack.c.b16 %v3384, %v3382
    %v3435 = vpack.c.b16 %v3385, %v3383
    %v3436 = vpack.c.b16 %v3388, %v3386
    %v3437 = vpack.c.b16 %v3389, %v3387
    %v3438 = vpack.c.b16 %v3392, %v3390
    %v3439 = vpack.c.b16 %v3393, %v3391
    %v3440 = vpack.c.b16 %v3396, %v3394
    %v3441 = vpack.c.b16 %v3397, %v3395
    %v3442 = vpack.c.b16 %v3400, %v3398
    %v3443 = vpack.c.b16 %v3401, %v3399
    %v3444 = vpack.c.b16 %v3404, %v3402
    %v3445 = vpack.c.b16 %v3405, %v3403
    %v3446 = vpack.c.b16 %v3408, %v3406
    %v3447 = vpack.c.b16 %v3409, %v3407
    %v3448 = vpack.c.b16 %v3412, %v3410
    %v3449 = vpack.c.b16 %v3413, %v3411
    %v3450 = vpack.c.b16 %v3416, %v3414
    %v3451 = vpack.c.b16 %v3417, %v3415
    %v3452 = vpack.c.b16 %v3420, %v3418
    %v3453 = vpack.c.b16 %v3421, %v3419
    %3486 = vmatprep.subr.bf16.mxu0 %v3423
    %3487 = vmatpush1.bf16.msra.mxu0 %v3422
    %3488 = vmatprep.subr.bf16.mxu0 %v3425
    %3489 = vmatpush1.bf16.msra.mxu0 %v3424
    %3490 = vmatprep.subr.bf16.mxu0 %v3427
    %3491 = vmatpush1.bf16.msra.mxu0 %v3426
    %3492 = vmatprep.subr.bf16.mxu0 %v3429
    %3493 = vmatpush1.bf16.msra.mxu0 %v3428
    %3494 = vmatprep.subr.bf16.mxu0 %v3431
    %3495 = vmatpush1.bf16.msra.mxu0 %v3430
    %3496 = vmatprep.subr.bf16.mxu0 %v3433
    %3497 = vmatpush1.bf16.msra.mxu0 %v3432
    %3498 = vmatprep.subr.bf16.mxu0 %v3435
    %3499 = vmatpush1.bf16.msra.mxu0 %v3434
    %3500 = vmatprep.subr.bf16.mxu0 %v3437
    %3501 = vmatpush1.bf16.msra.mxu0 %v3436
    %3502 = vmatprep.subr.bf16.mxu0 %v3439
    %3503 = vmatpush1.bf16.msra.mxu0 %v3438
    %3504 = vmatprep.subr.bf16.mxu0 %v3441
    %3505 = vmatpush1.bf16.msra.mxu0 %v3440
    %3506 = vmatprep.subr.bf16.mxu0 %v3443
    %3507 = vmatpush1.bf16.msra.mxu0 %v3442
    %3508 = vmatprep.subr.bf16.mxu0 %v3445
    %3509 = vmatpush1.bf16.msra.mxu0 %v3444
    %3510 = vmatprep.subr.bf16.mxu0 %v3447
    %3511 = vmatpush1.bf16.msra.mxu0 %v3446
    %3512 = vmatprep.subr.bf16.mxu0 %v3449
    %3513 = vmatpush1.bf16.msra.mxu0 %v3448
    %3514 = vmatprep.subr.bf16.mxu0 %v3451
    %3515 = vmatpush1.bf16.msra.mxu0 %v3450
    %3516 = vmatprep.subr.bf16.mxu0 %v3453
    %3517 = vmatpush1.bf16.msra.mxu0 %v3452
    %3518 = vmatprep.mubr.bf16.mxu0 %v3280
    %3519 = vmatmul.mubr.bf16.gmra.mrb[0].mxu0 %v3279
    %v3520 = vpop.f32.mrb[0].mxu0
    %v3521 = vadd.f32 %v3319, %v3520
    %v3522 = vpop.f32.mrb[0].mxu0
    %v3523 = vadd.f32 %v3323, %v3522
    %v3524 = vpop.f32.mrb[0].mxu0
    %v3525 = vpop.f32.mrb[0].mxu0
    %3526 = vdwg.mxu0
    %vm3527 = vcmp.gt.f32.partialorder %v3521, 0.0
    %vm3528 = vcmp.gt.f32.partialorder %v3523, 0.0
    %v3529 = vmul.f32 %v3521, 0.2
    %v3530 = vmul.f32 %v3523, 0.2
    %v3531 = vsel %vm3527, %v3521, %v3529
    %v3532 = vsel %vm3528, %v3523, %v3530
    %v3533 = vpack.c.bf16 %v3531, %v3531
    %v3534 = vpack.c.bf16 %v3532, %v3532
    %v3535 = vld [vmem:[%s13] sm:$0xff]
    %v3536 = vld [vmem:[%s13 + $0x8] sm:$0xff]
    %v3537 = vld [vmem:[%s13 + $0x10] sm:$0xff]
    %v3538 = vld [vmem:[%s13 + $0x18] sm:$0xff]
    %v3539 = vld [vmem:[%s13 + $0x20] sm:$0xff]
    %v3540 = vld [vmem:[%s13 + $0x28] sm:$0xff]
    %v3541 = vld [vmem:[%s13 + $0x30] sm:$0xff]
    %v3542 = vld [vmem:[%s13 + $0x38] sm:$0xff]
    %v3543 = vld [vmem:[%s13 + $0x40] sm:$0xff]
    %v3544 = vld [vmem:[%s13 + $0x48] sm:$0xff]
    %v3545 = vld [vmem:[%s13 + $0x50] sm:$0xff]
    %v3546 = vld [vmem:[%s13 + $0x58] sm:$0xff]
    %v3547 = vld [vmem:[%s13 + $0x60] sm:$0xff]
    %v3548 = vld [vmem:[%s13 + $0x68] sm:$0xff]
    %v3549 = vld [vmem:[%s13 + $0x70] sm:$0xff]
    %v3550 = vld [vmem:[%s13 + $0x78] sm:$0xff]
    %v3551 = vld [vmem:[%s13 + $0x80] sm:$0xff]
    %v3552 = vld [vmem:[%s13 + $0x88] sm:$0xff]
    %v3553 = vld [vmem:[%s13 + $0x90] sm:$0xff]
    %v3554 = vld [vmem:[%s13 + $0x98] sm:$0xff]
    %v3555 = vld [vmem:[%s13 + $0xa0] sm:$0xff]
    %v3556 = vld [vmem:[%s13 + $0xa8] sm:$0xff]
    %v3557 = vld [vmem:[%s13 + $0xb0] sm:$0xff]
    %v3558 = vld [vmem:[%s13 + $0xb8] sm:$0xff]
    %v3559 = vld [vmem:[%s13 + $0xc0] sm:$0xff]
    %v3560 = vld [vmem:[%s13 + $0xc8] sm:$0xff]
    %v3561 = vld [vmem:[%s13 + $0xd0] sm:$0xff]
    %v3562 = vld [vmem:[%s13 + $0xd8] sm:$0xff]
    %v3563 = vld [vmem:[%s13 + $0xe0] sm:$0xff]
    %v3564 = vld [vmem:[%s13 + $0xe8] sm:$0xff]
    %v3565 = vld [vmem:[%s13 + $0xf0] sm:$0xff]
    %v3566 = vld [vmem:[%s13 + $0xf8] sm:$0xff]
    %s3567 = scalar_lea.vmem %s4, 6
    %v3568 = vld [vmem:[%s3567] ss:$8 sm:$0x3]
    %v3570 = vlaneseq
    %v3571 = vshrl.u32 %v3570, 7
    %v3572 = vsub.s32 0, %v3571
    %v3573 = vrot.slane %v3568, %v3572
    %v3574 = vlaneseq
    %v3575 = vshrl.u32 %v3574, 7
    %v3576 = vsub.s32 1, %v3575
    %v3577 = vrot.slane %v3568, %v3576
    %v3612 = vunpack.c.l.b16 %v3535
    %v3613 = vunpack.c.h.b16 %v3535
    %v3614 = vunpack.c.l.b16 %v3536
    %v3615 = vunpack.c.h.b16 %v3536
    %v3616 = vunpack.c.l.b16 %v3537
    %v3617 = vunpack.c.h.b16 %v3537
    %v3618 = vunpack.c.l.b16 %v3538
    %v3619 = vunpack.c.h.b16 %v3538
    %v3620 = vunpack.c.l.b16 %v3539
    %v3621 = vunpack.c.h.b16 %v3539
    %v3622 = vunpack.c.l.b16 %v3540
    %v3623 = vunpack.c.h.b16 %v3540
    %v3624 = vunpack.c.l.b16 %v3541
    %v3625 = vunpack.c.h.b16 %v3541
    %v3626 = vunpack.c.l.b16 %v3542
    %v3627 = vunpack.c.h.b16 %v3542
    %v3628 = vunpack.c.l.b16 %v3543
    %v3629 = vunpack.c.h.b16 %v3543
    %v3630 = vunpack.c.l.b16 %v3544
    %v3631 = vunpack.c.h.b16 %v3544
    %v3632 = vunpack.c.l.b16 %v3545
    %v3633 = vunpack.c.h.b16 %v3545
    %v3634 = vunpack.c.l.b16 %v3546
    %v3635 = vunpack.c.h.b16 %v3546
    %v3636 = vunpack.c.l.b16 %v3547
    %v3637 = vunpack.c.h.b16 %v3547
    %v3638 = vunpack.c.l.b16 %v3548
    %v3639 = vunpack.c.h.b16 %v3548
    %v3640 = vunpack.c.l.b16 %v3549
    %v3641 = vunpack.c.h.b16 %v3549
    %v3642 = vunpack.c.l.b16 %v3550
    %v3643 = vunpack.c.h.b16 %v3550
    %v3644 = vunpack.c.l.b16 %v3551
    %v3645 = vunpack.c.h.b16 %v3551
    %v3646 = vunpack.c.l.b16 %v3552
    %v3647 = vunpack.c.h.b16 %v3552
    %v3648 = vunpack.c.l.b16 %v3553
    %v3649 = vunpack.c.h.b16 %v3553
    %v3650 = vunpack.c.l.b16 %v3554
    %v3651 = vunpack.c.h.b16 %v3554
    %v3652 = vunpack.c.l.b16 %v3555
    %v3653 = vunpack.c.h.b16 %v3555
    %v3654 = vunpack.c.l.b16 %v3556
    %v3655 = vunpack.c.h.b16 %v3556
    %v3656 = vunpack.c.l.b16 %v3557
    %v3657 = vunpack.c.h.b16 %v3557
    %v3658 = vunpack.c.l.b16 %v3558
    %v3659 = vunpack.c.h.b16 %v3558
    %v3660 = vunpack.c.l.b16 %v3559
    %v3661 = vunpack.c.h.b16 %v3559
    %v3662 = vunpack.c.l.b16 %v3560
    %v3663 = vunpack.c.h.b16 %v3560
    %v3664 = vunpack.c.l.b16 %v3561
    %v3665 = vunpack.c.h.b16 %v3561
    %v3666 = vunpack.c.l.b16 %v3562
    %v3667 = vunpack.c.h.b16 %v3562
    %v3668 = vunpack.c.l.b16 %v3563
    %v3669 = vunpack.c.h.b16 %v3563
    %v3670 = vunpack.c.l.b16 %v3564
    %v3671 = vunpack.c.h.b16 %v3564
    %v3672 = vunpack.c.l.b16 %v3565
    %v3673 = vunpack.c.h.b16 %v3565
    %v3674 = vunpack.c.l.b16 %v3566
    %v3675 = vunpack.c.h.b16 %v3566
    %v3676 = vpack.c.b16 %v3614, %v3612
    %v3677 = vpack.c.b16 %v3615, %v3613
    %v3678 = vpack.c.b16 %v3618, %v3616
    %v3679 = vpack.c.b16 %v3619, %v3617
    %v3680 = vpack.c.b16 %v3622, %v3620
    %v3681 = vpack.c.b16 %v3623, %v3621
    %v3682 = vpack.c.b16 %v3626, %v3624
    %v3683 = vpack.c.b16 %v3627, %v3625
    %v3684 = vpack.c.b16 %v3630, %v3628
    %v3685 = vpack.c.b16 %v3631, %v3629
    %v3686 = vpack.c.b16 %v3634, %v3632
    %v3687 = vpack.c.b16 %v3635, %v3633
    %v3688 = vpack.c.b16 %v3638, %v3636
    %v3689 = vpack.c.b16 %v3639, %v3637
    %v3690 = vpack.c.b16 %v3642, %v3640
    %v3691 = vpack.c.b16 %v3643, %v3641
    %v3692 = vpack.c.b16 %v3646, %v3644
    %v3693 = vpack.c.b16 %v3647, %v3645
    %v3694 = vpack.c.b16 %v3650, %v3648
    %v3695 = vpack.c.b16 %v3651, %v3649
    %v3696 = vpack.c.b16 %v3654, %v3652
    %v3697 = vpack.c.b16 %v3655, %v3653
    %v3698 = vpack.c.b16 %v3658, %v3656
    %v3699 = vpack.c.b16 %v3659, %v3657
    %v3700 = vpack.c.b16 %v3662, %v3660
    %v3701 = vpack.c.b16 %v3663, %v3661
    %v3702 = vpack.c.b16 %v3666, %v3664
    %v3703 = vpack.c.b16 %v3667, %v3665
    %v3704 = vpack.c.b16 %v3670, %v3668
    %v3705 = vpack.c.b16 %v3671, %v3669
    %v3706 = vpack.c.b16 %v3674, %v3672
    %v3707 = vpack.c.b16 %v3675, %v3673
    %3740 = vmatprep.subr.bf16.mxu0 %v3677
    %3741 = vmatpush1.bf16.msra.mxu0 %v3676
    %3742 = vmatprep.subr.bf16.mxu0 %v3679
    %3743 = vmatpush1.bf16.msra.mxu0 %v3678
    %3744 = vmatprep.subr.bf16.mxu0 %v3681
    %3745 = vmatpush1.bf16.msra.mxu0 %v3680
    %3746 = vmatprep.subr.bf16.mxu0 %v3683
    %3747 = vmatpush1.bf16.msra.mxu0 %v3682
    %3748 = vmatprep.subr.bf16.mxu0 %v3685
    %3749 = vmatpush1.bf16.msra.mxu0 %v3684
    %3750 = vmatprep.subr.bf16.mxu0 %v3687
    %3751 = vmatpush1.bf16.msra.mxu0 %v3686
    %3752 = vmatprep.subr.bf16.mxu0 %v3689
    %3753 = vmatpush1.bf16.msra.mxu0 %v3688
    %3754 = vmatprep.subr.bf16.mxu0 %v3691
    %3755 = vmatpush1.bf16.msra.mxu0 %v3690
    %3756 = vmatprep.subr.bf16.mxu0 %v3693
    %3757 = vmatpush1.bf16.msra.mxu0 %v3692
    %3758 = vmatprep.subr.bf16.mxu0 %v3695
    %3759 = vmatpush1.bf16.msra.mxu0 %v3694
    %3760 = vmatprep.subr.bf16.mxu0 %v3697
    %3761 = vmatpush1.bf16.msra.mxu0 %v3696
    %3762 = vmatprep.subr.bf16.mxu0 %v3699
    %3763 = vmatpush1.bf16.msra.mxu0 %v3698
    %3764 = vmatprep.subr.bf16.mxu0 %v3701
    %3765 = vmatpush1.bf16.msra.mxu0 %v3700
    %3766 = vmatprep.subr.bf16.mxu0 %v3703
    %3767 = vmatpush1.bf16.msra.mxu0 %v3702
    %3768 = vmatprep.subr.bf16.mxu0 %v3705
    %3769 = vmatpush1.bf16.msra.mxu0 %v3704
    %3770 = vmatprep.subr.bf16.mxu0 %v3707
    %3771 = vmatpush1.bf16.msra.mxu0 %v3706
    %3772 = vmatprep.mubr.bf16.mxu0 %v3534
    %3773 = vmatmul.mubr.bf16.gmra.mrb[0].mxu0 %v3533
    %v3774 = vpop.f32.mrb[0].mxu0
    %v3775 = vadd.f32 %v3573, %v3774
    %v3776 = vpop.f32.mrb[0].mxu0
    %v3777 = vadd.f32 %v3577, %v3776
    %v3778 = vpop.f32.mrb[0].mxu0
    %v3779 = vpop.f32.mrb[0].mxu0
    %3780 = vdwg.mxu0
    %vm3781 = vcmp.gt.f32.partialorder %v3775, 0.0
    %vm3782 = vcmp.gt.f32.partialorder %v3777, 0.0
    %v3783 = vmul.f32 %v3775, 0.2
    %v3784 = vmul.f32 %v3777, 0.2
    %v3785 = vsel %vm3781, %v3775, %v3783
    %v3786 = vsel %vm3782, %v3777, %v3784
    %v3787 = vpack.c.bf16 %v3785, %v3785
    %v3788 = vpack.c.bf16 %v3786, %v3786
    %v3789 = vld [vmem:[%s14] sm:$0xf]
    %v3790 = vld [vmem:[%s14 + $0x4] sm:$0xf]
    %v3791 = vld [vmem:[%s14 + $0x8] sm:$0xf]
    %v3792 = vld [vmem:[%s14 + $0xc] sm:$0xf]
    %v3793 = vld [vmem:[%s14 + $0x10] sm:$0xf]
    %v3794 = vld [vmem:[%s14 + $0x14] sm:$0xf]
    %v3795 = vld [vmem:[%s14 + $0x18] sm:$0xf]
    %v3796 = vld [vmem:[%s14 + $0x1c] sm:$0xf]
    %v3797 = vld [vmem:[%s14 + $0x20] sm:$0xf]
    %v3798 = vld [vmem:[%s14 + $0x24] sm:$0xf]
    %v3799 = vld [vmem:[%s14 + $0x28] sm:$0xf]
    %v3800 = vld [vmem:[%s14 + $0x2c] sm:$0xf]
    %v3801 = vld [vmem:[%s14 + $0x30] sm:$0xf]
    %v3802 = vld [vmem:[%s14 + $0x34] sm:$0xf]
    %v3803 = vld [vmem:[%s14 + $0x38] sm:$0xf]
    %v3804 = vld [vmem:[%s14 + $0x3c] sm:$0xf]
    %v3805 = vld [vmem:[%s14 + $0x40] sm:$0xf]
    %v3806 = vld [vmem:[%s14 + $0x44] sm:$0xf]
    %v3807 = vld [vmem:[%s14 + $0x48] sm:$0xf]
    %v3808 = vld [vmem:[%s14 + $0x4c] sm:$0xf]
    %v3809 = vld [vmem:[%s14 + $0x50] sm:$0xf]
    %v3810 = vld [vmem:[%s14 + $0x54] sm:$0xf]
    %v3811 = vld [vmem:[%s14 + $0x58] sm:$0xf]
    %v3812 = vld [vmem:[%s14 + $0x5c] sm:$0xf]
    %v3813 = vld [vmem:[%s14 + $0x60] sm:$0xf]
    %v3814 = vld [vmem:[%s14 + $0x64] sm:$0xf]
    %v3815 = vld [vmem:[%s14 + $0x68] sm:$0xf]
    %v3816 = vld [vmem:[%s14 + $0x6c] sm:$0xf]
    %v3817 = vld [vmem:[%s14 + $0x70] sm:$0xf]
    %v3818 = vld [vmem:[%s14 + $0x74] sm:$0xf]
    %v3819 = vld [vmem:[%s14 + $0x78] sm:$0xf]
    %v3820 = vld [vmem:[%s14 + $0x7c] sm:$0xf]
    %v3821 = vld [vmem:[%s4 + $0x7] ss:$0 sm:$0xff]
    %v3854 = vunpack.c.l.b16 %v3789
    %v3855 = vunpack.c.l.b16 %v3790
    %v3856 = vunpack.c.l.b16 %v3791
    %v3857 = vunpack.c.l.b16 %v3792
    %v3858 = vunpack.c.l.b16 %v3793
    %v3859 = vunpack.c.l.b16 %v3794
    %v3860 = vunpack.c.l.b16 %v3795
    %v3861 = vunpack.c.l.b16 %v3796
    %v3862 = vunpack.c.l.b16 %v3797
    %v3863 = vunpack.c.l.b16 %v3798
    %v3864 = vunpack.c.l.b16 %v3799
    %v3865 = vunpack.c.l.b16 %v3800
    %v3866 = vunpack.c.l.b16 %v3801
    %v3867 = vunpack.c.l.b16 %v3802
    %v3868 = vunpack.c.l.b16 %v3803
    %v3869 = vunpack.c.l.b16 %v3804
    %v3870 = vunpack.c.l.b16 %v3805
    %v3871 = vunpack.c.l.b16 %v3806
    %v3872 = vunpack.c.l.b16 %v3807
    %v3873 = vunpack.c.l.b16 %v3808
    %v3874 = vunpack.c.l.b16 %v3809
    %v3875 = vunpack.c.l.b16 %v3810
    %v3876 = vunpack.c.l.b16 %v3811
    %v3877 = vunpack.c.l.b16 %v3812
    %v3878 = vunpack.c.l.b16 %v3813
    %v3879 = vunpack.c.l.b16 %v3814
    %v3880 = vunpack.c.l.b16 %v3815
    %v3881 = vunpack.c.l.b16 %v3816
    %v3882 = vunpack.c.l.b16 %v3817
    %v3883 = vunpack.c.l.b16 %v3818
    %v3884 = vunpack.c.l.b16 %v3819
    %v3885 = vunpack.c.l.b16 %v3820
    %v3886 = vpack.c.b16 %v3855, %v3854
    %v3887 = vpack.c.b16 %v3857, %v3856
    %v3888 = vpack.c.b16 %v3859, %v3858
    %v3889 = vpack.c.b16 %v3861, %v3860
    %v3890 = vpack.c.b16 %v3863, %v3862
    %v3891 = vpack.c.b16 %v3865, %v3864
    %v3892 = vpack.c.b16 %v3867, %v3866
    %v3893 = vpack.c.b16 %v3869, %v3868
    %v3894 = vpack.c.b16 %v3871, %v3870
    %v3895 = vpack.c.b16 %v3873, %v3872
    %v3896 = vpack.c.b16 %v3875, %v3874
    %v3897 = vpack.c.b16 %v3877, %v3876
    %v3898 = vpack.c.b16 %v3879, %v3878
    %v3899 = vpack.c.b16 %v3881, %v3880
    %v3900 = vpack.c.b16 %v3883, %v3882
    %v3901 = vpack.c.b16 %v3885, %v3884
    %3918 = vmatprep.subr.bf16.mxu0 0
    %3919 = vmatpush1.bf16.msra.mxu0 %v3886
    %3920 = vmatprep.subr.bf16.mxu0 0
    %3921 = vmatpush1.bf16.msra.mxu0 %v3887
    %3922 = vmatprep.subr.bf16.mxu0 0
    %3923 = vmatpush1.bf16.msra.mxu0 %v3888
    %3924 = vmatprep.subr.bf16.mxu0 0
    %3925 = vmatpush1.bf16.msra.mxu0 %v3889
    %3926 = vmatprep.subr.bf16.mxu0 0
    %3927 = vmatpush1.bf16.msra.mxu0 %v3890
    %3928 = vmatprep.subr.bf16.mxu0 0
    %3929 = vmatpush1.bf16.msra.mxu0 %v3891
    %3930 = vmatprep.subr.bf16.mxu0 0
    %3931 = vmatpush1.bf16.msra.mxu0 %v3892
    %3932 = vmatprep.subr.bf16.mxu0 0
    %3933 = vmatpush1.bf16.msra.mxu0 %v3893
    %3934 = vmatprep.subr.bf16.mxu0 0
    %3935 = vmatpush1.bf16.msra.mxu0 %v3894
    %3936 = vmatprep.subr.bf16.mxu0 0
    %3937 = vmatpush1.bf16.msra.mxu0 %v3895
    %3938 = vmatprep.subr.bf16.mxu0 0
    %3939 = vmatpush1.bf16.msra.mxu0 %v3896
    %3940 = vmatprep.subr.bf16.mxu0 0
    %3941 = vmatpush1.bf16.msra.mxu0 %v3897
    %3942 = vmatprep.subr.bf16.mxu0 0
    %3943 = vmatpush1.bf16.msra.mxu0 %v3898
    %3944 = vmatprep.subr.bf16.mxu0 0
    %3945 = vmatpush1.bf16.msra.mxu0 %v3899
    %3946 = vmatprep.subr.bf16.mxu0 0
    %3947 = vmatpush1.bf16.msra.mxu0 %v3900
    %3948 = vmatprep.subr.bf16.mxu0 0
    %3949 = vmatpush1.bf16.msra.mxu0 %v3901
    %3950 = vmatprep.mubr.bf16.mxu0 %v3788
    %3951 = vmatmul.mubr.bf16.gmra.mrb[0].mxu0 %v3787
    %v3952 = vpop.f32.mrb[0].mxu0
    %v3953 = vadd.f32 %v3821, %v3952
    %v3954 = vpop.f32.mrb[0].mxu0
    %v3955 = vpop.f32.mrb[0].mxu0
    %v3956 = vpop.f32.mrb[0].mxu0
    %3957 = vdwg.mxu0
    %v3958 = vsub.f32 0.0, %v3953
    %v3959 = vmul.f32 %v3958, 1.442695
    %v3960 = vpow.pop %v3959
    %v3961 = vadd.f32 %v3960, 1.0
    %v3962 = vrcp.pop %v3961
    %v3963 = vmul.f32 1.0, %v3962
    %vm3964 = vcmask 50176
    %3965 = vst.msk [vmem:[%s23] sm:$0x3] %vm3964, %v3963
    %v3966 = vld [vmem:[%s3] sm:$0xf]
    %v3967 = vld [vmem:[%s3 + $0x4] sm:$0xf]
    %v3970 = vunpack.c.l.b16 %v3966
    %v3971 = vunpack.c.l.b16 %v3967
    %v3972 = vpack.c.b16 %v3971, %v3970
    %vm3973 = vcmask 15360
    %v3975 = vsel %vm3973, %v3972, 0
    %v3977 = vsel %vm2248, %v2233, 0
    %3979 = vmatprep.subr.bf16.mxu0 0
    %3980 = vmatpush1.bf16.msra.mxu0 %v3977
    %3981 = vmatprep.subr.bf16.mxu0 0
    %3982 = vmatpush1.bf16.msra.mxu0 0
    %3983 = vmatprep.subr.bf16.mxu0 0
    %3984 = vmatpush1.bf16.msra.mxu0 0
    %3985 = vmatprep.subr.bf16.mxu0 0
    %3986 = vmatpush1.bf16.msra.mxu0 0
    %3987 = vmatprep.subr.bf16.mxu0 0
    %3988 = vmatpush1.bf16.msra.mxu0 0
    %3989 = vmatprep.subr.bf16.mxu0 0
    %3990 = vmatpush1.bf16.msra.mxu0 0
    %3991 = vmatprep.subr.bf16.mxu0 0
    %3992 = vmatpush1.bf16.msra.mxu0 0
    %3993 = vmatprep.subr.bf16.mxu0 0
    %3994 = vmatpush1.bf16.msra.mxu0 0
    %3995 = vmatprep.subr.bf16.mxu0 0
    %3996 = vmatpush1.bf16.msra.mxu0 0
    %3997 = vmatprep.subr.bf16.mxu0 0
    %3998 = vmatpush1.bf16.msra.mxu0 0
    %3999 = vmatprep.subr.bf16.mxu0 0
    %4000 = vmatpush1.bf16.msra.mxu0 0
    %4001 = vmatprep.subr.bf16.mxu0 0
    %4002 = vmatpush1.bf16.msra.mxu0 0
    %4003 = vmatprep.subr.bf16.mxu0 0
    %4004 = vmatpush1.bf16.msra.mxu0 0
    %4005 = vmatprep.subr.bf16.mxu0 0
    %4006 = vmatpush1.bf16.msra.mxu0 0
    %4007 = vmatprep.subr.bf16.mxu0 0
    %4008 = vmatpush1.bf16.msra.mxu0 0
    %4009 = vmatprep.subr.bf16.mxu0 0
    %4010 = vmatpush1.bf16.msra.mxu0 0
    %4011 = vmatprep.mubr.bf16.mxu0 0
    %4012 = vmatmul.mubr.bf16.gmra.mrb[0].mxu0 %v3975
    %v4013 = vpop.f32.mrb[0].mxu0
    %v4014 = vadd.f32 0.0, %v4013
    %v4015 = vpop.f32.mrb[0].mxu0
    %v4016 = vpop.f32.mrb[0].mxu0
    %v4017 = vadd.f32 0.0, %v4016
    %v4018 = vpop.f32.mrb[0].mxu0
    %4019 = vdwg.mxu0
    %v4020 = vpack.c.bf16 %v3963, %v3963
    %v4022 = vsel %vm2248, %v4020, 0
    %4024 = vmatprep.subr.bf16.mxu0 0
    %4025 = vmatpush1.bf16.msra.mxu0 %v4022
    %4026 = vmatprep.subr.bf16.mxu0 0
    %4027 = vmatpush1.bf16.msra.mxu0 0
    %4028 = vmatprep.subr.bf16.mxu0 0
    %4029 = vmatpush1.bf16.msra.mxu0 0
    %4030 = vmatprep.subr.bf16.mxu0 0
    %4031 = vmatpush1.bf16.msra.mxu0 0
    %4032 = vmatprep.subr.bf16.mxu0 0
    %4033 = vmatpush1.bf16.msra.mxu0 0
    %4034 = vmatprep.subr.bf16.mxu0 0
    %4035 = vmatpush1.bf16.msra.mxu0 0
    %4036 = vmatprep.subr.bf16.mxu0 0
    %4037 = vmatpush1.bf16.msra.mxu0 0
    %4038 = vmatprep.subr.bf16.mxu0 0
    %4039 = vmatpush1.bf16.msra.mxu0 0
    %4040 = vmatprep.subr.bf16.mxu0 0
    %4041 = vmatpush1.bf16.msra.mxu0 0
    %4042 = vmatprep.subr.bf16.mxu0 0
    %4043 = vmatpush1.bf16.msra.mxu0 0
    %4044 = vmatprep.subr.bf16.mxu0 0
    %4045 = vmatpush1.bf16.msra.mxu0 0
    %4046 = vmatprep.subr.bf16.mxu0 0
    %4047 = vmatpush1.bf16.msra.mxu0 0
    %4048 = vmatprep.subr.bf16.mxu0 0
    %4049 = vmatpush1.bf16.msra.mxu0 0
    %4050 = vmatprep.subr.bf16.mxu0 0
    %4051 = vmatpush1.bf16.msra.mxu0 0
    %4052 = vmatprep.subr.bf16.mxu0 0
    %4053 = vmatpush1.bf16.msra.mxu0 0
    %4054 = vmatprep.subr.bf16.mxu0 0
    %4055 = vmatpush1.bf16.msra.mxu0 0
    %4056 = vmatprep.mubr.bf16.mxu0 0
    %4057 = vmatmul.mubr.bf16.gmra.mrb[0].mxu0 %v3975
    %v4058 = vpop.f32.mrb[0].mxu0
    %v4059 = vadd.f32 0.0, %v4058
    %v4060 = vpop.f32.mrb[0].mxu0
    %v4061 = vpop.f32.mrb[0].mxu0
    %v4062 = vadd.f32 0.0, %v4061
    %v4063 = vpop.f32.mrb[0].mxu0
    %4064 = vdwg.mxu0
    %v4065 = vpack.c.bf16 %v4017, %v4014
    %v4066 = vld [vmem:[%s15] sm:$0xff]
    %v4067 = vpack.c.bf16 %v4062, %v4059
    %v4068 = vld [vmem:[%s16] sm:$0xff]
    %v4069 = vld [vmem:[%s16 + $0x8] sm:$0xff]
    %v4072 = vunpack.c.l.b16 %v4068
    %v4073 = vunpack.c.h.b16 %v4068
    %v4074 = vunpack.c.l.b16 %v4069
    %v4075 = vunpack.c.h.b16 %v4069
    %v4076 = vpack.c.b16 %v4072, %v4072
    %v4077 = vpack.c.b16 %v4073, %v4073
    %v4078 = vpack.c.b16 %v4074, %v4074
    %v4079 = vpack.c.b16 %v4075, %v4075
    %vm4080 = vcmask 56320
    %v4082 = vsel %vm4080, %v4067, 0
    %vm4084 = vcmask 1042432
    %vm4085 = vcmask 1043456
    %v4086 = vsel %vm4084, 4294967295, 65535
    %v4087 = vsel %vm4085, %v4086, 0
    %v4089 = vand.u32 %v4076, %v4087
    %v4092 = vand.u32 %v4077, %v4087
    %v4095 = vand.u32 %v4078, %v4087
    %v4098 = vand.u32 %v4079, %v4087
    %4100 = vmatprep.subr.bf16.mxu0 %v4092
    %4101 = vmatpush1.bf16.msra.mxu0 %v4089
    %4102 = vmatprep.subr.bf16.mxu0 0
    %4103 = vmatpush1.bf16.msra.mxu0 0
    %4104 = vmatprep.subr.bf16.mxu0 0
    %4105 = vmatpush1.bf16.msra.mxu0 0
    %4106 = vmatprep.subr.bf16.mxu0 0
    %4107 = vmatpush1.bf16.msra.mxu0 0
    %4108 = vmatprep.subr.bf16.mxu0 0
    %4109 = vmatpush1.bf16.msra.mxu0 0
    %4110 = vmatprep.subr.bf16.mxu0 0
    %4111 = vmatpush1.bf16.msra.mxu0 0
    %4112 = vmatprep.subr.bf16.mxu0 0
    %4113 = vmatpush1.bf16.msra.mxu0 0
    %4114 = vmatprep.subr.bf16.mxu0 0
    %4115 = vmatpush1.bf16.msra.mxu0 0
    %4116 = vmatprep.subr.bf16.mxu0 0
    %4117 = vmatpush1.bf16.msra.mxu0 0
    %4118 = vmatprep.subr.bf16.mxu0 0
    %4119 = vmatpush1.bf16.msra.mxu0 0
    %4120 = vmatprep.subr.bf16.mxu0 0
    %4121 = vmatpush1.bf16.msra.mxu0 0
    %4122 = vmatprep.subr.bf16.mxu0 0
    %4123 = vmatpush1.bf16.msra.mxu0 0
    %4124 = vmatprep.subr.bf16.mxu0 0
    %4125 = vmatpush1.bf16.msra.mxu0 0
    %4126 = vmatprep.subr.bf16.mxu0 0
    %4127 = vmatpush1.bf16.msra.mxu0 0
    %4128 = vmatprep.subr.bf16.mxu0 0
    %4129 = vmatpush1.bf16.msra.mxu0 0
    %4130 = vmatprep.subr.bf16.mxu0 0
    %4131 = vmatpush1.bf16.msra.mxu0 0
    %4132 = vmatprep.mubr.bf16.mxu0 0
    %4133 = vmatmul.mubr.bf16.gmra.mrb[0].mxu0 %v4082
    %v4134 = vpop.f32.mrb[0].mxu0
    %v4135 = vadd.f32 0.0, %v4134
    %v4136 = vpop.f32.mrb[0].mxu0
    %v4137 = vadd.f32 0.0, %v4136
    %v4138 = vpop.f32.mrb[0].mxu0
    %v4139 = vadd.f32 0.0, %v4138
    %v4140 = vpop.f32.mrb[0].mxu0
    %v4141 = vadd.f32 0.0, %v4140
    %4142 = vdwg.mxu0
    %4143 = vmatprep.subr.bf16.mxu0 %v4098
    %4144 = vmatpush1.bf16.msra.mxu0 %v4095
    %4145 = vmatprep.subr.bf16.mxu0 0
    %4146 = vmatpush1.bf16.msra.mxu0 0
    %4147 = vmatprep.subr.bf16.mxu0 0
    %4148 = vmatpush1.bf16.msra.mxu0 0
    %4149 = vmatprep.subr.bf16.mxu0 0
    %4150 = vmatpush1.bf16.msra.mxu0 0
    %4151 = vmatprep.subr.bf16.mxu0 0
    %4152 = vmatpush1.bf16.msra.mxu0 0
    %4153 = vmatprep.subr.bf16.mxu0 0
    %4154 = vmatpush1.bf16.msra.mxu0 0
    %4155 = vmatprep.subr.bf16.mxu0 0
    %4156 = vmatpush1.bf16.msra.mxu0 0
    %4157 = vmatprep.subr.bf16.mxu0 0
    %4158 = vmatpush1.bf16.msra.mxu0 0
    %4159 = vmatprep.subr.bf16.mxu0 0
    %4160 = vmatpush1.bf16.msra.mxu0 0
    %4161 = vmatprep.subr.bf16.mxu0 0
    %4162 = vmatpush1.bf16.msra.mxu0 0
    %4163 = vmatprep.subr.bf16.mxu0 0
    %4164 = vmatpush1.bf16.msra.mxu0 0
    %4165 = vmatprep.subr.bf16.mxu0 0
    %4166 = vmatpush1.bf16.msra.mxu0 0
    %4167 = vmatprep.subr.bf16.mxu0 0
    %4168 = vmatpush1.bf16.msra.mxu0 0
    %4169 = vmatprep.subr.bf16.mxu0 0
    %4170 = vmatpush1.bf16.msra.mxu0 0
    %4171 = vmatprep.subr.bf16.mxu0 0
    %4172 = vmatpush1.bf16.msra.mxu0 0
    %4173 = vmatprep.subr.bf16.mxu0 0
    %4174 = vmatpush1.bf16.msra.mxu0 0
    %4175 = vmatprep.mubr.bf16.mxu0 0
    %4176 = vmatmul.mubr.bf16.gmra.mrb[0].mxu0 %v4082
    %v4177 = vpop.f32.mrb[0].mxu0
    %v4178 = vadd.f32 0.0, %v4177
    %v4179 = vpop.f32.mrb[0].mxu0
    %v4180 = vadd.f32 0.0, %v4179
    %v4181 = vpop.f32.mrb[0].mxu0
    %v4182 = vadd.f32 0.0, %v4181
    %v4183 = vpop.f32.mrb[0].mxu0
    %v4184 = vadd.f32 0.0, %v4183
    %4185 = vdwg.mxu0
    %v4187 = vcombine.high %v4066, %v4066
    %v4189 = vunpack.c.l.s4 1983009808
    %v4190 = vunpack.c.0.s8 %v4189
    %v4191 = vlaneseq
    %v4192 = vshrl.u32 %v4191, 7
    %v4193 = vsub.s32 %v4190, %v4192
    %v4194 = vrot.slane %v4066, %v4193
    %v4196 = vunpack.c.l.s4 1983009808
    %v4197 = vunpack.c.0.s8 %v4196
    %v4198 = vlaneseq
    %v4199 = vshrl.u32 %v4198, 7
    %v4200 = vsub.s32 %v4197, %v4199
    %v4201 = vrot.slane %v4187, %v4200
    %v4202 = vcombine.high %v4194, %v4194
    %v4203 = vcombine.high %v4201, %v4201
    %v4205 = vsel %vm2244, %v4065, 0
    %v4208 = vand.u32 %v4194, %v2251
    %v4211 = vand.u32 %v4202, %v2251
    %v4214 = vand.u32 %v4201, %v2251
    %v4217 = vand.u32 %v4203, %v2251
    %4219 = vmatprep.subr.bf16.mxu0 %v4211
    %4220 = vmatpush1.bf16.msra.mxu0 %v4208
    %4221 = vmatprep.subr.bf16.mxu0 0
    %4222 = vmatpush1.bf16.msra.mxu0 0
    %4223 = vmatprep.subr.bf16.mxu0 0
    %4224 = vmatpush1.bf16.msra.mxu0 0
    %4225 = vmatprep.subr.bf16.mxu0 0
    %4226 = vmatpush1.bf16.msra.mxu0 0
    %4227 = vmatprep.subr.bf16.mxu0 0
    %4228 = vmatpush1.bf16.msra.mxu0 0
    %4229 = vmatprep.subr.bf16.mxu0 0
    %4230 = vmatpush1.bf16.msra.mxu0 0
    %4231 = vmatprep.subr.bf16.mxu0 0
    %4232 = vmatpush1.bf16.msra.mxu0 0
    %4233 = vmatprep.subr.bf16.mxu0 0
    %4234 = vmatpush1.bf16.msra.mxu0 0
    %4235 = vmatprep.subr.bf16.mxu0 0
    %4236 = vmatpush1.bf16.msra.mxu0 0
    %4237 = vmatprep.subr.bf16.mxu0 0
    %4238 = vmatpush1.bf16.msra.mxu0 0
    %4239 = vmatprep.subr.bf16.mxu0 0
    %4240 = vmatpush1.bf16.msra.mxu0 0
    %4241 = vmatprep.subr.bf16.mxu0 0
    %4242 = vmatpush1.bf16.msra.mxu0 0
    %4243 = vmatprep.subr.bf16.mxu0 0
    %4244 = vmatpush1.bf16.msra.mxu0 0
    %4245 = vmatprep.subr.bf16.mxu0 0
    %4246 = vmatpush1.bf16.msra.mxu0 0
    %4247 = vmatprep.subr.bf16.mxu0 0
    %4248 = vmatpush1.bf16.msra.mxu0 0
    %4249 = vmatprep.subr.bf16.mxu0 0
    %4250 = vmatpush1.bf16.msra.mxu0 0
    %4251 = vmatprep.mubr.bf16.mxu0 0
    %4252 = vmatmul.mubr.bf16.gmra.mrb[0].mxu0 %v4205
    %v4253 = vpop.f32.mrb[0].mxu0
    %v4254 = vadd.f32 %v4135, %v4253
    %v4255 = vpop.f32.mrb[0].mxu0
    %v4256 = vadd.f32 %v4137, %v4255
    %v4257 = vpop.f32.mrb[0].mxu0
    %v4258 = vadd.f32 %v4139, %v4257
    %v4259 = vpop.f32.mrb[0].mxu0
    %v4260 = vadd.f32 %v4141, %v4259
    %4261 = vdwg.mxu0
    %4262 = vmatprep.subr.bf16.mxu0 %v4217
    %4263 = vmatpush1.bf16.msra.mxu0 %v4214
    %4264 = vmatprep.subr.bf16.mxu0 0
    %4265 = vmatpush1.bf16.msra.mxu0 0
    %4266 = vmatprep.subr.bf16.mxu0 0
    %4267 = vmatpush1.bf16.msra.mxu0 0
    %4268 = vmatprep.subr.bf16.mxu0 0
    %4269 = vmatpush1.bf16.msra.mxu0 0
    %4270 = vmatprep.subr.bf16.mxu0 0
    %4271 = vmatpush1.bf16.msra.mxu0 0
    %4272 = vmatprep.subr.bf16.mxu0 0
    %4273 = vmatpush1.bf16.msra.mxu0 0
    %4274 = vmatprep.subr.bf16.mxu0 0
    %4275 = vmatpush1.bf16.msra.mxu0 0
    %4276 = vmatprep.subr.bf16.mxu0 0
    %4277 = vmatpush1.bf16.msra.mxu0 0
    %4278 = vmatprep.subr.bf16.mxu0 0
    %4279 = vmatpush1.bf16.msra.mxu0 0
    %4280 = vmatprep.subr.bf16.mxu0 0
    %4281 = vmatpush1.bf16.msra.mxu0 0
    %4282 = vmatprep.subr.bf16.mxu0 0
    %4283 = vmatpush1.bf16.msra.mxu0 0
    %4284 = vmatprep.subr.bf16.mxu0 0
    %4285 = vmatpush1.bf16.msra.mxu0 0
    %4286 = vmatprep.subr.bf16.mxu0 0
    %4287 = vmatpush1.bf16.msra.mxu0 0
    %4288 = vmatprep.subr.bf16.mxu0 0
    %4289 = vmatpush1.bf16.msra.mxu0 0
    %4290 = vmatprep.subr.bf16.mxu0 0
    %4291 = vmatpush1.bf16.msra.mxu0 0
    %4292 = vmatprep.subr.bf16.mxu0 0
    %4293 = vmatpush1.bf16.msra.mxu0 0
    %4294 = vmatprep.mubr.bf16.mxu0 0
    %4295 = vmatmul.mubr.bf16.gmra.mrb[0].mxu0 %v4205
    %v4296 = vpop.f32.mrb[0].mxu0
    %v4297 = vadd.f32 %v4178, %v4296
    %v4298 = vpop.f32.mrb[0].mxu0
    %v4299 = vadd.f32 %v4180, %v4298
    %v4300 = vpop.f32.mrb[0].mxu0
    %v4301 = vadd.f32 %v4182, %v4300
    %v4302 = vpop.f32.mrb[0].mxu0
    %v4303 = vadd.f32 %v4184, %v4302
    %4304 = vdwg.mxu0
    %v4305 = vld [vmem:[%s2] sm:$0xff]
    %v4306 = vld [vmem:[%s2 + $0x8] sm:$0xff]
    %v4307 = vpack.c.bf16 %v4306, %v4305
    %v4308 = vld [vmem:[%s17] sm:$0xf]
    %v4311 = vunpack.c.l.s4 1966171168
    %v4312 = vunpack.c.0.s8 %v4311
    %v4313 = vlaneseq
    %v4314 = vshrl.u32 %v4313, 7
    %v4315 = vsub.s32 %v4312, %v4314
    %v4316 = vrot.slane %v4308, %v4315
    %v4317 = vcombine.high %v4316, %v4316
    %v4319 = vunpack.c.l.s4 1966171168
    %v4320 = vunpack.c.0.s8 %v4319
    %v4321 = vlaneseq
    %v4322 = vshrl.u32 %v4321, 7
    %v4323 = vsub.s32 %v4320, %v4322
    %v4324 = vrot.slane %v4316, %v4323
    %v4326 = vunpack.c.l.s4 1966171168
    %v4327 = vunpack.c.0.s8 %v4326
    %v4328 = vlaneseq
    %v4329 = vshrl.u32 %v4328, 7
    %v4330 = vsub.s32 %v4327, %v4329
    %v4331 = vrot.slane %v4317, %v4330
    %v4332 = vcombine.high %v4324, %v4324
    %v4333 = vcombine.high %v4331, %v4331
    %v4335 = vsel %vm3973, %v4307, 0
    %v4338 = vsel %vm2248, %v4324, 0
    %v4341 = vsel %vm2248, %v4331, 0
    %v4344 = vsel %vm2248, %v4332, 0
    %v4347 = vsel %vm2248, %v4333, 0
    %4349 = vmatprep.subr.bf16.mxu0 %v4341
    %4350 = vmatpush1.bf16.msra.mxu0 %v4338
    %4351 = vmatprep.subr.bf16.mxu0 0
    %4352 = vmatpush1.bf16.msra.mxu0 0
    %4353 = vmatprep.subr.bf16.mxu0 0
    %4354 = vmatpush1.bf16.msra.mxu0 0
    %4355 = vmatprep.subr.bf16.mxu0 0
    %4356 = vmatpush1.bf16.msra.mxu0 0
    %4357 = vmatprep.subr.bf16.mxu0 0
    %4358 = vmatpush1.bf16.msra.mxu0 0
    %4359 = vmatprep.subr.bf16.mxu0 0
    %4360 = vmatpush1.bf16.msra.mxu0 0
    %4361 = vmatprep.subr.bf16.mxu0 0
    %4362 = vmatpush1.bf16.msra.mxu0 0
    %4363 = vmatprep.subr.bf16.mxu0 0
    %4364 = vmatpush1.bf16.msra.mxu0 0
    %4365 = vmatprep.subr.bf16.mxu0 0
    %4366 = vmatpush1.bf16.msra.mxu0 0
    %4367 = vmatprep.subr.bf16.mxu0 0
    %4368 = vmatpush1.bf16.msra.mxu0 0
    %4369 = vmatprep.subr.bf16.mxu0 0
    %4370 = vmatpush1.bf16.msra.mxu0 0
    %4371 = vmatprep.subr.bf16.mxu0 0
    %4372 = vmatpush1.bf16.msra.mxu0 0
    %4373 = vmatprep.subr.bf16.mxu0 0
    %4374 = vmatpush1.bf16.msra.mxu0 0
    %4375 = vmatprep.subr.bf16.mxu0 0
    %4376 = vmatpush1.bf16.msra.mxu0 0
    %4377 = vmatprep.subr.bf16.mxu0 0
    %4378 = vmatpush1.bf16.msra.mxu0 0
    %4379 = vmatprep.subr.bf16.mxu0 0
    %4380 = vmatpush1.bf16.msra.mxu0 0
    %4381 = vmatprep.mubr.bf16.mxu0 0
    %4382 = vmatmul.mubr.bf16.gmra.mrb[0].mxu0 %v4335
    %v4383 = vpop.f32.mrb[0].mxu0
    %v4384 = vadd.f32 0.0, %v4383
    %v4385 = vpop.f32.mrb[0].mxu0
    %v4386 = vadd.f32 0.0, %v4385
    %v4387 = vpop.f32.mrb[0].mxu0
    %v4388 = vadd.f32 0.0, %v4387
    %v4389 = vpop.f32.mrb[0].mxu0
    %v4390 = vadd.f32 0.0, %v4389
    %4391 = vdwg.mxu0
    %4392 = vmatprep.subr.bf16.mxu0 %v4347
    %4393 = vmatpush1.bf16.msra.mxu0 %v4344
    %4394 = vmatprep.subr.bf16.mxu0 0
    %4395 = vmatpush1.bf16.msra.mxu0 0
    %4396 = vmatprep.subr.bf16.mxu0 0
    %4397 = vmatpush1.bf16.msra.mxu0 0
    %4398 = vmatprep.subr.bf16.mxu0 0
    %4399 = vmatpush1.bf16.msra.mxu0 0
    %4400 = vmatprep.subr.bf16.mxu0 0
    %4401 = vmatpush1.bf16.msra.mxu0 0
    %4402 = vmatprep.subr.bf16.mxu0 0
    %4403 = vmatpush1.bf16.msra.mxu0 0
    %4404 = vmatprep.subr.bf16.mxu0 0
    %4405 = vmatpush1.bf16.msra.mxu0 0
    %4406 = vmatprep.subr.bf16.mxu0 0
    %4407 = vmatpush1.bf16.msra.mxu0 0
    %4408 = vmatprep.subr.bf16.mxu0 0
    %4409 = vmatpush1.bf16.msra.mxu0 0
    %4410 = vmatprep.subr.bf16.mxu0 0
    %4411 = vmatpush1.bf16.msra.mxu0 0
    %4412 = vmatprep.subr.bf16.mxu0 0
    %4413 = vmatpush1.bf16.msra.mxu0 0
    %4414 = vmatprep.subr.bf16.mxu0 0
    %4415 = vmatpush1.bf16.msra.mxu0 0
    %4416 = vmatprep.subr.bf16.mxu0 0
    %4417 = vmatpush1.bf16.msra.mxu0 0
    %4418 = vmatprep.subr.bf16.mxu0 0
    %4419 = vmatpush1.bf16.msra.mxu0 0
    %4420 = vmatprep.subr.bf16.mxu0 0
    %4421 = vmatpush1.bf16.msra.mxu0 0
    %4422 = vmatprep.subr.bf16.mxu0 0
    %4423 = vmatpush1.bf16.msra.mxu0 0
    %4424 = vmatprep.mubr.bf16.mxu0 0
    %4425 = vmatmul.mubr.bf16.gmra.mrb[0].mxu0 %v4335
    %v4426 = vpop.f32.mrb[0].mxu0
    %v4427 = vadd.f32 0.0, %v4426
    %v4428 = vpop.f32.mrb[0].mxu0
    %v4429 = vadd.f32 0.0, %v4428
    %v4430 = vpop.f32.mrb[0].mxu0
    %v4431 = vadd.f32 0.0, %v4430
    %v4432 = vpop.f32.mrb[0].mxu0
    %v4433 = vadd.f32 0.0, %v4432
    %4434 = vdwg.mxu0
    %v4435 = vadd.f32 %v4254, %v4384
    %v4436 = vadd.f32 %v4256, %v4386
    %v4437 = vadd.f32 %v4297, %v4427
    %v4438 = vadd.f32 %v4299, %v4429
    %v4439 = vadd.f32 %v4258, %v4388
    %v4440 = vadd.f32 %v4260, %v4390
    %v4441 = vadd.f32 %v4301, %v4431
    %v4442 = vadd.f32 %v4303, %v4433
    %s4443 = scalar_lea.vmem %s4, 32
    %v4444 = vld [vmem:[%s4443] ss:$8 sm:$0xf]
    %v4446 = vlaneseq
    %v4447 = vshrl.u32 %v4446, 7
    %v4448 = vsub.s32 0, %v4447
    %v4449 = vrot.slane %v4444, %v4448
    %v4450 = vlaneseq
    %v4451 = vshrl.u32 %v4450, 7
    %v4452 = vsub.s32 1, %v4451
    %v4453 = vrot.slane %v4444, %v4452
    %v4454 = vlaneseq
    %v4455 = vshrl.u32 %v4454, 7
    %v4456 = vsub.s32 2, %v4455
    %v4457 = vrot.slane %v4444, %v4456
    %v4458 = vlaneseq
    %v4459 = vshrl.u32 %v4458, 7
    %v4460 = vsub.s32 3, %v4459
    %v4461 = vrot.slane %v4444, %v4460
    %v4466 = vadd.f32 %v4435, %v4449
    %v4467 = vadd.f32 %v4436, %v4453
    %v4468 = vadd.f32 %v4437, %v4457
    %v4469 = vadd.f32 %v4438, %v4461
    %v4470 = vadd.f32 %v4439, %v4449
    %v4471 = vadd.f32 %v4440, %v4453
    %v4472 = vadd.f32 %v4441, %v4457
    %v4473 = vadd.f32 %v4442, %v4461
    %v4474 = vmax.f32 %v4466, 0.0
    %v4475 = vmax.f32 %v4467, 0.0
    %v4476 = vmax.f32 %v4468, 0.0
    %v4477 = vmax.f32 %v4469, 0.0
    %v4478 = vmax.f32 %v4470, 0.0
    %v4479 = vmax.f32 %v4471, 0.0
    %v4480 = vmax.f32 %v4472, 0.0
    %v4481 = vmax.f32 %v4473, 0.0
    %s4482 = smul.u32 4, 64
    %s4483 = smul.u32 %s4482, 4
    %s4484 = sshll.u32 %s4483, 4
    %4485 = dma.done [#allocation4], %s4484
    %v4486 = vpack.c.bf16 %v4478, %v4474
    %v4487 = vpack.c.bf16 %v4479, %v4475
    %v4488 = vpack.c.bf16 %v4480, %v4476
    %v4489 = vpack.c.bf16 %v4481, %v4477
    %v4490 = vld [vmem:[#allocation2] sm:$0xff]
    %v4491 = vld [vmem:[#allocation2 + $0x8] sm:$0xff]
    %v4492 = vld [vmem:[#allocation2 + $0x10] sm:$0xff]
    %v4493 = vld [vmem:[#allocation2 + $0x18] sm:$0xff]
    %v4494 = vld [vmem:[#allocation2 + $0x20] sm:$0xff]
    %v4495 = vld [vmem:[#allocation2 + $0x28] sm:$0xff]
    %v4496 = vld [vmem:[#allocation2 + $0x30] sm:$0xff]
    %v4497 = vld [vmem:[#allocation2 + $0x38] sm:$0xff]
    %v4498 = vld [vmem:[#allocation2 + $0x40] sm:$0xff]
    %v4499 = vld [vmem:[#allocation2 + $0x48] sm:$0xff]
    %v4500 = vld [vmem:[#allocation2 + $0x50] sm:$0xff]
    %v4501 = vld [vmem:[#allocation2 + $0x58] sm:$0xff]
    %v4502 = vld [vmem:[#allocation2 + $0x60] sm:$0xff]
    %v4503 = vld [vmem:[#allocation2 + $0x68] sm:$0xff]
    %v4504 = vld [vmem:[#allocation2 + $0x70] sm:$0xff]
    %v4505 = vld [vmem:[#allocation2 + $0x78] sm:$0xff]
    %v4506 = vld [vmem:[#allocation2 + $0x80] sm:$0xff]
    %v4507 = vld [vmem:[#allocation2 + $0x88] sm:$0xff]
    %v4508 = vld [vmem:[#allocation2 + $0x90] sm:$0xff]
    %v4509 = vld [vmem:[#allocation2 + $0x98] sm:$0xff]
    %v4510 = vld [vmem:[#allocation2 + $0xa0] sm:$0xff]
    %v4511 = vld [vmem:[#allocation2 + $0xa8] sm:$0xff]
    %v4512 = vld [vmem:[#allocation2 + $0xb0] sm:$0xff]
    %v4513 = vld [vmem:[#allocation2 + $0xb8] sm:$0xff]
    %v4514 = vld [vmem:[#allocation2 + $0xc0] sm:$0xff]
    %v4515 = vld [vmem:[#allocation2 + $0xc8] sm:$0xff]
    %v4516 = vld [vmem:[#allocation2 + $0xd0] sm:$0xff]
    %v4517 = vld [vmem:[#allocation2 + $0xd8] sm:$0xff]
    %v4518 = vld [vmem:[#allocation2 + $0xe0] sm:$0xff]
    %v4519 = vld [vmem:[#allocation2 + $0xe8] sm:$0xff]
    %v4520 = vld [vmem:[#allocation2 + $0xf0] sm:$0xff]
    %v4521 = vld [vmem:[#allocation2 + $0xf8] sm:$0xff]
    %v4522 = vld [vmem:[#allocation2 + $0x100] sm:$0xff]
    %v4523 = vld [vmem:[#allocation2 + $0x108] sm:$0xff]
    %v4524 = vld [vmem:[#allocation2 + $0x110] sm:$0xff]
    %v4525 = vld [vmem:[#allocation2 + $0x118] sm:$0xff]
    %v4526 = vld [vmem:[#allocation2 + $0x120] sm:$0xff]
    %v4527 = vld [vmem:[#allocation2 + $0x128] sm:$0xff]
    %v4528 = vld [vmem:[#allocation2 + $0x130] sm:$0xff]
    %v4529 = vld [vmem:[#allocation2 + $0x138] sm:$0xff]
    %v4530 = vld [vmem:[#allocation2 + $0x140] sm:$0xff]
    %v4531 = vld [vmem:[#allocation2 + $0x148] sm:$0xff]
    %v4532 = vld [vmem:[#allocation2 + $0x150] sm:$0xff]
    %v4533 = vld [vmem:[#allocation2 + $0x158] sm:$0xff]
    %v4534 = vld [vmem:[#allocation2 + $0x160] sm:$0xff]
    %v4535 = vld [vmem:[#allocation2 + $0x168] sm:$0xff]
    %v4536 = vld [vmem:[#allocation2 + $0x170] sm:$0xff]
    %v4537 = vld [vmem:[#allocation2 + $0x178] sm:$0xff]
    %v4538 = vld [vmem:[#allocation2 + $0x180] sm:$0xff]
    %v4539 = vld [vmem:[#allocation2 + $0x188] sm:$0xff]
    %v4540 = vld [vmem:[#allocation2 + $0x190] sm:$0xff]
    %v4541 = vld [vmem:[#allocation2 + $0x198] sm:$0xff]
    %v4542 = vld [vmem:[#allocation2 + $0x1a0] sm:$0xff]
    %v4543 = vld [vmem:[#allocation2 + $0x1a8] sm:$0xff]
    %v4544 = vld [vmem:[#allocation2 + $0x1b0] sm:$0xff]
    %v4545 = vld [vmem:[#allocation2 + $0x1b8] sm:$0xff]
    %v4546 = vld [vmem:[#allocation2 + $0x1c0] sm:$0xff]
    %v4547 = vld [vmem:[#allocation2 + $0x1c8] sm:$0xff]
    %v4548 = vld [vmem:[#allocation2 + $0x1d0] sm:$0xff]
    %v4549 = vld [vmem:[#allocation2 + $0x1d8] sm:$0xff]
    %v4550 = vld [vmem:[#allocation2 + $0x1e0] sm:$0xff]
    %v4551 = vld [vmem:[#allocation2 + $0x1e8] sm:$0xff]
    %v4552 = vld [vmem:[#allocation2 + $0x1f0] sm:$0xff]
    %v4553 = vld [vmem:[#allocation2 + $0x1f8] sm:$0xff]
    %v4554 = vld [vmem:[#allocation2 + $0x200] sm:$0xff]
    %v4555 = vld [vmem:[#allocation2 + $0x208] sm:$0xff]
    %v4556 = vld [vmem:[#allocation2 + $0x210] sm:$0xff]
    %v4557 = vld [vmem:[#allocation2 + $0x218] sm:$0xff]
    %v4558 = vld [vmem:[#allocation2 + $0x220] sm:$0xff]
    %v4559 = vld [vmem:[#allocation2 + $0x228] sm:$0xff]
    %v4560 = vld [vmem:[#allocation2 + $0x230] sm:$0xff]
    %v4561 = vld [vmem:[#allocation2 + $0x238] sm:$0xff]
    %v4562 = vld [vmem:[#allocation2 + $0x240] sm:$0xff]
    %v4563 = vld [vmem:[#allocation2 + $0x248] sm:$0xff]
    %v4564 = vld [vmem:[#allocation2 + $0x250] sm:$0xff]
    %v4565 = vld [vmem:[#allocation2 + $0x258] sm:$0xff]
    %v4566 = vld [vmem:[#allocation2 + $0x260] sm:$0xff]
    %v4567 = vld [vmem:[#allocation2 + $0x268] sm:$0xff]
    %v4568 = vld [vmem:[#allocation2 + $0x270] sm:$0xff]
    %v4569 = vld [vmem:[#allocation2 + $0x278] sm:$0xff]
    %v4570 = vld [vmem:[#allocation2 + $0x280] sm:$0xff]
    %v4571 = vld [vmem:[#allocation2 + $0x288] sm:$0xff]
    %v4572 = vld [vmem:[#allocation2 + $0x290] sm:$0xff]
    %v4573 = vld [vmem:[#allocation2 + $0x298] sm:$0xff]
    %v4574 = vld [vmem:[#allocation2 + $0x2a0] sm:$0xff]
    %v4575 = vld [vmem:[#allocation2 + $0x2a8] sm:$0xff]
    %v4576 = vld [vmem:[#allocation2 + $0x2b0] sm:$0xff]
    %v4577 = vld [vmem:[#allocation2 + $0x2b8] sm:$0xff]
    %v4578 = vld [vmem:[#allocation2 + $0x2c0] sm:$0xff]
    %v4579 = vld [vmem:[#allocation2 + $0x2c8] sm:$0xff]
    %v4580 = vld [vmem:[#allocation2 + $0x2d0] sm:$0xff]
    %v4581 = vld [vmem:[#allocation2 + $0x2d8] sm:$0xff]
    %v4582 = vld [vmem:[#allocation2 + $0x2e0] sm:$0xff]
    %v4583 = vld [vmem:[#allocation2 + $0x2e8] sm:$0xff]
    %v4584 = vld [vmem:[#allocation2 + $0x2f0] sm:$0xff]
    %v4585 = vld [vmem:[#allocation2 + $0x2f8] sm:$0xff]
    %v4586 = vld [vmem:[#allocation2 + $0x300] sm:$0xff]
    %v4587 = vld [vmem:[#allocation2 + $0x308] sm:$0xff]
    %v4588 = vld [vmem:[#allocation2 + $0x310] sm:$0xff]
    %v4589 = vld [vmem:[#allocation2 + $0x318] sm:$0xff]
    %v4590 = vld [vmem:[#allocation2 + $0x320] sm:$0xff]
    %v4591 = vld [vmem:[#allocation2 + $0x328] sm:$0xff]
    %v4592 = vld [vmem:[#allocation2 + $0x330] sm:$0xff]
    %v4593 = vld [vmem:[#allocation2 + $0x338] sm:$0xff]
    %v4594 = vld [vmem:[#allocation2 + $0x340] sm:$0xff]
    %v4595 = vld [vmem:[#allocation2 + $0x348] sm:$0xff]
    %v4596 = vld [vmem:[#allocation2 + $0x350] sm:$0xff]
    %v4597 = vld [vmem:[#allocation2 + $0x358] sm:$0xff]
    %v4598 = vld [vmem:[#allocation2 + $0x360] sm:$0xff]
    %v4599 = vld [vmem:[#allocation2 + $0x368] sm:$0xff]
    %v4600 = vld [vmem:[#allocation2 + $0x370] sm:$0xff]
    %v4601 = vld [vmem:[#allocation2 + $0x378] sm:$0xff]
    %v4602 = vld [vmem:[#allocation2 + $0x380] sm:$0xff]
    %v4603 = vld [vmem:[#allocation2 + $0x388] sm:$0xff]
    %v4604 = vld [vmem:[#allocation2 + $0x390] sm:$0xff]
    %v4605 = vld [vmem:[#allocation2 + $0x398] sm:$0xff]
    %v4606 = vld [vmem:[#allocation2 + $0x3a0] sm:$0xff]
    %v4607 = vld [vmem:[#allocation2 + $0x3a8] sm:$0xff]
    %v4608 = vld [vmem:[#allocation2 + $0x3b0] sm:$0xff]
    %v4609 = vld [vmem:[#allocation2 + $0x3b8] sm:$0xff]
    %v4610 = vld [vmem:[#allocation2 + $0x3c0] sm:$0xff]
    %v4611 = vld [vmem:[#allocation2 + $0x3c8] sm:$0xff]
    %v4612 = vld [vmem:[#allocation2 + $0x3d0] sm:$0xff]
    %v4613 = vld [vmem:[#allocation2 + $0x3d8] sm:$0xff]
    %v4614 = vld [vmem:[#allocation2 + $0x3e0] sm:$0xff]
    %v4615 = vld [vmem:[#allocation2 + $0x3e8] sm:$0xff]
    %v4616 = vld [vmem:[#allocation2 + $0x3f0] sm:$0xff]
    %v4617 = vld [vmem:[#allocation2 + $0x3f8] sm:$0xff]
    %s4618 = scalar_lea.vmem %s4, 33
    %v4619 = vld [vmem:[%s4618] ss:$8 sm:$0xf]
    %v4621 = vlaneseq
    %v4622 = vshrl.u32 %v4621, 7
    %v4623 = vsub.s32 0, %v4622
    %v4624 = vrot.slane %v4619, %v4623
    %v4625 = vlaneseq
    %v4626 = vshrl.u32 %v4625, 7
    %v4627 = vsub.s32 1, %v4626
    %v4628 = vrot.slane %v4619, %v4627
    %v4629 = vlaneseq
    %v4630 = vshrl.u32 %v4629, 7
    %v4631 = vsub.s32 2, %v4630
    %v4632 = vrot.slane %v4619, %v4631
    %v4633 = vlaneseq
    %v4634 = vshrl.u32 %v4633, 7
    %v4635 = vsub.s32 3, %v4634
    %v4636 = vrot.slane %v4619, %v4635
    %4641 = vmatprep.subr.bf16.mxu0 %v4491
    %4642 = vmatpush1.bf16.msra.mxu0 %v4490
    %4643 = vmatprep.subr.bf16.mxu0 %v4495
    %4644 = vmatpush1.bf16.msra.mxu0 %v4494
    %4645 = vmatprep.subr.bf16.mxu0 %v4499
    %4646 = vmatpush1.bf16.msra.mxu0 %v4498
    %4647 = vmatprep.subr.bf16.mxu0 %v4503
    %4648 = vmatpush1.bf16.msra.mxu0 %v4502
    %4649 = vmatprep.subr.bf16.mxu0 %v4507
    %4650 = vmatpush1.bf16.msra.mxu0 %v4506
    %4651 = vmatprep.subr.bf16.mxu0 %v4511
    %4652 = vmatpush1.bf16.msra.mxu0 %v4510
    %4653 = vmatprep.subr.bf16.mxu0 %v4515
    %4654 = vmatpush1.bf16.msra.mxu0 %v4514
    %4655 = vmatprep.subr.bf16.mxu0 %v4519
    %4656 = vmatpush1.bf16.msra.mxu0 %v4518
    %4657 = vmatprep.subr.bf16.mxu0 %v4523
    %4658 = vmatpush1.bf16.msra.mxu0 %v4522
    %4659 = vmatprep.subr.bf16.mxu0 %v4527
    %4660 = vmatpush1.bf16.msra.mxu0 %v4526
    %4661 = vmatprep.subr.bf16.mxu0 %v4531
    %4662 = vmatpush1.bf16.msra.mxu0 %v4530
    %4663 = vmatprep.subr.bf16.mxu0 %v4535
    %4664 = vmatpush1.bf16.msra.mxu0 %v4534
    %4665 = vmatprep.subr.bf16.mxu0 %v4539
    %4666 = vmatpush1.bf16.msra.mxu0 %v4538
    %4667 = vmatprep.subr.bf16.mxu0 %v4543
    %4668 = vmatpush1.bf16.msra.mxu0 %v4542
    %4669 = vmatprep.subr.bf16.mxu0 %v4547
    %4670 = vmatpush1.bf16.msra.mxu0 %v4546
    %4671 = vmatprep.subr.bf16.mxu0 %v4551
    %4672 = vmatpush1.bf16.msra.mxu0 %v4550
    %4673 = vmatprep.mubr.bf16.mxu0 %v4487
    %4674 = vmatmul.mubr.bf16.gmra.mrb[0].mxu0 %v4486
    %v4675 = vpop.f32.mrb[0].mxu0
    %v4676 = vadd.f32 %v4624, %v4675
    %v4677 = vpop.f32.mrb[0].mxu0
    %v4678 = vadd.f32 %v4628, %v4677
    %v4679 = vpop.f32.mrb[0].mxu0
    %v4680 = vadd.f32 %v4624, %v4679
    %v4681 = vpop.f32.mrb[0].mxu0
    %v4682 = vadd.f32 %v4628, %v4681
    %4683 = vdwg.mxu0
    %4684 = vmatprep.subr.bf16.mxu0 %v4555
    %4685 = vmatpush1.bf16.msra.mxu0 %v4554
    %4686 = vmatprep.subr.bf16.mxu0 %v4559
    %4687 = vmatpush1.bf16.msra.mxu0 %v4558
    %4688 = vmatprep.subr.bf16.mxu0 %v4563
    %4689 = vmatpush1.bf16.msra.mxu0 %v4562
    %4690 = vmatprep.subr.bf16.mxu0 %v4567
    %4691 = vmatpush1.bf16.msra.mxu0 %v4566
    %4692 = vmatprep.subr.bf16.mxu0 %v4571
    %4693 = vmatpush1.bf16.msra.mxu0 %v4570
    %4694 = vmatprep.subr.bf16.mxu0 %v4575
    %4695 = vmatpush1.bf16.msra.mxu0 %v4574
    %4696 = vmatprep.subr.bf16.mxu0 %v4579
    %4697 = vmatpush1.bf16.msra.mxu0 %v4578
    %4698 = vmatprep.subr.bf16.mxu0 %v4583
    %4699 = vmatpush1.bf16.msra.mxu0 %v4582
    %4700 = vmatprep.subr.bf16.mxu0 %v4587
    %4701 = vmatpush1.bf16.msra.mxu0 %v4586
    %4702 = vmatprep.subr.bf16.mxu0 %v4591
    %4703 = vmatpush1.bf16.msra.mxu0 %v4590
    %4704 = vmatprep.subr.bf16.mxu0 %v4595
    %4705 = vmatpush1.bf16.msra.mxu0 %v4594
    %4706 = vmatprep.subr.bf16.mxu0 %v4599
    %4707 = vmatpush1.bf16.msra.mxu0 %v4598
    %4708 = vmatprep.subr.bf16.mxu0 %v4603
    %4709 = vmatpush1.bf16.msra.mxu0 %v4602
    %4710 = vmatprep.subr.bf16.mxu0 %v4607
    %4711 = vmatpush1.bf16.msra.mxu0 %v4606
    %4712 = vmatprep.subr.bf16.mxu0 %v4611
    %4713 = vmatpush1.bf16.msra.mxu0 %v4610
    %4714 = vmatprep.subr.bf16.mxu0 %v4615
    %4715 = vmatpush1.bf16.msra.mxu0 %v4614
    %4716 = vmatprep.mubr.bf16.mxu0 %v4489
    %4717 = vmatmul.mubr.bf16.gmra.mrb[0].mxu0 %v4488
    %v4718 = vpop.f32.mrb[0].mxu0
    %v4719 = vadd.f32 %v4676, %v4718
    %v4720 = vpop.f32.mrb[0].mxu0
    %v4721 = vadd.f32 %v4678, %v4720
    %v4722 = vpop.f32.mrb[0].mxu0
    %v4723 = vadd.f32 %v4680, %v4722
    %v4724 = vpop.f32.mrb[0].mxu0
    %v4725 = vadd.f32 %v4682, %v4724
    %4726 = vdwg.mxu0
    %4727 = vmatprep.subr.bf16.mxu0 %v4493
    %4728 = vmatpush1.bf16.msra.mxu0 %v4492
    %4729 = vmatprep.subr.bf16.mxu0 %v4497
    %4730 = vmatpush1.bf16.msra.mxu0 %v4496
    %4731 = vmatprep.subr.bf16.mxu0 %v4501
    %4732 = vmatpush1.bf16.msra.mxu0 %v4500
    %4733 = vmatprep.subr.bf16.mxu0 %v4505
    %4734 = vmatpush1.bf16.msra.mxu0 %v4504
    %4735 = vmatprep.subr.bf16.mxu0 %v4509
    %4736 = vmatpush1.bf16.msra.mxu0 %v4508
    %4737 = vmatprep.subr.bf16.mxu0 %v4513
    %4738 = vmatpush1.bf16.msra.mxu0 %v4512
    %4739 = vmatprep.subr.bf16.mxu0 %v4517
    %4740 = vmatpush1.bf16.msra.mxu0 %v4516
    %4741 = vmatprep.subr.bf16.mxu0 %v4521
    %4742 = vmatpush1.bf16.msra.mxu0 %v4520
    %4743 = vmatprep.subr.bf16.mxu0 %v4525
    %4744 = vmatpush1.bf16.msra.mxu0 %v4524
    %4745 = vmatprep.subr.bf16.mxu0 %v4529
    %4746 = vmatpush1.bf16.msra.mxu0 %v4528
    %4747 = vmatprep.subr.bf16.mxu0 %v4533
    %4748 = vmatpush1.bf16.msra.mxu0 %v4532
    %4749 = vmatprep.subr.bf16.mxu0 %v4537
    %4750 = vmatpush1.bf16.msra.mxu0 %v4536
    %4751 = vmatprep.subr.bf16.mxu0 %v4541
    %4752 = vmatpush1.bf16.msra.mxu0 %v4540
    %4753 = vmatprep.subr.bf16.mxu0 %v4545
    %4754 = vmatpush1.bf16.msra.mxu0 %v4544
    %4755 = vmatprep.subr.bf16.mxu0 %v4549
    %4756 = vmatpush1.bf16.msra.mxu0 %v4548
    %4757 = vmatprep.subr.bf16.mxu0 %v4553
    %4758 = vmatpush1.bf16.msra.mxu0 %v4552
    %4759 = vmatprep.mubr.bf16.mxu0 %v4487
    %4760 = vmatmul.mubr.bf16.gmra.mrb[0].mxu0 %v4486
    %v4761 = vpop.f32.mrb[0].mxu0
    %v4762 = vadd.f32 %v4632, %v4761
    %v4763 = vpop.f32.mrb[0].mxu0
    %v4764 = vadd.f32 %v4636, %v4763
    %v4765 = vpop.f32.mrb[0].mxu0
    %v4766 = vadd.f32 %v4632, %v4765
    %v4767 = vpop.f32.mrb[0].mxu0
    %v4768 = vadd.f32 %v4636, %v4767
    %4769 = vdwg.mxu0
    %4770 = vmatprep.subr.bf16.mxu0 %v4557
    %4771 = vmatpush1.bf16.msra.mxu0 %v4556
    %4772 = vmatprep.subr.bf16.mxu0 %v4561
    %4773 = vmatpush1.bf16.msra.mxu0 %v4560
    %4774 = vmatprep.subr.bf16.mxu0 %v4565
    %4775 = vmatpush1.bf16.msra.mxu0 %v4564
    %4776 = vmatprep.subr.bf16.mxu0 %v4569
    %4777 = vmatpush1.bf16.msra.mxu0 %v4568
    %4778 = vmatprep.subr.bf16.mxu0 %v4573
    %4779 = vmatpush1.bf16.msra.mxu0 %v4572
    %4780 = vmatprep.subr.bf16.mxu0 %v4577
    %4781 = vmatpush1.bf16.msra.mxu0 %v4576
    %4782 = vmatprep.subr.bf16.mxu0 %v4581
    %4783 = vmatpush1.bf16.msra.mxu0 %v4580
    %4784 = vmatprep.subr.bf16.mxu0 %v4585
    %4785 = vmatpush1.bf16.msra.mxu0 %v4584
    %4786 = vmatprep.subr.bf16.mxu0 %v4589
    %4787 = vmatpush1.bf16.msra.mxu0 %v4588
    %4788 = vmatprep.subr.bf16.mxu0 %v4593
    %4789 = vmatpush1.bf16.msra.mxu0 %v4592
    %4790 = vmatprep.subr.bf16.mxu0 %v4597
    %4791 = vmatpush1.bf16.msra.mxu0 %v4596
    %4792 = vmatprep.subr.bf16.mxu0 %v4601
    %4793 = vmatpush1.bf16.msra.mxu0 %v4600
    %4794 = vmatprep.subr.bf16.mxu0 %v4605
    %4795 = vmatpush1.bf16.msra.mxu0 %v4604
    %4796 = vmatprep.subr.bf16.mxu0 %v4609
    %4797 = vmatpush1.bf16.msra.mxu0 %v4608
    %4798 = vmatprep.subr.bf16.mxu0 %v4613
    %4799 = vmatpush1.bf16.msra.mxu0 %v4612
    %4800 = vmatprep.subr.bf16.mxu0 %v4617
    %4801 = vmatpush1.bf16.msra.mxu0 %v4616
    %4802 = vmatprep.mubr.bf16.mxu0 %v4489
    %4803 = vmatmul.mubr.bf16.gmra.mrb[0].mxu0 %v4488
    %v4804 = vpop.f32.mrb[0].mxu0
    %v4805 = vadd.f32 %v4762, %v4804
    %v4806 = vpop.f32.mrb[0].mxu0
    %v4807 = vadd.f32 %v4764, %v4806
    %v4808 = vpop.f32.mrb[0].mxu0
    %v4809 = vadd.f32 %v4766, %v4808
    %v4810 = vpop.f32.mrb[0].mxu0
    %v4811 = vadd.f32 %v4768, %v4810
    %4812 = vdwg.mxu0
    %v4813 = vmax.f32 %v4719, 0.0
    %v4814 = vmax.f32 %v4721, 0.0
    %v4815 = vmax.f32 %v4805, 0.0
    %v4816 = vmax.f32 %v4807, 0.0
    %v4817 = vmax.f32 %v4723, 0.0
    %v4818 = vmax.f32 %v4725, 0.0
    %v4819 = vmax.f32 %v4809, 0.0
    %v4820 = vmax.f32 %v4811, 0.0
    %s4821 = sshll.u32 %s4483, 4
    %4822 = dma.done %s1141, %s4821
    %v4823 = vpack.c.bf16 %v4817, %v4813
    %v4824 = vpack.c.bf16 %v4818, %v4814
    %v4825 = vpack.c.bf16 %v4819, %v4815
    %v4826 = vpack.c.bf16 %v4820, %v4816
    %v4827 = vld [vmem:[#allocation3] sm:$0xff]
    %v4828 = vld [vmem:[#allocation3 + $0x8] sm:$0xff]
    %v4829 = vld [vmem:[#allocation3 + $0x10] sm:$0xff]
    %v4830 = vld [vmem:[#allocation3 + $0x18] sm:$0xff]
    %v4831 = vld [vmem:[#allocation3 + $0x20] sm:$0xff]
    %v4832 = vld [vmem:[#allocation3 + $0x28] sm:$0xff]
    %v4833 = vld [vmem:[#allocation3 + $0x30] sm:$0xff]
    %v4834 = vld [vmem:[#allocation3 + $0x38] sm:$0xff]
    %v4835 = vld [vmem:[#allocation3 + $0x40] sm:$0xff]
    %v4836 = vld [vmem:[#allocation3 + $0x48] sm:$0xff]
    %v4837 = vld [vmem:[#allocation3 + $0x50] sm:$0xff]
    %v4838 = vld [vmem:[#allocation3 + $0x58] sm:$0xff]
    %v4839 = vld [vmem:[#allocation3 + $0x60] sm:$0xff]
    %v4840 = vld [vmem:[#allocation3 + $0x68] sm:$0xff]
    %v4841 = vld [vmem:[#allocation3 + $0x70] sm:$0xff]
    %v4842 = vld [vmem:[#allocation3 + $0x78] sm:$0xff]
    %v4843 = vld [vmem:[#allocation3 + $0x80] sm:$0xff]
    %v4844 = vld [vmem:[#allocation3 + $0x88] sm:$0xff]
    %v4845 = vld [vmem:[#allocation3 + $0x90] sm:$0xff]
    %v4846 = vld [vmem:[#allocation3 + $0x98] sm:$0xff]
    %v4847 = vld [vmem:[#allocation3 + $0xa0] sm:$0xff]
    %v4848 = vld [vmem:[#allocation3 + $0xa8] sm:$0xff]
    %v4849 = vld [vmem:[#allocation3 + $0xb0] sm:$0xff]
    %v4850 = vld [vmem:[#allocation3 + $0xb8] sm:$0xff]
    %v4851 = vld [vmem:[#allocation3 + $0xc0] sm:$0xff]
    %v4852 = vld [vmem:[#allocation3 + $0xc8] sm:$0xff]
    %v4853 = vld [vmem:[#allocation3 + $0xd0] sm:$0xff]
    %v4854 = vld [vmem:[#allocation3 + $0xd8] sm:$0xff]
    %v4855 = vld [vmem:[#allocation3 + $0xe0] sm:$0xff]
    %v4856 = vld [vmem:[#allocation3 + $0xe8] sm:$0xff]
    %v4857 = vld [vmem:[#allocation3 + $0xf0] sm:$0xff]
    %v4858 = vld [vmem:[#allocation3 + $0xf8] sm:$0xff]
    %v4859 = vld [vmem:[#allocation3 + $0x100] sm:$0xff]
    %v4860 = vld [vmem:[#allocation3 + $0x108] sm:$0xff]
    %v4861 = vld [vmem:[#allocation3 + $0x110] sm:$0xff]
    %v4862 = vld [vmem:[#allocation3 + $0x118] sm:$0xff]
    %v4863 = vld [vmem:[#allocation3 + $0x120] sm:$0xff]
    %v4864 = vld [vmem:[#allocation3 + $0x128] sm:$0xff]
    %v4865 = vld [vmem:[#allocation3 + $0x130] sm:$0xff]
    %v4866 = vld [vmem:[#allocation3 + $0x138] sm:$0xff]
    %v4867 = vld [vmem:[#allocation3 + $0x140] sm:$0xff]
    %v4868 = vld [vmem:[#allocation3 + $0x148] sm:$0xff]
    %v4869 = vld [vmem:[#allocation3 + $0x150] sm:$0xff]
    %v4870 = vld [vmem:[#allocation3 + $0x158] sm:$0xff]
    %v4871 = vld [vmem:[#allocation3 + $0x160] sm:$0xff]
    %v4872 = vld [vmem:[#allocation3 + $0x168] sm:$0xff]
    %v4873 = vld [vmem:[#allocation3 + $0x170] sm:$0xff]
    %v4874 = vld [vmem:[#allocation3 + $0x178] sm:$0xff]
    %v4875 = vld [vmem:[#allocation3 + $0x180] sm:$0xff]
    %v4876 = vld [vmem:[#allocation3 + $0x188] sm:$0xff]
    %v4877 = vld [vmem:[#allocation3 + $0x190] sm:$0xff]
    %v4878 = vld [vmem:[#allocation3 + $0x198] sm:$0xff]
    %v4879 = vld [vmem:[#allocation3 + $0x1a0] sm:$0xff]
    %v4880 = vld [vmem:[#allocation3 + $0x1a8] sm:$0xff]
    %v4881 = vld [vmem:[#allocation3 + $0x1b0] sm:$0xff]
    %v4882 = vld [vmem:[#allocation3 + $0x1b8] sm:$0xff]
    %v4883 = vld [vmem:[#allocation3 + $0x1c0] sm:$0xff]
    %v4884 = vld [vmem:[#allocation3 + $0x1c8] sm:$0xff]
    %v4885 = vld [vmem:[#allocation3 + $0x1d0] sm:$0xff]
    %v4886 = vld [vmem:[#allocation3 + $0x1d8] sm:$0xff]
    %v4887 = vld [vmem:[#allocation3 + $0x1e0] sm:$0xff]
    %v4888 = vld [vmem:[#allocation3 + $0x1e8] sm:$0xff]
    %v4889 = vld [vmem:[#allocation3 + $0x1f0] sm:$0xff]
    %v4890 = vld [vmem:[#allocation3 + $0x1f8] sm:$0xff]
    %v4891 = vld [vmem:[#allocation3 + $0x200] sm:$0xff]
    %v4892 = vld [vmem:[#allocation3 + $0x208] sm:$0xff]
    %v4893 = vld [vmem:[#allocation3 + $0x210] sm:$0xff]
    %v4894 = vld [vmem:[#allocation3 + $0x218] sm:$0xff]
    %v4895 = vld [vmem:[#allocation3 + $0x220] sm:$0xff]
    %v4896 = vld [vmem:[#allocation3 + $0x228] sm:$0xff]
    %v4897 = vld [vmem:[#allocation3 + $0x230] sm:$0xff]
    %v4898 = vld [vmem:[#allocation3 + $0x238] sm:$0xff]
    %v4899 = vld [vmem:[#allocation3 + $0x240] sm:$0xff]
    %v4900 = vld [vmem:[#allocation3 + $0x248] sm:$0xff]
    %v4901 = vld [vmem:[#allocation3 + $0x250] sm:$0xff]
    %v4902 = vld [vmem:[#allocation3 + $0x258] sm:$0xff]
    %v4903 = vld [vmem:[#allocation3 + $0x260] sm:$0xff]
    %v4904 = vld [vmem:[#allocation3 + $0x268] sm:$0xff]
    %v4905 = vld [vmem:[#allocation3 + $0x270] sm:$0xff]
    %v4906 = vld [vmem:[#allocation3 + $0x278] sm:$0xff]
    %v4907 = vld [vmem:[#allocation3 + $0x280] sm:$0xff]
    %v4908 = vld [vmem:[#allocation3 + $0x288] sm:$0xff]
    %v4909 = vld [vmem:[#allocation3 + $0x290] sm:$0xff]
    %v4910 = vld [vmem:[#allocation3 + $0x298] sm:$0xff]
    %v4911 = vld [vmem:[#allocation3 + $0x2a0] sm:$0xff]
    %v4912 = vld [vmem:[#allocation3 + $0x2a8] sm:$0xff]
    %v4913 = vld [vmem:[#allocation3 + $0x2b0] sm:$0xff]
    %v4914 = vld [vmem:[#allocation3 + $0x2b8] sm:$0xff]
    %v4915 = vld [vmem:[#allocation3 + $0x2c0] sm:$0xff]
    %v4916 = vld [vmem:[#allocation3 + $0x2c8] sm:$0xff]
    %v4917 = vld [vmem:[#allocation3 + $0x2d0] sm:$0xff]
    %v4918 = vld [vmem:[#allocation3 + $0x2d8] sm:$0xff]
    %v4919 = vld [vmem:[#allocation3 + $0x2e0] sm:$0xff]
    %v4920 = vld [vmem:[#allocation3 + $0x2e8] sm:$0xff]
    %v4921 = vld [vmem:[#allocation3 + $0x2f0] sm:$0xff]
    %v4922 = vld [vmem:[#allocation3 + $0x2f8] sm:$0xff]
    %v4923 = vld [vmem:[#allocation3 + $0x300] sm:$0xff]
    %v4924 = vld [vmem:[#allocation3 + $0x308] sm:$0xff]
    %v4925 = vld [vmem:[#allocation3 + $0x310] sm:$0xff]
    %v4926 = vld [vmem:[#allocation3 + $0x318] sm:$0xff]
    %v4927 = vld [vmem:[#allocation3 + $0x320] sm:$0xff]
    %v4928 = vld [vmem:[#allocation3 + $0x328] sm:$0xff]
    %v4929 = vld [vmem:[#allocation3 + $0x330] sm:$0xff]
    %v4930 = vld [vmem:[#allocation3 + $0x338] sm:$0xff]
    %v4931 = vld [vmem:[#allocation3 + $0x340] sm:$0xff]
    %v4932 = vld [vmem:[#allocation3 + $0x348] sm:$0xff]
    %v4933 = vld [vmem:[#allocation3 + $0x350] sm:$0xff]
    %v4934 = vld [vmem:[#allocation3 + $0x358] sm:$0xff]
    %v4935 = vld [vmem:[#allocation3 + $0x360] sm:$0xff]
    %v4936 = vld [vmem:[#allocation3 + $0x368] sm:$0xff]
    %v4937 = vld [vmem:[#allocation3 + $0x370] sm:$0xff]
    %v4938 = vld [vmem:[#allocation3 + $0x378] sm:$0xff]
    %v4939 = vld [vmem:[#allocation3 + $0x380] sm:$0xff]
    %v4940 = vld [vmem:[#allocation3 + $0x388] sm:$0xff]
    %v4941 = vld [vmem:[#allocation3 + $0x390] sm:$0xff]
    %v4942 = vld [vmem:[#allocation3 + $0x398] sm:$0xff]
    %v4943 = vld [vmem:[#allocation3 + $0x3a0] sm:$0xff]
    %v4944 = vld [vmem:[#allocation3 + $0x3a8] sm:$0xff]
    %v4945 = vld [vmem:[#allocation3 + $0x3b0] sm:$0xff]
    %v4946 = vld [vmem:[#allocation3 + $0x3b8] sm:$0xff]
    %v4947 = vld [vmem:[#allocation3 + $0x3c0] sm:$0xff]
    %v4948 = vld [vmem:[#allocation3 + $0x3c8] sm:$0xff]
    %v4949 = vld [vmem:[#allocation3 + $0x3d0] sm:$0xff]
    %v4950 = vld [vmem:[#allocation3 + $0x3d8] sm:$0xff]
    %v4951 = vld [vmem:[#allocation3 + $0x3e0] sm:$0xff]
    %v4952 = vld [vmem:[#allocation3 + $0x3e8] sm:$0xff]
    %v4953 = vld [vmem:[#allocation3 + $0x3f0] sm:$0xff]
    %v4954 = vld [vmem:[#allocation3 + $0x3f8] sm:$0xff]
    %s4955 = scalar_lea.vmem %s4, 34
    %v4956 = vld [vmem:[%s4955] ss:$8 sm:$0xf]
    %v4958 = vlaneseq
    %v4959 = vshrl.u32 %v4958, 7
    %v4960 = vsub.s32 0, %v4959
    %v4961 = vrot.slane %v4956, %v4960
    %v4962 = vlaneseq
    %v4963 = vshrl.u32 %v4962, 7
    %v4964 = vsub.s32 1, %v4963
    %v4965 = vrot.slane %v4956, %v4964
    %v4966 = vlaneseq
    %v4967 = vshrl.u32 %v4966, 7
    %v4968 = vsub.s32 2, %v4967
    %v4969 = vrot.slane %v4956, %v4968
    %v4970 = vlaneseq
    %v4971 = vshrl.u32 %v4970, 7
    %v4972 = vsub.s32 3, %v4971
    %v4973 = vrot.slane %v4956, %v4972
    %4978 = vmatprep.subr.bf16.mxu0 %v4828
    %4979 = vmatpush1.bf16.msra.mxu0 %v4827
    %4980 = vmatprep.subr.bf16.mxu0 %v4832
    %4981 = vmatpush1.bf16.msra.mxu0 %v4831
    %4982 = vmatprep.subr.bf16.mxu0 %v4836
    %4983 = vmatpush1.bf16.msra.mxu0 %v4835
    %4984 = vmatprep.subr.bf16.mxu0 %v4840
    %4985 = vmatpush1.bf16.msra.mxu0 %v4839
    %4986 = vmatprep.subr.bf16.mxu0 %v4844
    %4987 = vmatpush1.bf16.msra.mxu0 %v4843
    %4988 = vmatprep.subr.bf16.mxu0 %v4848
    %4989 = vmatpush1.bf16.msra.mxu0 %v4847
    %4990 = vmatprep.subr.bf16.mxu0 %v4852
    %4991 = vmatpush1.bf16.msra.mxu0 %v4851
    %4992 = vmatprep.subr.bf16.mxu0 %v4856
    %4993 = vmatpush1.bf16.msra.mxu0 %v4855
    %4994 = vmatprep.subr.bf16.mxu0 %v4860
    %4995 = vmatpush1.bf16.msra.mxu0 %v4859
    %4996 = vmatprep.subr.bf16.mxu0 %v4864
    %4997 = vmatpush1.bf16.msra.mxu0 %v4863
    %4998 = vmatprep.subr.bf16.mxu0 %v4868
    %4999 = vmatpush1.bf16.msra.mxu0 %v4867
    %5000 = vmatprep.subr.bf16.mxu0 %v4872
    %5001 = vmatpush1.bf16.msra.mxu0 %v4871
    %5002 = vmatprep.subr.bf16.mxu0 %v4876
    %5003 = vmatpush1.bf16.msra.mxu0 %v4875
    %5004 = vmatprep.subr.bf16.mxu0 %v4880
    %5005 = vmatpush1.bf16.msra.mxu0 %v4879
    %5006 = vmatprep.subr.bf16.mxu0 %v4884
    %5007 = vmatpush1.bf16.msra.mxu0 %v4883
    %5008 = vmatprep.subr.bf16.mxu0 %v4888
    %5009 = vmatpush1.bf16.msra.mxu0 %v4887
    %5010 = vmatprep.mubr.bf16.mxu0 %v4824
    %5011 = vmatmul.mubr.bf16.gmra.mrb[0].mxu0 %v4823
    %v5012 = vpop.f32.mrb[0].mxu0
    %v5013 = vadd.f32 %v4961, %v5012
    %v5014 = vpop.f32.mrb[0].mxu0
    %v5015 = vadd.f32 %v4965, %v5014
    %v5016 = vpop.f32.mrb[0].mxu0
    %v5017 = vadd.f32 %v4961, %v5016
    %v5018 = vpop.f32.mrb[0].mxu0
    %v5019 = vadd.f32 %v4965, %v5018
    %5020 = vdwg.mxu0
    %5021 = vmatprep.subr.bf16.mxu0 %v4892
    %5022 = vmatpush1.bf16.msra.mxu0 %v4891
    %5023 = vmatprep.subr.bf16.mxu0 %v4896
    %5024 = vmatpush1.bf16.msra.mxu0 %v4895
    %5025 = vmatprep.subr.bf16.mxu0 %v4900
    %5026 = vmatpush1.bf16.msra.mxu0 %v4899
    %5027 = vmatprep.subr.bf16.mxu0 %v4904
    %5028 = vmatpush1.bf16.msra.mxu0 %v4903
    %5029 = vmatprep.subr.bf16.mxu0 %v4908
    %5030 = vmatpush1.bf16.msra.mxu0 %v4907
    %5031 = vmatprep.subr.bf16.mxu0 %v4912
    %5032 = vmatpush1.bf16.msra.mxu0 %v4911
    %5033 = vmatprep.subr.bf16.mxu0 %v4916
    %5034 = vmatpush1.bf16.msra.mxu0 %v4915
    %5035 = vmatprep.subr.bf16.mxu0 %v4920
    %5036 = vmatpush1.bf16.msra.mxu0 %v4919
    %5037 = vmatprep.subr.bf16.mxu0 %v4924
    %5038 = vmatpush1.bf16.msra.mxu0 %v4923
    %5039 = vmatprep.subr.bf16.mxu0 %v4928
    %5040 = vmatpush1.bf16.msra.mxu0 %v4927
    %5041 = vmatprep.subr.bf16.mxu0 %v4932
    %5042 = vmatpush1.bf16.msra.mxu0 %v4931
    %5043 = vmatprep.subr.bf16.mxu0 %v4936
    %5044 = vmatpush1.bf16.msra.mxu0 %v4935
    %5045 = vmatprep.subr.bf16.mxu0 %v4940
    %5046 = vmatpush1.bf16.msra.mxu0 %v4939
    %5047 = vmatprep.subr.bf16.mxu0 %v4944
    %5048 = vmatpush1.bf16.msra.mxu0 %v4943
    %5049 = vmatprep.subr.bf16.mxu0 %v4948
    %5050 = vmatpush1.bf16.msra.mxu0 %v4947
    %5051 = vmatprep.subr.bf16.mxu0 %v4952
    %5052 = vmatpush1.bf16.msra.mxu0 %v4951
    %5053 = vmatprep.mubr.bf16.mxu0 %v4826
    %5054 = vmatmul.mubr.bf16.gmra.mrb[0].mxu0 %v4825
    %v5055 = vpop.f32.mrb[0].mxu0
    %v5056 = vadd.f32 %v5013, %v5055
    %v5057 = vpop.f32.mrb[0].mxu0
    %v5058 = vadd.f32 %v5015, %v5057
    %v5059 = vpop.f32.mrb[0].mxu0
    %v5060 = vadd.f32 %v5017, %v5059
    %v5061 = vpop.f32.mrb[0].mxu0
    %v5062 = vadd.f32 %v5019, %v5061
    %5063 = vdwg.mxu0
    %5064 = vmatprep.subr.bf16.mxu0 %v4830
    %5065 = vmatpush1.bf16.msra.mxu0 %v4829
    %5066 = vmatprep.subr.bf16.mxu0 %v4834
    %5067 = vmatpush1.bf16.msra.mxu0 %v4833
    %5068 = vmatprep.subr.bf16.mxu0 %v4838
    %5069 = vmatpush1.bf16.msra.mxu0 %v4837
    %5070 = vmatprep.subr.bf16.mxu0 %v4842
    %5071 = vmatpush1.bf16.msra.mxu0 %v4841
    %5072 = vmatprep.subr.bf16.mxu0 %v4846
    %5073 = vmatpush1.bf16.msra.mxu0 %v4845
    %5074 = vmatprep.subr.bf16.mxu0 %v4850
    %5075 = vmatpush1.bf16.msra.mxu0 %v4849
    %5076 = vmatprep.subr.bf16.mxu0 %v4854
    %5077 = vmatpush1.bf16.msra.mxu0 %v4853
    %5078 = vmatprep.subr.bf16.mxu0 %v4858
    %5079 = vmatpush1.bf16.msra.mxu0 %v4857
    %5080 = vmatprep.subr.bf16.mxu0 %v4862
    %5081 = vmatpush1.bf16.msra.mxu0 %v4861
    %5082 = vmatprep.subr.bf16.mxu0 %v4866
    %5083 = vmatpush1.bf16.msra.mxu0 %v4865
    %5084 = vmatprep.subr.bf16.mxu0 %v4870
    %5085 = vmatpush1.bf16.msra.mxu0 %v4869
    %5086 = vmatprep.subr.bf16.mxu0 %v4874
    %5087 = vmatpush1.bf16.msra.mxu0 %v4873
    %5088 = vmatprep.subr.bf16.mxu0 %v4878
    %5089 = vmatpush1.bf16.msra.mxu0 %v4877
    %5090 = vmatprep.subr.bf16.mxu0 %v4882
    %5091 = vmatpush1.bf16.msra.mxu0 %v4881
    %5092 = vmatprep.subr.bf16.mxu0 %v4886
    %5093 = vmatpush1.bf16.msra.mxu0 %v4885
    %5094 = vmatprep.subr.bf16.mxu0 %v4890
    %5095 = vmatpush1.bf16.msra.mxu0 %v4889
    %5096 = vmatprep.mubr.bf16.mxu0 %v4824
    %5097 = vmatmul.mubr.bf16.gmra.mrb[0].mxu0 %v4823
    %v5098 = vpop.f32.mrb[0].mxu0
    %v5099 = vadd.f32 %v4969, %v5098
    %v5100 = vpop.f32.mrb[0].mxu0
    %v5101 = vadd.f32 %v4973, %v5100
    %v5102 = vpop.f32.mrb[0].mxu0
    %v5103 = vadd.f32 %v4969, %v5102
    %v5104 = vpop.f32.mrb[0].mxu0
    %v5105 = vadd.f32 %v4973, %v5104
    %5106 = vdwg.mxu0
    %5107 = vmatprep.subr.bf16.mxu0 %v4894
    %5108 = vmatpush1.bf16.msra.mxu0 %v4893
    %5109 = vmatprep.subr.bf16.mxu0 %v4898
    %5110 = vmatpush1.bf16.msra.mxu0 %v4897
    %5111 = vmatprep.subr.bf16.mxu0 %v4902
    %5112 = vmatpush1.bf16.msra.mxu0 %v4901
    %5113 = vmatprep.subr.bf16.mxu0 %v4906
    %5114 = vmatpush1.bf16.msra.mxu0 %v4905
    %5115 = vmatprep.subr.bf16.mxu0 %v4910
    %5116 = vmatpush1.bf16.msra.mxu0 %v4909
    %5117 = vmatprep.subr.bf16.mxu0 %v4914
    %5118 = vmatpush1.bf16.msra.mxu0 %v4913
    %5119 = vmatprep.subr.bf16.mxu0 %v4918
    %5120 = vmatpush1.bf16.msra.mxu0 %v4917
    %5121 = vmatprep.subr.bf16.mxu0 %v4922
    %5122 = vmatpush1.bf16.msra.mxu0 %v4921
    %5123 = vmatprep.subr.bf16.mxu0 %v4926
    %5124 = vmatpush1.bf16.msra.mxu0 %v4925
    %5125 = vmatprep.subr.bf16.mxu0 %v4930
    %5126 = vmatpush1.bf16.msra.mxu0 %v4929
    %5127 = vmatprep.subr.bf16.mxu0 %v4934
    %5128 = vmatpush1.bf16.msra.mxu0 %v4933
    %5129 = vmatprep.subr.bf16.mxu0 %v4938
    %5130 = vmatpush1.bf16.msra.mxu0 %v4937
    %5131 = vmatprep.subr.bf16.mxu0 %v4942
    %5132 = vmatpush1.bf16.msra.mxu0 %v4941
    %5133 = vmatprep.subr.bf16.mxu0 %v4946
    %5134 = vmatpush1.bf16.msra.mxu0 %v4945
    %5135 = vmatprep.subr.bf16.mxu0 %v4950
    %5136 = vmatpush1.bf16.msra.mxu0 %v4949
    %5137 = vmatprep.subr.bf16.mxu0 %v4954
    %5138 = vmatpush1.bf16.msra.mxu0 %v4953
    %5139 = vmatprep.mubr.bf16.mxu0 %v4826
    %5140 = vmatmul.mubr.bf16.gmra.mrb[0].mxu0 %v4825
    %v5141 = vpop.f32.mrb[0].mxu0
    %v5142 = vadd.f32 %v5099, %v5141
    %v5143 = vpop.f32.mrb[0].mxu0
    %v5144 = vadd.f32 %v5101, %v5143
    %v5145 = vpop.f32.mrb[0].mxu0
    %v5146 = vadd.f32 %v5103, %v5145
    %v5147 = vpop.f32.mrb[0].mxu0
    %v5148 = vadd.f32 %v5105, %v5147
    %5149 = vdwg.mxu0
    %v5150 = vmax.f32 %v5056, 0.0
    %v5151 = vmax.f32 %v5058, 0.0
    %v5152 = vmax.f32 %v5142, 0.0
    %v5153 = vmax.f32 %v5144, 0.0
    %v5154 = vmax.f32 %v5060, 0.0
    %v5155 = vmax.f32 %v5062, 0.0
    %v5156 = vmax.f32 %v5146, 0.0
    %v5157 = vmax.f32 %v5148, 0.0
    %v5158 = vpack.c.bf16 %v5154, %v5150
    %v5159 = vpack.c.bf16 %v5155, %v5151
    %v5160 = vpack.c.bf16 %v5156, %v5152
    %v5161 = vpack.c.bf16 %v5157, %v5153
    %v5162 = vld [vmem:[%s18] sm:$0xf]
    %v5163 = vld [vmem:[%s18 + $0x4] sm:$0xf]
    %v5164 = vld [vmem:[%s18 + $0x8] sm:$0xf]
    %v5165 = vld [vmem:[%s18 + $0xc] sm:$0xf]
    %v5166 = vld [vmem:[%s18 + $0x10] sm:$0xf]
    %v5167 = vld [vmem:[%s18 + $0x14] sm:$0xf]
    %v5168 = vld [vmem:[%s18 + $0x18] sm:$0xf]
    %v5169 = vld [vmem:[%s18 + $0x1c] sm:$0xf]
    %v5170 = vld [vmem:[%s18 + $0x20] sm:$0xf]
    %v5171 = vld [vmem:[%s18 + $0x24] sm:$0xf]
    %v5172 = vld [vmem:[%s18 + $0x28] sm:$0xf]
    %v5173 = vld [vmem:[%s18 + $0x2c] sm:$0xf]
    %v5174 = vld [vmem:[%s18 + $0x30] sm:$0xf]
    %v5175 = vld [vmem:[%s18 + $0x34] sm:$0xf]
    %v5176 = vld [vmem:[%s18 + $0x38] sm:$0xf]
    %v5177 = vld [vmem:[%s18 + $0x3c] sm:$0xf]
    %v5178 = vld [vmem:[%s18 + $0x40] sm:$0xf]
    %v5179 = vld [vmem:[%s18 + $0x44] sm:$0xf]
    %v5180 = vld [vmem:[%s18 + $0x48] sm:$0xf]
    %v5181 = vld [vmem:[%s18 + $0x4c] sm:$0xf]
    %v5182 = vld [vmem:[%s18 + $0x50] sm:$0xf]
    %v5183 = vld [vmem:[%s18 + $0x54] sm:$0xf]
    %v5184 = vld [vmem:[%s18 + $0x58] sm:$0xf]
    %v5185 = vld [vmem:[%s18 + $0x5c] sm:$0xf]
    %v5186 = vld [vmem:[%s18 + $0x60] sm:$0xf]
    %v5187 = vld [vmem:[%s18 + $0x64] sm:$0xf]
    %v5188 = vld [vmem:[%s18 + $0x68] sm:$0xf]
    %v5189 = vld [vmem:[%s18 + $0x6c] sm:$0xf]
    %v5190 = vld [vmem:[%s18 + $0x70] sm:$0xf]
    %v5191 = vld [vmem:[%s18 + $0x74] sm:$0xf]
    %v5192 = vld [vmem:[%s18 + $0x78] sm:$0xf]
    %v5193 = vld [vmem:[%s18 + $0x7c] sm:$0xf]
    %v5194 = vld [vmem:[%s18 + $0x80] sm:$0xf]
    %v5195 = vld [vmem:[%s18 + $0x84] sm:$0xf]
    %v5196 = vld [vmem:[%s18 + $0x88] sm:$0xf]
    %v5197 = vld [vmem:[%s18 + $0x8c] sm:$0xf]
    %v5198 = vld [vmem:[%s18 + $0x90] sm:$0xf]
    %v5199 = vld [vmem:[%s18 + $0x94] sm:$0xf]
    %v5200 = vld [vmem:[%s18 + $0x98] sm:$0xf]
    %v5201 = vld [vmem:[%s18 + $0x9c] sm:$0xf]
    %v5202 = vld [vmem:[%s18 + $0xa0] sm:$0xf]
    %v5203 = vld [vmem:[%s18 + $0xa4] sm:$0xf]
    %v5204 = vld [vmem:[%s18 + $0xa8] sm:$0xf]
    %v5205 = vld [vmem:[%s18 + $0xac] sm:$0xf]
    %v5206 = vld [vmem:[%s18 + $0xb0] sm:$0xf]
    %v5207 = vld [vmem:[%s18 + $0xb4] sm:$0xf]
    %v5208 = vld [vmem:[%s18 + $0xb8] sm:$0xf]
    %v5209 = vld [vmem:[%s18 + $0xbc] sm:$0xf]
    %v5210 = vld [vmem:[%s18 + $0xc0] sm:$0xf]
    %v5211 = vld [vmem:[%s18 + $0xc4] sm:$0xf]
    %v5212 = vld [vmem:[%s18 + $0xc8] sm:$0xf]
    %v5213 = vld [vmem:[%s18 + $0xcc] sm:$0xf]
    %v5214 = vld [vmem:[%s18 + $0xd0] sm:$0xf]
    %v5215 = vld [vmem:[%s18 + $0xd4] sm:$0xf]
    %v5216 = vld [vmem:[%s18 + $0xd8] sm:$0xf]
    %v5217 = vld [vmem:[%s18 + $0xdc] sm:$0xf]
    %v5218 = vld [vmem:[%s18 + $0xe0] sm:$0xf]
    %v5219 = vld [vmem:[%s18 + $0xe4] sm:$0xf]
    %v5220 = vld [vmem:[%s18 + $0xe8] sm:$0xf]
    %v5221 = vld [vmem:[%s18 + $0xec] sm:$0xf]
    %v5222 = vld [vmem:[%s18 + $0xf0] sm:$0xf]
    %v5223 = vld [vmem:[%s18 + $0xf4] sm:$0xf]
    %v5224 = vld [vmem:[%s18 + $0xf8] sm:$0xf]
    %v5225 = vld [vmem:[%s18 + $0xfc] sm:$0xf]
    %v5226 = vld [vmem:[%s4 + $0x23] ss:$0 sm:$0xff]
    %v5291 = vunpack.c.l.b16 %v5162
    %v5292 = vunpack.c.l.b16 %v5163
    %v5293 = vunpack.c.l.b16 %v5164
    %v5294 = vunpack.c.l.b16 %v5165
    %v5295 = vunpack.c.l.b16 %v5166
    %v5296 = vunpack.c.l.b16 %v5167
    %v5297 = vunpack.c.l.b16 %v5168
    %v5298 = vunpack.c.l.b16 %v5169
    %v5299 = vunpack.c.l.b16 %v5170
    %v5300 = vunpack.c.l.b16 %v5171
    %v5301 = vunpack.c.l.b16 %v5172
    %v5302 = vunpack.c.l.b16 %v5173
    %v5303 = vunpack.c.l.b16 %v5174
    %v5304 = vunpack.c.l.b16 %v5175
    %v5305 = vunpack.c.l.b16 %v5176
    %v5306 = vunpack.c.l.b16 %v5177
    %v5307 = vunpack.c.l.b16 %v5178
    %v5308 = vunpack.c.l.b16 %v5179
    %v5309 = vunpack.c.l.b16 %v5180
    %v5310 = vunpack.c.l.b16 %v5181
    %v5311 = vunpack.c.l.b16 %v5182
    %v5312 = vunpack.c.l.b16 %v5183
    %v5313 = vunpack.c.l.b16 %v5184
    %v5314 = vunpack.c.l.b16 %v5185
    %v5315 = vunpack.c.l.b16 %v5186
    %v5316 = vunpack.c.l.b16 %v5187
    %v5317 = vunpack.c.l.b16 %v5188
    %v5318 = vunpack.c.l.b16 %v5189
    %v5319 = vunpack.c.l.b16 %v5190
    %v5320 = vunpack.c.l.b16 %v5191
    %v5321 = vunpack.c.l.b16 %v5192
    %v5322 = vunpack.c.l.b16 %v5193
    %v5323 = vunpack.c.l.b16 %v5194
    %v5324 = vunpack.c.l.b16 %v5195
    %v5325 = vunpack.c.l.b16 %v5196
    %v5326 = vunpack.c.l.b16 %v5197
    %v5327 = vunpack.c.l.b16 %v5198
    %v5328 = vunpack.c.l.b16 %v5199
    %v5329 = vunpack.c.l.b16 %v5200
    %v5330 = vunpack.c.l.b16 %v5201
    %v5331 = vunpack.c.l.b16 %v5202
    %v5332 = vunpack.c.l.b16 %v5203
    %v5333 = vunpack.c.l.b16 %v5204
    %v5334 = vunpack.c.l.b16 %v5205
    %v5335 = vunpack.c.l.b16 %v5206
    %v5336 = vunpack.c.l.b16 %v5207
    %v5337 = vunpack.c.l.b16 %v5208
    %v5338 = vunpack.c.l.b16 %v5209
    %v5339 = vunpack.c.l.b16 %v5210
    %v5340 = vunpack.c.l.b16 %v5211
    %v5341 = vunpack.c.l.b16 %v5212
    %v5342 = vunpack.c.l.b16 %v5213
    %v5343 = vunpack.c.l.b16 %v5214
    %v5344 = vunpack.c.l.b16 %v5215
    %v5345 = vunpack.c.l.b16 %v5216
    %v5346 = vunpack.c.l.b16 %v5217
    %v5347 = vunpack.c.l.b16 %v5218
    %v5348 = vunpack.c.l.b16 %v5219
    %v5349 = vunpack.c.l.b16 %v5220
    %v5350 = vunpack.c.l.b16 %v5221
    %v5351 = vunpack.c.l.b16 %v5222
    %v5352 = vunpack.c.l.b16 %v5223
    %v5353 = vunpack.c.l.b16 %v5224
    %v5354 = vunpack.c.l.b16 %v5225
    %v5355 = vpack.c.b16 %v5292, %v5291
    %v5356 = vpack.c.b16 %v5294, %v5293
    %v5357 = vpack.c.b16 %v5296, %v5295
    %v5358 = vpack.c.b16 %v5298, %v5297
    %v5359 = vpack.c.b16 %v5300, %v5299
    %v5360 = vpack.c.b16 %v5302, %v5301
    %v5361 = vpack.c.b16 %v5304, %v5303
    %v5362 = vpack.c.b16 %v5306, %v5305
    %v5363 = vpack.c.b16 %v5308, %v5307
    %v5364 = vpack.c.b16 %v5310, %v5309
    %v5365 = vpack.c.b16 %v5312, %v5311
    %v5366 = vpack.c.b16 %v5314, %v5313
    %v5367 = vpack.c.b16 %v5316, %v5315
    %v5368 = vpack.c.b16 %v5318, %v5317
    %v5369 = vpack.c.b16 %v5320, %v5319
    %v5370 = vpack.c.b16 %v5322, %v5321
    %v5371 = vpack.c.b16 %v5324, %v5323
    %v5372 = vpack.c.b16 %v5326, %v5325
    %v5373 = vpack.c.b16 %v5328, %v5327
    %v5374 = vpack.c.b16 %v5330, %v5329
    %v5375 = vpack.c.b16 %v5332, %v5331
    %v5376 = vpack.c.b16 %v5334, %v5333
    %v5377 = vpack.c.b16 %v5336, %v5335
    %v5378 = vpack.c.b16 %v5338, %v5337
    %v5379 = vpack.c.b16 %v5340, %v5339
    %v5380 = vpack.c.b16 %v5342, %v5341
    %v5381 = vpack.c.b16 %v5344, %v5343
    %v5382 = vpack.c.b16 %v5346, %v5345
    %v5383 = vpack.c.b16 %v5348, %v5347
    %v5384 = vpack.c.b16 %v5350, %v5349
    %v5385 = vpack.c.b16 %v5352, %v5351
    %v5386 = vpack.c.b16 %v5354, %v5353
    %5419 = vmatprep.subr.bf16.mxu0 0
    %5420 = vmatpush1.bf16.msra.mxu0 %v5355
    %5421 = vmatprep.subr.bf16.mxu0 0
    %5422 = vmatpush1.bf16.msra.mxu0 %v5356
    %5423 = vmatprep.subr.bf16.mxu0 0
    %5424 = vmatpush1.bf16.msra.mxu0 %v5357
    %5425 = vmatprep.subr.bf16.mxu0 0
    %5426 = vmatpush1.bf16.msra.mxu0 %v5358
    %5427 = vmatprep.subr.bf16.mxu0 0
    %5428 = vmatpush1.bf16.msra.mxu0 %v5359
    %5429 = vmatprep.subr.bf16.mxu0 0
    %5430 = vmatpush1.bf16.msra.mxu0 %v5360
    %5431 = vmatprep.subr.bf16.mxu0 0
    %5432 = vmatpush1.bf16.msra.mxu0 %v5361
    %5433 = vmatprep.subr.bf16.mxu0 0
    %5434 = vmatpush1.bf16.msra.mxu0 %v5362
    %5435 = vmatprep.subr.bf16.mxu0 0
    %5436 = vmatpush1.bf16.msra.mxu0 %v5363
    %5437 = vmatprep.subr.bf16.mxu0 0
    %5438 = vmatpush1.bf16.msra.mxu0 %v5364
    %5439 = vmatprep.subr.bf16.mxu0 0
    %5440 = vmatpush1.bf16.msra.mxu0 %v5365
    %5441 = vmatprep.subr.bf16.mxu0 0
    %5442 = vmatpush1.bf16.msra.mxu0 %v5366
    %5443 = vmatprep.subr.bf16.mxu0 0
    %5444 = vmatpush1.bf16.msra.mxu0 %v5367
    %5445 = vmatprep.subr.bf16.mxu0 0
    %5446 = vmatpush1.bf16.msra.mxu0 %v5368
    %5447 = vmatprep.subr.bf16.mxu0 0
    %5448 = vmatpush1.bf16.msra.mxu0 %v5369
    %5449 = vmatprep.subr.bf16.mxu0 0
    %5450 = vmatpush1.bf16.msra.mxu0 %v5370
    %5451 = vmatprep.mubr.bf16.mxu0 %v5159
    %5452 = vmatmul.mubr.bf16.gmra.mrb[0].mxu0 %v5158
    %v5453 = vpop.f32.mrb[0].mxu0
    %v5454 = vadd.f32 %v5226, %v5453
    %v5455 = vpop.f32.mrb[0].mxu0
    %v5456 = vpop.f32.mrb[0].mxu0
    %v5457 = vadd.f32 %v5226, %v5456
    %v5458 = vpop.f32.mrb[0].mxu0
    %5459 = vdwg.mxu0
    %5460 = vmatprep.subr.bf16.mxu0 0
    %5461 = vmatpush1.bf16.msra.mxu0 %v5371
    %5462 = vmatprep.subr.bf16.mxu0 0
    %5463 = vmatpush1.bf16.msra.mxu0 %v5372
    %5464 = vmatprep.subr.bf16.mxu0 0
    %5465 = vmatpush1.bf16.msra.mxu0 %v5373
    %5466 = vmatprep.subr.bf16.mxu0 0
    %5467 = vmatpush1.bf16.msra.mxu0 %v5374
    %5468 = vmatprep.subr.bf16.mxu0 0
    %5469 = vmatpush1.bf16.msra.mxu0 %v5375
    %5470 = vmatprep.subr.bf16.mxu0 0
    %5471 = vmatpush1.bf16.msra.mxu0 %v5376
    %5472 = vmatprep.subr.bf16.mxu0 0
    %5473 = vmatpush1.bf16.msra.mxu0 %v5377
    %5474 = vmatprep.subr.bf16.mxu0 0
    %5475 = vmatpush1.bf16.msra.mxu0 %v5378
    %5476 = vmatprep.subr.bf16.mxu0 0
    %5477 = vmatpush1.bf16.msra.mxu0 %v5379
    %5478 = vmatprep.subr.bf16.mxu0 0
    %5479 = vmatpush1.bf16.msra.mxu0 %v5380
    %5480 = vmatprep.subr.bf16.mxu0 0
    %5481 = vmatpush1.bf16.msra.mxu0 %v5381
    %5482 = vmatprep.subr.bf16.mxu0 0
    %5483 = vmatpush1.bf16.msra.mxu0 %v5382
    %5484 = vmatprep.subr.bf16.mxu0 0
    %5485 = vmatpush1.bf16.msra.mxu0 %v5383
    %5486 = vmatprep.subr.bf16.mxu0 0
    %5487 = vmatpush1.bf16.msra.mxu0 %v5384
    %5488 = vmatprep.subr.bf16.mxu0 0
    %5489 = vmatpush1.bf16.msra.mxu0 %v5385
    %5490 = vmatprep.subr.bf16.mxu0 0
    %5491 = vmatpush1.bf16.msra.mxu0 %v5386
    %5492 = vmatprep.mubr.bf16.mxu0 %v5161
    %5493 = vmatmul.mubr.bf16.gmra.mrb[0].mxu0 %v5160
    %v5494 = vpop.f32.mrb[0].mxu0
    %v5495 = vadd.f32 %v5454, %v5494
    %v5496 = vpop.f32.mrb[0].mxu0
    %v5497 = vpop.f32.mrb[0].mxu0
    %v5498 = vadd.f32 %v5457, %v5497
    %v5499 = vpop.f32.mrb[0].mxu0
    %5500 = vdwg.mxu0
    %v5502 = vrot.slane %v5495, 2
    %5503 = vrot.lane.b32.xlu0 %v5502, 16
    %v5504 = vpop.permute.xlu0 %5503
    %v5506 = vrot.slane %v5495, 4
    %5507 = vrot.lane.b32.xlu0 %v5506, 32
    %v5508 = vpop.permute.xlu0 %5507
    %v5510 = vrot.slane %v5495, 6
    %5511 = vrot.lane.b32.xlu0 %v5510, 48
    %v5512 = vpop.permute.xlu0 %5511
    %5515 = vrot.lane.b32.xlu0 %v5498, 64
    %v5516 = vpop.permute.xlu0 %5515
    %v5518 = vrot.slane %v5498, 2
    %5519 = vrot.lane.b32.xlu0 %v5518, 80
    %v5520 = vpop.permute.xlu0 %5519
    %v5522 = vrot.slane %v5498, 4
    %5523 = vrot.lane.b32.xlu0 %v5522, 96
    %v5524 = vpop.permute.xlu0 %5523
    %v5526 = vrot.slane %v5498, 6
    %5527 = vrot.lane.b32.xlu0 %v5526, 112
    %v5528 = vpop.permute.xlu0 %5527
    %vm5530 = vcmask 130048
    %v5531 = vsel %vm5530, %v5495, %v5504
    %v5532 = vsel %vm3213, %v5531, %v5508
    %vm5533 = vcmask 392192
    %v5534 = vsel %vm5533, %v5532, %v5512
    %vm5535 = vcmask 523264
    %v5536 = vsel %vm5535, %v5534, %v5516
    %vm5537 = vcmask 654336
    %v5538 = vsel %vm5537, %v5536, %v5520
    %vm5539 = vcmask 785408
    %v5540 = vsel %vm5539, %v5538, %v5524
    %vm5541 = vcmask 916480
    %v5542 = vsel %vm5541, %v5540, %v5528
    %5543 = vst [vmem:[#allocation5] sm:$0x3] %v5542
    // Predicated region
    $region152: #{advanced_vae_forward.1} parent=1 // pred_check
      _
    $region153: #{advanced_vae_forward.1} parent=1 // pred_check_branch
      %5545 = sbr.rel (0) target = $region155
    $region154: #{advanced_vae_forward.1} parent=1 // pred_region
      %s5547 = ssub.s32 32, 32
      %5548 = vsyncadd [#allocation6], %s5547
      %s5550 = sshll.u32 [#allocation5], 4
      %s5551 = int_to_ptr.vmem [resolvable:$true] %s5550
      %5553 = dma.vmem_to_hbm [thread:$0]  %s5551, 32, %s21, [#allocation6]
    $region155: #{advanced_vae_forward.1} parent=1 // pred_fallthru
      _
    // Predicated region
    $region156: #{advanced_vae_forward.1} parent=1 // pred_check
      _
    $region157: #{advanced_vae_forward.1} parent=1 // pred_check_branch
      %5555 = sbr.rel (0) target = $region159
    $region158: #{advanced_vae_forward.1} parent=1 // pred_region
      _
    $region159: #{advanced_vae_forward.1} parent=1 // pred_fallthru
      _
    // Predicated region
    $region160: #{advanced_vae_forward.1} parent=1 // pred_check
      _
    $region161: #{advanced_vae_forward.1} parent=1 // pred_check_branch
      %5557 = sbr.rel (0) target = $region163
    $region162: #{advanced_vae_forward.1} parent=1 // pred_region
      _
    $region163: #{advanced_vae_forward.1} parent=1 // pred_fallthru
      _
    // Predicated region
    $region164: #{advanced_vae_forward.1} parent=1 // pred_check
      _
    $region165: #{advanced_vae_forward.1} parent=1 // pred_check_branch
      %5559 = sbr.rel (0) target = $region167
    $region166: #{advanced_vae_forward.1} parent=1 // pred_region
      %5560 = dma.done [#allocation6], 32
    $region167: #{advanced_vae_forward.1} parent=1 // pred_fallthru
      _
    // Predicated region
    $region168: #{advanced_vae_forward.1} parent=1 // pred_check
      _
    $region169: #{advanced_vae_forward.1} parent=1 // pred_check_branch
      %5562 = sbr.rel (0) target = $region171
    $region170: #{advanced_vae_forward.1} parent=1 // pred_region
      _
    $region171: #{advanced_vae_forward.1} parent=1 // pred_fallthru
      _
    // Predicated region
    $region172: #{advanced_vae_forward.1} parent=1 // pred_check
      _
    $region173: #{advanced_vae_forward.1} parent=1 // pred_check_branch
      %5564 = sbr.rel (0) target = $region175
    $region174: #{advanced_vae_forward.1} parent=1 // pred_region
      _
    $region175: #{advanced_vae_forward.1} parent=1 // pred_fallthru
      _
    %5565 = vsyncpa [#allocation6], 1
  %5566 = vsyncmov [#allocation4]
  %s5567 = vpop.sfrf %5566
  %p5568 = scmp.eq.s32.totalorder %s5567, 0
  %p5569 = pneg %p5568
  %5571 = shalt.err (%p5569)
  %s5572 = scalar_lea.sflag [#allocation4], 1
  %5573 = vsyncmov %s5572
  %s5574 = vpop.sfrf %5573
  %p5575 = scmp.eq.s32.totalorder %s5574, 0
  %p5576 = pneg %p5575
  %5578 = shalt.err (%p5576)

</llo_original>
